<compile_context>
chip_gen: v5e
topology: v5e:2x2
jax: 0.10.0
libtpu: 0.0.40
codegen_flags: <defaults>
</compile_context>

<pallas_src>
import functools

import jax
import jax.numpy as jnp
import numpy as np
from jax import lax
from jax.experimental import pallas as pl
from jax.experimental.pallas import tpu as pltpu

# ----------------------------- configuration -------------------------------
EMBEDDING_SIZE = 256
HIDDEN_SIZE = 128
VOCAB_SIZE = 384
NUM_LAYERS = 2          # kernel below is written for exactly 2 layers
BATCH = 4
CAP_LEN = 13            # caption tokens; total seq = CAP_LEN + 1 (features)
LENS = [14] * BATCH     # as in the reference script: lens = [14] * 4


# ------------------------------ Pallas kernel ------------------------------
def lstm_forward_pallas(x_flat, kparams, *, T, Bp, H, V):
    """x_flat: (T*Bp, E) time-major, batch padded to Bp (multiple of 8).

    Returns logits (T*Bp, V) float32.
    """
    del V  # implied by wlin/out shapes

    def kernel(x_ref, wih0_ref, wfused_ref, whh1_ref, b0_ref, b1_ref,
               wlin_ref, blin_ref, out_ref, xproj_ref, h1all_ref):
        # --- prologue: hoisted layer-0 input projection (one big-M matmul) ---
        xproj_ref[...] = (
            jnp.dot(x_ref[...], wih0_ref[...],
                    preferred_element_type=jnp.float32)
            + b0_ref[...])

        # Hoisted bias broadcast: with unroll=True an in-loop broadcast would
        # be materialized T times (JAX does not CSE broadcast_in_dim).
        b1b = jnp.broadcast_to(b1_ref[...], (Bp, 4 * H))

        def act(gates, c_prev):
            # PyTorch gate order: i, f, g, o.  i and f are adjacent -> one
            # sigmoid over the contiguous [:, :2H] slice.
            if_g = jax.nn.sigmoid(gates[:, :2 * H])
            g_g = jnp.tanh(gates[:, 2 * H:3 * H])
            o_g = jax.nn.sigmoid(gates[:, 3 * H:4 * H])
            c_new = if_g[:, H:2 * H] * c_prev + if_g[:, :H] * g_g
            h_new = o_g * jnp.tanh(c_new)
            return h_new, c_new

        def body(t, carry):
            h0, c0, h1, c1, g0rec = carry
            off = pl.multiple_of(t * Bp, Bp)

            # Off the critical path: layer-1 recurrent partial uses the
            # PREVIOUS step's h1 (carry), so it overlaps with layer-0 work.
            pre1 = (jnp.dot(h1, whh1_ref[...],
                            preferred_element_type=jnp.float32)
                    + b1b)

            # Layer 0: its recurrent matmul contribution was produced by the
            # previous step's fused MXU push (g0rec carry) -> no dot here.
            gates0 = xproj_ref[pl.ds(off, Bp), :] + g0rec
            h0n, c0n = act(gates0, c0)

            # The single serially-dependent MXU push of this step:
            #   cols [:4H]  = h0n @ Whh0^T  -> gates0 recurrent part, step t+1
            #   cols [4H:]  = h0n @ Wih1^T  -> input part of gates1, step t
            fused = jnp.dot(h0n, wfused_ref[...],
                            preferred_element_type=jnp.float32)

            gates1 = pre1 + fused[:, 4 * H:]
            h1n, c1n = act(gates1, c1)
            h1all_ref[pl.ds(off, Bp), :] = h1n
            return (h0n, c0n, h1n, c1n, fused[:, :4 * H])

        z = jnp.zeros((Bp, H), jnp.float32)
        zg = jnp.zeros((Bp, 4 * H), jnp.float32)   # h0_{-1} = 0 -> g0rec = 0
        lax.fori_loop(0, T, body, (z, z, z, z, zg), unroll=True)

        # --- epilogue: deferred vocab projection (one big-M, lane-dense) ---
        out_ref[...] = (
            jnp.dot(h1all_ref[...], wlin_ref[...],
                    preferred_element_type=jnp.float32)
            + blin_ref[...])

    vmem_spec = functools.partial(
        pl.BlockSpec, memory_space=pltpu.MemorySpace.VMEM)

    return pl.pallas_call(
        kernel,
        out_shape=jax.ShapeDtypeStruct((T * Bp, VOCAB_SIZE), jnp.float32),
        in_specs=[vmem_spec() for _ in range(8)],
        out_specs=vmem_spec(),
        scratch_shapes=[
            pltpu.VMEM((T * Bp, 4 * H), jnp.float32),   # hoisted x projection
            pltpu.VMEM((T * Bp, H), jnp.float32),       # per-step h1 buffer
        ],
    )(x_flat,
      kparams["wih0"], kparams["wfused"], kparams["whh1"],
      kparams["b0"], kparams["b1"],
      kparams["wlin"], kparams["blin"])


# ------------------------------ model wrapper ------------------------------
def lstm_model_forward(params, input_features, capts, lens):
    """Mirrors LSTMModel.forward: returns (sum(lens), vocab) logits."""
    # Embedding lookup (glue).
    emb = jnp.take(params["embedding"], capts, axis=0)              # (B, Tc, E)
    embeddings = jnp.concatenate(
        [input_features[:, None, :], emb], axis=1)                  # (B, T, E)
    B, T, E = embeddings.shape
    H, V = HIDDEN_SIZE, VOCAB_SIZE

    # Pad the batch/sublane dimension to a multiple of 8 so vregs are full.
    Bp = ((B + 7) // 8) * 8

    x_tbe = jnp.transpose(embeddings, (1, 0, 2))                    # (T, B, E)
    x_pad = jnp.zeros((T, Bp, E), jnp.float32).at[:, :B, :].set(x_tbe)
    x_flat = x_pad.reshape(T * Bp, E)

    # Kernel-ready parameters:
    #   * wih0:   layer-0 input weight (E, 4H), used once in the prologue.
    #   * wfused: column-fusion of [Whh0^T | Wih1^T] -> (H, 8H), so each step
    #     has exactly one serially-dependent matmul.
    #   * whh1:   layer-1 recurrent weight (H, 4H), issued off-critical-path.
    kparams = {
        "wih0": params["w_ih_l0"].T,                                # (E, 4H)
        "wfused": jnp.concatenate(
            [params["w_hh_l0"].T, params["w_ih_l1"].T], axis=1),    # (H, 8H)
        "whh1": params["w_hh_l1"].T,                                # (H, 4H)
        "b0": (params["b_ih_l0"] + params["b_hh_l0"])[None, :],     # (1, 4H)
        "b1": (params["b_ih_l1"] + params["b_hh_l1"])[None, :],     # (1, 4H)
        "wlin": params["w_lin"].T,                                  # (H, V)
        "blin": params["b_lin"][None, :],                           # (1, V)
    }

    logits_flat = lstm_forward_pallas(x_flat, kparams,
                                      T=T, Bp=Bp, H=H, V=V)         # (T*Bp, V)

    # pack_padded_sequence ordering (batch_first): for each t, sequences with
    # lens[b] > t, in (descending-length) batch order.  lens are equal here,
    # so this is a time-major flatten over valid rows; built statically.
    packed_idx = [t * Bp + b for t in range(T) for b in range(B) if lens[b] > t]
    return logits_flat[jnp.asarray(packed_idx, dtype=jnp.int32)]


# ---------------------------- pure-JAX reference ---------------------------
def _ref_forward(params, input_features, capts, lens):
    emb = jnp.take(params["embedding"], capts, axis=0)
    embeddings = jnp.concatenate([input_features[:, None, :], emb], axis=1)
    B, T, _ = embeddings.shape
    H = HIDDEN_SIZE
    x_tbe = jnp.transpose(embeddings, (1, 0, 2))

    def cell(x_in, h, c, wih, whh, b_ih, b_hh):
        gates = x_in @ wih.T + h @ whh.T + b_ih + b_hh
        i_g = jax.nn.sigmoid(gates[:, 0 * H:1 * H])
        f_g = jax.nn.sigmoid(gates[:, 1 * H:2 * H])
        g_g = jnp.tanh(gates[:, 2 * H:3 * H])
        o_g = jax.nn.sigmoid(gates[:, 3 * H:4 * H])
        c_new = f_g * c + i_g * g_g
        h_new = o_g * jnp.tanh(c_new)
        return h_new, c_new

    def step(carry, x_t):
        h0, c0, h1, c1 = carry
        h0, c0 = cell(x_t, h0, c0, params["w_ih_l0"], params["w_hh_l0"],
                      params["b_ih_l0"], params["b_hh_l0"])
        h1, c1 = cell(h0, h1, c1, params["w_ih_l1"], params["w_hh_l1"],
                      params["b_ih_l1"], params["b_hh_l1"])
        out = h1 @ params["w_lin"].T + params["b_lin"]
        return (h0, c0, h1, c1), out

    z = jnp.zeros((B, H), jnp.float32)
    _, outs = lax.scan(step, (z, z, z, z), x_tbe)
    packed_idx = [t * B + b for t in range(T) for b in range(B) if lens[b] > t]
    return outs.reshape(T * B, VOCAB_SIZE)[jnp.asarray(packed_idx, jnp.int32)]


# --------------------------------- params ----------------------------------
def init_params(key):
    E, H, V = EMBEDDING_SIZE, HIDDEN_SIZE, VOCAB_SIZE
    ks = jax.random.split(key, 12)
    s = 0.05
    p = {
        "embedding": s * jax.random.normal(ks[0], (V, E), jnp.float32),
        "w_ih_l0": s * jax.random.normal(ks[1], (4 * H, E), jnp.float32),
        "w_hh_l0": s * jax.random.normal(ks[2], (4 * H, H), jnp.float32),
        "b_ih_l0": s * jax.random.normal(ks[3], (4 * H,), jnp.float32),
        "b_hh_l0": s * jax.random.normal(ks[4], (4 * H,), jnp.float32),
        "w_ih_l1": s * jax.random.normal(ks[5], (4 * H, H), jnp.float32),
        "w_hh_l1": s * jax.random.normal(ks[6], (4 * H, H), jnp.float32),
        "b_ih_l1": s * jax.random.normal(ks[7], (4 * H,), jnp.float32),
        "b_hh_l1": s * jax.random.normal(ks[8], (4 * H,), jnp.float32),
        "w_lin": s * jax.random.normal(ks[9], (V, H), jnp.float32),
        "b_lin": s * jax.random.normal(ks[10], (V,), jnp.float32),
    }
    return p


# ----------------------------------- main -----------------------------------
if __name__ == "__main__":
    key = jax.random.PRNGKey(0)
    kp, kf, kc = jax.random.split(key, 3)

    params = init_params(kp)
    input_features = jax.random.normal(kf, (BATCH, EMBEDDING_SIZE), jnp.float32)
    capts = jax.random.randint(kc, (BATCH, CAP_LEN), 0, VOCAB_SIZE,
                               dtype=jnp.int32)

    fwd = jax.jit(functools.partial(lstm_model_forward, lens=LENS))
    out = fwd(params, input_features, capts)
    out = jax.block_until_ready(out)

    assert out.shape == (sum(LENS), VOCAB_SIZE), out.shape

    ref = jax.block_until_ready(_ref_forward(params, input_features, capts, LENS))
    np.testing.assert_allclose(np.asarray(out), np.asarray(ref),
                               rtol=1e-4, atol=1e-4)

    # TODO(synk): LSTMModel.sample (greedy decoding loop) not implemented;
    # only forward() is required here.
    # TODO(synk): bf16 prologue/epilogue matmuls (v6e/v7x bonus) skipped to
    # keep the rtol/atol=1e-4 f32 verification; the serial loop dominates.
    print("KERNEL_OK")
</pallas_src>

<mosaic_0001>
module attributes {stable_mosaic.version = 11 : i64} {
  func.func @kernel(%arg0: memref<112x256xf32, #tpu.memory_space<vmem>>, %arg1: memref<256x512xf32, #tpu.memory_space<vmem>>, %arg2: memref<128x1024xf32, #tpu.memory_space<vmem>>, %arg3: memref<128x512xf32, #tpu.memory_space<vmem>>, %arg4: memref<1x512xf32, #tpu.memory_space<vmem>>, %arg5: memref<1x512xf32, #tpu.memory_space<vmem>>, %arg6: memref<128x384xf32, #tpu.memory_space<vmem>>, %arg7: memref<1x384xf32, #tpu.memory_space<vmem>>, %arg8: memref<112x384xf32, #tpu.memory_space<vmem>>, %arg9: memref<112x512xf32, #tpu.memory_space<vmem>>, %arg10: memref<112x128xf32, #tpu.memory_space<vmem>>) attributes {dimension_semantics = [], scalar_prefetch = 0 : i64, scratch_operands = 2 : i64, tpu.core_type = #tpu.core_type<tc>} {
    %c0 = arith.constant 0 : index
    %c0_0 = arith.constant 0 : index
    %0 = vector.load %arg0[%c0, %c0_0] : memref<112x256xf32, #tpu.memory_space<vmem>>, vector<112x256xf32>
    %c0_1 = arith.constant 0 : index
    %c0_2 = arith.constant 0 : index
    %1 = vector.load %arg1[%c0_1, %c0_2] : memref<256x512xf32, #tpu.memory_space<vmem>>, vector<256x512xf32>
    %cst = arith.constant dense<0.000000e+00> : vector<112x512xf32>
    %2 = tpu.matmul %0, %1, %cst {dimension_numbers = #tpu.dot_dimension_numbers<[1], [0], [0], [1], [0, 0, 1, 1], [], []>} : vector<112x256xf32>, vector<256x512xf32>, vector<112x512xf32> -> vector<112x512xf32>
    %c0_3 = arith.constant 0 : index
    %c0_4 = arith.constant 0 : index
    %3 = vector.load %arg4[%c0_3, %c0_4] : memref<1x512xf32, #tpu.memory_space<vmem>>, vector<1x512xf32>
    %4 = vector.broadcast %3 : vector<1x512xf32> to vector<112x512xf32>
    %5 = arith.addf %2, %4 : vector<112x512xf32>
    %c0_5 = arith.constant 0 : index
    %c0_6 = arith.constant 0 : index
    %6 = vector.load %arg9[%c0_5, %c0_6] : memref<112x512xf32, #tpu.memory_space<vmem>>, vector<112x512xf32>
    tpu.vector_store %arg9[%c0_5, %c0_6], %5 {strides = array<i32>} : memref<112x512xf32, #tpu.memory_space<vmem>>, vector<112x512xf32>,
    %c0_7 = arith.constant 0 : index
    %c0_8 = arith.constant 0 : index
    %7 = vector.load %arg5[%c0_7, %c0_8] : memref<1x512xf32, #tpu.memory_space<vmem>>, vector<1x512xf32>
    %8 = vector.shape_cast %7 : vector<1x512xf32> to vector<1x512xf32>
    %9 = vector.broadcast %8 : vector<1x512xf32> to vector<8x512xf32>
    %cst_9 = arith.constant 0.000000e+00 : f32
    %10 = vector.broadcast %cst_9 : f32 to vector<8x128xf32>
    %cst_10 = arith.constant 0.000000e+00 : f32
    %11 = vector.broadcast %cst_10 : f32 to vector<8x512xf32>
    %c0_i32 = arith.constant 0 : i32
    %c8_i32 = arith.constant 8 : i32
    %12 = arith.muli %c0_i32, %c8_i32 : i32
    %13 = tpu.assume_multiple %12, 8 : i32
    %c0_11 = arith.constant 0 : index
    %c0_12 = arith.constant 0 : index
    %14 = vector.load %arg3[%c0_11, %c0_12] : memref<128x512xf32, #tpu.memory_space<vmem>>, vector<128x512xf32>
    %cst_13 = arith.constant dense<0.000000e+00> : vector<8x512xf32>
    %15 = tpu.matmul %10, %14, %cst_13 {dimension_numbers = #tpu.dot_dimension_numbers<[1], [0], [0], [1], [0, 0, 1, 1], [], []>} : vector<8x128xf32>, vector<128x512xf32>, vector<8x512xf32> -> vector<8x512xf32>
    %16 = arith.addf %15, %9 : vector<8x512xf32>
    %17 = arith.index_cast %13 : i32 to index
    %c0_14 = arith.constant 0 : index
    %18 = vector.load %arg9[%17, %c0_14] : memref<112x512xf32, #tpu.memory_space<vmem>>, vector<8x512xf32>
    %19 = arith.addf %18, %11 : vector<8x512xf32>
    %20 = vector.extract_strided_slice %19 {offsets = [0, 0], sizes = [8, 256], strides = [1, 1]} : vector<8x512xf32> to vector<8x256xf32>
    %21 = arith.negf %20 : vector<8x256xf32>
    %22 = math.exp %21 : vector<8x256xf32>
    %cst_15 = arith.constant 1.000000e+00 : f32
    %23 = vector.broadcast %cst_15 : f32 to vector<8x256xf32>
    %24 = arith.addf %23, %22 : vector<8x256xf32>
    %25 = arith.divf %23, %24 : vector<8x256xf32>
    %26 = vector.extract_strided_slice %19 {offsets = [0, 256], sizes = [8, 128], strides = [1, 1]} : vector<8x512xf32> to vector<8x128xf32>
    %27 = math.tanh %26 : vector<8x128xf32>
    %28 = vector.extract_strided_slice %19 {offsets = [0, 384], sizes = [8, 128], strides = [1, 1]} : vector<8x512xf32> to vector<8x128xf32>
    %29 = arith.negf %28 : vector<8x128xf32>
    %30 = math.exp %29 : vector<8x128xf32>
    %cst_16 = arith.constant 1.000000e+00 : f32
    %31 = vector.broadcast %cst_16 : f32 to vector<8x128xf32>
    %32 = arith.addf %31, %30 : vector<8x128xf32>
    %33 = arith.divf %31, %32 : vector<8x128xf32>
    %34 = vector.extract_strided_slice %25 {offsets = [0, 128], sizes = [8, 128], strides = [1, 1]} : vector<8x256xf32> to vector<8x128xf32>
    %35 = arith.mulf %34, %10 : vector<8x128xf32>
    %36 = vector.extract_strided_slice %25 {offsets = [0, 0], sizes = [8, 128], strides = [1, 1]} : vector<8x256xf32> to vector<8x128xf32>
    %37 = arith.mulf %36, %27 : vector<8x128xf32>
    %38 = arith.addf %35, %37 : vector<8x128xf32>
    %39 = math.tanh %38 : vector<8x128xf32>
    %40 = arith.mulf %33, %39 : vector<8x128xf32>
    %c0_17 = arith.constant 0 : index
    %c0_18 = arith.constant 0 : index
    %41 = vector.load %arg2[%c0_17, %c0_18] : memref<128x1024xf32, #tpu.memory_space<vmem>>, vector<128x1024xf32>
    %cst_19 = arith.constant dense<0.000000e+00> : vector<8x1024xf32>
    %42 = tpu.matmul %40, %41, %cst_19 {dimension_numbers = #tpu.dot_dimension_numbers<[1], [0], [0], [1], [0, 0, 1, 1], [], []>} : vector<8x128xf32>, vector<128x1024xf32>, vector<8x1024xf32> -> vector<8x1024xf32>
    %43 = vector.extract_strided_slice %42 {offsets = [0, 512], sizes = [8, 512], strides = [1, 1]} : vector<8x1024xf32> to vector<8x512xf32>
    %44 = arith.addf %16, %43 : vector<8x512xf32>
    %45 = vector.extract_strided_slice %44 {offsets = [0, 0], sizes = [8, 256], strides = [1, 1]} : vector<8x512xf32> to vector<8x256xf32>
    %46 = arith.negf %45 : vector<8x256xf32>
    %47 = math.exp %46 : vector<8x256xf32>
    %cst_20 = arith.constant 1.000000e+00 : f32
    %48 = vector.broadcast %cst_20 : f32 to vector<8x256xf32>
    %49 = arith.addf %48, %47 : vector<8x256xf32>
    %50 = arith.divf %48, %49 : vector<8x256xf32>
    %51 = vector.extract_strided_slice %44 {offsets = [0, 256], sizes = [8, 128], strides = [1, 1]} : vector<8x512xf32> to vector<8x128xf32>
    %52 = math.tanh %51 : vector<8x128xf32>
    %53 = vector.extract_strided_slice %44 {offsets = [0, 384], sizes = [8, 128], strides = [1, 1]} : vector<8x512xf32> to vector<8x128xf32>
    %54 = arith.negf %53 : vector<8x128xf32>
    %55 = math.exp %54 : vector<8x128xf32>
    %cst_21 = arith.constant 1.000000e+00 : f32
    %56 = vector.broadcast %cst_21 : f32 to vector<8x128xf32>
    %57 = arith.addf %56, %55 : vector<8x128xf32>
    %58 = arith.divf %56, %57 : vector<8x128xf32>
    %59 = vector.extract_strided_slice %50 {offsets = [0, 128], sizes = [8, 128], strides = [1, 1]} : vector<8x256xf32> to vector<8x128xf32>
    %60 = arith.mulf %59, %10 : vector<8x128xf32>
    %61 = vector.extract_strided_slice %50 {offsets = [0, 0], sizes = [8, 128], strides = [1, 1]} : vector<8x256xf32> to vector<8x128xf32>
    %62 = arith.mulf %61, %52 : vector<8x128xf32>
    %63 = arith.addf %60, %62 : vector<8x128xf32>
    %64 = math.tanh %63 : vector<8x128xf32>
    %65 = arith.mulf %58, %64 : vector<8x128xf32>
    %66 = arith.index_cast %13 : i32 to index
    %c0_22 = arith.constant 0 : index
    %67 = vector.load %arg10[%66, %c0_22] : memref<112x128xf32, #tpu.memory_space<vmem>>, vector<8x128xf32>
    tpu.vector_store %arg10[%66, %c0_22], %65 {strides = array<i32>} : memref<112x128xf32, #tpu.memory_space<vmem>>, vector<8x128xf32>,
    %68 = vector.extract_strided_slice %42 {offsets = [0, 0], sizes = [8, 512], strides = [1, 1]} : vector<8x1024xf32> to vector<8x512xf32>
    %c1_i32 = arith.constant 1 : i32
    %c8_i32_23 = arith.constant 8 : i32
    %69 = arith.muli %c1_i32, %c8_i32_23 : i32
    %70 = tpu.assume_multiple %69, 8 : i32
    %c0_24 = arith.constant 0 : index
    %c0_25 = arith.constant 0 : index
    %71 = vector.load %arg3[%c0_24, %c0_25] : memref<128x512xf32, #tpu.memory_space<vmem>>, vector<128x512xf32>
    %cst_26 = arith.constant dense<0.000000e+00> : vector<8x512xf32>
    %72 = tpu.matmul %65, %71, %cst_26 {dimension_numbers = #tpu.dot_dimension_numbers<[1], [0], [0], [1], [0, 0, 1, 1], [], []>} : vector<8x128xf32>, vector<128x512xf32>, vector<8x512xf32> -> vector<8x512xf32>
    %73 = arith.addf %72, %9 : vector<8x512xf32>
    %74 = arith.index_cast %70 : i32 to index
    %c0_27 = arith.constant 0 : index
    %75 = vector.load %arg9[%74, %c0_27] : memref<112x512xf32, #tpu.memory_space<vmem>>, vector<8x512xf32>
    %76 = arith.addf %75, %68 : vector<8x512xf32>
    %77 = vector.extract_strided_slice %76 {offsets = [0, 0], sizes = [8, 256], strides = [1, 1]} : vector<8x512xf32> to vector<8x256xf32>
    %78 = arith.negf %77 : vector<8x256xf32>
    %79 = math.exp %78 : vector<8x256xf32>
    %cst_28 = arith.constant 1.000000e+00 : f32
    %80 = vector.broadcast %cst_28 : f32 to vector<8x256xf32>
    %81 = arith.addf %80, %79 : vector<8x256xf32>
    %82 = arith.divf %80, %81 : vector<8x256xf32>
    %83 = vector.extract_strided_slice %76 {offsets = [0, 256], sizes = [8, 128], strides = [1, 1]} : vector<8x512xf32> to vector<8x128xf32>
    %84 = math.tanh %83 : vector<8x128xf32>
    %85 = vector.extract_strided_slice %76 {offsets = [0, 384], sizes = [8, 128], strides = [1, 1]} : vector<8x512xf32> to vector<8x128xf32>
    %86 = arith.negf %85 : vector<8x128xf32>
    %87 = math.exp %86 : vector<8x128xf32>
    %cst_29 = arith.constant 1.000000e+00 : f32
    %88 = vector.broadcast %cst_29 : f32 to vector<8x128xf32>
    %89 = arith.addf %88, %87 : vector<8x128xf32>
    %90 = arith.divf %88, %89 : vector<8x128xf32>
    %91 = vector.extract_strided_slice %82 {offsets = [0, 128], sizes = [8, 128], strides = [1, 1]} : vector<8x256xf32> to vector<8x128xf32>
    %92 = arith.mulf %91, %38 : vector<8x128xf32>
    %93 = vector.extract_strided_slice %82 {offsets = [0, 0], sizes = [8, 128], strides = [1, 1]} : vector<8x256xf32> to vector<8x128xf32>
    %94 = arith.mulf %93, %84 : vector<8x128xf32>
    %95 = arith.addf %92, %94 : vector<8x128xf32>
    %96 = math.tanh %95 : vector<8x128xf32>
    %97 = arith.mulf %90, %96 : vector<8x128xf32>
    %c0_30 = arith.constant 0 : index
    %c0_31 = arith.constant 0 : index
    %98 = vector.load %arg2[%c0_30, %c0_31] : memref<128x1024xf32, #tpu.memory_space<vmem>>, vector<128x1024xf32>
    %cst_32 = arith.constant dense<0.000000e+00> : vector<8x1024xf32>
    %99 = tpu.matmul %97, %98, %cst_32 {dimension_numbers = #tpu.dot_dimension_numbers<[1], [0], [0], [1], [0, 0, 1, 1], [], []>} : vector<8x128xf32>, vector<128x1024xf32>, vector<8x1024xf32> -> vector<8x1024xf32>
    %100 = vector.extract_strided_slice %99 {offsets = [0, 512], sizes = [8, 512], strides = [1, 1]} : vector<8x1024xf32> to vector<8x512xf32>
    %101 = arith.addf %73, %100 : vector<8x512xf32>
    %102 = vector.extract_strided_slice %101 {offsets = [0, 0], sizes = [8, 256], strides = [1, 1]} : vector<8x512xf32> to vector<8x256xf32>
    %103 = arith.negf %102 : vector<8x256xf32>
    %104 = math.exp %103 : vector<8x256xf32>
    %cst_33 = arith.constant 1.000000e+00 : f32
    %105 = vector.broadcast %cst_33 : f32 to vector<8x256xf32>
    %106 = arith.addf %105, %104 : vector<8x256xf32>
    %107 = arith.divf %105, %106 : vector<8x256xf32>
    %108 = vector.extract_strided_slice %101 {offsets = [0, 256], sizes = [8, 128], strides = [1, 1]} : vector<8x512xf32> to vector<8x128xf32>
    %109 = math.tanh %108 : vector<8x128xf32>
    %110 = vector.extract_strided_slice %101 {offsets = [0, 384], sizes = [8, 128], strides = [1, 1]} : vector<8x512xf32> to vector<8x128xf32>
    %111 = arith.negf %110 : vector<8x128xf32>
    %112 = math.exp %111 : vector<8x128xf32>
    %cst_34 = arith.constant 1.000000e+00 : f32
    %113 = vector.broadcast %cst_34 : f32 to vector<8x128xf32>
    %114 = arith.addf %113, %112 : vector<8x128xf32>
    %115 = arith.divf %113, %114 : vector<8x128xf32>
    %116 = vector.extract_strided_slice %107 {offsets = [0, 128], sizes = [8, 128], strides = [1, 1]} : vector<8x256xf32> to vector<8x128xf32>
    %117 = arith.mulf %116, %63 : vector<8x128xf32>
    %118 = vector.extract_strided_slice %107 {offsets = [0, 0], sizes = [8, 128], strides = [1, 1]} : vector<8x256xf32> to vector<8x128xf32>
    %119 = arith.mulf %118, %109 : vector<8x128xf32>
    %120 = arith.addf %117, %119 : vector<8x128xf32>
    %121 = math.tanh %120 : vector<8x128xf32>
    %122 = arith.mulf %115, %121 : vector<8x128xf32>
    %123 = arith.index_cast %70 : i32 to index
    %c0_35 = arith.constant 0 : index
    %124 = vector.load %arg10[%123, %c0_35] : memref<112x128xf32, #tpu.memory_space<vmem>>, vector<8x128xf32>
    tpu.vector_store %arg10[%123, %c0_35], %122 {strides = array<i32>} : memref<112x128xf32, #tpu.memory_space<vmem>>, vector<8x128xf32>,
    %125 = vector.extract_strided_slice %99 {offsets = [0, 0], sizes = [8, 512], strides = [1, 1]} : vector<8x1024xf32> to vector<8x512xf32>
    %c2_i32 = arith.constant 2 : i32
    %c8_i32_36 = arith.constant 8 : i32
    %126 = arith.muli %c2_i32, %c8_i32_36 : i32
    %127 = tpu.assume_multiple %126, 8 : i32
    %c0_37 = arith.constant 0 : index
    %c0_38 = arith.constant 0 : index
    %128 = vector.load %arg3[%c0_37, %c0_38] : memref<128x512xf32, #tpu.memory_space<vmem>>, vector<128x512xf32>
    %cst_39 = arith.constant dense<0.000000e+00> : vector<8x512xf32>
    %129 = tpu.matmul %122, %128, %cst_39 {dimension_numbers = #tpu.dot_dimension_numbers<[1], [0], [0], [1], [0, 0, 1, 1], [], []>} : vector<8x128xf32>, vector<128x512xf32>, vector<8x512xf32> -> vector<8x512xf32>
    %130 = arith.addf %129, %9 : vector<8x512xf32>
    %131 = arith.index_cast %127 : i32 to index
    %c0_40 = arith.constant 0 : index
    %132 = vector.load %arg9[%131, %c0_40] : memref<112x512xf32, #tpu.memory_space<vmem>>, vector<8x512xf32>
    %133 = arith.addf %132, %125 : vector<8x512xf32>
    %134 = vector.extract_strided_slice %133 {offsets = [0, 0], sizes = [8, 256], strides = [1, 1]} : vector<8x512xf32> to vector<8x256xf32>
    %135 = arith.negf %134 : vector<8x256xf32>
    %136 = math.exp %135 : vector<8x256xf32>
    %cst_41 = arith.constant 1.000000e+00 : f32
    %137 = vector.broadcast %cst_41 : f32 to vector<8x256xf32>
    %138 = arith.addf %137, %136 : vector<8x256xf32>
    %139 = arith.divf %137, %138 : vector<8x256xf32>
    %140 = vector.extract_strided_slice %133 {offsets = [0, 256], sizes = [8, 128], strides = [1, 1]} : vector<8x512xf32> to vector<8x128xf32>
    %141 = math.tanh %140 : vector<8x128xf32>
    %142 = vector.extract_strided_slice %133 {offsets = [0, 384], sizes = [8, 128], strides = [1, 1]} : vector<8x512xf32> to vector<8x128xf32>
    %143 = arith.negf %142 : vector<8x128xf32>
    %144 = math.exp %143 : vector<8x128xf32>
    %cst_42 = arith.constant 1.000000e+00 : f32
    %145 = vector.broadcast %cst_42 : f32 to vector<8x128xf32>
    %146 = arith.addf %145, %144 : vector<8x128xf32>
    %147 = arith.divf %145, %146 : vector<8x128xf32>
    %148 = vector.extract_strided_slice %139 {offsets = [0, 128], sizes = [8, 128], strides = [1, 1]} : vector<8x256xf32> to vector<8x128xf32>
    %149 = arith.mulf %148, %95 : vector<8x128xf32>
    %150 = vector.extract_strided_slice %139 {offsets = [0, 0], sizes = [8, 128], strides = [1, 1]} : vector<8x256xf32> to vector<8x128xf32>
    %151 = arith.mulf %150, %141 : vector<8x128xf32>
    %152 = arith.addf %149, %151 : vector<8x128xf32>
    %153 = math.tanh %152 : vector<8x128xf32>
    %154 = arith.mulf %147, %153 : vector<8x128xf32>
    %c0_43 = arith.constant 0 : index
    %c0_44 = arith.constant 0 : index
    %155 = vector.load %arg2[%c0_43, %c0_44] : memref<128x1024xf32, #tpu.memory_space<vmem>>, vector<128x1024xf32>
    %cst_45 = arith.constant dense<0.000000e+00> : vector<8x1024xf32>
    %156 = tpu.matmul %154, %155, %cst_45 {dimension_numbers = #tpu.dot_dimension_numbers<[1], [0], [0], [1], [0, 0, 1, 1], [], []>} : vector<8x128xf32>, vector<128x1024xf32>, vector<8x1024xf32> -> vector<8x1024xf32>
    %157 = vector.extract_strided_slice %156 {offsets = [0, 512], sizes = [8, 512], strides = [1, 1]} : vector<8x1024xf32> to vector<8x512xf32>
    %158 = arith.addf %130, %157 : vector<8x512xf32>
    %159 = vector.extract_strided_slice %158 {offsets = [0, 0], sizes = [8, 256], strides = [1, 1]} : vector<8x512xf32> to vector<8x256xf32>
    %160 = arith.negf %159 : vector<8x256xf32>
    %161 = math.exp %160 : vector<8x256xf32>
    %cst_46 = arith.constant 1.000000e+00 : f32
    %162 = vector.broadcast %cst_46 : f32 to vector<8x256xf32>
    %163 = arith.addf %162, %161 : vector<8x256xf32>
    %164 = arith.divf %162, %163 : vector<8x256xf32>
    %165 = vector.extract_strided_slice %158 {offsets = [0, 256], sizes = [8, 128], strides = [1, 1]} : vector<8x512xf32> to vector<8x128xf32>
    %166 = math.tanh %165 : vector<8x128xf32>
    %167 = vector.extract_strided_slice %158 {offsets = [0, 384], sizes = [8, 128], strides = [1, 1]} : vector<8x512xf32> to vector<8x128xf32>
    %168 = arith.negf %167 : vector<8x128xf32>
    %169 = math.exp %168 : vector<8x128xf32>
    %cst_47 = arith.constant 1.000000e+00 : f32
    %170 = vector.broadcast %cst_47 : f32 to vector<8x128xf32>
    %171 = arith.addf %170, %169 : vector<8x128xf32>
    %172 = arith.divf %170, %171 : vector<8x128xf32>
    %173 = vector.extract_strided_slice %164 {offsets = [0, 128], sizes = [8, 128], strides = [1, 1]} : vector<8x256xf32> to vector<8x128xf32>
    %174 = arith.mulf %173, %120 : vector<8x128xf32>
    %175 = vector.extract_strided_slice %164 {offsets = [0, 0], sizes = [8, 128], strides = [1, 1]} : vector<8x256xf32> to vector<8x128xf32>
    %176 = arith.mulf %175, %166 : vector<8x128xf32>
    %177 = arith.addf %174, %176 : vector<8x128xf32>
    %178 = math.tanh %177 : vector<8x128xf32>
    %179 = arith.mulf %172, %178 : vector<8x128xf32>
    %180 = arith.index_cast %127 : i32 to index
    %c0_48 = arith.constant 0 : index
    %181 = vector.load %arg10[%180, %c0_48] : memref<112x128xf32, #tpu.memory_space<vmem>>, vector<8x128xf32>
    tpu.vector_store %arg10[%180, %c0_48], %179 {strides = array<i32>} : memref<112x128xf32, #tpu.memory_space<vmem>>, vector<8x128xf32>,
    %182 = vector.extract_strided_slice %156 {offsets = [0, 0], sizes = [8, 512], strides = [1, 1]} : vector<8x1024xf32> to vector<8x512xf32>
    %c3_i32 = arith.constant 3 : i32
    %c8_i32_49 = arith.constant 8 : i32
    %183 = arith.muli %c3_i32, %c8_i32_49 : i32
    %184 = tpu.assume_multiple %183, 8 : i32
    %c0_50 = arith.constant 0 : index
    %c0_51 = arith.constant 0 : index
    %185 = vector.load %arg3[%c0_50, %c0_51] : memref<128x512xf32, #tpu.memory_space<vmem>>, vector<128x512xf32>
    %cst_52 = arith.constant dense<0.000000e+00> : vector<8x512xf32>
    %186 = tpu.matmul %179, %185, %cst_52 {dimension_numbers = #tpu.dot_dimension_numbers<[1], [0], [0], [1], [0, 0, 1, 1], [], []>} : vector<8x128xf32>, vector<128x512xf32>, vector<8x512xf32> -> vector<8x512xf32>
    %187 = arith.addf %186, %9 : vector<8x512xf32>
    %188 = arith.index_cast %184 : i32 to index
    %c0_53 = arith.constant 0 : index
    %189 = vector.load %arg9[%188, %c0_53] : memref<112x512xf32, #tpu.memory_space<vmem>>, vector<8x512xf32>
    %190 = arith.addf %189, %182 : vector<8x512xf32>
    %191 = vector.extract_strided_slice %190 {offsets = [0, 0], sizes = [8, 256], strides = [1, 1]} : vector<8x512xf32> to vector<8x256xf32>
    %192 = arith.negf %191 : vector<8x256xf32>
    %193 = math.exp %192 : vector<8x256xf32>
    %cst_54 = arith.constant 1.000000e+00 : f32
    %194 = vector.broadcast %cst_54 : f32 to vector<8x256xf32>
    %195 = arith.addf %194, %193 : vector<8x256xf32>
    %196 = arith.divf %194, %195 : vector<8x256xf32>
    %197 = vector.extract_strided_slice %190 {offsets = [0, 256], sizes = [8, 128], strides = [1, 1]} : vector<8x512xf32> to vector<8x128xf32>
    %198 = math.tanh %197 : vector<8x128xf32>
    %199 = vector.extract_strided_slice %190 {offsets = [0, 384], sizes = [8, 128], strides = [1, 1]} : vector<8x512xf32> to vector<8x128xf32>
    %200 = arith.negf %199 : vector<8x128xf32>
    %201 = math.exp %200 : vector<8x128xf32>
    %cst_55 = arith.constant 1.000000e+00 : f32
    %202 = vector.broadcast %cst_55 : f32 to vector<8x128xf32>
    %203 = arith.addf %202, %201 : vector<8x128xf32>
    %204 = arith.divf %202, %203 : vector<8x128xf32>
    %205 = vector.extract_strided_slice %196 {offsets = [0, 128], sizes = [8, 128], strides = [1, 1]} : vector<8x256xf32> to vector<8x128xf32>
    %206 = arith.mulf %205, %152 : vector<8x128xf32>
    %207 = vector.extract_strided_slice %196 {offsets = [0, 0], sizes = [8, 128], strides = [1, 1]} : vector<8x256xf32> to vector<8x128xf32>
    %208 = arith.mulf %207, %198 : vector<8x128xf32>
    %209 = arith.addf %206, %208 : vector<8x128xf32>
    %210 = math.tanh %209 : vector<8x128xf32>
    %211 = arith.mulf %204, %210 : vector<8x128xf32>
    %c0_56 = arith.constant 0 : index
    %c0_57 = arith.constant 0 : index
    %212 = vector.load %arg2[%c0_56, %c0_57] : memref<128x1024xf32, #tpu.memory_space<vmem>>, vector<128x1024xf32>
    %cst_58 = arith.constant dense<0.000000e+00> : vector<8x1024xf32>
    %213 = tpu.matmul %211, %212, %cst_58 {dimension_numbers = #tpu.dot_dimension_numbers<[1], [0], [0], [1], [0, 0, 1, 1], [], []>} : vector<8x128xf32>, vector<128x1024xf32>, vector<8x1024xf32> -> vector<8x1024xf32>
    %214 = vector.extract_strided_slice %213 {offsets = [0, 512], sizes = [8, 512], strides = [1, 1]} : vector<8x1024xf32> to vector<8x512xf32>
    %215 = arith.addf %187, %214 : vector<8x512xf32>
    %216 = vector.extract_strided_slice %215 {offsets = [0, 0], sizes = [8, 256], strides = [1, 1]} : vector<8x512xf32> to vector<8x256xf32>
    %217 = arith.negf %216 : vector<8x256xf32>
    %218 = math.exp %217 : vector<8x256xf32>
    %cst_59 = arith.constant 1.000000e+00 : f32
    %219 = vector.broadcast %cst_59 : f32 to vector<8x256xf32>
    %220 = arith.addf %219, %218 : vector<8x256xf32>
    %221 = arith.divf %219, %220 : vector<8x256xf32>
    %222 = vector.extract_strided_slice %215 {offsets = [0, 256], sizes = [8, 128], strides = [1, 1]} : vector<8x512xf32> to vector<8x128xf32>
    %223 = math.tanh %222 : vector<8x128xf32>
    %224 = vector.extract_strided_slice %215 {offsets = [0, 384], sizes = [8, 128], strides = [1, 1]} : vector<8x512xf32> to vector<8x128xf32>
    %225 = arith.negf %224 : vector<8x128xf32>
    %226 = math.exp %225 : vector<8x128xf32>
    %cst_60 = arith.constant 1.000000e+00 : f32
    %227 = vector.broadcast %cst_60 : f32 to vector<8x128xf32>
    %228 = arith.addf %227, %226 : vector<8x128xf32>
    %229 = arith.divf %227, %228 : vector<8x128xf32>
    %230 = vector.extract_strided_slice %221 {offsets = [0, 128], sizes = [8, 128], strides = [1, 1]} : vector<8x256xf32> to vector<8x128xf32>
    %231 = arith.mulf %230, %177 : vector<8x128xf32>
    %232 = vector.extract_strided_slice %221 {offsets = [0, 0], sizes = [8, 128], strides = [1, 1]} : vector<8x256xf32> to vector<8x128xf32>
    %233 = arith.mulf %232, %223 : vector<8x128xf32>
    %234 = arith.addf %231, %233 : vector<8x128xf32>
    %235 = math.tanh %234 : vector<8x128xf32>
    %236 = arith.mulf %229, %235 : vector<8x128xf32>
    %237 = arith.index_cast %184 : i32 to index
    %c0_61 = arith.constant 0 : index
    %238 = vector.load %arg10[%237, %c0_61] : memref<112x128xf32, #tpu.memory_space<vmem>>, vector<8x128xf32>
    tpu.vector_store %arg10[%237, %c0_61], %236 {strides = array<i32>} : memref<112x128xf32, #tpu.memory_space<vmem>>, vector<8x128xf32>,
    %239 = vector.extract_strided_slice %213 {offsets = [0, 0], sizes = [8, 512], strides = [1, 1]} : vector<8x1024xf32> to vector<8x512xf32>
    %c4_i32 = arith.constant 4 : i32
    %c8_i32_62 = arith.constant 8 : i32
    %240 = arith.muli %c4_i32, %c8_i32_62 : i32
    %241 = tpu.assume_multiple %240, 8 : i32
    %c0_63 = arith.constant 0 : index
    %c0_64 = arith.constant 0 : index
    %242 = vector.load %arg3[%c0_63, %c0_64] : memref<128x512xf32, #tpu.memory_space<vmem>>, vector<128x512xf32>
    %cst_65 = arith.constant dense<0.000000e+00> : vector<8x512xf32>
    %243 = tpu.matmul %236, %242, %cst_65 {dimension_numbers = #tpu.dot_dimension_numbers<[1], [0], [0], [1], [0, 0, 1, 1], [], []>} : vector<8x128xf32>, vector<128x512xf32>, vector<8x512xf32> -> vector<8x512xf32>
    %244 = arith.addf %243, %9 : vector<8x512xf32>
    %245 = arith.index_cast %241 : i32 to index
    %c0_66 = arith.constant 0 : index
    %246 = vector.load %arg9[%245, %c0_66] : memref<112x512xf32, #tpu.memory_space<vmem>>, vector<8x512xf32>
    %247 = arith.addf %246, %239 : vector<8x512xf32>
    %248 = vector.extract_strided_slice %247 {offsets = [0, 0], sizes = [8, 256], strides = [1, 1]} : vector<8x512xf32> to vector<8x256xf32>
    %249 = arith.negf %248 : vector<8x256xf32>
    %250 = math.exp %249 : vector<8x256xf32>
    %cst_67 = arith.constant 1.000000e+00 : f32
    %251 = vector.broadcast %cst_67 : f32 to vector<8x256xf32>
    %252 = arith.addf %251, %250 : vector<8x256xf32>
    %253 = arith.divf %251, %252 : vector<8x256xf32>
    %254 = vector.extract_strided_slice %247 {offsets = [0, 256], sizes = [8, 128], strides = [1, 1]} : vector<8x512xf32> to vector<8x128xf32>
    %255 = math.tanh %254 : vector<8x128xf32>
    %256 = vector.extract_strided_slice %247 {offsets = [0, 384], sizes = [8, 128], strides = [1, 1]} : vector<8x512xf32> to vector<8x128xf32>
    %257 = arith.negf %256 : vector<8x128xf32>
    %258 = math.exp %257 : vector<8x128xf32>
    %cst_68 = arith.constant 1.000000e+00 : f32
    %259 = vector.broadcast %cst_68 : f32 to vector<8x128xf32>
    %260 = arith.addf %259, %258 : vector<8x128xf32>
    %261 = arith.divf %259, %260 : vector<8x128xf32>
    %262 = vector.extract_strided_slice %253 {offsets = [0, 128], sizes = [8, 128], strides = [1, 1]} : vector<8x256xf32> to vector<8x128xf32>
    %263 = arith.mulf %262, %209 : vector<8x128xf32>
    %264 = vector.extract_strided_slice %253 {offsets = [0, 0], sizes = [8, 128], strides = [1, 1]} : vector<8x256xf32> to vector<8x128xf32>
    %265 = arith.mulf %264, %255 : vector<8x128xf32>
    %266 = arith.addf %263, %265 : vector<8x128xf32>
    %267 = math.tanh %266 : vector<8x128xf32>
    %268 = arith.mulf %261, %267 : vector<8x128xf32>
    %c0_69 = arith.constant 0 : index
    %c0_70 = arith.constant 0 : index
    %269 = vector.load %arg2[%c0_69, %c0_70] : memref<128x1024xf32, #tpu.memory_space<vmem>>, vector<128x1024xf32>
    %cst_71 = arith.constant dense<0.000000e+00> : vector<8x1024xf32>
    %270 = tpu.matmul %268, %269, %cst_71 {dimension_numbers = #tpu.dot_dimension_numbers<[1], [0], [0], [1], [0, 0, 1, 1], [], []>} : vector<8x128xf32>, vector<128x1024xf32>, vector<8x1024xf32> -> vector<8x1024xf32>
    %271 = vector.extract_strided_slice %270 {offsets = [0, 512], sizes = [8, 512], strides = [1, 1]} : vector<8x1024xf32> to vector<8x512xf32>
    %272 = arith.addf %244, %271 : vector<8x512xf32>
    %273 = vector.extract_strided_slice %272 {offsets = [0, 0], sizes = [8, 256], strides = [1, 1]} : vector<8x512xf32> to vector<8x256xf32>
    %274 = arith.negf %273 : vector<8x256xf32>
    %275 = math.exp %274 : vector<8x256xf32>
    %cst_72 = arith.constant 1.000000e+00 : f32
    %276 = vector.broadcast %cst_72 : f32 to vector<8x256xf32>
    %277 = arith.addf %276, %275 : vector<8x256xf32>
    %278 = arith.divf %276, %277 : vector<8x256xf32>
    %279 = vector.extract_strided_slice %272 {offsets = [0, 256], sizes = [8, 128], strides = [1, 1]} : vector<8x512xf32> to vector<8x128xf32>
    %280 = math.tanh %279 : vector<8x128xf32>
    %281 = vector.extract_strided_slice %272 {offsets = [0, 384], sizes = [8, 128], strides = [1, 1]} : vector<8x512xf32> to vector<8x128xf32>
    %282 = arith.negf %281 : vector<8x128xf32>
    %283 = math.exp %282 : vector<8x128xf32>
    %cst_73 = arith.constant 1.000000e+00 : f32
    %284 = vector.broadcast %cst_73 : f32 to vector<8x128xf32>
    %285 = arith.addf %284, %283 : vector<8x128xf32>
    %286 = arith.divf %284, %285 : vector<8x128xf32>
    %287 = vector.extract_strided_slice %278 {offsets = [0, 128], sizes = [8, 128], strides = [1, 1]} : vector<8x256xf32> to vector<8x128xf32>
    %288 = arith.mulf %287, %234 : vector<8x128xf32>
    %289 = vector.extract_strided_slice %278 {offsets = [0, 0], sizes = [8, 128], strides = [1, 1]} : vector<8x256xf32> to vector<8x128xf32>
    %290 = arith.mulf %289, %280 : vector<8x128xf32>
    %291 = arith.addf %288, %290 : vector<8x128xf32>
    %292 = math.tanh %291 : vector<8x128xf32>
    %293 = arith.mulf %286, %292 : vector<8x128xf32>
    %294 = arith.index_cast %241 : i32 to index
    %c0_74 = arith.constant 0 : index
    %295 = vector.load %arg10[%294, %c0_74] : memref<112x128xf32, #tpu.memory_space<vmem>>, vector<8x128xf32>
    tpu.vector_store %arg10[%294, %c0_74], %293 {strides = array<i32>} : memref<112x128xf32, #tpu.memory_space<vmem>>, vector<8x128xf32>,
    %296 = vector.extract_strided_slice %270 {offsets = [0, 0], sizes = [8, 512], strides = [1, 1]} : vector<8x1024xf32> to vector<8x512xf32>
    %c5_i32 = arith.constant 5 : i32
    %c8_i32_75 = arith.constant 8 : i32
    %297 = arith.muli %c5_i32, %c8_i32_75 : i32
    %298 = tpu.assume_multiple %297, 8 : i32
    %c0_76 = arith.constant 0 : index
    %c0_77 = arith.constant 0 : index
    %299 = vector.load %arg3[%c0_76, %c0_77] : memref<128x512xf32, #tpu.memory_space<vmem>>, vector<128x512xf32>
    %cst_78 = arith.constant dense<0.000000e+00> : vector<8x512xf32>
    %300 = tpu.matmul %293, %299, %cst_78 {dimension_numbers = #tpu.dot_dimension_numbers<[1], [0], [0], [1], [0, 0, 1, 1], [], []>} : vector<8x128xf32>, vector<128x512xf32>, vector<8x512xf32> -> vector<8x512xf32>
    %301 = arith.addf %300, %9 : vector<8x512xf32>
    %302 = arith.index_cast %298 : i32 to index
    %c0_79 = arith.constant 0 : index
    %303 = vector.load %arg9[%302, %c0_79] : memref<112x512xf32, #tpu.memory_space<vmem>>, vector<8x512xf32>
    %304 = arith.addf %303, %296 : vector<8x512xf32>
    %305 = vector.extract_strided_slice %304 {offsets = [0, 0], sizes = [8, 256], strides = [1, 1]} : vector<8x512xf32> to vector<8x256xf32>
    %306 = arith.negf %305 : vector<8x256xf32>
    %307 = math.exp %306 : vector<8x256xf32>
    %cst_80 = arith.constant 1.000000e+00 : f32
    %308 = vector.broadcast %cst_80 : f32 to vector<8x256xf32>
    %309 = arith.addf %308, %307 : vector<8x256xf32>
    %310 = arith.divf %308, %309 : vector<8x256xf32>
    %311 = vector.extract_strided_slice %304 {offsets = [0, 256], sizes = [8, 128], strides = [1, 1]} : vector<8x512xf32> to vector<8x128xf32>
    %312 = math.tanh %311 : vector<8x128xf32>
    %313 = vector.extract_strided_slice %304 {offsets = [0, 384], sizes = [8, 128], strides = [1, 1]} : vector<8x512xf32> to vector<8x128xf32>
    %314 = arith.negf %313 : vector<8x128xf32>
    %315 = math.exp %314 : vector<8x128xf32>
    %cst_81 = arith.constant 1.000000e+00 : f32
    %316 = vector.broadcast %cst_81 : f32 to vector<8x128xf32>
    %317 = arith.addf %316, %315 : vector<8x128xf32>
    %318 = arith.divf %316, %317 : vector<8x128xf32>
    %319 = vector.extract_strided_slice %310 {offsets = [0, 128], sizes = [8, 128], strides = [1, 1]} : vector<8x256xf32> to vector<8x128xf32>
    %320 = arith.mulf %319, %266 : vector<8x128xf32>
    %321 = vector.extract_strided_slice %310 {offsets = [0, 0], sizes = [8, 128], strides = [1, 1]} : vector<8x256xf32> to vector<8x128xf32>
    %322 = arith.mulf %321, %312 : vector<8x128xf32>
    %323 = arith.addf %320, %322 : vector<8x128xf32>
    %324 = math.tanh %323 : vector<8x128xf32>
    %325 = arith.mulf %318, %324 : vector<8x128xf32>
    %c0_82 = arith.constant 0 : index
    %c0_83 = arith.constant 0 : index
    %326 = vector.load %arg2[%c0_82, %c0_83] : memref<128x1024xf32, #tpu.memory_space<vmem>>, vector<128x1024xf32>
    %cst_84 = arith.constant dense<0.000000e+00> : vector<8x1024xf32>
    %327 = tpu.matmul %325, %326, %cst_84 {dimension_numbers = #tpu.dot_dimension_numbers<[1], [0], [0], [1], [0, 0, 1, 1], [], []>} : vector<8x128xf32>, vector<128x1024xf32>, vector<8x1024xf32> -> vector<8x1024xf32>
    %328 = vector.extract_strided_slice %327 {offsets = [0, 512], sizes = [8, 512], strides = [1, 1]} : vector<8x1024xf32> to vector<8x512xf32>
    %329 = arith.addf %301, %328 : vector<8x512xf32>
    %330 = vector.extract_strided_slice %329 {offsets = [0, 0], sizes = [8, 256], strides = [1, 1]} : vector<8x512xf32> to vector<8x256xf32>
    %331 = arith.negf %330 : vector<8x256xf32>
    %332 = math.exp %331 : vector<8x256xf32>
    %cst_85 = arith.constant 1.000000e+00 : f32
    %333 = vector.broadcast %cst_85 : f32 to vector<8x256xf32>
    %334 = arith.addf %333, %332 : vector<8x256xf32>
    %335 = arith.divf %333, %334 : vector<8x256xf32>
    %336 = vector.extract_strided_slice %329 {offsets = [0, 256], sizes = [8, 128], strides = [1, 1]} : vector<8x512xf32> to vector<8x128xf32>
    %337 = math.tanh %336 : vector<8x128xf32>
    %338 = vector.extract_strided_slice %329 {offsets = [0, 384], sizes = [8, 128], strides = [1, 1]} : vector<8x512xf32> to vector<8x128xf32>
    %339 = arith.negf %338 : vector<8x128xf32>
    %340 = math.exp %339 : vector<8x128xf32>
    %cst_86 = arith.constant 1.000000e+00 : f32
    %341 = vector.broadcast %cst_86 : f32 to vector<8x128xf32>
    %342 = arith.addf %341, %340 : vector<8x128xf32>
    %343 = arith.divf %341, %342 : vector<8x128xf32>
    %344 = vector.extract_strided_slice %335 {offsets = [0, 128], sizes = [8, 128], strides = [1, 1]} : vector<8x256xf32> to vector<8x128xf32>
    %345 = arith.mulf %344, %291 : vector<8x128xf32>
    %346 = vector.extract_strided_slice %335 {offsets = [0, 0], sizes = [8, 128], strides = [1, 1]} : vector<8x256xf32> to vector<8x128xf32>
    %347 = arith.mulf %346, %337 : vector<8x128xf32>
    %348 = arith.addf %345, %347 : vector<8x128xf32>
    %349 = math.tanh %348 : vector<8x128xf32>
    %350 = arith.mulf %343, %349 : vector<8x128xf32>
    %351 = arith.index_cast %298 : i32 to index
    %c0_87 = arith.constant 0 : index
    %352 = vector.load %arg10[%351, %c0_87] : memref<112x128xf32, #tpu.memory_space<vmem>>, vector<8x128xf32>
    tpu.vector_store %arg10[%351, %c0_87], %350 {strides = array<i32>} : memref<112x128xf32, #tpu.memory_space<vmem>>, vector<8x128xf32>,
    %353 = vector.extract_strided_slice %327 {offsets = [0, 0], sizes = [8, 512], strides = [1, 1]} : vector<8x1024xf32> to vector<8x512xf32>
    %c6_i32 = arith.constant 6 : i32
    %c8_i32_88 = arith.constant 8 : i32
    %354 = arith.muli %c6_i32, %c8_i32_88 : i32
    %355 = tpu.assume_multiple %354, 8 : i32
    %c0_89 = arith.constant 0 : index
    %c0_90 = arith.constant 0 : index
    %356 = vector.load %arg3[%c0_89, %c0_90] : memref<128x512xf32, #tpu.memory_space<vmem>>, vector<128x512xf32>
    %cst_91 = arith.constant dense<0.000000e+00> : vector<8x512xf32>
    %357 = tpu.matmul %350, %356, %cst_91 {dimension_numbers = #tpu.dot_dimension_numbers<[1], [0], [0], [1], [0, 0, 1, 1], [], []>} : vector<8x128xf32>, vector<128x512xf32>, vector<8x512xf32> -> vector<8x512xf32>
    %358 = arith.addf %357, %9 : vector<8x512xf32>
    %359 = arith.index_cast %355 : i32 to index
    %c0_92 = arith.constant 0 : index
    %360 = vector.load %arg9[%359, %c0_92] : memref<112x512xf32, #tpu.memory_space<vmem>>, vector<8x512xf32>
    %361 = arith.addf %360, %353 : vector<8x512xf32>
    %362 = vector.extract_strided_slice %361 {offsets = [0, 0], sizes = [8, 256], strides = [1, 1]} : vector<8x512xf32> to vector<8x256xf32>
    %363 = arith.negf %362 : vector<8x256xf32>
    %364 = math.exp %363 : vector<8x256xf32>
    %cst_93 = arith.constant 1.000000e+00 : f32
    %365 = vector.broadcast %cst_93 : f32 to vector<8x256xf32>
    %366 = arith.addf %365, %364 : vector<8x256xf32>
    %367 = arith.divf %365, %366 : vector<8x256xf32>
    %368 = vector.extract_strided_slice %361 {offsets = [0, 256], sizes = [8, 128], strides = [1, 1]} : vector<8x512xf32> to vector<8x128xf32>
    %369 = math.tanh %368 : vector<8x128xf32>
    %370 = vector.extract_strided_slice %361 {offsets = [0, 384], sizes = [8, 128], strides = [1, 1]} : vector<8x512xf32> to vector<8x128xf32>
    %371 = arith.negf %370 : vector<8x128xf32>
    %372 = math.exp %371 : vector<8x128xf32>
    %cst_94 = arith.constant 1.000000e+00 : f32
    %373 = vector.broadcast %cst_94 : f32 to vector<8x128xf32>
    %374 = arith.addf %373, %372 : vector<8x128xf32>
    %375 = arith.divf %373, %374 : vector<8x128xf32>
    %376 = vector.extract_strided_slice %367 {offsets = [0, 128], sizes = [8, 128], strides = [1, 1]} : vector<8x256xf32> to vector<8x128xf32>
    %377 = arith.mulf %376, %323 : vector<8x128xf32>
    %378 = vector.extract_strided_slice %367 {offsets = [0, 0], sizes = [8, 128], strides = [1, 1]} : vector<8x256xf32> to vector<8x128xf32>
    %379 = arith.mulf %378, %369 : vector<8x128xf32>
    %380 = arith.addf %377, %379 : vector<8x128xf32>
    %381 = math.tanh %380 : vector<8x128xf32>
    %382 = arith.mulf %375, %381 : vector<8x128xf32>
    %c0_95 = arith.constant 0 : index
    %c0_96 = arith.constant 0 : index
    %383 = vector.load %arg2[%c0_95, %c0_96] : memref<128x1024xf32, #tpu.memory_space<vmem>>, vector<128x1024xf32>
    %cst_97 = arith.constant dense<0.000000e+00> : vector<8x1024xf32>
    %384 = tpu.matmul %382, %383, %cst_97 {dimension_numbers = #tpu.dot_dimension_numbers<[1], [0], [0], [1], [0, 0, 1, 1], [], []>} : vector<8x128xf32>, vector<128x1024xf32>, vector<8x1024xf32> -> vector<8x1024xf32>
    %385 = vector.extract_strided_slice %384 {offsets = [0, 512], sizes = [8, 512], strides = [1, 1]} : vector<8x1024xf32> to vector<8x512xf32>
    %386 = arith.addf %358, %385 : vector<8x512xf32>
    %387 = vector.extract_strided_slice %386 {offsets = [0, 0], sizes = [8, 256], strides = [1, 1]} : vector<8x512xf32> to vector<8x256xf32>
    %388 = arith.negf %387 : vector<8x256xf32>
    %389 = math.exp %388 : vector<8x256xf32>
    %cst_98 = arith.constant 1.000000e+00 : f32
    %390 = vector.broadcast %cst_98 : f32 to vector<8x256xf32>
    %391 = arith.addf %390, %389 : vector<8x256xf32>
    %392 = arith.divf %390, %391 : vector<8x256xf32>
    %393 = vector.extract_strided_slice %386 {offsets = [0, 256], sizes = [8, 128], strides = [1, 1]} : vector<8x512xf32> to vector<8x128xf32>
    %394 = math.tanh %393 : vector<8x128xf32>
    %395 = vector.extract_strided_slice %386 {offsets = [0, 384], sizes = [8, 128], strides = [1, 1]} : vector<8x512xf32> to vector<8x128xf32>
    %396 = arith.negf %395 : vector<8x128xf32>
    %397 = math.exp %396 : vector<8x128xf32>
    %cst_99 = arith.constant 1.000000e+00 : f32
    %398 = vector.broadcast %cst_99 : f32 to vector<8x128xf32>
    %399 = arith.addf %398, %397 : vector<8x128xf32>
    %400 = arith.divf %398, %399 : vector<8x128xf32>
    %401 = vector.extract_strided_slice %392 {offsets = [0, 128], sizes = [8, 128], strides = [1, 1]} : vector<8x256xf32> to vector<8x128xf32>
    %402 = arith.mulf %401, %348 : vector<8x128xf32>
    %403 = vector.extract_strided_slice %392 {offsets = [0, 0], sizes = [8, 128], strides = [1, 1]} : vector<8x256xf32> to vector<8x128xf32>
    %404 = arith.mulf %403, %394 : vector<8x128xf32>
    %405 = arith.addf %402, %404 : vector<8x128xf32>
    %406 = math.tanh %405 : vector<8x128xf32>
    %407 = arith.mulf %400, %406 : vector<8x128xf32>
    %408 = arith.index_cast %355 : i32 to index
    %c0_100 = arith.constant 0 : index
    %409 = vector.load %arg10[%408, %c0_100] : memref<112x128xf32, #tpu.memory_space<vmem>>, vector<8x128xf32>
    tpu.vector_store %arg10[%408, %c0_100], %407 {strides = array<i32>} : memref<112x128xf32, #tpu.memory_space<vmem>>, vector<8x128xf32>,
    %410 = vector.extract_strided_slice %384 {offsets = [0, 0], sizes = [8, 512], strides = [1, 1]} : vector<8x1024xf32> to vector<8x512xf32>
    %c7_i32 = arith.constant 7 : i32
    %c8_i32_101 = arith.constant 8 : i32
    %411 = arith.muli %c7_i32, %c8_i32_101 : i32
    %412 = tpu.assume_multiple %411, 8 : i32
    %c0_102 = arith.constant 0 : index
    %c0_103 = arith.constant 0 : index
    %413 = vector.load %arg3[%c0_102, %c0_103] : memref<128x512xf32, #tpu.memory_space<vmem>>, vector<128x512xf32>
    %cst_104 = arith.constant dense<0.000000e+00> : vector<8x512xf32>
    %414 = tpu.matmul %407, %413, %cst_104 {dimension_numbers = #tpu.dot_dimension_numbers<[1], [0], [0], [1], [0, 0, 1, 1], [], []>} : vector<8x128xf32>, vector<128x512xf32>, vector<8x512xf32> -> vector<8x512xf32>
    %415 = arith.addf %414, %9 : vector<8x512xf32>
    %416 = arith.index_cast %412 : i32 to index
    %c0_105 = arith.constant 0 : index
    %417 = vector.load %arg9[%416, %c0_105] : memref<112x512xf32, #tpu.memory_space<vmem>>, vector<8x512xf32>
    %418 = arith.addf %417, %410 : vector<8x512xf32>
    %419 = vector.extract_strided_slice %418 {offsets = [0, 0], sizes = [8, 256], strides = [1, 1]} : vector<8x512xf32> to vector<8x256xf32>
    %420 = arith.negf %419 : vector<8x256xf32>
    %421 = math.exp %420 : vector<8x256xf32>
    %cst_106 = arith.constant 1.000000e+00 : f32
    %422 = vector.broadcast %cst_106 : f32 to vector<8x256xf32>
    %423 = arith.addf %422, %421 : vector<8x256xf32>
    %424 = arith.divf %422, %423 : vector<8x256xf32>
    %425 = vector.extract_strided_slice %418 {offsets = [0, 256], sizes = [8, 128], strides = [1, 1]} : vector<8x512xf32> to vector<8x128xf32>
    %426 = math.tanh %425 : vector<8x128xf32>
    %427 = vector.extract_strided_slice %418 {offsets = [0, 384], sizes = [8, 128], strides = [1, 1]} : vector<8x512xf32> to vector<8x128xf32>
    %428 = arith.negf %427 : vector<8x128xf32>
    %429 = math.exp %428 : vector<8x128xf32>
    %cst_107 = arith.constant 1.000000e+00 : f32
    %430 = vector.broadcast %cst_107 : f32 to vector<8x128xf32>
    %431 = arith.addf %430, %429 : vector<8x128xf32>
    %432 = arith.divf %430, %431 : vector<8x128xf32>
    %433 = vector.extract_strided_slice %424 {offsets = [0, 128], sizes = [8, 128], strides = [1, 1]} : vector<8x256xf32> to vector<8x128xf32>
    %434 = arith.mulf %433, %380 : vector<8x128xf32>
    %435 = vector.extract_strided_slice %424 {offsets = [0, 0], sizes = [8, 128], strides = [1, 1]} : vector<8x256xf32> to vector<8x128xf32>
    %436 = arith.mulf %435, %426 : vector<8x128xf32>
    %437 = arith.addf %434, %436 : vector<8x128xf32>
    %438 = math.tanh %437 : vector<8x128xf32>
    %439 = arith.mulf %432, %438 : vector<8x128xf32>
    %c0_108 = arith.constant 0 : index
    %c0_109 = arith.constant 0 : index
    %440 = vector.load %arg2[%c0_108, %c0_109] : memref<128x1024xf32, #tpu.memory_space<vmem>>, vector<128x1024xf32>
    %cst_110 = arith.constant dense<0.000000e+00> : vector<8x1024xf32>
    %441 = tpu.matmul %439, %440, %cst_110 {dimension_numbers = #tpu.dot_dimension_numbers<[1], [0], [0], [1], [0, 0, 1, 1], [], []>} : vector<8x128xf32>, vector<128x1024xf32>, vector<8x1024xf32> -> vector<8x1024xf32>
    %442 = vector.extract_strided_slice %441 {offsets = [0, 512], sizes = [8, 512], strides = [1, 1]} : vector<8x1024xf32> to vector<8x512xf32>
    %443 = arith.addf %415, %442 : vector<8x512xf32>
    %444 = vector.extract_strided_slice %443 {offsets = [0, 0], sizes = [8, 256], strides = [1, 1]} : vector<8x512xf32> to vector<8x256xf32>
    %445 = arith.negf %444 : vector<8x256xf32>
    %446 = math.exp %445 : vector<8x256xf32>
    %cst_111 = arith.constant 1.000000e+00 : f32
    %447 = vector.broadcast %cst_111 : f32 to vector<8x256xf32>
    %448 = arith.addf %447, %446 : vector<8x256xf32>
    %449 = arith.divf %447, %448 : vector<8x256xf32>
    %450 = vector.extract_strided_slice %443 {offsets = [0, 256], sizes = [8, 128], strides = [1, 1]} : vector<8x512xf32> to vector<8x128xf32>
    %451 = math.tanh %450 : vector<8x128xf32>
    %452 = vector.extract_strided_slice %443 {offsets = [0, 384], sizes = [8, 128], strides = [1, 1]} : vector<8x512xf32> to vector<8x128xf32>
    %453 = arith.negf %452 : vector<8x128xf32>
    %454 = math.exp %453 : vector<8x128xf32>
    %cst_112 = arith.constant 1.000000e+00 : f32
    %455 = vector.broadcast %cst_112 : f32 to vector<8x128xf32>
    %456 = arith.addf %455, %454 : vector<8x128xf32>
    %457 = arith.divf %455, %456 : vector<8x128xf32>
    %458 = vector.extract_strided_slice %449 {offsets = [0, 128], sizes = [8, 128], strides = [1, 1]} : vector<8x256xf32> to vector<8x128xf32>
    %459 = arith.mulf %458, %405 : vector<8x128xf32>
    %460 = vector.extract_strided_slice %449 {offsets = [0, 0], sizes = [8, 128], strides = [1, 1]} : vector<8x256xf32> to vector<8x128xf32>
    %461 = arith.mulf %460, %451 : vector<8x128xf32>
    %462 = arith.addf %459, %461 : vector<8x128xf32>
    %463 = math.tanh %462 : vector<8x128xf32>
    %464 = arith.mulf %457, %463 : vector<8x128xf32>
    %465 = arith.index_cast %412 : i32 to index
    %c0_113 = arith.constant 0 : index
    %466 = vector.load %arg10[%465, %c0_113] : memref<112x128xf32, #tpu.memory_space<vmem>>, vector<8x128xf32>
    tpu.vector_store %arg10[%465, %c0_113], %464 {strides = array<i32>} : memref<112x128xf32, #tpu.memory_space<vmem>>, vector<8x128xf32>,
    %467 = vector.extract_strided_slice %441 {offsets = [0, 0], sizes = [8, 512], strides = [1, 1]} : vector<8x1024xf32> to vector<8x512xf32>
    %c8_i32_114 = arith.constant 8 : i32
    %c8_i32_115 = arith.constant 8 : i32
    %468 = arith.muli %c8_i32_114, %c8_i32_115 : i32
    %469 = tpu.assume_multiple %468, 8 : i32
    %c0_116 = arith.constant 0 : index
    %c0_117 = arith.constant 0 : index
    %470 = vector.load %arg3[%c0_116, %c0_117] : memref<128x512xf32, #tpu.memory_space<vmem>>, vector<128x512xf32>
    %cst_118 = arith.constant dense<0.000000e+00> : vector<8x512xf32>
    %471 = tpu.matmul %464, %470, %cst_118 {dimension_numbers = #tpu.dot_dimension_numbers<[1], [0], [0], [1], [0, 0, 1, 1], [], []>} : vector<8x128xf32>, vector<128x512xf32>, vector<8x512xf32> -> vector<8x512xf32>
    %472 = arith.addf %471, %9 : vector<8x512xf32>
    %473 = arith.index_cast %469 : i32 to index
    %c0_119 = arith.constant 0 : index
    %474 = vector.load %arg9[%473, %c0_119] : memref<112x512xf32, #tpu.memory_space<vmem>>, vector<8x512xf32>
    %475 = arith.addf %474, %467 : vector<8x512xf32>
    %476 = vector.extract_strided_slice %475 {offsets = [0, 0], sizes = [8, 256], strides = [1, 1]} : vector<8x512xf32> to vector<8x256xf32>
    %477 = arith.negf %476 : vector<8x256xf32>
    %478 = math.exp %477 : vector<8x256xf32>
    %cst_120 = arith.constant 1.000000e+00 : f32
    %479 = vector.broadcast %cst_120 : f32 to vector<8x256xf32>
    %480 = arith.addf %479, %478 : vector<8x256xf32>
    %481 = arith.divf %479, %480 : vector<8x256xf32>
    %482 = vector.extract_strided_slice %475 {offsets = [0, 256], sizes = [8, 128], strides = [1, 1]} : vector<8x512xf32> to vector<8x128xf32>
    %483 = math.tanh %482 : vector<8x128xf32>
    %484 = vector.extract_strided_slice %475 {offsets = [0, 384], sizes = [8, 128], strides = [1, 1]} : vector<8x512xf32> to vector<8x128xf32>
    %485 = arith.negf %484 : vector<8x128xf32>
    %486 = math.exp %485 : vector<8x128xf32>
    %cst_121 = arith.constant 1.000000e+00 : f32
    %487 = vector.broadcast %cst_121 : f32 to vector<8x128xf32>
    %488 = arith.addf %487, %486 : vector<8x128xf32>
    %489 = arith.divf %487, %488 : vector<8x128xf32>
    %490 = vector.extract_strided_slice %481 {offsets = [0, 128], sizes = [8, 128], strides = [1, 1]} : vector<8x256xf32> to vector<8x128xf32>
    %491 = arith.mulf %490, %437 : vector<8x128xf32>
    %492 = vector.extract_strided_slice %481 {offsets = [0, 0], sizes = [8, 128], strides = [1, 1]} : vector<8x256xf32> to vector<8x128xf32>
    %493 = arith.mulf %492, %483 : vector<8x128xf32>
    %494 = arith.addf %491, %493 : vector<8x128xf32>
    %495 = math.tanh %494 : vector<8x128xf32>
    %496 = arith.mulf %489, %495 : vector<8x128xf32>
    %c0_122 = arith.constant 0 : index
    %c0_123 = arith.constant 0 : index
    %497 = vector.load %arg2[%c0_122, %c0_123] : memref<128x1024xf32, #tpu.memory_space<vmem>>, vector<128x1024xf32>
    %cst_124 = arith.constant dense<0.000000e+00> : vector<8x1024xf32>
    %498 = tpu.matmul %496, %497, %cst_124 {dimension_numbers = #tpu.dot_dimension_numbers<[1], [0], [0], [1], [0, 0, 1, 1], [], []>} : vector<8x128xf32>, vector<128x1024xf32>, vector<8x1024xf32> -> vector<8x1024xf32>
    %499 = vector.extract_strided_slice %498 {offsets = [0, 512], sizes = [8, 512], strides = [1, 1]} : vector<8x1024xf32> to vector<8x512xf32>
    %500 = arith.addf %472, %499 : vector<8x512xf32>
    %501 = vector.extract_strided_slice %500 {offsets = [0, 0], sizes = [8, 256], strides = [1, 1]} : vector<8x512xf32> to vector<8x256xf32>
    %502 = arith.negf %501 : vector<8x256xf32>
    %503 = math.exp %502 : vector<8x256xf32>
    %cst_125 = arith.constant 1.000000e+00 : f32
    %504 = vector.broadcast %cst_125 : f32 to vector<8x256xf32>
    %505 = arith.addf %504, %503 : vector<8x256xf32>
    %506 = arith.divf %504, %505 : vector<8x256xf32>
    %507 = vector.extract_strided_slice %500 {offsets = [0, 256], sizes = [8, 128], strides = [1, 1]} : vector<8x512xf32> to vector<8x128xf32>
    %508 = math.tanh %507 : vector<8x128xf32>
    %509 = vector.extract_strided_slice %500 {offsets = [0, 384], sizes = [8, 128], strides = [1, 1]} : vector<8x512xf32> to vector<8x128xf32>
    %510 = arith.negf %509 : vector<8x128xf32>
    %511 = math.exp %510 : vector<8x128xf32>
    %cst_126 = arith.constant 1.000000e+00 : f32
    %512 = vector.broadcast %cst_126 : f32 to vector<8x128xf32>
    %513 = arith.addf %512, %511 : vector<8x128xf32>
    %514 = arith.divf %512, %513 : vector<8x128xf32>
    %515 = vector.extract_strided_slice %506 {offsets = [0, 128], sizes = [8, 128], strides = [1, 1]} : vector<8x256xf32> to vector<8x128xf32>
    %516 = arith.mulf %515, %462 : vector<8x128xf32>
    %517 = vector.extract_strided_slice %506 {offsets = [0, 0], sizes = [8, 128], strides = [1, 1]} : vector<8x256xf32> to vector<8x128xf32>
    %518 = arith.mulf %517, %508 : vector<8x128xf32>
    %519 = arith.addf %516, %518 : vector<8x128xf32>
    %520 = math.tanh %519 : vector<8x128xf32>
    %521 = arith.mulf %514, %520 : vector<8x128xf32>
    %522 = arith.index_cast %469 : i32 to index
    %c0_127 = arith.constant 0 : index
    %523 = vector.load %arg10[%522, %c0_127] : memref<112x128xf32, #tpu.memory_space<vmem>>, vector<8x128xf32>
    tpu.vector_store %arg10[%522, %c0_127], %521 {strides = array<i32>} : memref<112x128xf32, #tpu.memory_space<vmem>>, vector<8x128xf32>,
    %524 = vector.extract_strided_slice %498 {offsets = [0, 0], sizes = [8, 512], strides = [1, 1]} : vector<8x1024xf32> to vector<8x512xf32>
    %c9_i32 = arith.constant 9 : i32
    %c8_i32_128 = arith.constant 8 : i32
    %525 = arith.muli %c9_i32, %c8_i32_128 : i32
    %526 = tpu.assume_multiple %525, 8 : i32
    %c0_129 = arith.constant 0 : index
    %c0_130 = arith.constant 0 : index
    %527 = vector.load %arg3[%c0_129, %c0_130] : memref<128x512xf32, #tpu.memory_space<vmem>>, vector<128x512xf32>
    %cst_131 = arith.constant dense<0.000000e+00> : vector<8x512xf32>
    %528 = tpu.matmul %521, %527, %cst_131 {dimension_numbers = #tpu.dot_dimension_numbers<[1], [0], [0], [1], [0, 0, 1, 1], [], []>} : vector<8x128xf32>, vector<128x512xf32>, vector<8x512xf32> -> vector<8x512xf32>
    %529 = arith.addf %528, %9 : vector<8x512xf32>
    %530 = arith.index_cast %526 : i32 to index
    %c0_132 = arith.constant 0 : index
    %531 = vector.load %arg9[%530, %c0_132] : memref<112x512xf32, #tpu.memory_space<vmem>>, vector<8x512xf32>
    %532 = arith.addf %531, %524 : vector<8x512xf32>
    %533 = vector.extract_strided_slice %532 {offsets = [0, 0], sizes = [8, 256], strides = [1, 1]} : vector<8x512xf32> to vector<8x256xf32>
    %534 = arith.negf %533 : vector<8x256xf32>
    %535 = math.exp %534 : vector<8x256xf32>
    %cst_133 = arith.constant 1.000000e+00 : f32
    %536 = vector.broadcast %cst_133 : f32 to vector<8x256xf32>
    %537 = arith.addf %536, %535 : vector<8x256xf32>
    %538 = arith.divf %536, %537 : vector<8x256xf32>
    %539 = vector.extract_strided_slice %532 {offsets = [0, 256], sizes = [8, 128], strides = [1, 1]} : vector<8x512xf32> to vector<8x128xf32>
    %540 = math.tanh %539 : vector<8x128xf32>
    %541 = vector.extract_strided_slice %532 {offsets = [0, 384], sizes = [8, 128], strides = [1, 1]} : vector<8x512xf32> to vector<8x128xf32>
    %542 = arith.negf %541 : vector<8x128xf32>
    %543 = math.exp %542 : vector<8x128xf32>
    %cst_134 = arith.constant 1.000000e+00 : f32
    %544 = vector.broadcast %cst_134 : f32 to vector<8x128xf32>
    %545 = arith.addf %544, %543 : vector<8x128xf32>
    %546 = arith.divf %544, %545 : vector<8x128xf32>
    %547 = vector.extract_strided_slice %538 {offsets = [0, 128], sizes = [8, 128], strides = [1, 1]} : vector<8x256xf32> to vector<8x128xf32>
    %548 = arith.mulf %547, %494 : vector<8x128xf32>
    %549 = vector.extract_strided_slice %538 {offsets = [0, 0], sizes = [8, 128], strides = [1, 1]} : vector<8x256xf32> to vector<8x128xf32>
    %550 = arith.mulf %549, %540 : vector<8x128xf32>
    %551 = arith.addf %548, %550 : vector<8x128xf32>
    %552 = math.tanh %551 : vector<8x128xf32>
    %553 = arith.mulf %546, %552 : vector<8x128xf32>
    %c0_135 = arith.constant 0 : index
    %c0_136 = arith.constant 0 : index
    %554 = vector.load %arg2[%c0_135, %c0_136] : memref<128x1024xf32, #tpu.memory_space<vmem>>, vector<128x1024xf32>
    %cst_137 = arith.constant dense<0.000000e+00> : vector<8x1024xf32>
    %555 = tpu.matmul %553, %554, %cst_137 {dimension_numbers = #tpu.dot_dimension_numbers<[1], [0], [0], [1], [0, 0, 1, 1], [], []>} : vector<8x128xf32>, vector<128x1024xf32>, vector<8x1024xf32> -> vector<8x1024xf32>
    %556 = vector.extract_strided_slice %555 {offsets = [0, 512], sizes = [8, 512], strides = [1, 1]} : vector<8x1024xf32> to vector<8x512xf32>
    %557 = arith.addf %529, %556 : vector<8x512xf32>
    %558 = vector.extract_strided_slice %557 {offsets = [0, 0], sizes = [8, 256], strides = [1, 1]} : vector<8x512xf32> to vector<8x256xf32>
    %559 = arith.negf %558 : vector<8x256xf32>
    %560 = math.exp %559 : vector<8x256xf32>
    %cst_138 = arith.constant 1.000000e+00 : f32
    %561 = vector.broadcast %cst_138 : f32 to vector<8x256xf32>
    %562 = arith.addf %561, %560 : vector<8x256xf32>
    %563 = arith.divf %561, %562 : vector<8x256xf32>
    %564 = vector.extract_strided_slice %557 {offsets = [0, 256], sizes = [8, 128], strides = [1, 1]} : vector<8x512xf32> to vector<8x128xf32>
    %565 = math.tanh %564 : vector<8x128xf32>
    %566 = vector.extract_strided_slice %557 {offsets = [0, 384], sizes = [8, 128], strides = [1, 1]} : vector<8x512xf32> to vector<8x128xf32>
    %567 = arith.negf %566 : vector<8x128xf32>
    %568 = math.exp %567 : vector<8x128xf32>
    %cst_139 = arith.constant 1.000000e+00 : f32
    %569 = vector.broadcast %cst_139 : f32 to vector<8x128xf32>
    %570 = arith.addf %569, %568 : vector<8x128xf32>
    %571 = arith.divf %569, %570 : vector<8x128xf32>
    %572 = vector.extract_strided_slice %563 {offsets = [0, 128], sizes = [8, 128], strides = [1, 1]} : vector<8x256xf32> to vector<8x128xf32>
    %573 = arith.mulf %572, %519 : vector<8x128xf32>
    %574 = vector.extract_strided_slice %563 {offsets = [0, 0], sizes = [8, 128], strides = [1, 1]} : vector<8x256xf32> to vector<8x128xf32>
    %575 = arith.mulf %574, %565 : vector<8x128xf32>
    %576 = arith.addf %573, %575 : vector<8x128xf32>
    %577 = math.tanh %576 : vector<8x128xf32>
    %578 = arith.mulf %571, %577 : vector<8x128xf32>
    %579 = arith.index_cast %526 : i32 to index
    %c0_140 = arith.constant 0 : index
    %580 = vector.load %arg10[%579, %c0_140] : memref<112x128xf32, #tpu.memory_space<vmem>>, vector<8x128xf32>
    tpu.vector_store %arg10[%579, %c0_140], %578 {strides = array<i32>} : memref<112x128xf32, #tpu.memory_space<vmem>>, vector<8x128xf32>,
    %581 = vector.extract_strided_slice %555 {offsets = [0, 0], sizes = [8, 512], strides = [1, 1]} : vector<8x1024xf32> to vector<8x512xf32>
    %c10_i32 = arith.constant 10 : i32
    %c8_i32_141 = arith.constant 8 : i32
    %582 = arith.muli %c10_i32, %c8_i32_141 : i32
    %583 = tpu.assume_multiple %582, 8 : i32
    %c0_142 = arith.constant 0 : index
    %c0_143 = arith.constant 0 : index
    %584 = vector.load %arg3[%c0_142, %c0_143] : memref<128x512xf32, #tpu.memory_space<vmem>>, vector<128x512xf32>
    %cst_144 = arith.constant dense<0.000000e+00> : vector<8x512xf32>
    %585 = tpu.matmul %578, %584, %cst_144 {dimension_numbers = #tpu.dot_dimension_numbers<[1], [0], [0], [1], [0, 0, 1, 1], [], []>} : vector<8x128xf32>, vector<128x512xf32>, vector<8x512xf32> -> vector<8x512xf32>
    %586 = arith.addf %585, %9 : vector<8x512xf32>
    %587 = arith.index_cast %583 : i32 to index
    %c0_145 = arith.constant 0 : index
    %588 = vector.load %arg9[%587, %c0_145] : memref<112x512xf32, #tpu.memory_space<vmem>>, vector<8x512xf32>
    %589 = arith.addf %588, %581 : vector<8x512xf32>
    %590 = vector.extract_strided_slice %589 {offsets = [0, 0], sizes = [8, 256], strides = [1, 1]} : vector<8x512xf32> to vector<8x256xf32>
    %591 = arith.negf %590 : vector<8x256xf32>
    %592 = math.exp %591 : vector<8x256xf32>
    %cst_146 = arith.constant 1.000000e+00 : f32
    %593 = vector.broadcast %cst_146 : f32 to vector<8x256xf32>
    %594 = arith.addf %593, %592 : vector<8x256xf32>
    %595 = arith.divf %593, %594 : vector<8x256xf32>
    %596 = vector.extract_strided_slice %589 {offsets = [0, 256], sizes = [8, 128], strides = [1, 1]} : vector<8x512xf32> to vector<8x128xf32>
    %597 = math.tanh %596 : vector<8x128xf32>
    %598 = vector.extract_strided_slice %589 {offsets = [0, 384], sizes = [8, 128], strides = [1, 1]} : vector<8x512xf32> to vector<8x128xf32>
    %599 = arith.negf %598 : vector<8x128xf32>
    %600 = math.exp %599 : vector<8x128xf32>
    %cst_147 = arith.constant 1.000000e+00 : f32
    %601 = vector.broadcast %cst_147 : f32 to vector<8x128xf32>
    %602 = arith.addf %601, %600 : vector<8x128xf32>
    %603 = arith.divf %601, %602 : vector<8x128xf32>
    %604 = vector.extract_strided_slice %595 {offsets = [0, 128], sizes = [8, 128], strides = [1, 1]} : vector<8x256xf32> to vector<8x128xf32>
    %605 = arith.mulf %604, %551 : vector<8x128xf32>
    %606 = vector.extract_strided_slice %595 {offsets = [0, 0], sizes = [8, 128], strides = [1, 1]} : vector<8x256xf32> to vector<8x128xf32>
    %607 = arith.mulf %606, %597 : vector<8x128xf32>
    %608 = arith.addf %605, %607 : vector<8x128xf32>
    %609 = math.tanh %608 : vector<8x128xf32>
    %610 = arith.mulf %603, %609 : vector<8x128xf32>
    %c0_148 = arith.constant 0 : index
    %c0_149 = arith.constant 0 : index
    %611 = vector.load %arg2[%c0_148, %c0_149] : memref<128x1024xf32, #tpu.memory_space<vmem>>, vector<128x1024xf32>
    %cst_150 = arith.constant dense<0.000000e+00> : vector<8x1024xf32>
    %612 = tpu.matmul %610, %611, %cst_150 {dimension_numbers = #tpu.dot_dimension_numbers<[1], [0], [0], [1], [0, 0, 1, 1], [], []>} : vector<8x128xf32>, vector<128x1024xf32>, vector<8x1024xf32> -> vector<8x1024xf32>
    %613 = vector.extract_strided_slice %612 {offsets = [0, 512], sizes = [8, 512], strides = [1, 1]} : vector<8x1024xf32> to vector<8x512xf32>
    %614 = arith.addf %586, %613 : vector<8x512xf32>
    %615 = vector.extract_strided_slice %614 {offsets = [0, 0], sizes = [8, 256], strides = [1, 1]} : vector<8x512xf32> to vector<8x256xf32>
    %616 = arith.negf %615 : vector<8x256xf32>
    %617 = math.exp %616 : vector<8x256xf32>
    %cst_151 = arith.constant 1.000000e+00 : f32
    %618 = vector.broadcast %cst_151 : f32 to vector<8x256xf32>
    %619 = arith.addf %618, %617 : vector<8x256xf32>
    %620 = arith.divf %618, %619 : vector<8x256xf32>
    %621 = vector.extract_strided_slice %614 {offsets = [0, 256], sizes = [8, 128], strides = [1, 1]} : vector<8x512xf32> to vector<8x128xf32>
    %622 = math.tanh %621 : vector<8x128xf32>
    %623 = vector.extract_strided_slice %614 {offsets = [0, 384], sizes = [8, 128], strides = [1, 1]} : vector<8x512xf32> to vector<8x128xf32>
    %624 = arith.negf %623 : vector<8x128xf32>
    %625 = math.exp %624 : vector<8x128xf32>
    %cst_152 = arith.constant 1.000000e+00 : f32
    %626 = vector.broadcast %cst_152 : f32 to vector<8x128xf32>
    %627 = arith.addf %626, %625 : vector<8x128xf32>
    %628 = arith.divf %626, %627 : vector<8x128xf32>
    %629 = vector.extract_strided_slice %620 {offsets = [0, 128], sizes = [8, 128], strides = [1, 1]} : vector<8x256xf32> to vector<8x128xf32>
    %630 = arith.mulf %629, %576 : vector<8x128xf32>
    %631 = vector.extract_strided_slice %620 {offsets = [0, 0], sizes = [8, 128], strides = [1, 1]} : vector<8x256xf32> to vector<8x128xf32>
    %632 = arith.mulf %631, %622 : vector<8x128xf32>
    %633 = arith.addf %630, %632 : vector<8x128xf32>
    %634 = math.tanh %633 : vector<8x128xf32>
    %635 = arith.mulf %628, %634 : vector<8x128xf32>
    %636 = arith.index_cast %583 : i32 to index
    %c0_153 = arith.constant 0 : index
    %637 = vector.load %arg10[%636, %c0_153] : memref<112x128xf32, #tpu.memory_space<vmem>>, vector<8x128xf32>
    tpu.vector_store %arg10[%636, %c0_153], %635 {strides = array<i32>} : memref<112x128xf32, #tpu.memory_space<vmem>>, vector<8x128xf32>,
    %638 = vector.extract_strided_slice %612 {offsets = [0, 0], sizes = [8, 512], strides = [1, 1]} : vector<8x1024xf32> to vector<8x512xf32>
    %c11_i32 = arith.constant 11 : i32
    %c8_i32_154 = arith.constant 8 : i32
    %639 = arith.muli %c11_i32, %c8_i32_154 : i32
    %640 = tpu.assume_multiple %639, 8 : i32
    %c0_155 = arith.constant 0 : index
    %c0_156 = arith.constant 0 : index
    %641 = vector.load %arg3[%c0_155, %c0_156] : memref<128x512xf32, #tpu.memory_space<vmem>>, vector<128x512xf32>
    %cst_157 = arith.constant dense<0.000000e+00> : vector<8x512xf32>
    %642 = tpu.matmul %635, %641, %cst_157 {dimension_numbers = #tpu.dot_dimension_numbers<[1], [0], [0], [1], [0, 0, 1, 1], [], []>} : vector<8x128xf32>, vector<128x512xf32>, vector<8x512xf32> -> vector<8x512xf32>
    %643 = arith.addf %642, %9 : vector<8x512xf32>
    %644 = arith.index_cast %640 : i32 to index
    %c0_158 = arith.constant 0 : index
    %645 = vector.load %arg9[%644, %c0_158] : memref<112x512xf32, #tpu.memory_space<vmem>>, vector<8x512xf32>
    %646 = arith.addf %645, %638 : vector<8x512xf32>
    %647 = vector.extract_strided_slice %646 {offsets = [0, 0], sizes = [8, 256], strides = [1, 1]} : vector<8x512xf32> to vector<8x256xf32>
    %648 = arith.negf %647 : vector<8x256xf32>
    %649 = math.exp %648 : vector<8x256xf32>
    %cst_159 = arith.constant 1.000000e+00 : f32
    %650 = vector.broadcast %cst_159 : f32 to vector<8x256xf32>
    %651 = arith.addf %650, %649 : vector<8x256xf32>
    %652 = arith.divf %650, %651 : vector<8x256xf32>
    %653 = vector.extract_strided_slice %646 {offsets = [0, 256], sizes = [8, 128], strides = [1, 1]} : vector<8x512xf32> to vector<8x128xf32>
    %654 = math.tanh %653 : vector<8x128xf32>
    %655 = vector.extract_strided_slice %646 {offsets = [0, 384], sizes = [8, 128], strides = [1, 1]} : vector<8x512xf32> to vector<8x128xf32>
    %656 = arith.negf %655 : vector<8x128xf32>
    %657 = math.exp %656 : vector<8x128xf32>
    %cst_160 = arith.constant 1.000000e+00 : f32
    %658 = vector.broadcast %cst_160 : f32 to vector<8x128xf32>
    %659 = arith.addf %658, %657 : vector<8x128xf32>
    %660 = arith.divf %658, %659 : vector<8x128xf32>
    %661 = vector.extract_strided_slice %652 {offsets = [0, 128], sizes = [8, 128], strides = [1, 1]} : vector<8x256xf32> to vector<8x128xf32>
    %662 = arith.mulf %661, %608 : vector<8x128xf32>
    %663 = vector.extract_strided_slice %652 {offsets = [0, 0], sizes = [8, 128], strides = [1, 1]} : vector<8x256xf32> to vector<8x128xf32>
    %664 = arith.mulf %663, %654 : vector<8x128xf32>
    %665 = arith.addf %662, %664 : vector<8x128xf32>
    %666 = math.tanh %665 : vector<8x128xf32>
    %667 = arith.mulf %660, %666 : vector<8x128xf32>
    %c0_161 = arith.constant 0 : index
    %c0_162 = arith.constant 0 : index
    %668 = vector.load %arg2[%c0_161, %c0_162] : memref<128x1024xf32, #tpu.memory_space<vmem>>, vector<128x1024xf32>
    %cst_163 = arith.constant dense<0.000000e+00> : vector<8x1024xf32>
    %669 = tpu.matmul %667, %668, %cst_163 {dimension_numbers = #tpu.dot_dimension_numbers<[1], [0], [0], [1], [0, 0, 1, 1], [], []>} : vector<8x128xf32>, vector<128x1024xf32>, vector<8x1024xf32> -> vector<8x1024xf32>
    %670 = vector.extract_strided_slice %669 {offsets = [0, 512], sizes = [8, 512], strides = [1, 1]} : vector<8x1024xf32> to vector<8x512xf32>
    %671 = arith.addf %643, %670 : vector<8x512xf32>
    %672 = vector.extract_strided_slice %671 {offsets = [0, 0], sizes = [8, 256], strides = [1, 1]} : vector<8x512xf32> to vector<8x256xf32>
    %673 = arith.negf %672 : vector<8x256xf32>
    %674 = math.exp %673 : vector<8x256xf32>
    %cst_164 = arith.constant 1.000000e+00 : f32
    %675 = vector.broadcast %cst_164 : f32 to vector<8x256xf32>
    %676 = arith.addf %675, %674 : vector<8x256xf32>
    %677 = arith.divf %675, %676 : vector<8x256xf32>
    %678 = vector.extract_strided_slice %671 {offsets = [0, 256], sizes = [8, 128], strides = [1, 1]} : vector<8x512xf32> to vector<8x128xf32>
    %679 = math.tanh %678 : vector<8x128xf32>
    %680 = vector.extract_strided_slice %671 {offsets = [0, 384], sizes = [8, 128], strides = [1, 1]} : vector<8x512xf32> to vector<8x128xf32>
    %681 = arith.negf %680 : vector<8x128xf32>
    %682 = math.exp %681 : vector<8x128xf32>
    %cst_165 = arith.constant 1.000000e+00 : f32
    %683 = vector.broadcast %cst_165 : f32 to vector<8x128xf32>
    %684 = arith.addf %683, %682 : vector<8x128xf32>
    %685 = arith.divf %683, %684 : vector<8x128xf32>
    %686 = vector.extract_strided_slice %677 {offsets = [0, 128], sizes = [8, 128], strides = [1, 1]} : vector<8x256xf32> to vector<8x128xf32>
    %687 = arith.mulf %686, %633 : vector<8x128xf32>
    %688 = vector.extract_strided_slice %677 {offsets = [0, 0], sizes = [8, 128], strides = [1, 1]} : vector<8x256xf32> to vector<8x128xf32>
    %689 = arith.mulf %688, %679 : vector<8x128xf32>
    %690 = arith.addf %687, %689 : vector<8x128xf32>
    %691 = math.tanh %690 : vector<8x128xf32>
    %692 = arith.mulf %685, %691 : vector<8x128xf32>
    %693 = arith.index_cast %640 : i32 to index
    %c0_166 = arith.constant 0 : index
    %694 = vector.load %arg10[%693, %c0_166] : memref<112x128xf32, #tpu.memory_space<vmem>>, vector<8x128xf32>
    tpu.vector_store %arg10[%693, %c0_166], %692 {strides = array<i32>} : memref<112x128xf32, #tpu.memory_space<vmem>>, vector<8x128xf32>,
    %695 = vector.extract_strided_slice %669 {offsets = [0, 0], sizes = [8, 512], strides = [1, 1]} : vector<8x1024xf32> to vector<8x512xf32>
    %c12_i32 = arith.constant 12 : i32
    %c8_i32_167 = arith.constant 8 : i32
    %696 = arith.muli %c12_i32, %c8_i32_167 : i32
    %697 = tpu.assume_multiple %696, 8 : i32
    %c0_168 = arith.constant 0 : index
    %c0_169 = arith.constant 0 : index
    %698 = vector.load %arg3[%c0_168, %c0_169] : memref<128x512xf32, #tpu.memory_space<vmem>>, vector<128x512xf32>
    %cst_170 = arith.constant dense<0.000000e+00> : vector<8x512xf32>
    %699 = tpu.matmul %692, %698, %cst_170 {dimension_numbers = #tpu.dot_dimension_numbers<[1], [0], [0], [1], [0, 0, 1, 1], [], []>} : vector<8x128xf32>, vector<128x512xf32>, vector<8x512xf32> -> vector<8x512xf32>
    %700 = arith.addf %699, %9 : vector<8x512xf32>
    %701 = arith.index_cast %697 : i32 to index
    %c0_171 = arith.constant 0 : index
    %702 = vector.load %arg9[%701, %c0_171] : memref<112x512xf32, #tpu.memory_space<vmem>>, vector<8x512xf32>
    %703 = arith.addf %702, %695 : vector<8x512xf32>
    %704 = vector.extract_strided_slice %703 {offsets = [0, 0], sizes = [8, 256], strides = [1, 1]} : vector<8x512xf32> to vector<8x256xf32>
    %705 = arith.negf %704 : vector<8x256xf32>
    %706 = math.exp %705 : vector<8x256xf32>
    %cst_172 = arith.constant 1.000000e+00 : f32
    %707 = vector.broadcast %cst_172 : f32 to vector<8x256xf32>
    %708 = arith.addf %707, %706 : vector<8x256xf32>
    %709 = arith.divf %707, %708 : vector<8x256xf32>
    %710 = vector.extract_strided_slice %703 {offsets = [0, 256], sizes = [8, 128], strides = [1, 1]} : vector<8x512xf32> to vector<8x128xf32>
    %711 = math.tanh %710 : vector<8x128xf32>
    %712 = vector.extract_strided_slice %703 {offsets = [0, 384], sizes = [8, 128], strides = [1, 1]} : vector<8x512xf32> to vector<8x128xf32>
    %713 = arith.negf %712 : vector<8x128xf32>
    %714 = math.exp %713 : vector<8x128xf32>
    %cst_173 = arith.constant 1.000000e+00 : f32
    %715 = vector.broadcast %cst_173 : f32 to vector<8x128xf32>
    %716 = arith.addf %715, %714 : vector<8x128xf32>
    %717 = arith.divf %715, %716 : vector<8x128xf32>
    %718 = vector.extract_strided_slice %709 {offsets = [0, 128], sizes = [8, 128], strides = [1, 1]} : vector<8x256xf32> to vector<8x128xf32>
    %719 = arith.mulf %718, %665 : vector<8x128xf32>
    %720 = vector.extract_strided_slice %709 {offsets = [0, 0], sizes = [8, 128], strides = [1, 1]} : vector<8x256xf32> to vector<8x128xf32>
    %721 = arith.mulf %720, %711 : vector<8x128xf32>
    %722 = arith.addf %719, %721 : vector<8x128xf32>
    %723 = math.tanh %722 : vector<8x128xf32>
    %724 = arith.mulf %717, %723 : vector<8x128xf32>
    %c0_174 = arith.constant 0 : index
    %c0_175 = arith.constant 0 : index
    %725 = vector.load %arg2[%c0_174, %c0_175] : memref<128x1024xf32, #tpu.memory_space<vmem>>, vector<128x1024xf32>
    %cst_176 = arith.constant dense<0.000000e+00> : vector<8x1024xf32>
    %726 = tpu.matmul %724, %725, %cst_176 {dimension_numbers = #tpu.dot_dimension_numbers<[1], [0], [0], [1], [0, 0, 1, 1], [], []>} : vector<8x128xf32>, vector<128x1024xf32>, vector<8x1024xf32> -> vector<8x1024xf32>
    %727 = vector.extract_strided_slice %726 {offsets = [0, 512], sizes = [8, 512], strides = [1, 1]} : vector<8x1024xf32> to vector<8x512xf32>
    %728 = arith.addf %700, %727 : vector<8x512xf32>
    %729 = vector.extract_strided_slice %728 {offsets = [0, 0], sizes = [8, 256], strides = [1, 1]} : vector<8x512xf32> to vector<8x256xf32>
    %730 = arith.negf %729 : vector<8x256xf32>
    %731 = math.exp %730 : vector<8x256xf32>
    %cst_177 = arith.constant 1.000000e+00 : f32
    %732 = vector.broadcast %cst_177 : f32 to vector<8x256xf32>
    %733 = arith.addf %732, %731 : vector<8x256xf32>
    %734 = arith.divf %732, %733 : vector<8x256xf32>
    %735 = vector.extract_strided_slice %728 {offsets = [0, 256], sizes = [8, 128], strides = [1, 1]} : vector<8x512xf32> to vector<8x128xf32>
    %736 = math.tanh %735 : vector<8x128xf32>
    %737 = vector.extract_strided_slice %728 {offsets = [0, 384], sizes = [8, 128], strides = [1, 1]} : vector<8x512xf32> to vector<8x128xf32>
    %738 = arith.negf %737 : vector<8x128xf32>
    %739 = math.exp %738 : vector<8x128xf32>
    %cst_178 = arith.constant 1.000000e+00 : f32
    %740 = vector.broadcast %cst_178 : f32 to vector<8x128xf32>
    %741 = arith.addf %740, %739 : vector<8x128xf32>
    %742 = arith.divf %740, %741 : vector<8x128xf32>
    %743 = vector.extract_strided_slice %734 {offsets = [0, 128], sizes = [8, 128], strides = [1, 1]} : vector<8x256xf32> to vector<8x128xf32>
    %744 = arith.mulf %743, %690 : vector<8x128xf32>
    %745 = vector.extract_strided_slice %734 {offsets = [0, 0], sizes = [8, 128], strides = [1, 1]} : vector<8x256xf32> to vector<8x128xf32>
    %746 = arith.mulf %745, %736 : vector<8x128xf32>
    %747 = arith.addf %744, %746 : vector<8x128xf32>
    %748 = math.tanh %747 : vector<8x128xf32>
    %749 = arith.mulf %742, %748 : vector<8x128xf32>
    %750 = arith.index_cast %697 : i32 to index
    %c0_179 = arith.constant 0 : index
    %751 = vector.load %arg10[%750, %c0_179] : memref<112x128xf32, #tpu.memory_space<vmem>>, vector<8x128xf32>
    tpu.vector_store %arg10[%750, %c0_179], %749 {strides = array<i32>} : memref<112x128xf32, #tpu.memory_space<vmem>>, vector<8x128xf32>,
    %752 = vector.extract_strided_slice %726 {offsets = [0, 0], sizes = [8, 512], strides = [1, 1]} : vector<8x1024xf32> to vector<8x512xf32>
    %c13_i32 = arith.constant 13 : i32
    %c8_i32_180 = arith.constant 8 : i32
    %753 = arith.muli %c13_i32, %c8_i32_180 : i32
    %754 = tpu.assume_multiple %753, 8 : i32
    %c0_181 = arith.constant 0 : index
    %c0_182 = arith.constant 0 : index
    %755 = vector.load %arg3[%c0_181, %c0_182] : memref<128x512xf32, #tpu.memory_space<vmem>>, vector<128x512xf32>
    %cst_183 = arith.constant dense<0.000000e+00> : vector<8x512xf32>
    %756 = tpu.matmul %749, %755, %cst_183 {dimension_numbers = #tpu.dot_dimension_numbers<[1], [0], [0], [1], [0, 0, 1, 1], [], []>} : vector<8x128xf32>, vector<128x512xf32>, vector<8x512xf32> -> vector<8x512xf32>
    %757 = arith.addf %756, %9 : vector<8x512xf32>
    %758 = arith.index_cast %754 : i32 to index
    %c0_184 = arith.constant 0 : index
    %759 = vector.load %arg9[%758, %c0_184] : memref<112x512xf32, #tpu.memory_space<vmem>>, vector<8x512xf32>
    %760 = arith.addf %759, %752 : vector<8x512xf32>
    %761 = vector.extract_strided_slice %760 {offsets = [0, 0], sizes = [8, 256], strides = [1, 1]} : vector<8x512xf32> to vector<8x256xf32>
    %762 = arith.negf %761 : vector<8x256xf32>
    %763 = math.exp %762 : vector<8x256xf32>
    %cst_185 = arith.constant 1.000000e+00 : f32
    %764 = vector.broadcast %cst_185 : f32 to vector<8x256xf32>
    %765 = arith.addf %764, %763 : vector<8x256xf32>
    %766 = arith.divf %764, %765 : vector<8x256xf32>
    %767 = vector.extract_strided_slice %760 {offsets = [0, 256], sizes = [8, 128], strides = [1, 1]} : vector<8x512xf32> to vector<8x128xf32>
    %768 = math.tanh %767 : vector<8x128xf32>
    %769 = vector.extract_strided_slice %760 {offsets = [0, 384], sizes = [8, 128], strides = [1, 1]} : vector<8x512xf32> to vector<8x128xf32>
    %770 = arith.negf %769 : vector<8x128xf32>
    %771 = math.exp %770 : vector<8x128xf32>
    %cst_186 = arith.constant 1.000000e+00 : f32
    %772 = vector.broadcast %cst_186 : f32 to vector<8x128xf32>
    %773 = arith.addf %772, %771 : vector<8x128xf32>
    %774 = arith.divf %772, %773 : vector<8x128xf32>
    %775 = vector.extract_strided_slice %766 {offsets = [0, 128], sizes = [8, 128], strides = [1, 1]} : vector<8x256xf32> to vector<8x128xf32>
    %776 = arith.mulf %775, %722 : vector<8x128xf32>
    %777 = vector.extract_strided_slice %766 {offsets = [0, 0], sizes = [8, 128], strides = [1, 1]} : vector<8x256xf32> to vector<8x128xf32>
    %778 = arith.mulf %777, %768 : vector<8x128xf32>
    %779 = arith.addf %776, %778 : vector<8x128xf32>
    %780 = math.tanh %779 : vector<8x128xf32>
    %781 = arith.mulf %774, %780 : vector<8x128xf32>
    %c0_187 = arith.constant 0 : index
    %c0_188 = arith.constant 0 : index
    %782 = vector.load %arg2[%c0_187, %c0_188] : memref<128x1024xf32, #tpu.memory_space<vmem>>, vector<128x1024xf32>
    %cst_189 = arith.constant dense<0.000000e+00> : vector<8x1024xf32>
    %783 = tpu.matmul %781, %782, %cst_189 {dimension_numbers = #tpu.dot_dimension_numbers<[1], [0], [0], [1], [0, 0, 1, 1], [], []>} : vector<8x128xf32>, vector<128x1024xf32>, vector<8x1024xf32> -> vector<8x1024xf32>
    %784 = vector.extract_strided_slice %783 {offsets = [0, 512], sizes = [8, 512], strides = [1, 1]} : vector<8x1024xf32> to vector<8x512xf32>
    %785 = arith.addf %757, %784 : vector<8x512xf32>
    %786 = vector.extract_strided_slice %785 {offsets = [0, 0], sizes = [8, 256], strides = [1, 1]} : vector<8x512xf32> to vector<8x256xf32>
    %787 = arith.negf %786 : vector<8x256xf32>
    %788 = math.exp %787 : vector<8x256xf32>
    %cst_190 = arith.constant 1.000000e+00 : f32
    %789 = vector.broadcast %cst_190 : f32 to vector<8x256xf32>
    %790 = arith.addf %789, %788 : vector<8x256xf32>
    %791 = arith.divf %789, %790 : vector<8x256xf32>
    %792 = vector.extract_strided_slice %785 {offsets = [0, 256], sizes = [8, 128], strides = [1, 1]} : vector<8x512xf32> to vector<8x128xf32>
    %793 = math.tanh %792 : vector<8x128xf32>
    %794 = vector.extract_strided_slice %785 {offsets = [0, 384], sizes = [8, 128], strides = [1, 1]} : vector<8x512xf32> to vector<8x128xf32>
    %795 = arith.negf %794 : vector<8x128xf32>
    %796 = math.exp %795 : vector<8x128xf32>
    %cst_191 = arith.constant 1.000000e+00 : f32
    %797 = vector.broadcast %cst_191 : f32 to vector<8x128xf32>
    %798 = arith.addf %797, %796 : vector<8x128xf32>
    %799 = arith.divf %797, %798 : vector<8x128xf32>
    %800 = vector.extract_strided_slice %791 {offsets = [0, 128], sizes = [8, 128], strides = [1, 1]} : vector<8x256xf32> to vector<8x128xf32>
    %801 = arith.mulf %800, %747 : vector<8x128xf32>
    %802 = vector.extract_strided_slice %791 {offsets = [0, 0], sizes = [8, 128], strides = [1, 1]} : vector<8x256xf32> to vector<8x128xf32>
    %803 = arith.mulf %802, %793 : vector<8x128xf32>
    %804 = arith.addf %801, %803 : vector<8x128xf32>
    %805 = math.tanh %804 : vector<8x128xf32>
    %806 = arith.mulf %799, %805 : vector<8x128xf32>
    %807 = arith.index_cast %754 : i32 to index
    %c0_192 = arith.constant 0 : index
    %808 = vector.load %arg10[%807, %c0_192] : memref<112x128xf32, #tpu.memory_space<vmem>>, vector<8x128xf32>
    tpu.vector_store %arg10[%807, %c0_192], %806 {strides = array<i32>} : memref<112x128xf32, #tpu.memory_space<vmem>>, vector<8x128xf32>,
    %809 = vector.extract_strided_slice %783 {offsets = [0, 0], sizes = [8, 512], strides = [1, 1]} : vector<8x1024xf32> to vector<8x512xf32>
    %c14_i32 = arith.constant 14 : i32
    %c0_193 = arith.constant 0 : index
    %c0_194 = arith.constant 0 : index
    %810 = vector.load %arg10[%c0_193, %c0_194] : memref<112x128xf32, #tpu.memory_space<vmem>>, vector<112x128xf32>
    %c0_195 = arith.constant 0 : index
    %c0_196 = arith.constant 0 : index
    %811 = vector.load %arg6[%c0_195, %c0_196] : memref<128x384xf32, #tpu.memory_space<vmem>>, vector<128x384xf32>
    %cst_197 = arith.constant dense<0.000000e+00> : vector<112x384xf32>
    %812 = tpu.matmul %810, %811, %cst_197 {dimension_numbers = #tpu.dot_dimension_numbers<[1], [0], [0], [1], [0, 0, 1, 1], [], []>} : vector<112x128xf32>, vector<128x384xf32>, vector<112x384xf32> -> vector<112x384xf32>
    %c0_198 = arith.constant 0 : index
    %c0_199 = arith.constant 0 : index
    %813 = vector.load %arg7[%c0_198, %c0_199] : memref<1x384xf32, #tpu.memory_space<vmem>>, vector<1x384xf32>
    %814 = vector.broadcast %813 : vector<1x384xf32> to vector<112x384xf32>
    %815 = arith.addf %812, %814 : vector<112x384xf32>
    %c0_200 = arith.constant 0 : index
    %c0_201 = arith.constant 0 : index
    %816 = vector.load %arg8[%c0_200, %c0_201] : memref<112x384xf32, #tpu.memory_space<vmem>>, vector<112x384xf32>
    tpu.vector_store %arg8[%c0_200, %c0_201], %815 {strides = array<i32>} : memref<112x384xf32, #tpu.memory_space<vmem>>, vector<112x384xf32>,
    return
  }
}

</mosaic_0001>

<llo_original>
// kernel: lstm_model_forward.1
$region0: #{lstm_model_forward.1}
  #allocation0 [shape = 'u32[]', space=smem, size = 0x4, offset = 0x4, fixed_abs, tag = 'smem constant byte address 0x4 - core index']
  #allocation1 [shape = 'u32[72,128]{1,0:T(1,128)}', space=vmem, size = 0x9000, scoped, tag = 'internal scratch']
  #allocation2 [shape = 'f32[112,512]{1,0:T(8,128)}', space=vmem, size = 0x38000, scoped, tag = 'scratch operand']
  #allocation3 [shape = 'f32[112,128]{1,0:T(8,128)}', space=vmem, size = 0xe000, scoped, tag = 'scratch operand']
  %s0 = inlined_call_operand.vmem [shape: f32[112,256], index: 0, kind: input, shape index: {}]
  %s1 = inlined_call_operand.vmem [shape: f32[256,512], index: 1, kind: input, shape index: {}]
  %s2 = inlined_call_operand.vmem [shape: f32[128,1024], index: 2, kind: input, shape index: {}]
  %s3 = inlined_call_operand.vmem [shape: f32[128,512], index: 3, kind: input, shape index: {}]
  %s4 = inlined_call_operand.vmem [shape: f32[1,512], index: 4, kind: input, shape index: {}]
  %s5 = inlined_call_operand.vmem [shape: f32[1,512], index: 5, kind: input, shape index: {}]
  %s6 = inlined_call_operand.vmem [shape: f32[128,384], index: 6, kind: input, shape index: {}]
  %s7 = inlined_call_operand.vmem [shape: f32[1,384], index: 7, kind: input, shape index: {}]
  %s8 = inlined_call_operand.vmem [shape: f32[112,384], index: 8, kind: output, shape index: {}]
  %s9 = sld [smem:[#allocation0]]
  $region42: #{lstm_model_forward.1} parent=0
    _
  %s11 = ssub.s32 1, %s9
  %s12 = scalar_select 0, %s11, %s9
  // Predicated region
  $region2: #{lstm_model_forward.1} parent=0 // pred_check
    _
  $region3: #{lstm_model_forward.1} parent=0 // pred_check_branch
    %14 = sbr.rel (0) target = $region5
  $region4: #{lstm_model_forward.1} parent=0 // pred_region
    _
  $region5: #{lstm_model_forward.1} parent=0 // pred_fallthru
    _
  // Predicated region
  $region6: #{lstm_model_forward.1} parent=0 // pred_check
    _
  $region7: #{lstm_model_forward.1} parent=0 // pred_check_branch
    %16 = sbr.rel (0) target = $region9
  $region8: #{lstm_model_forward.1} parent=0 // pred_region
    _
  $region9: #{lstm_model_forward.1} parent=0 // pred_fallthru
    _
  // Predicated region
  $region10: #{lstm_model_forward.1} parent=0 // pred_check
    _
  $region11: #{lstm_model_forward.1} parent=0 // pred_check_branch
    %18 = sbr.rel (0) target = $region13
  $region12: #{lstm_model_forward.1} parent=0 // pred_region
    _
  $region13: #{lstm_model_forward.1} parent=0 // pred_fallthru
    _
  // Predicated region
  $region14: #{lstm_model_forward.1} parent=0 // pred_check
    _
  $region15: #{lstm_model_forward.1} parent=0 // pred_check_branch
    %20 = sbr.rel (0) target = $region17
  $region16: #{lstm_model_forward.1} parent=0 // pred_region
    _
  $region17: #{lstm_model_forward.1} parent=0 // pred_fallthru
    _
  // Predicated region
  $region18: #{lstm_model_forward.1} parent=0 // pred_check
    _
  $region19: #{lstm_model_forward.1} parent=0 // pred_check_branch
    %22 = sbr.rel (0) target = $region21
  $region20: #{lstm_model_forward.1} parent=0 // pred_region
    _
  $region21: #{lstm_model_forward.1} parent=0 // pred_fallthru
    _
  // Predicated region
  $region22: #{lstm_model_forward.1} parent=0 // pred_check
    _
  $region23: #{lstm_model_forward.1} parent=0 // pred_check_branch
    %24 = sbr.rel (0) target = $region25
  $region24: #{lstm_model_forward.1} parent=0 // pred_region
    _
  $region25: #{lstm_model_forward.1} parent=0 // pred_fallthru
    _
  // Predicated region
  $region26: #{lstm_model_forward.1} parent=0 // pred_check
    _
  $region27: #{lstm_model_forward.1} parent=0 // pred_check_branch
    %26 = sbr.rel (0) target = $region29
  $region28: #{lstm_model_forward.1} parent=0 // pred_region
    _
  $region29: #{lstm_model_forward.1} parent=0 // pred_fallthru
    _
  // Predicated region
  $region30: #{lstm_model_forward.1} parent=0 // pred_check
    _
  $region31: #{lstm_model_forward.1} parent=0 // pred_check_branch
    %28 = sbr.rel (0) target = $region33
  $region32: #{lstm_model_forward.1} parent=0 // pred_region
    _
  $region33: #{lstm_model_forward.1} parent=0 // pred_fallthru
    _
  %v29 = vld [vmem:[%s0] sm:$0xff]
  %v30 = vld [vmem:[%s0 + $0x8] sm:$0xff]
  %v31 = vld [vmem:[%s0 + $0x10] sm:$0xff]
  %v32 = vld [vmem:[%s0 + $0x18] sm:$0xff]
  %v33 = vld [vmem:[%s0 + $0x20] sm:$0xff]
  %v34 = vld [vmem:[%s0 + $0x28] sm:$0xff]
  %v35 = vld [vmem:[%s0 + $0x30] sm:$0xff]
  %v36 = vld [vmem:[%s0 + $0x38] sm:$0xff]
  %v37 = vld [vmem:[%s0 + $0x40] sm:$0xff]
  %v38 = vld [vmem:[%s0 + $0x48] sm:$0xff]
  %v39 = vld [vmem:[%s0 + $0x50] sm:$0xff]
  %v40 = vld [vmem:[%s0 + $0x58] sm:$0xff]
  %v41 = vld [vmem:[%s0 + $0x60] sm:$0xff]
  %v42 = vld [vmem:[%s0 + $0x68] sm:$0xff]
  %v43 = vld [vmem:[%s0 + $0x70] sm:$0xff]
  %v44 = vld [vmem:[%s0 + $0x78] sm:$0xff]
  %v45 = vld [vmem:[%s0 + $0x80] sm:$0xff]
  %v46 = vld [vmem:[%s0 + $0x88] sm:$0xff]
  %v47 = vld [vmem:[%s0 + $0x90] sm:$0xff]
  %v48 = vld [vmem:[%s0 + $0x98] sm:$0xff]
  %v49 = vld [vmem:[%s0 + $0xa0] sm:$0xff]
  %v50 = vld [vmem:[%s0 + $0xa8] sm:$0xff]
  %v51 = vld [vmem:[%s0 + $0xb0] sm:$0xff]
  %v52 = vld [vmem:[%s0 + $0xb8] sm:$0xff]
  %v53 = vld [vmem:[%s0 + $0xc0] sm:$0xff]
  %v54 = vld [vmem:[%s0 + $0xc8] sm:$0xff]
  %v55 = vld [vmem:[%s0 + $0xd0] sm:$0xff]
  %v56 = vld [vmem:[%s0 + $0xd8] sm:$0xff]
  %v57 = vld [vmem:[%s1] sm:$0xff]
  %v58 = vld [vmem:[%s1 + $0x8] sm:$0xff]
  %v59 = vld [vmem:[%s1 + $0x10] sm:$0xff]
  %v60 = vld [vmem:[%s1 + $0x18] sm:$0xff]
  %v61 = vld [vmem:[%s1 + $0x20] sm:$0xff]
  %v62 = vld [vmem:[%s1 + $0x28] sm:$0xff]
  %v63 = vld [vmem:[%s1 + $0x30] sm:$0xff]
  %v64 = vld [vmem:[%s1 + $0x38] sm:$0xff]
  %v65 = vld [vmem:[%s1 + $0x40] sm:$0xff]
  %v66 = vld [vmem:[%s1 + $0x48] sm:$0xff]
  %v67 = vld [vmem:[%s1 + $0x50] sm:$0xff]
  %v68 = vld [vmem:[%s1 + $0x58] sm:$0xff]
  %v69 = vld [vmem:[%s1 + $0x60] sm:$0xff]
  %v70 = vld [vmem:[%s1 + $0x68] sm:$0xff]
  %v71 = vld [vmem:[%s1 + $0x70] sm:$0xff]
  %v72 = vld [vmem:[%s1 + $0x78] sm:$0xff]
  %v73 = vld [vmem:[%s1 + $0x80] sm:$0xff]
  %v74 = vld [vmem:[%s1 + $0x88] sm:$0xff]
  %v75 = vld [vmem:[%s1 + $0x90] sm:$0xff]
  %v76 = vld [vmem:[%s1 + $0x98] sm:$0xff]
  %v77 = vld [vmem:[%s1 + $0xa0] sm:$0xff]
  %v78 = vld [vmem:[%s1 + $0xa8] sm:$0xff]
  %v79 = vld [vmem:[%s1 + $0xb0] sm:$0xff]
  %v80 = vld [vmem:[%s1 + $0xb8] sm:$0xff]
  %v81 = vld [vmem:[%s1 + $0xc0] sm:$0xff]
  %v82 = vld [vmem:[%s1 + $0xc8] sm:$0xff]
  %v83 = vld [vmem:[%s1 + $0xd0] sm:$0xff]
  %v84 = vld [vmem:[%s1 + $0xd8] sm:$0xff]
  %v85 = vld [vmem:[%s1 + $0xe0] sm:$0xff]
  %v86 = vld [vmem:[%s1 + $0xe8] sm:$0xff]
  %v87 = vld [vmem:[%s1 + $0xf0] sm:$0xff]
  %v88 = vld [vmem:[%s1 + $0xf8] sm:$0xff]
  %v89 = vld [vmem:[%s1 + $0x100] sm:$0xff]
  %v90 = vld [vmem:[%s1 + $0x108] sm:$0xff]
  %v91 = vld [vmem:[%s1 + $0x110] sm:$0xff]
  %v92 = vld [vmem:[%s1 + $0x118] sm:$0xff]
  %v93 = vld [vmem:[%s1 + $0x120] sm:$0xff]
  %v94 = vld [vmem:[%s1 + $0x128] sm:$0xff]
  %v95 = vld [vmem:[%s1 + $0x130] sm:$0xff]
  %v96 = vld [vmem:[%s1 + $0x138] sm:$0xff]
  %v97 = vld [vmem:[%s1 + $0x140] sm:$0xff]
  %v98 = vld [vmem:[%s1 + $0x148] sm:$0xff]
  %v99 = vld [vmem:[%s1 + $0x150] sm:$0xff]
  %v100 = vld [vmem:[%s1 + $0x158] sm:$0xff]
  %v101 = vld [vmem:[%s1 + $0x160] sm:$0xff]
  %v102 = vld [vmem:[%s1 + $0x168] sm:$0xff]
  %v103 = vld [vmem:[%s1 + $0x170] sm:$0xff]
  %v104 = vld [vmem:[%s1 + $0x178] sm:$0xff]
  %v105 = vld [vmem:[%s1 + $0x180] sm:$0xff]
  %v106 = vld [vmem:[%s1 + $0x188] sm:$0xff]
  %v107 = vld [vmem:[%s1 + $0x190] sm:$0xff]
  %v108 = vld [vmem:[%s1 + $0x198] sm:$0xff]
  %v109 = vld [vmem:[%s1 + $0x1a0] sm:$0xff]
  %v110 = vld [vmem:[%s1 + $0x1a8] sm:$0xff]
  %v111 = vld [vmem:[%s1 + $0x1b0] sm:$0xff]
  %v112 = vld [vmem:[%s1 + $0x1b8] sm:$0xff]
  %v113 = vld [vmem:[%s1 + $0x1c0] sm:$0xff]
  %v114 = vld [vmem:[%s1 + $0x1c8] sm:$0xff]
  %v115 = vld [vmem:[%s1 + $0x1d0] sm:$0xff]
  %v116 = vld [vmem:[%s1 + $0x1d8] sm:$0xff]
  %v117 = vld [vmem:[%s1 + $0x1e0] sm:$0xff]
  %v118 = vld [vmem:[%s1 + $0x1e8] sm:$0xff]
  %v119 = vld [vmem:[%s1 + $0x1f0] sm:$0xff]
  %v120 = vld [vmem:[%s1 + $0x1f8] sm:$0xff]
  %v121 = vld [vmem:[%s1 + $0x200] sm:$0xff]
  %v122 = vld [vmem:[%s1 + $0x208] sm:$0xff]
  %v123 = vld [vmem:[%s1 + $0x210] sm:$0xff]
  %v124 = vld [vmem:[%s1 + $0x218] sm:$0xff]
  %v125 = vld [vmem:[%s1 + $0x220] sm:$0xff]
  %v126 = vld [vmem:[%s1 + $0x228] sm:$0xff]
  %v127 = vld [vmem:[%s1 + $0x230] sm:$0xff]
  %v128 = vld [vmem:[%s1 + $0x238] sm:$0xff]
  %v129 = vld [vmem:[%s1 + $0x240] sm:$0xff]
  %v130 = vld [vmem:[%s1 + $0x248] sm:$0xff]
  %v131 = vld [vmem:[%s1 + $0x250] sm:$0xff]
  %v132 = vld [vmem:[%s1 + $0x258] sm:$0xff]
  %v133 = vld [vmem:[%s1 + $0x260] sm:$0xff]
  %v134 = vld [vmem:[%s1 + $0x268] sm:$0xff]
  %v135 = vld [vmem:[%s1 + $0x270] sm:$0xff]
  %v136 = vld [vmem:[%s1 + $0x278] sm:$0xff]
  %v137 = vld [vmem:[%s1 + $0x280] sm:$0xff]
  %v138 = vld [vmem:[%s1 + $0x288] sm:$0xff]
  %v139 = vld [vmem:[%s1 + $0x290] sm:$0xff]
  %v140 = vld [vmem:[%s1 + $0x298] sm:$0xff]
  %v141 = vld [vmem:[%s1 + $0x2a0] sm:$0xff]
  %v142 = vld [vmem:[%s1 + $0x2a8] sm:$0xff]
  %v143 = vld [vmem:[%s1 + $0x2b0] sm:$0xff]
  %v144 = vld [vmem:[%s1 + $0x2b8] sm:$0xff]
  %v145 = vld [vmem:[%s1 + $0x2c0] sm:$0xff]
  %v146 = vld [vmem:[%s1 + $0x2c8] sm:$0xff]
  %v147 = vld [vmem:[%s1 + $0x2d0] sm:$0xff]
  %v148 = vld [vmem:[%s1 + $0x2d8] sm:$0xff]
  %v149 = vld [vmem:[%s1 + $0x2e0] sm:$0xff]
  %v150 = vld [vmem:[%s1 + $0x2e8] sm:$0xff]
  %v151 = vld [vmem:[%s1 + $0x2f0] sm:$0xff]
  %v152 = vld [vmem:[%s1 + $0x2f8] sm:$0xff]
  %v153 = vld [vmem:[%s1 + $0x300] sm:$0xff]
  %v154 = vld [vmem:[%s1 + $0x308] sm:$0xff]
  %v155 = vld [vmem:[%s1 + $0x310] sm:$0xff]
  %v156 = vld [vmem:[%s1 + $0x318] sm:$0xff]
  %v157 = vld [vmem:[%s1 + $0x320] sm:$0xff]
  %v158 = vld [vmem:[%s1 + $0x328] sm:$0xff]
  %v159 = vld [vmem:[%s1 + $0x330] sm:$0xff]
  %v160 = vld [vmem:[%s1 + $0x338] sm:$0xff]
  %v161 = vld [vmem:[%s1 + $0x340] sm:$0xff]
  %v162 = vld [vmem:[%s1 + $0x348] sm:$0xff]
  %v163 = vld [vmem:[%s1 + $0x350] sm:$0xff]
  %v164 = vld [vmem:[%s1 + $0x358] sm:$0xff]
  %v165 = vld [vmem:[%s1 + $0x360] sm:$0xff]
  %v166 = vld [vmem:[%s1 + $0x368] sm:$0xff]
  %v167 = vld [vmem:[%s1 + $0x370] sm:$0xff]
  %v168 = vld [vmem:[%s1 + $0x378] sm:$0xff]
  %v169 = vld [vmem:[%s1 + $0x380] sm:$0xff]
  %v170 = vld [vmem:[%s1 + $0x388] sm:$0xff]
  %v171 = vld [vmem:[%s1 + $0x390] sm:$0xff]
  %v172 = vld [vmem:[%s1 + $0x398] sm:$0xff]
  %v173 = vld [vmem:[%s1 + $0x3a0] sm:$0xff]
  %v174 = vld [vmem:[%s1 + $0x3a8] sm:$0xff]
  %v175 = vld [vmem:[%s1 + $0x3b0] sm:$0xff]
  %v176 = vld [vmem:[%s1 + $0x3b8] sm:$0xff]
  %v177 = vld [vmem:[%s1 + $0x3c0] sm:$0xff]
  %v178 = vld [vmem:[%s1 + $0x3c8] sm:$0xff]
  %v179 = vld [vmem:[%s1 + $0x3d0] sm:$0xff]
  %v180 = vld [vmem:[%s1 + $0x3d8] sm:$0xff]
  %v181 = vld [vmem:[%s1 + $0x3e0] sm:$0xff]
  %v182 = vld [vmem:[%s1 + $0x3e8] sm:$0xff]
  %v183 = vld [vmem:[%s1 + $0x3f0] sm:$0xff]
  %v184 = vld [vmem:[%s1 + $0x3f8] sm:$0xff]
  %v185 = vld [vmem:[%s4] sm:$0xf]
  %v187 = vperm.slane %v185, 0
  %v188 = vperm.slane %v185, 1
  %v189 = vperm.slane %v185, 2
  %v190 = vperm.slane %v185, 3
  %195 = vmatpush.msra.mxu0 %v117
  %196 = vmatpush.msra.mxu0 %v113
  %197 = vmatpush.msra.mxu0 %v109
  %198 = vmatpush.msra.mxu0 %v105
  %199 = vmatpush.msra.mxu0 %v101
  %200 = vmatpush.msra.mxu0 %v97
  %201 = vmatpush.msra.mxu0 %v93
  %202 = vmatpush.msra.mxu0 %v89
  %203 = vmatpush.msra.mxu0 %v85
  %204 = vmatpush.msra.mxu0 %v81
  %205 = vmatpush.msra.mxu0 %v77
  %206 = vmatpush.msra.mxu0 %v73
  %207 = vmatpush.msra.mxu0 %v69
  %208 = vmatpush.msra.mxu0 %v65
  %209 = vmatpush.msra.mxu0 %v61
  %210 = vmatpush.msra.mxu0 %v57
  %211 = vmatmul.f32.gmra.mxu0 %v29
  %v212 = vpop.f32.mrf.mxu0
  %v213 = vadd.f32 %v187, %v212
  %214 = vmatmul.f32.gmra.mxu0 %v31
  %v215 = vpop.f32.mrf.mxu0
  %v216 = vadd.f32 %v187, %v215
  %217 = vmatmul.f32.gmra.mxu0 %v33
  %v218 = vpop.f32.mrf.mxu0
  %v219 = vadd.f32 %v187, %v218
  %220 = vmatmul.f32.gmra.mxu0 %v35
  %v221 = vpop.f32.mrf.mxu0
  %v222 = vadd.f32 %v187, %v221
  %223 = vmatmul.f32.gmra.mxu0 %v37
  %v224 = vpop.f32.mrf.mxu0
  %v225 = vadd.f32 %v187, %v224
  %226 = vmatmul.f32.gmra.mxu0 %v39
  %v227 = vpop.f32.mrf.mxu0
  %v228 = vadd.f32 %v187, %v227
  %229 = vmatmul.f32.gmra.mxu0 %v41
  %v230 = vpop.f32.mrf.mxu0
  %v231 = vadd.f32 %v187, %v230
  %232 = vmatmul.f32.gmra.mxu0 %v43
  %v233 = vpop.f32.mrf.mxu0
  %v234 = vadd.f32 %v187, %v233
  %235 = vmatmul.f32.gmra.mxu0 %v45
  %v236 = vpop.f32.mrf.mxu0
  %v237 = vadd.f32 %v187, %v236
  %238 = vmatmul.f32.gmra.mxu0 %v47
  %v239 = vpop.f32.mrf.mxu0
  %v240 = vadd.f32 %v187, %v239
  %241 = vmatmul.f32.gmra.mxu0 %v49
  %v242 = vpop.f32.mrf.mxu0
  %v243 = vadd.f32 %v187, %v242
  %244 = vmatmul.f32.gmra.mxu0 %v51
  %v245 = vpop.f32.mrf.mxu0
  %v246 = vadd.f32 %v187, %v245
  %247 = vmatmul.f32.gmra.mxu0 %v53
  %v248 = vpop.f32.mrf.mxu0
  %v249 = vadd.f32 %v187, %v248
  %250 = vmatmul.f32.gmra.mxu0 %v55
  %v251 = vpop.f32.mrf.mxu0
  %v252 = vadd.f32 %v187, %v251
  %253 = vdwg.mxu0
  %254 = vmatpush.msra.mxu0 %v181
  %255 = vmatpush.msra.mxu0 %v177
  %256 = vmatpush.msra.mxu0 %v173
  %257 = vmatpush.msra.mxu0 %v169
  %258 = vmatpush.msra.mxu0 %v165
  %259 = vmatpush.msra.mxu0 %v161
  %260 = vmatpush.msra.mxu0 %v157
  %261 = vmatpush.msra.mxu0 %v153
  %262 = vmatpush.msra.mxu0 %v149
  %263 = vmatpush.msra.mxu0 %v145
  %264 = vmatpush.msra.mxu0 %v141
  %265 = vmatpush.msra.mxu0 %v137
  %266 = vmatpush.msra.mxu0 %v133
  %267 = vmatpush.msra.mxu0 %v129
  %268 = vmatpush.msra.mxu0 %v125
  %269 = vmatpush.msra.mxu0 %v121
  %270 = vmatmul.f32.gmra.mxu0 %v30
  %v271 = vpop.f32.mrf.mxu0
  %v272 = vadd.f32 %v213, %v271
  %273 = vmatmul.f32.gmra.mxu0 %v32
  %v274 = vpop.f32.mrf.mxu0
  %v275 = vadd.f32 %v216, %v274
  %276 = vmatmul.f32.gmra.mxu0 %v34
  %v277 = vpop.f32.mrf.mxu0
  %v278 = vadd.f32 %v219, %v277
  %279 = vmatmul.f32.gmra.mxu0 %v36
  %v280 = vpop.f32.mrf.mxu0
  %v281 = vadd.f32 %v222, %v280
  %282 = vmatmul.f32.gmra.mxu0 %v38
  %v283 = vpop.f32.mrf.mxu0
  %v284 = vadd.f32 %v225, %v283
  %285 = vmatmul.f32.gmra.mxu0 %v40
  %v286 = vpop.f32.mrf.mxu0
  %v287 = vadd.f32 %v228, %v286
  %288 = vmatmul.f32.gmra.mxu0 %v42
  %v289 = vpop.f32.mrf.mxu0
  %v290 = vadd.f32 %v231, %v289
  %291 = vmatmul.f32.gmra.mxu0 %v44
  %v292 = vpop.f32.mrf.mxu0
  %v293 = vadd.f32 %v234, %v292
  %294 = vmatmul.f32.gmra.mxu0 %v46
  %v295 = vpop.f32.mrf.mxu0
  %v296 = vadd.f32 %v237, %v295
  %297 = vmatmul.f32.gmra.mxu0 %v48
  %v298 = vpop.f32.mrf.mxu0
  %v299 = vadd.f32 %v240, %v298
  %300 = vmatmul.f32.gmra.mxu0 %v50
  %v301 = vpop.f32.mrf.mxu0
  %v302 = vadd.f32 %v243, %v301
  %303 = vmatmul.f32.gmra.mxu0 %v52
  %v304 = vpop.f32.mrf.mxu0
  %v305 = vadd.f32 %v246, %v304
  %306 = vmatmul.f32.gmra.mxu0 %v54
  %v307 = vpop.f32.mrf.mxu0
  %v308 = vadd.f32 %v249, %v307
  %309 = vmatmul.f32.gmra.mxu0 %v56
  %v310 = vpop.f32.mrf.mxu0
  %v311 = vadd.f32 %v252, %v310
  %312 = vdwg.mxu0
  %313 = vmatpush.msra.mxu0 %v118
  %314 = vmatpush.msra.mxu0 %v114
  %315 = vmatpush.msra.mxu0 %v110
  %316 = vmatpush.msra.mxu0 %v106
  %317 = vmatpush.msra.mxu0 %v102
  %318 = vmatpush.msra.mxu0 %v98
  %319 = vmatpush.msra.mxu0 %v94
  %320 = vmatpush.msra.mxu0 %v90
  %321 = vmatpush.msra.mxu0 %v86
  %322 = vmatpush.msra.mxu0 %v82
  %323 = vmatpush.msra.mxu0 %v78
  %324 = vmatpush.msra.mxu0 %v74
  %325 = vmatpush.msra.mxu0 %v70
  %326 = vmatpush.msra.mxu0 %v66
  %327 = vmatpush.msra.mxu0 %v62
  %328 = vmatpush.msra.mxu0 %v58
  %329 = vmatmul.f32.gmra.mxu0 %v29
  %v330 = vpop.f32.mrf.mxu0
  %v331 = vadd.f32 %v188, %v330
  %332 = vmatmul.f32.gmra.mxu0 %v31
  %v333 = vpop.f32.mrf.mxu0
  %v334 = vadd.f32 %v188, %v333
  %335 = vmatmul.f32.gmra.mxu0 %v33
  %v336 = vpop.f32.mrf.mxu0
  %v337 = vadd.f32 %v188, %v336
  %338 = vmatmul.f32.gmra.mxu0 %v35
  %v339 = vpop.f32.mrf.mxu0
  %v340 = vadd.f32 %v188, %v339
  %341 = vmatmul.f32.gmra.mxu0 %v37
  %v342 = vpop.f32.mrf.mxu0
  %v343 = vadd.f32 %v188, %v342
  %344 = vmatmul.f32.gmra.mxu0 %v39
  %v345 = vpop.f32.mrf.mxu0
  %v346 = vadd.f32 %v188, %v345
  %347 = vmatmul.f32.gmra.mxu0 %v41
  %v348 = vpop.f32.mrf.mxu0
  %v349 = vadd.f32 %v188, %v348
  %350 = vmatmul.f32.gmra.mxu0 %v43
  %v351 = vpop.f32.mrf.mxu0
  %v352 = vadd.f32 %v188, %v351
  %353 = vmatmul.f32.gmra.mxu0 %v45
  %v354 = vpop.f32.mrf.mxu0
  %v355 = vadd.f32 %v188, %v354
  %356 = vmatmul.f32.gmra.mxu0 %v47
  %v357 = vpop.f32.mrf.mxu0
  %v358 = vadd.f32 %v188, %v357
  %359 = vmatmul.f32.gmra.mxu0 %v49
  %v360 = vpop.f32.mrf.mxu0
  %v361 = vadd.f32 %v188, %v360
  %362 = vmatmul.f32.gmra.mxu0 %v51
  %v363 = vpop.f32.mrf.mxu0
  %v364 = vadd.f32 %v188, %v363
  %365 = vmatmul.f32.gmra.mxu0 %v53
  %v366 = vpop.f32.mrf.mxu0
  %v367 = vadd.f32 %v188, %v366
  %368 = vmatmul.f32.gmra.mxu0 %v55
  %v369 = vpop.f32.mrf.mxu0
  %v370 = vadd.f32 %v188, %v369
  %371 = vdwg.mxu0
  %372 = vmatpush.msra.mxu0 %v182
  %373 = vmatpush.msra.mxu0 %v178
  %374 = vmatpush.msra.mxu0 %v174
  %375 = vmatpush.msra.mxu0 %v170
  %376 = vmatpush.msra.mxu0 %v166
  %377 = vmatpush.msra.mxu0 %v162
  %378 = vmatpush.msra.mxu0 %v158
  %379 = vmatpush.msra.mxu0 %v154
  %380 = vmatpush.msra.mxu0 %v150
  %381 = vmatpush.msra.mxu0 %v146
  %382 = vmatpush.msra.mxu0 %v142
  %383 = vmatpush.msra.mxu0 %v138
  %384 = vmatpush.msra.mxu0 %v134
  %385 = vmatpush.msra.mxu0 %v130
  %386 = vmatpush.msra.mxu0 %v126
  %387 = vmatpush.msra.mxu0 %v122
  %388 = vmatmul.f32.gmra.mxu0 %v30
  %v389 = vpop.f32.mrf.mxu0
  %v390 = vadd.f32 %v331, %v389
  %391 = vmatmul.f32.gmra.mxu0 %v32
  %v392 = vpop.f32.mrf.mxu0
  %v393 = vadd.f32 %v334, %v392
  %394 = vmatmul.f32.gmra.mxu0 %v34
  %v395 = vpop.f32.mrf.mxu0
  %v396 = vadd.f32 %v337, %v395
  %397 = vmatmul.f32.gmra.mxu0 %v36
  %v398 = vpop.f32.mrf.mxu0
  %v399 = vadd.f32 %v340, %v398
  %400 = vmatmul.f32.gmra.mxu0 %v38
  %v401 = vpop.f32.mrf.mxu0
  %v402 = vadd.f32 %v343, %v401
  %403 = vmatmul.f32.gmra.mxu0 %v40
  %v404 = vpop.f32.mrf.mxu0
  %v405 = vadd.f32 %v346, %v404
  %406 = vmatmul.f32.gmra.mxu0 %v42
  %v407 = vpop.f32.mrf.mxu0
  %v408 = vadd.f32 %v349, %v407
  %409 = vmatmul.f32.gmra.mxu0 %v44
  %v410 = vpop.f32.mrf.mxu0
  %v411 = vadd.f32 %v352, %v410
  %412 = vmatmul.f32.gmra.mxu0 %v46
  %v413 = vpop.f32.mrf.mxu0
  %v414 = vadd.f32 %v355, %v413
  %415 = vmatmul.f32.gmra.mxu0 %v48
  %v416 = vpop.f32.mrf.mxu0
  %v417 = vadd.f32 %v358, %v416
  %418 = vmatmul.f32.gmra.mxu0 %v50
  %v419 = vpop.f32.mrf.mxu0
  %v420 = vadd.f32 %v361, %v419
  %421 = vmatmul.f32.gmra.mxu0 %v52
  %v422 = vpop.f32.mrf.mxu0
  %v423 = vadd.f32 %v364, %v422
  %424 = vmatmul.f32.gmra.mxu0 %v54
  %v425 = vpop.f32.mrf.mxu0
  %v426 = vadd.f32 %v367, %v425
  %427 = vmatmul.f32.gmra.mxu0 %v56
  %v428 = vpop.f32.mrf.mxu0
  %v429 = vadd.f32 %v370, %v428
  %430 = vdwg.mxu0
  %431 = vmatpush.msra.mxu0 %v119
  %432 = vmatpush.msra.mxu0 %v115
  %433 = vmatpush.msra.mxu0 %v111
  %434 = vmatpush.msra.mxu0 %v107
  %435 = vmatpush.msra.mxu0 %v103
  %436 = vmatpush.msra.mxu0 %v99
  %437 = vmatpush.msra.mxu0 %v95
  %438 = vmatpush.msra.mxu0 %v91
  %439 = vmatpush.msra.mxu0 %v87
  %440 = vmatpush.msra.mxu0 %v83
  %441 = vmatpush.msra.mxu0 %v79
  %442 = vmatpush.msra.mxu0 %v75
  %443 = vmatpush.msra.mxu0 %v71
  %444 = vmatpush.msra.mxu0 %v67
  %445 = vmatpush.msra.mxu0 %v63
  %446 = vmatpush.msra.mxu0 %v59
  %447 = vmatmul.f32.gmra.mxu0 %v29
  %v448 = vpop.f32.mrf.mxu0
  %v449 = vadd.f32 %v189, %v448
  %450 = vmatmul.f32.gmra.mxu0 %v31
  %v451 = vpop.f32.mrf.mxu0
  %v452 = vadd.f32 %v189, %v451
  %453 = vmatmul.f32.gmra.mxu0 %v33
  %v454 = vpop.f32.mrf.mxu0
  %v455 = vadd.f32 %v189, %v454
  %456 = vmatmul.f32.gmra.mxu0 %v35
  %v457 = vpop.f32.mrf.mxu0
  %v458 = vadd.f32 %v189, %v457
  %459 = vmatmul.f32.gmra.mxu0 %v37
  %v460 = vpop.f32.mrf.mxu0
  %v461 = vadd.f32 %v189, %v460
  %462 = vmatmul.f32.gmra.mxu0 %v39
  %v463 = vpop.f32.mrf.mxu0
  %v464 = vadd.f32 %v189, %v463
  %465 = vmatmul.f32.gmra.mxu0 %v41
  %v466 = vpop.f32.mrf.mxu0
  %v467 = vadd.f32 %v189, %v466
  %468 = vmatmul.f32.gmra.mxu0 %v43
  %v469 = vpop.f32.mrf.mxu0
  %v470 = vadd.f32 %v189, %v469
  %471 = vmatmul.f32.gmra.mxu0 %v45
  %v472 = vpop.f32.mrf.mxu0
  %v473 = vadd.f32 %v189, %v472
  %474 = vmatmul.f32.gmra.mxu0 %v47
  %v475 = vpop.f32.mrf.mxu0
  %v476 = vadd.f32 %v189, %v475
  %477 = vmatmul.f32.gmra.mxu0 %v49
  %v478 = vpop.f32.mrf.mxu0
  %v479 = vadd.f32 %v189, %v478
  %480 = vmatmul.f32.gmra.mxu0 %v51
  %v481 = vpop.f32.mrf.mxu0
  %v482 = vadd.f32 %v189, %v481
  %483 = vmatmul.f32.gmra.mxu0 %v53
  %v484 = vpop.f32.mrf.mxu0
  %v485 = vadd.f32 %v189, %v484
  %486 = vmatmul.f32.gmra.mxu0 %v55
  %v487 = vpop.f32.mrf.mxu0
  %v488 = vadd.f32 %v189, %v487
  %489 = vdwg.mxu0
  %490 = vmatpush.msra.mxu0 %v183
  %491 = vmatpush.msra.mxu0 %v179
  %492 = vmatpush.msra.mxu0 %v175
  %493 = vmatpush.msra.mxu0 %v171
  %494 = vmatpush.msra.mxu0 %v167
  %495 = vmatpush.msra.mxu0 %v163
  %496 = vmatpush.msra.mxu0 %v159
  %497 = vmatpush.msra.mxu0 %v155
  %498 = vmatpush.msra.mxu0 %v151
  %499 = vmatpush.msra.mxu0 %v147
  %500 = vmatpush.msra.mxu0 %v143
  %501 = vmatpush.msra.mxu0 %v139
  %502 = vmatpush.msra.mxu0 %v135
  %503 = vmatpush.msra.mxu0 %v131
  %504 = vmatpush.msra.mxu0 %v127
  %505 = vmatpush.msra.mxu0 %v123
  %506 = vmatmul.f32.gmra.mxu0 %v30
  %v507 = vpop.f32.mrf.mxu0
  %v508 = vadd.f32 %v449, %v507
  %509 = vmatmul.f32.gmra.mxu0 %v32
  %v510 = vpop.f32.mrf.mxu0
  %v511 = vadd.f32 %v452, %v510
  %512 = vmatmul.f32.gmra.mxu0 %v34
  %v513 = vpop.f32.mrf.mxu0
  %v514 = vadd.f32 %v455, %v513
  %515 = vmatmul.f32.gmra.mxu0 %v36
  %v516 = vpop.f32.mrf.mxu0
  %v517 = vadd.f32 %v458, %v516
  %518 = vmatmul.f32.gmra.mxu0 %v38
  %v519 = vpop.f32.mrf.mxu0
  %v520 = vadd.f32 %v461, %v519
  %521 = vmatmul.f32.gmra.mxu0 %v40
  %v522 = vpop.f32.mrf.mxu0
  %v523 = vadd.f32 %v464, %v522
  %524 = vmatmul.f32.gmra.mxu0 %v42
  %v525 = vpop.f32.mrf.mxu0
  %v526 = vadd.f32 %v467, %v525
  %527 = vmatmul.f32.gmra.mxu0 %v44
  %v528 = vpop.f32.mrf.mxu0
  %v529 = vadd.f32 %v470, %v528
  %530 = vmatmul.f32.gmra.mxu0 %v46
  %v531 = vpop.f32.mrf.mxu0
  %v532 = vadd.f32 %v473, %v531
  %533 = vmatmul.f32.gmra.mxu0 %v48
  %v534 = vpop.f32.mrf.mxu0
  %v535 = vadd.f32 %v476, %v534
  %536 = vmatmul.f32.gmra.mxu0 %v50
  %v537 = vpop.f32.mrf.mxu0
  %v538 = vadd.f32 %v479, %v537
  %539 = vmatmul.f32.gmra.mxu0 %v52
  %v540 = vpop.f32.mrf.mxu0
  %v541 = vadd.f32 %v482, %v540
  %542 = vmatmul.f32.gmra.mxu0 %v54
  %v543 = vpop.f32.mrf.mxu0
  %v544 = vadd.f32 %v485, %v543
  %545 = vmatmul.f32.gmra.mxu0 %v56
  %v546 = vpop.f32.mrf.mxu0
  %v547 = vadd.f32 %v488, %v546
  %548 = vdwg.mxu0
  %549 = vmatpush.msra.mxu0 %v120
  %550 = vmatpush.msra.mxu0 %v116
  %551 = vmatpush.msra.mxu0 %v112
  %552 = vmatpush.msra.mxu0 %v108
  %553 = vmatpush.msra.mxu0 %v104
  %554 = vmatpush.msra.mxu0 %v100
  %555 = vmatpush.msra.mxu0 %v96
  %556 = vmatpush.msra.mxu0 %v92
  %557 = vmatpush.msra.mxu0 %v88
  %558 = vmatpush.msra.mxu0 %v84
  %559 = vmatpush.msra.mxu0 %v80
  %560 = vmatpush.msra.mxu0 %v76
  %561 = vmatpush.msra.mxu0 %v72
  %562 = vmatpush.msra.mxu0 %v68
  %563 = vmatpush.msra.mxu0 %v64
  %564 = vmatpush.msra.mxu0 %v60
  %565 = vmatmul.f32.gmra.mxu0 %v29
  %v566 = vpop.f32.mrf.mxu0
  %v567 = vadd.f32 %v190, %v566
  %568 = vmatmul.f32.gmra.mxu0 %v31
  %v569 = vpop.f32.mrf.mxu0
  %v570 = vadd.f32 %v190, %v569
  %571 = vmatmul.f32.gmra.mxu0 %v33
  %v572 = vpop.f32.mrf.mxu0
  %v573 = vadd.f32 %v190, %v572
  %574 = vmatmul.f32.gmra.mxu0 %v35
  %v575 = vpop.f32.mrf.mxu0
  %v576 = vadd.f32 %v190, %v575
  %577 = vmatmul.f32.gmra.mxu0 %v37
  %v578 = vpop.f32.mrf.mxu0
  %v579 = vadd.f32 %v190, %v578
  %580 = vmatmul.f32.gmra.mxu0 %v39
  %v581 = vpop.f32.mrf.mxu0
  %v582 = vadd.f32 %v190, %v581
  %583 = vmatmul.f32.gmra.mxu0 %v41
  %v584 = vpop.f32.mrf.mxu0
  %v585 = vadd.f32 %v190, %v584
  %586 = vmatmul.f32.gmra.mxu0 %v43
  %v587 = vpop.f32.mrf.mxu0
  %v588 = vadd.f32 %v190, %v587
  %589 = vmatmul.f32.gmra.mxu0 %v45
  %v590 = vpop.f32.mrf.mxu0
  %v591 = vadd.f32 %v190, %v590
  %592 = vmatmul.f32.gmra.mxu0 %v47
  %v593 = vpop.f32.mrf.mxu0
  %v594 = vadd.f32 %v190, %v593
  %595 = vmatmul.f32.gmra.mxu0 %v49
  %v596 = vpop.f32.mrf.mxu0
  %v597 = vadd.f32 %v190, %v596
  %598 = vmatmul.f32.gmra.mxu0 %v51
  %v599 = vpop.f32.mrf.mxu0
  %v600 = vadd.f32 %v190, %v599
  %601 = vmatmul.f32.gmra.mxu0 %v53
  %v602 = vpop.f32.mrf.mxu0
  %v603 = vadd.f32 %v190, %v602
  %604 = vmatmul.f32.gmra.mxu0 %v55
  %v605 = vpop.f32.mrf.mxu0
  %v606 = vadd.f32 %v190, %v605
  %607 = vdwg.mxu0
  %608 = vmatpush.msra.mxu0 %v184
  %609 = vmatpush.msra.mxu0 %v180
  %610 = vmatpush.msra.mxu0 %v176
  %611 = vmatpush.msra.mxu0 %v172
  %612 = vmatpush.msra.mxu0 %v168
  %613 = vmatpush.msra.mxu0 %v164
  %614 = vmatpush.msra.mxu0 %v160
  %615 = vmatpush.msra.mxu0 %v156
  %616 = vmatpush.msra.mxu0 %v152
  %617 = vmatpush.msra.mxu0 %v148
  %618 = vmatpush.msra.mxu0 %v144
  %619 = vmatpush.msra.mxu0 %v140
  %620 = vmatpush.msra.mxu0 %v136
  %621 = vmatpush.msra.mxu0 %v132
  %622 = vmatpush.msra.mxu0 %v128
  %623 = vmatpush.msra.mxu0 %v124
  %624 = vmatmul.f32.gmra.mxu0 %v30
  %v625 = vpop.f32.mrf.mxu0
  %v626 = vadd.f32 %v567, %v625
  %627 = vmatmul.f32.gmra.mxu0 %v32
  %v628 = vpop.f32.mrf.mxu0
  %v629 = vadd.f32 %v570, %v628
  %630 = vmatmul.f32.gmra.mxu0 %v34
  %v631 = vpop.f32.mrf.mxu0
  %v632 = vadd.f32 %v573, %v631
  %633 = vmatmul.f32.gmra.mxu0 %v36
  %v634 = vpop.f32.mrf.mxu0
  %v635 = vadd.f32 %v576, %v634
  %636 = vmatmul.f32.gmra.mxu0 %v38
  %v637 = vpop.f32.mrf.mxu0
  %v638 = vadd.f32 %v579, %v637
  %639 = vmatmul.f32.gmra.mxu0 %v40
  %v640 = vpop.f32.mrf.mxu0
  %v641 = vadd.f32 %v582, %v640
  %642 = vmatmul.f32.gmra.mxu0 %v42
  %v643 = vpop.f32.mrf.mxu0
  %v644 = vadd.f32 %v585, %v643
  %645 = vmatmul.f32.gmra.mxu0 %v44
  %v646 = vpop.f32.mrf.mxu0
  %v647 = vadd.f32 %v588, %v646
  %648 = vmatmul.f32.gmra.mxu0 %v46
  %v649 = vpop.f32.mrf.mxu0
  %v650 = vadd.f32 %v591, %v649
  %651 = vmatmul.f32.gmra.mxu0 %v48
  %v652 = vpop.f32.mrf.mxu0
  %v653 = vadd.f32 %v594, %v652
  %654 = vmatmul.f32.gmra.mxu0 %v50
  %v655 = vpop.f32.mrf.mxu0
  %v656 = vadd.f32 %v597, %v655
  %657 = vmatmul.f32.gmra.mxu0 %v52
  %v658 = vpop.f32.mrf.mxu0
  %v659 = vadd.f32 %v600, %v658
  %660 = vmatmul.f32.gmra.mxu0 %v54
  %v661 = vpop.f32.mrf.mxu0
  %v662 = vadd.f32 %v603, %v661
  %663 = vmatmul.f32.gmra.mxu0 %v56
  %v664 = vpop.f32.mrf.mxu0
  %v665 = vadd.f32 %v606, %v664
  %666 = vdwg.mxu0
  %667 = vst [vmem:[#allocation2] sm:$0xff] %v272
  %668 = vst [vmem:[#allocation2 + $0x8] sm:$0xff] %v390
  %669 = vst [vmem:[#allocation2 + $0x10] sm:$0xff] %v508
  %670 = vst [vmem:[#allocation2 + $0x18] sm:$0xff] %v626
  %671 = vst [vmem:[#allocation2 + $0x20] sm:$0xff] %v275
  %672 = vst [vmem:[#allocation2 + $0x28] sm:$0xff] %v393
  %673 = vst [vmem:[#allocation2 + $0x30] sm:$0xff] %v511
  %674 = vst [vmem:[#allocation2 + $0x38] sm:$0xff] %v629
  %675 = vst [vmem:[#allocation2 + $0x40] sm:$0xff] %v278
  %676 = vst [vmem:[#allocation2 + $0x48] sm:$0xff] %v396
  %677 = vst [vmem:[#allocation2 + $0x50] sm:$0xff] %v514
  %678 = vst [vmem:[#allocation2 + $0x58] sm:$0xff] %v632
  %679 = vst [vmem:[#allocation2 + $0x60] sm:$0xff] %v281
  %680 = vst [vmem:[#allocation2 + $0x68] sm:$0xff] %v399
  %681 = vst [vmem:[#allocation2 + $0x70] sm:$0xff] %v517
  %682 = vst [vmem:[#allocation2 + $0x78] sm:$0xff] %v635
  %683 = vst [vmem:[#allocation2 + $0x80] sm:$0xff] %v284
  %684 = vst [vmem:[#allocation2 + $0x88] sm:$0xff] %v402
  %685 = vst [vmem:[#allocation2 + $0x90] sm:$0xff] %v520
  %686 = vst [vmem:[#allocation2 + $0x98] sm:$0xff] %v638
  %687 = vst [vmem:[#allocation2 + $0xa0] sm:$0xff] %v287
  %688 = vst [vmem:[#allocation2 + $0xa8] sm:$0xff] %v405
  %689 = vst [vmem:[#allocation2 + $0xb0] sm:$0xff] %v523
  %690 = vst [vmem:[#allocation2 + $0xb8] sm:$0xff] %v641
  %691 = vst [vmem:[#allocation2 + $0xc0] sm:$0xff] %v290
  %692 = vst [vmem:[#allocation2 + $0xc8] sm:$0xff] %v408
  %693 = vst [vmem:[#allocation2 + $0xd0] sm:$0xff] %v526
  %694 = vst [vmem:[#allocation2 + $0xd8] sm:$0xff] %v644
  %695 = vst [vmem:[#allocation2 + $0xe0] sm:$0xff] %v293
  %696 = vst [vmem:[#allocation2 + $0xe8] sm:$0xff] %v411
  %697 = vst [vmem:[#allocation2 + $0xf0] sm:$0xff] %v529
  %698 = vst [vmem:[#allocation2 + $0xf8] sm:$0xff] %v647
  %699 = vst [vmem:[#allocation2 + $0x100] sm:$0xff] %v296
  %700 = vst [vmem:[#allocation2 + $0x108] sm:$0xff] %v414
  %701 = vst [vmem:[#allocation2 + $0x110] sm:$0xff] %v532
  %702 = vst [vmem:[#allocation2 + $0x118] sm:$0xff] %v650
  %703 = vst [vmem:[#allocation2 + $0x120] sm:$0xff] %v299
  %704 = vst [vmem:[#allocation2 + $0x128] sm:$0xff] %v417
  %705 = vst [vmem:[#allocation2 + $0x130] sm:$0xff] %v535
  %706 = vst [vmem:[#allocation2 + $0x138] sm:$0xff] %v653
  %707 = vst [vmem:[#allocation2 + $0x140] sm:$0xff] %v302
  %708 = vst [vmem:[#allocation2 + $0x148] sm:$0xff] %v420
  %709 = vst [vmem:[#allocation2 + $0x150] sm:$0xff] %v538
  %710 = vst [vmem:[#allocation2 + $0x158] sm:$0xff] %v656
  %711 = vst [vmem:[#allocation2 + $0x160] sm:$0xff] %v305
  %712 = vst [vmem:[#allocation2 + $0x168] sm:$0xff] %v423
  %713 = vst [vmem:[#allocation2 + $0x170] sm:$0xff] %v541
  %714 = vst [vmem:[#allocation2 + $0x178] sm:$0xff] %v659
  %715 = vst [vmem:[#allocation2 + $0x180] sm:$0xff] %v308
  %716 = vst [vmem:[#allocation2 + $0x188] sm:$0xff] %v426
  %717 = vst [vmem:[#allocation2 + $0x190] sm:$0xff] %v544
  %718 = vst [vmem:[#allocation2 + $0x198] sm:$0xff] %v662
  %719 = vst [vmem:[#allocation2 + $0x1a0] sm:$0xff] %v311
  %720 = vst [vmem:[#allocation2 + $0x1a8] sm:$0xff] %v429
  %721 = vst [vmem:[#allocation2 + $0x1b0] sm:$0xff] %v547
  %722 = vst [vmem:[#allocation2 + $0x1b8] sm:$0xff] %v665
  %v723 = vld [vmem:[%s5] sm:$0xf]
  %v725 = vperm.slane %v723, 0
  %v726 = vperm.slane %v723, 1
  %v727 = vperm.slane %v723, 2
  %v728 = vperm.slane %v723, 3
  %v733 = vld [vmem:[%s3] sm:$0xff]
  %v734 = vld [vmem:[%s3 + $0x8] sm:$0xff]
  %v735 = vld [vmem:[%s3 + $0x10] sm:$0xff]
  %v736 = vld [vmem:[%s3 + $0x18] sm:$0xff]
  %v737 = vld [vmem:[%s3 + $0x20] sm:$0xff]
  %v738 = vld [vmem:[%s3 + $0x28] sm:$0xff]
  %v739 = vld [vmem:[%s3 + $0x30] sm:$0xff]
  %v740 = vld [vmem:[%s3 + $0x38] sm:$0xff]
  %v741 = vld [vmem:[%s3 + $0x40] sm:$0xff]
  %v742 = vld [vmem:[%s3 + $0x48] sm:$0xff]
  %v743 = vld [vmem:[%s3 + $0x50] sm:$0xff]
  %v744 = vld [vmem:[%s3 + $0x58] sm:$0xff]
  %v745 = vld [vmem:[%s3 + $0x60] sm:$0xff]
  %v746 = vld [vmem:[%s3 + $0x68] sm:$0xff]
  %v747 = vld [vmem:[%s3 + $0x70] sm:$0xff]
  %v748 = vld [vmem:[%s3 + $0x78] sm:$0xff]
  %v749 = vld [vmem:[%s3 + $0x80] sm:$0xff]
  %v750 = vld [vmem:[%s3 + $0x88] sm:$0xff]
  %v751 = vld [vmem:[%s3 + $0x90] sm:$0xff]
  %v752 = vld [vmem:[%s3 + $0x98] sm:$0xff]
  %v753 = vld [vmem:[%s3 + $0xa0] sm:$0xff]
  %v754 = vld [vmem:[%s3 + $0xa8] sm:$0xff]
  %v755 = vld [vmem:[%s3 + $0xb0] sm:$0xff]
  %v756 = vld [vmem:[%s3 + $0xb8] sm:$0xff]
  %v757 = vld [vmem:[%s3 + $0xc0] sm:$0xff]
  %v758 = vld [vmem:[%s3 + $0xc8] sm:$0xff]
  %v759 = vld [vmem:[%s3 + $0xd0] sm:$0xff]
  %v760 = vld [vmem:[%s3 + $0xd8] sm:$0xff]
  %v761 = vld [vmem:[%s3 + $0xe0] sm:$0xff]
  %v762 = vld [vmem:[%s3 + $0xe8] sm:$0xff]
  %v763 = vld [vmem:[%s3 + $0xf0] sm:$0xff]
  %v764 = vld [vmem:[%s3 + $0xf8] sm:$0xff]
  %v765 = vld [vmem:[%s3 + $0x100] sm:$0xff]
  %v766 = vld [vmem:[%s3 + $0x108] sm:$0xff]
  %v767 = vld [vmem:[%s3 + $0x110] sm:$0xff]
  %v768 = vld [vmem:[%s3 + $0x118] sm:$0xff]
  %v769 = vld [vmem:[%s3 + $0x120] sm:$0xff]
  %v770 = vld [vmem:[%s3 + $0x128] sm:$0xff]
  %v771 = vld [vmem:[%s3 + $0x130] sm:$0xff]
  %v772 = vld [vmem:[%s3 + $0x138] sm:$0xff]
  %v773 = vld [vmem:[%s3 + $0x140] sm:$0xff]
  %v774 = vld [vmem:[%s3 + $0x148] sm:$0xff]
  %v775 = vld [vmem:[%s3 + $0x150] sm:$0xff]
  %v776 = vld [vmem:[%s3 + $0x158] sm:$0xff]
  %v777 = vld [vmem:[%s3 + $0x160] sm:$0xff]
  %v778 = vld [vmem:[%s3 + $0x168] sm:$0xff]
  %v779 = vld [vmem:[%s3 + $0x170] sm:$0xff]
  %v780 = vld [vmem:[%s3 + $0x178] sm:$0xff]
  %v781 = vld [vmem:[%s3 + $0x180] sm:$0xff]
  %v782 = vld [vmem:[%s3 + $0x188] sm:$0xff]
  %v783 = vld [vmem:[%s3 + $0x190] sm:$0xff]
  %v784 = vld [vmem:[%s3 + $0x198] sm:$0xff]
  %v785 = vld [vmem:[%s3 + $0x1a0] sm:$0xff]
  %v786 = vld [vmem:[%s3 + $0x1a8] sm:$0xff]
  %v787 = vld [vmem:[%s3 + $0x1b0] sm:$0xff]
  %v788 = vld [vmem:[%s3 + $0x1b8] sm:$0xff]
  %v789 = vld [vmem:[%s3 + $0x1c0] sm:$0xff]
  %v790 = vld [vmem:[%s3 + $0x1c8] sm:$0xff]
  %v791 = vld [vmem:[%s3 + $0x1d0] sm:$0xff]
  %v792 = vld [vmem:[%s3 + $0x1d8] sm:$0xff]
  %v793 = vld [vmem:[%s3 + $0x1e0] sm:$0xff]
  %v794 = vld [vmem:[%s3 + $0x1e8] sm:$0xff]
  %v795 = vld [vmem:[%s3 + $0x1f0] sm:$0xff]
  %v796 = vld [vmem:[%s3 + $0x1f8] sm:$0xff]
  %797 = vmatpush.msra.mxu0 %v793
  %798 = vmatpush.msra.mxu0 %v789
  %799 = vmatpush.msra.mxu0 %v785
  %800 = vmatpush.msra.mxu0 %v781
  %801 = vmatpush.msra.mxu0 %v777
  %802 = vmatpush.msra.mxu0 %v773
  %803 = vmatpush.msra.mxu0 %v769
  %804 = vmatpush.msra.mxu0 %v765
  %805 = vmatpush.msra.mxu0 %v761
  %806 = vmatpush.msra.mxu0 %v757
  %807 = vmatpush.msra.mxu0 %v753
  %808 = vmatpush.msra.mxu0 %v749
  %809 = vmatpush.msra.mxu0 %v745
  %810 = vmatpush.msra.mxu0 %v741
  %811 = vmatpush.msra.mxu0 %v737
  %812 = vmatpush.msra.mxu0 %v733
  %813 = vmatmul.f32.gmra.mxu0 0.0
  %v814 = vpop.f32.mrf.mxu0
  %v815 = vadd.f32 %v725, %v814
  %816 = vdwg.mxu0
  %817 = vmatpush.msra.mxu0 %v794
  %818 = vmatpush.msra.mxu0 %v790
  %819 = vmatpush.msra.mxu0 %v786
  %820 = vmatpush.msra.mxu0 %v782
  %821 = vmatpush.msra.mxu0 %v778
  %822 = vmatpush.msra.mxu0 %v774
  %823 = vmatpush.msra.mxu0 %v770
  %824 = vmatpush.msra.mxu0 %v766
  %825 = vmatpush.msra.mxu0 %v762
  %826 = vmatpush.msra.mxu0 %v758
  %827 = vmatpush.msra.mxu0 %v754
  %828 = vmatpush.msra.mxu0 %v750
  %829 = vmatpush.msra.mxu0 %v746
  %830 = vmatpush.msra.mxu0 %v742
  %831 = vmatpush.msra.mxu0 %v738
  %832 = vmatpush.msra.mxu0 %v734
  %833 = vmatmul.f32.gmra.mxu0 0.0
  %v834 = vpop.f32.mrf.mxu0
  %v835 = vadd.f32 %v726, %v834
  %836 = vdwg.mxu0
  %837 = vmatpush.msra.mxu0 %v795
  %838 = vmatpush.msra.mxu0 %v791
  %839 = vmatpush.msra.mxu0 %v787
  %840 = vmatpush.msra.mxu0 %v783
  %841 = vmatpush.msra.mxu0 %v779
  %842 = vmatpush.msra.mxu0 %v775
  %843 = vmatpush.msra.mxu0 %v771
  %844 = vmatpush.msra.mxu0 %v767
  %845 = vmatpush.msra.mxu0 %v763
  %846 = vmatpush.msra.mxu0 %v759
  %847 = vmatpush.msra.mxu0 %v755
  %848 = vmatpush.msra.mxu0 %v751
  %849 = vmatpush.msra.mxu0 %v747
  %850 = vmatpush.msra.mxu0 %v743
  %851 = vmatpush.msra.mxu0 %v739
  %852 = vmatpush.msra.mxu0 %v735
  %853 = vmatmul.f32.gmra.mxu0 0.0
  %v854 = vpop.f32.mrf.mxu0
  %v855 = vadd.f32 %v727, %v854
  %856 = vdwg.mxu0
  %857 = vmatpush.msra.mxu0 %v796
  %858 = vmatpush.msra.mxu0 %v792
  %859 = vmatpush.msra.mxu0 %v788
  %860 = vmatpush.msra.mxu0 %v784
  %861 = vmatpush.msra.mxu0 %v780
  %862 = vmatpush.msra.mxu0 %v776
  %863 = vmatpush.msra.mxu0 %v772
  %864 = vmatpush.msra.mxu0 %v768
  %865 = vmatpush.msra.mxu0 %v764
  %866 = vmatpush.msra.mxu0 %v760
  %867 = vmatpush.msra.mxu0 %v756
  %868 = vmatpush.msra.mxu0 %v752
  %869 = vmatpush.msra.mxu0 %v748
  %870 = vmatpush.msra.mxu0 %v744
  %871 = vmatpush.msra.mxu0 %v740
  %872 = vmatpush.msra.mxu0 %v736
  %873 = vmatmul.f32.gmra.mxu0 0.0
  %v874 = vpop.f32.mrf.mxu0
  %v875 = vadd.f32 %v728, %v874
  %876 = vdwg.mxu0
  %s877 = smul.u32 0, 4
  %s878 = smul.addr %s877, 8
  %s879 = scalar_lea.vmem [#allocation2], %s878
  %v880 = vld [vmem:[%s879] sm:$0xff]
  %v881 = vld [vmem:[%s879 + $0x8] sm:$0xff]
  %v882 = vld [vmem:[%s879 + $0x10] sm:$0xff]
  %v883 = vld [vmem:[%s879 + $0x18] sm:$0xff]
  %v884 = vadd.f32 %v880, 0.0
  %v885 = vadd.f32 %v881, 0.0
  %v886 = vadd.f32 %v882, 0.0
  %v887 = vadd.f32 %v883, 0.0
  %v888 = vxor.u32 %v884, 2147483648
  %v889 = vxor.u32 %v885, 2147483648
  %v890 = vmul.f32 %v888, 1.442695
  %v891 = vpow.pop %v890
  %v892 = vmul.f32 %v889, 1.442695
  %v893 = vpow.pop %v892
  %v894 = vadd.f32 %v891, 1.0
  %v895 = vadd.f32 %v893, 1.0
  %v896 = vrcp.pop %v894
  %v897 = vmul.f32 %v894, %v896
  %v898 = vsub.f32 1.0, %v897
  %v899 = vmul.f32 %v896, %v898
  %v900 = vadd.f32 %v896, %v899
  %vm901 = vweird.f32 %v894
  %vm902 = vweird.f32 %v896
  %vm903 = vmor %vm901, %vm902
  %v904 = vsel %vm903, %v896, %v900
  %v905 = vand.u32 2147483647, %v894
  %vm906 = vcmp.eq.f32.partialorder %v905, 8.507059e+37
  %v907 = vand.u32 %v894, 2147483648
  %v908 = vor.u32 1.1754944e-38, %v907
  %v909 = vsel %vm906, %v908, %v904
  %v910 = vmul.f32 1.0, %v909
  %v911 = vrcp.pop %v895
  %v912 = vmul.f32 %v895, %v911
  %v913 = vsub.f32 1.0, %v912
  %v914 = vmul.f32 %v911, %v913
  %v915 = vadd.f32 %v911, %v914
  %vm916 = vweird.f32 %v895
  %vm917 = vweird.f32 %v911
  %vm918 = vmor %vm916, %vm917
  %v919 = vsel %vm918, %v911, %v915
  %v920 = vand.u32 2147483647, %v895
  %vm921 = vcmp.eq.f32.partialorder %v920, 8.507059e+37
  %v922 = vand.u32 %v895, 2147483648
  %v923 = vor.u32 1.1754944e-38, %v922
  %v924 = vsel %vm921, %v923, %v919
  %v925 = vmul.f32 1.0, %v924
  %v926 = vtanh.pop %v886
  %v927 = vxor.u32 %v887, 2147483648
  %v928 = vmul.f32 %v927, 1.442695
  %v929 = vpow.pop %v928
  %v930 = vadd.f32 %v929, 1.0
  %v931 = vrcp.pop %v930
  %v932 = vmul.f32 %v930, %v931
  %v933 = vsub.f32 1.0, %v932
  %v934 = vmul.f32 %v931, %v933
  %v935 = vadd.f32 %v931, %v934
  %vm936 = vweird.f32 %v930
  %vm937 = vweird.f32 %v931
  %vm938 = vmor %vm936, %vm937
  %v939 = vsel %vm938, %v931, %v935
  %v940 = vand.u32 2147483647, %v930
  %vm941 = vcmp.eq.f32.partialorder %v940, 8.507059e+37
  %v942 = vand.u32 %v930, 2147483648
  %v943 = vor.u32 1.1754944e-38, %v942
  %v944 = vsel %vm941, %v943, %v939
  %v945 = vmul.f32 1.0, %v944
  %v946 = vmul.f32 %v925, 0.0
  %v947 = vmul.f32 %v910, %v926
  %v948 = vadd.f32 %v946, %v947
  %v949 = vtanh.pop %v948
  %v950 = vmul.f32 %v945, %v949
  %v951 = vld [vmem:[%s2] sm:$0xff]
  %v952 = vld [vmem:[%s2 + $0x8] sm:$0xff]
  %v953 = vld [vmem:[%s2 + $0x10] sm:$0xff]
  %v954 = vld [vmem:[%s2 + $0x18] sm:$0xff]
  %v955 = vld [vmem:[%s2 + $0x20] sm:$0xff]
  %v956 = vld [vmem:[%s2 + $0x28] sm:$0xff]
  %v957 = vld [vmem:[%s2 + $0x30] sm:$0xff]
  %v958 = vld [vmem:[%s2 + $0x38] sm:$0xff]
  %v959 = vld [vmem:[%s2 + $0x40] sm:$0xff]
  %v960 = vld [vmem:[%s2 + $0x48] sm:$0xff]
  %v961 = vld [vmem:[%s2 + $0x50] sm:$0xff]
  %v962 = vld [vmem:[%s2 + $0x58] sm:$0xff]
  %v963 = vld [vmem:[%s2 + $0x60] sm:$0xff]
  %v964 = vld [vmem:[%s2 + $0x68] sm:$0xff]
  %v965 = vld [vmem:[%s2 + $0x70] sm:$0xff]
  %v966 = vld [vmem:[%s2 + $0x78] sm:$0xff]
  %v967 = vld [vmem:[%s2 + $0x80] sm:$0xff]
  %v968 = vld [vmem:[%s2 + $0x88] sm:$0xff]
  %v969 = vld [vmem:[%s2 + $0x90] sm:$0xff]
  %v970 = vld [vmem:[%s2 + $0x98] sm:$0xff]
  %v971 = vld [vmem:[%s2 + $0xa0] sm:$0xff]
  %v972 = vld [vmem:[%s2 + $0xa8] sm:$0xff]
  %v973 = vld [vmem:[%s2 + $0xb0] sm:$0xff]
  %v974 = vld [vmem:[%s2 + $0xb8] sm:$0xff]
  %v975 = vld [vmem:[%s2 + $0xc0] sm:$0xff]
  %v976 = vld [vmem:[%s2 + $0xc8] sm:$0xff]
  %v977 = vld [vmem:[%s2 + $0xd0] sm:$0xff]
  %v978 = vld [vmem:[%s2 + $0xd8] sm:$0xff]
  %v979 = vld [vmem:[%s2 + $0xe0] sm:$0xff]
  %v980 = vld [vmem:[%s2 + $0xe8] sm:$0xff]
  %v981 = vld [vmem:[%s2 + $0xf0] sm:$0xff]
  %v982 = vld [vmem:[%s2 + $0xf8] sm:$0xff]
  %v983 = vld [vmem:[%s2 + $0x100] sm:$0xff]
  %v984 = vld [vmem:[%s2 + $0x108] sm:$0xff]
  %v985 = vld [vmem:[%s2 + $0x110] sm:$0xff]
  %v986 = vld [vmem:[%s2 + $0x118] sm:$0xff]
  %v987 = vld [vmem:[%s2 + $0x120] sm:$0xff]
  %v988 = vld [vmem:[%s2 + $0x128] sm:$0xff]
  %v989 = vld [vmem:[%s2 + $0x130] sm:$0xff]
  %v990 = vld [vmem:[%s2 + $0x138] sm:$0xff]
  %v991 = vld [vmem:[%s2 + $0x140] sm:$0xff]
  %v992 = vld [vmem:[%s2 + $0x148] sm:$0xff]
  %v993 = vld [vmem:[%s2 + $0x150] sm:$0xff]
  %v994 = vld [vmem:[%s2 + $0x158] sm:$0xff]
  %v995 = vld [vmem:[%s2 + $0x160] sm:$0xff]
  %v996 = vld [vmem:[%s2 + $0x168] sm:$0xff]
  %v997 = vld [vmem:[%s2 + $0x170] sm:$0xff]
  %v998 = vld [vmem:[%s2 + $0x178] sm:$0xff]
  %v999 = vld [vmem:[%s2 + $0x180] sm:$0xff]
  %v1000 = vld [vmem:[%s2 + $0x188] sm:$0xff]
  %v1001 = vld [vmem:[%s2 + $0x190] sm:$0xff]
  %v1002 = vld [vmem:[%s2 + $0x198] sm:$0xff]
  %v1003 = vld [vmem:[%s2 + $0x1a0] sm:$0xff]
  %v1004 = vld [vmem:[%s2 + $0x1a8] sm:$0xff]
  %v1005 = vld [vmem:[%s2 + $0x1b0] sm:$0xff]
  %v1006 = vld [vmem:[%s2 + $0x1b8] sm:$0xff]
  %v1007 = vld [vmem:[%s2 + $0x1c0] sm:$0xff]
  %v1008 = vld [vmem:[%s2 + $0x1c8] sm:$0xff]
  %v1009 = vld [vmem:[%s2 + $0x1d0] sm:$0xff]
  %v1010 = vld [vmem:[%s2 + $0x1d8] sm:$0xff]
  %v1011 = vld [vmem:[%s2 + $0x1e0] sm:$0xff]
  %v1012 = vld [vmem:[%s2 + $0x1e8] sm:$0xff]
  %v1013 = vld [vmem:[%s2 + $0x1f0] sm:$0xff]
  %v1014 = vld [vmem:[%s2 + $0x1f8] sm:$0xff]
  %v1015 = vld [vmem:[%s2 + $0x200] sm:$0xff]
  %v1016 = vld [vmem:[%s2 + $0x208] sm:$0xff]
  %v1017 = vld [vmem:[%s2 + $0x210] sm:$0xff]
  %v1018 = vld [vmem:[%s2 + $0x218] sm:$0xff]
  %v1019 = vld [vmem:[%s2 + $0x220] sm:$0xff]
  %v1020 = vld [vmem:[%s2 + $0x228] sm:$0xff]
  %v1021 = vld [vmem:[%s2 + $0x230] sm:$0xff]
  %v1022 = vld [vmem:[%s2 + $0x238] sm:$0xff]
  %v1023 = vld [vmem:[%s2 + $0x240] sm:$0xff]
  %v1024 = vld [vmem:[%s2 + $0x248] sm:$0xff]
  %v1025 = vld [vmem:[%s2 + $0x250] sm:$0xff]
  %v1026 = vld [vmem:[%s2 + $0x258] sm:$0xff]
  %v1027 = vld [vmem:[%s2 + $0x260] sm:$0xff]
  %v1028 = vld [vmem:[%s2 + $0x268] sm:$0xff]
  %v1029 = vld [vmem:[%s2 + $0x270] sm:$0xff]
  %v1030 = vld [vmem:[%s2 + $0x278] sm:$0xff]
  %v1031 = vld [vmem:[%s2 + $0x280] sm:$0xff]
  %v1032 = vld [vmem:[%s2 + $0x288] sm:$0xff]
  %v1033 = vld [vmem:[%s2 + $0x290] sm:$0xff]
  %v1034 = vld [vmem:[%s2 + $0x298] sm:$0xff]
  %v1035 = vld [vmem:[%s2 + $0x2a0] sm:$0xff]
  %v1036 = vld [vmem:[%s2 + $0x2a8] sm:$0xff]
  %v1037 = vld [vmem:[%s2 + $0x2b0] sm:$0xff]
  %v1038 = vld [vmem:[%s2 + $0x2b8] sm:$0xff]
  %v1039 = vld [vmem:[%s2 + $0x2c0] sm:$0xff]
  %v1040 = vld [vmem:[%s2 + $0x2c8] sm:$0xff]
  %v1041 = vld [vmem:[%s2 + $0x2d0] sm:$0xff]
  %v1042 = vld [vmem:[%s2 + $0x2d8] sm:$0xff]
  %v1043 = vld [vmem:[%s2 + $0x2e0] sm:$0xff]
  %v1044 = vld [vmem:[%s2 + $0x2e8] sm:$0xff]
  %v1045 = vld [vmem:[%s2 + $0x2f0] sm:$0xff]
  %v1046 = vld [vmem:[%s2 + $0x2f8] sm:$0xff]
  %v1047 = vld [vmem:[%s2 + $0x300] sm:$0xff]
  %v1048 = vld [vmem:[%s2 + $0x308] sm:$0xff]
  %v1049 = vld [vmem:[%s2 + $0x310] sm:$0xff]
  %v1050 = vld [vmem:[%s2 + $0x318] sm:$0xff]
  %v1051 = vld [vmem:[%s2 + $0x320] sm:$0xff]
  %v1052 = vld [vmem:[%s2 + $0x328] sm:$0xff]
  %v1053 = vld [vmem:[%s2 + $0x330] sm:$0xff]
  %v1054 = vld [vmem:[%s2 + $0x338] sm:$0xff]
  %v1055 = vld [vmem:[%s2 + $0x340] sm:$0xff]
  %v1056 = vld [vmem:[%s2 + $0x348] sm:$0xff]
  %v1057 = vld [vmem:[%s2 + $0x350] sm:$0xff]
  %v1058 = vld [vmem:[%s2 + $0x358] sm:$0xff]
  %v1059 = vld [vmem:[%s2 + $0x360] sm:$0xff]
  %v1060 = vld [vmem:[%s2 + $0x368] sm:$0xff]
  %v1061 = vld [vmem:[%s2 + $0x370] sm:$0xff]
  %v1062 = vld [vmem:[%s2 + $0x378] sm:$0xff]
  %v1063 = vld [vmem:[%s2 + $0x380] sm:$0xff]
  %v1064 = vld [vmem:[%s2 + $0x388] sm:$0xff]
  %v1065 = vld [vmem:[%s2 + $0x390] sm:$0xff]
  %v1066 = vld [vmem:[%s2 + $0x398] sm:$0xff]
  %v1067 = vld [vmem:[%s2 + $0x3a0] sm:$0xff]
  %v1068 = vld [vmem:[%s2 + $0x3a8] sm:$0xff]
  %v1069 = vld [vmem:[%s2 + $0x3b0] sm:$0xff]
  %v1070 = vld [vmem:[%s2 + $0x3b8] sm:$0xff]
  %v1071 = vld [vmem:[%s2 + $0x3c0] sm:$0xff]
  %v1072 = vld [vmem:[%s2 + $0x3c8] sm:$0xff]
  %v1073 = vld [vmem:[%s2 + $0x3d0] sm:$0xff]
  %v1074 = vld [vmem:[%s2 + $0x3d8] sm:$0xff]
  %v1075 = vld [vmem:[%s2 + $0x3e0] sm:$0xff]
  %v1076 = vld [vmem:[%s2 + $0x3e8] sm:$0xff]
  %v1077 = vld [vmem:[%s2 + $0x3f0] sm:$0xff]
  %v1078 = vld [vmem:[%s2 + $0x3f8] sm:$0xff]
  %1079 = vmatpush.msra.mxu0 %v1071
  %1080 = vmatpush.msra.mxu0 %v1063
  %1081 = vmatpush.msra.mxu0 %v1055
  %1082 = vmatpush.msra.mxu0 %v1047
  %1083 = vmatpush.msra.mxu0 %v1039
  %1084 = vmatpush.msra.mxu0 %v1031
  %1085 = vmatpush.msra.mxu0 %v1023
  %1086 = vmatpush.msra.mxu0 %v1015
  %1087 = vmatpush.msra.mxu0 %v1007
  %1088 = vmatpush.msra.mxu0 %v999
  %1089 = vmatpush.msra.mxu0 %v991
  %1090 = vmatpush.msra.mxu0 %v983
  %1091 = vmatpush.msra.mxu0 %v975
  %1092 = vmatpush.msra.mxu0 %v967
  %1093 = vmatpush.msra.mxu0 %v959
  %1094 = vmatpush.msra.mxu0 %v951
  %1095 = vmatmul.f32.gmra.mxu0 %v950
  %v1096 = vpop.f32.mrf.mxu0
  %v1097 = vadd.f32 0.0, %v1096
  %1098 = vdwg.mxu0
  %1099 = vmatpush.msra.mxu0 %v1072
  %1100 = vmatpush.msra.mxu0 %v1064
  %1101 = vmatpush.msra.mxu0 %v1056
  %1102 = vmatpush.msra.mxu0 %v1048
  %1103 = vmatpush.msra.mxu0 %v1040
  %1104 = vmatpush.msra.mxu0 %v1032
  %1105 = vmatpush.msra.mxu0 %v1024
  %1106 = vmatpush.msra.mxu0 %v1016
  %1107 = vmatpush.msra.mxu0 %v1008
  %1108 = vmatpush.msra.mxu0 %v1000
  %1109 = vmatpush.msra.mxu0 %v992
  %1110 = vmatpush.msra.mxu0 %v984
  %1111 = vmatpush.msra.mxu0 %v976
  %1112 = vmatpush.msra.mxu0 %v968
  %1113 = vmatpush.msra.mxu0 %v960
  %1114 = vmatpush.msra.mxu0 %v952
  %1115 = vmatmul.f32.gmra.mxu0 %v950
  %v1116 = vpop.f32.mrf.mxu0
  %v1117 = vadd.f32 0.0, %v1116
  %1118 = vdwg.mxu0
  %1119 = vmatpush.msra.mxu0 %v1073
  %1120 = vmatpush.msra.mxu0 %v1065
  %1121 = vmatpush.msra.mxu0 %v1057
  %1122 = vmatpush.msra.mxu0 %v1049
  %1123 = vmatpush.msra.mxu0 %v1041
  %1124 = vmatpush.msra.mxu0 %v1033
  %1125 = vmatpush.msra.mxu0 %v1025
  %1126 = vmatpush.msra.mxu0 %v1017
  %1127 = vmatpush.msra.mxu0 %v1009
  %1128 = vmatpush.msra.mxu0 %v1001
  %1129 = vmatpush.msra.mxu0 %v993
  %1130 = vmatpush.msra.mxu0 %v985
  %1131 = vmatpush.msra.mxu0 %v977
  %1132 = vmatpush.msra.mxu0 %v969
  %1133 = vmatpush.msra.mxu0 %v961
  %1134 = vmatpush.msra.mxu0 %v953
  %1135 = vmatmul.f32.gmra.mxu0 %v950
  %v1136 = vpop.f32.mrf.mxu0
  %v1137 = vadd.f32 0.0, %v1136
  %1138 = vdwg.mxu0
  %1139 = vmatpush.msra.mxu0 %v1074
  %1140 = vmatpush.msra.mxu0 %v1066
  %1141 = vmatpush.msra.mxu0 %v1058
  %1142 = vmatpush.msra.mxu0 %v1050
  %1143 = vmatpush.msra.mxu0 %v1042
  %1144 = vmatpush.msra.mxu0 %v1034
  %1145 = vmatpush.msra.mxu0 %v1026
  %1146 = vmatpush.msra.mxu0 %v1018
  %1147 = vmatpush.msra.mxu0 %v1010
  %1148 = vmatpush.msra.mxu0 %v1002
  %1149 = vmatpush.msra.mxu0 %v994
  %1150 = vmatpush.msra.mxu0 %v986
  %1151 = vmatpush.msra.mxu0 %v978
  %1152 = vmatpush.msra.mxu0 %v970
  %1153 = vmatpush.msra.mxu0 %v962
  %1154 = vmatpush.msra.mxu0 %v954
  %1155 = vmatmul.f32.gmra.mxu0 %v950
  %v1156 = vpop.f32.mrf.mxu0
  %v1157 = vadd.f32 0.0, %v1156
  %1158 = vdwg.mxu0
  %1159 = vmatpush.msra.mxu0 %v1075
  %1160 = vmatpush.msra.mxu0 %v1067
  %1161 = vmatpush.msra.mxu0 %v1059
  %1162 = vmatpush.msra.mxu0 %v1051
  %1163 = vmatpush.msra.mxu0 %v1043
  %1164 = vmatpush.msra.mxu0 %v1035
  %1165 = vmatpush.msra.mxu0 %v1027
  %1166 = vmatpush.msra.mxu0 %v1019
  %1167 = vmatpush.msra.mxu0 %v1011
  %1168 = vmatpush.msra.mxu0 %v1003
  %1169 = vmatpush.msra.mxu0 %v995
  %1170 = vmatpush.msra.mxu0 %v987
  %1171 = vmatpush.msra.mxu0 %v979
  %1172 = vmatpush.msra.mxu0 %v971
  %1173 = vmatpush.msra.mxu0 %v963
  %1174 = vmatpush.msra.mxu0 %v955
  %1175 = vmatmul.f32.gmra.mxu0 %v950
  %v1176 = vpop.f32.mrf.mxu0
  %v1177 = vadd.f32 0.0, %v1176
  %1178 = vdwg.mxu0
  %1179 = vmatpush.msra.mxu0 %v1076
  %1180 = vmatpush.msra.mxu0 %v1068
  %1181 = vmatpush.msra.mxu0 %v1060
  %1182 = vmatpush.msra.mxu0 %v1052
  %1183 = vmatpush.msra.mxu0 %v1044
  %1184 = vmatpush.msra.mxu0 %v1036
  %1185 = vmatpush.msra.mxu0 %v1028
  %1186 = vmatpush.msra.mxu0 %v1020
  %1187 = vmatpush.msra.mxu0 %v1012
  %1188 = vmatpush.msra.mxu0 %v1004
  %1189 = vmatpush.msra.mxu0 %v996
  %1190 = vmatpush.msra.mxu0 %v988
  %1191 = vmatpush.msra.mxu0 %v980
  %1192 = vmatpush.msra.mxu0 %v972
  %1193 = vmatpush.msra.mxu0 %v964
  %1194 = vmatpush.msra.mxu0 %v956
  %1195 = vmatmul.f32.gmra.mxu0 %v950
  %v1196 = vpop.f32.mrf.mxu0
  %v1197 = vadd.f32 0.0, %v1196
  %1198 = vdwg.mxu0
  %1199 = vmatpush.msra.mxu0 %v1077
  %1200 = vmatpush.msra.mxu0 %v1069
  %1201 = vmatpush.msra.mxu0 %v1061
  %1202 = vmatpush.msra.mxu0 %v1053
  %1203 = vmatpush.msra.mxu0 %v1045
  %1204 = vmatpush.msra.mxu0 %v1037
  %1205 = vmatpush.msra.mxu0 %v1029
  %1206 = vmatpush.msra.mxu0 %v1021
  %1207 = vmatpush.msra.mxu0 %v1013
  %1208 = vmatpush.msra.mxu0 %v1005
  %1209 = vmatpush.msra.mxu0 %v997
  %1210 = vmatpush.msra.mxu0 %v989
  %1211 = vmatpush.msra.mxu0 %v981
  %1212 = vmatpush.msra.mxu0 %v973
  %1213 = vmatpush.msra.mxu0 %v965
  %1214 = vmatpush.msra.mxu0 %v957
  %1215 = vmatmul.f32.gmra.mxu0 %v950
  %v1216 = vpop.f32.mrf.mxu0
  %v1217 = vadd.f32 0.0, %v1216
  %1218 = vdwg.mxu0
  %1219 = vmatpush.msra.mxu0 %v1078
  %1220 = vmatpush.msra.mxu0 %v1070
  %1221 = vmatpush.msra.mxu0 %v1062
  %1222 = vmatpush.msra.mxu0 %v1054
  %1223 = vmatpush.msra.mxu0 %v1046
  %1224 = vmatpush.msra.mxu0 %v1038
  %1225 = vmatpush.msra.mxu0 %v1030
  %1226 = vmatpush.msra.mxu0 %v1022
  %1227 = vmatpush.msra.mxu0 %v1014
  %1228 = vmatpush.msra.mxu0 %v1006
  %1229 = vmatpush.msra.mxu0 %v998
  %1230 = vmatpush.msra.mxu0 %v990
  %1231 = vmatpush.msra.mxu0 %v982
  %1232 = vmatpush.msra.mxu0 %v974
  %1233 = vmatpush.msra.mxu0 %v966
  %1234 = vmatpush.msra.mxu0 %v958
  %1235 = vmatmul.f32.gmra.mxu0 %v950
  %v1236 = vpop.f32.mrf.mxu0
  %v1237 = vadd.f32 0.0, %v1236
  %1238 = vdwg.mxu0
  %v1239 = vadd.f32 %v815, %v1177
  %v1240 = vadd.f32 %v835, %v1197
  %v1241 = vadd.f32 %v855, %v1217
  %v1242 = vadd.f32 %v875, %v1237
  %v1243 = vxor.u32 %v1239, 2147483648
  %v1244 = vxor.u32 %v1240, 2147483648
  %v1245 = vmul.f32 %v1243, 1.442695
  %v1246 = vpow.pop %v1245
  %v1247 = vmul.f32 %v1244, 1.442695
  %v1248 = vpow.pop %v1247
  %v1249 = vadd.f32 %v1246, 1.0
  %v1250 = vadd.f32 %v1248, 1.0
  %v1251 = vrcp.pop %v1249
  %v1252 = vmul.f32 %v1249, %v1251
  %v1253 = vsub.f32 1.0, %v1252
  %v1254 = vmul.f32 %v1251, %v1253
  %v1255 = vadd.f32 %v1251, %v1254
  %vm1256 = vweird.f32 %v1249
  %vm1257 = vweird.f32 %v1251
  %vm1258 = vmor %vm1256, %vm1257
  %v1259 = vsel %vm1258, %v1251, %v1255
  %v1260 = vand.u32 2147483647, %v1249
  %vm1261 = vcmp.eq.f32.partialorder %v1260, 8.507059e+37
  %v1262 = vand.u32 %v1249, 2147483648
  %v1263 = vor.u32 1.1754944e-38, %v1262
  %v1264 = vsel %vm1261, %v1263, %v1259
  %v1265 = vmul.f32 1.0, %v1264
  %v1266 = vrcp.pop %v1250
  %v1267 = vmul.f32 %v1250, %v1266
  %v1268 = vsub.f32 1.0, %v1267
  %v1269 = vmul.f32 %v1266, %v1268
  %v1270 = vadd.f32 %v1266, %v1269
  %vm1271 = vweird.f32 %v1250
  %vm1272 = vweird.f32 %v1266
  %vm1273 = vmor %vm1271, %vm1272
  %v1274 = vsel %vm1273, %v1266, %v1270
  %v1275 = vand.u32 2147483647, %v1250
  %vm1276 = vcmp.eq.f32.partialorder %v1275, 8.507059e+37
  %v1277 = vand.u32 %v1250, 2147483648
  %v1278 = vor.u32 1.1754944e-38, %v1277
  %v1279 = vsel %vm1276, %v1278, %v1274
  %v1280 = vmul.f32 1.0, %v1279
  %v1281 = vtanh.pop %v1241
  %v1282 = vxor.u32 %v1242, 2147483648
  %v1283 = vmul.f32 %v1282, 1.442695
  %v1284 = vpow.pop %v1283
  %v1285 = vadd.f32 %v1284, 1.0
  %v1286 = vrcp.pop %v1285
  %v1287 = vmul.f32 %v1285, %v1286
  %v1288 = vsub.f32 1.0, %v1287
  %v1289 = vmul.f32 %v1286, %v1288
  %v1290 = vadd.f32 %v1286, %v1289
  %vm1291 = vweird.f32 %v1285
  %vm1292 = vweird.f32 %v1286
  %vm1293 = vmor %vm1291, %vm1292
  %v1294 = vsel %vm1293, %v1286, %v1290
  %v1295 = vand.u32 2147483647, %v1285
  %vm1296 = vcmp.eq.f32.partialorder %v1295, 8.507059e+37
  %v1297 = vand.u32 %v1285, 2147483648
  %v1298 = vor.u32 1.1754944e-38, %v1297
  %v1299 = vsel %vm1296, %v1298, %v1294
  %v1300 = vmul.f32 1.0, %v1299
  %v1301 = vmul.f32 %v1280, 0.0
  %v1302 = vmul.f32 %v1265, %v1281
  %v1303 = vadd.f32 %v1301, %v1302
  %v1304 = vtanh.pop %v1303
  %v1305 = vmul.f32 %v1300, %v1304
  %1306 = vst [vmem:[#allocation3] sm:$0xff] %v1305
  %v1307 = vld [vmem:[%s3] sm:$0xff]
  %v1308 = vld [vmem:[%s3 + $0x8] sm:$0xff]
  %v1309 = vld [vmem:[%s3 + $0x10] sm:$0xff]
  %v1310 = vld [vmem:[%s3 + $0x18] sm:$0xff]
  %v1311 = vld [vmem:[%s3 + $0x20] sm:$0xff]
  %v1312 = vld [vmem:[%s3 + $0x28] sm:$0xff]
  %v1313 = vld [vmem:[%s3 + $0x30] sm:$0xff]
  %v1314 = vld [vmem:[%s3 + $0x38] sm:$0xff]
  %v1315 = vld [vmem:[%s3 + $0x40] sm:$0xff]
  %v1316 = vld [vmem:[%s3 + $0x48] sm:$0xff]
  %v1317 = vld [vmem:[%s3 + $0x50] sm:$0xff]
  %v1318 = vld [vmem:[%s3 + $0x58] sm:$0xff]
  %v1319 = vld [vmem:[%s3 + $0x60] sm:$0xff]
  %v1320 = vld [vmem:[%s3 + $0x68] sm:$0xff]
  %v1321 = vld [vmem:[%s3 + $0x70] sm:$0xff]
  %v1322 = vld [vmem:[%s3 + $0x78] sm:$0xff]
  %v1323 = vld [vmem:[%s3 + $0x80] sm:$0xff]
  %v1324 = vld [vmem:[%s3 + $0x88] sm:$0xff]
  %v1325 = vld [vmem:[%s3 + $0x90] sm:$0xff]
  %v1326 = vld [vmem:[%s3 + $0x98] sm:$0xff]
  %v1327 = vld [vmem:[%s3 + $0xa0] sm:$0xff]
  %v1328 = vld [vmem:[%s3 + $0xa8] sm:$0xff]
  %v1329 = vld [vmem:[%s3 + $0xb0] sm:$0xff]
  %v1330 = vld [vmem:[%s3 + $0xb8] sm:$0xff]
  %v1331 = vld [vmem:[%s3 + $0xc0] sm:$0xff]
  %v1332 = vld [vmem:[%s3 + $0xc8] sm:$0xff]
  %v1333 = vld [vmem:[%s3 + $0xd0] sm:$0xff]
  %v1334 = vld [vmem:[%s3 + $0xd8] sm:$0xff]
  %v1335 = vld [vmem:[%s3 + $0xe0] sm:$0xff]
  %v1336 = vld [vmem:[%s3 + $0xe8] sm:$0xff]
  %v1337 = vld [vmem:[%s3 + $0xf0] sm:$0xff]
  %v1338 = vld [vmem:[%s3 + $0xf8] sm:$0xff]
  %v1339 = vld [vmem:[%s3 + $0x100] sm:$0xff]
  %v1340 = vld [vmem:[%s3 + $0x108] sm:$0xff]
  %v1341 = vld [vmem:[%s3 + $0x110] sm:$0xff]
  %v1342 = vld [vmem:[%s3 + $0x118] sm:$0xff]
  %v1343 = vld [vmem:[%s3 + $0x120] sm:$0xff]
  %v1344 = vld [vmem:[%s3 + $0x128] sm:$0xff]
  %v1345 = vld [vmem:[%s3 + $0x130] sm:$0xff]
  %v1346 = vld [vmem:[%s3 + $0x138] sm:$0xff]
  %v1347 = vld [vmem:[%s3 + $0x140] sm:$0xff]
  %v1348 = vld [vmem:[%s3 + $0x148] sm:$0xff]
  %v1349 = vld [vmem:[%s3 + $0x150] sm:$0xff]
  %v1350 = vld [vmem:[%s3 + $0x158] sm:$0xff]
  %v1351 = vld [vmem:[%s3 + $0x160] sm:$0xff]
  %v1352 = vld [vmem:[%s3 + $0x168] sm:$0xff]
  %v1353 = vld [vmem:[%s3 + $0x170] sm:$0xff]
  %v1354 = vld [vmem:[%s3 + $0x178] sm:$0xff]
  %v1355 = vld [vmem:[%s3 + $0x180] sm:$0xff]
  %v1356 = vld [vmem:[%s3 + $0x188] sm:$0xff]
  %v1357 = vld [vmem:[%s3 + $0x190] sm:$0xff]
  %v1358 = vld [vmem:[%s3 + $0x198] sm:$0xff]
  %v1359 = vld [vmem:[%s3 + $0x1a0] sm:$0xff]
  %v1360 = vld [vmem:[%s3 + $0x1a8] sm:$0xff]
  %v1361 = vld [vmem:[%s3 + $0x1b0] sm:$0xff]
  %v1362 = vld [vmem:[%s3 + $0x1b8] sm:$0xff]
  %v1363 = vld [vmem:[%s3 + $0x1c0] sm:$0xff]
  %v1364 = vld [vmem:[%s3 + $0x1c8] sm:$0xff]
  %v1365 = vld [vmem:[%s3 + $0x1d0] sm:$0xff]
  %v1366 = vld [vmem:[%s3 + $0x1d8] sm:$0xff]
  %v1367 = vld [vmem:[%s3 + $0x1e0] sm:$0xff]
  %v1368 = vld [vmem:[%s3 + $0x1e8] sm:$0xff]
  %v1369 = vld [vmem:[%s3 + $0x1f0] sm:$0xff]
  %v1370 = vld [vmem:[%s3 + $0x1f8] sm:$0xff]
  %1371 = vmatpush.msra.mxu0 %v1367
  %1372 = vmatpush.msra.mxu0 %v1363
  %1373 = vmatpush.msra.mxu0 %v1359
  %1374 = vmatpush.msra.mxu0 %v1355
  %1375 = vmatpush.msra.mxu0 %v1351
  %1376 = vmatpush.msra.mxu0 %v1347
  %1377 = vmatpush.msra.mxu0 %v1343
  %1378 = vmatpush.msra.mxu0 %v1339
  %1379 = vmatpush.msra.mxu0 %v1335
  %1380 = vmatpush.msra.mxu0 %v1331
  %1381 = vmatpush.msra.mxu0 %v1327
  %1382 = vmatpush.msra.mxu0 %v1323
  %1383 = vmatpush.msra.mxu0 %v1319
  %1384 = vmatpush.msra.mxu0 %v1315
  %1385 = vmatpush.msra.mxu0 %v1311
  %1386 = vmatpush.msra.mxu0 %v1307
  %1387 = vmatmul.f32.gmra.mxu0 %v1305
  %v1388 = vpop.f32.mrf.mxu0
  %v1389 = vadd.f32 %v725, %v1388
  %1390 = vdwg.mxu0
  %1391 = vmatpush.msra.mxu0 %v1368
  %1392 = vmatpush.msra.mxu0 %v1364
  %1393 = vmatpush.msra.mxu0 %v1360
  %1394 = vmatpush.msra.mxu0 %v1356
  %1395 = vmatpush.msra.mxu0 %v1352
  %1396 = vmatpush.msra.mxu0 %v1348
  %1397 = vmatpush.msra.mxu0 %v1344
  %1398 = vmatpush.msra.mxu0 %v1340
  %1399 = vmatpush.msra.mxu0 %v1336
  %1400 = vmatpush.msra.mxu0 %v1332
  %1401 = vmatpush.msra.mxu0 %v1328
  %1402 = vmatpush.msra.mxu0 %v1324
  %1403 = vmatpush.msra.mxu0 %v1320
  %1404 = vmatpush.msra.mxu0 %v1316
  %1405 = vmatpush.msra.mxu0 %v1312
  %1406 = vmatpush.msra.mxu0 %v1308
  %1407 = vmatmul.f32.gmra.mxu0 %v1305
  %v1408 = vpop.f32.mrf.mxu0
  %v1409 = vadd.f32 %v726, %v1408
  %1410 = vdwg.mxu0
  %1411 = vmatpush.msra.mxu0 %v1369
  %1412 = vmatpush.msra.mxu0 %v1365
  %1413 = vmatpush.msra.mxu0 %v1361
  %1414 = vmatpush.msra.mxu0 %v1357
  %1415 = vmatpush.msra.mxu0 %v1353
  %1416 = vmatpush.msra.mxu0 %v1349
  %1417 = vmatpush.msra.mxu0 %v1345
  %1418 = vmatpush.msra.mxu0 %v1341
  %1419 = vmatpush.msra.mxu0 %v1337
  %1420 = vmatpush.msra.mxu0 %v1333
  %1421 = vmatpush.msra.mxu0 %v1329
  %1422 = vmatpush.msra.mxu0 %v1325
  %1423 = vmatpush.msra.mxu0 %v1321
  %1424 = vmatpush.msra.mxu0 %v1317
  %1425 = vmatpush.msra.mxu0 %v1313
  %1426 = vmatpush.msra.mxu0 %v1309
  %1427 = vmatmul.f32.gmra.mxu0 %v1305
  %v1428 = vpop.f32.mrf.mxu0
  %v1429 = vadd.f32 %v727, %v1428
  %1430 = vdwg.mxu0
  %1431 = vmatpush.msra.mxu0 %v1370
  %1432 = vmatpush.msra.mxu0 %v1366
  %1433 = vmatpush.msra.mxu0 %v1362
  %1434 = vmatpush.msra.mxu0 %v1358
  %1435 = vmatpush.msra.mxu0 %v1354
  %1436 = vmatpush.msra.mxu0 %v1350
  %1437 = vmatpush.msra.mxu0 %v1346
  %1438 = vmatpush.msra.mxu0 %v1342
  %1439 = vmatpush.msra.mxu0 %v1338
  %1440 = vmatpush.msra.mxu0 %v1334
  %1441 = vmatpush.msra.mxu0 %v1330
  %1442 = vmatpush.msra.mxu0 %v1326
  %1443 = vmatpush.msra.mxu0 %v1322
  %1444 = vmatpush.msra.mxu0 %v1318
  %1445 = vmatpush.msra.mxu0 %v1314
  %1446 = vmatpush.msra.mxu0 %v1310
  %1447 = vmatmul.f32.gmra.mxu0 %v1305
  %v1448 = vpop.f32.mrf.mxu0
  %v1449 = vadd.f32 %v728, %v1448
  %1450 = vdwg.mxu0
  %s1451 = smul.u32 1, 4
  %s1452 = smul.addr %s1451, 8
  %s1453 = scalar_lea.vmem [#allocation2], %s1452
  %v1454 = vld [vmem:[%s1453] sm:$0xff]
  %v1455 = vld [vmem:[%s1453 + $0x8] sm:$0xff]
  %v1456 = vld [vmem:[%s1453 + $0x10] sm:$0xff]
  %v1457 = vld [vmem:[%s1453 + $0x18] sm:$0xff]
  %v1458 = vadd.f32 %v1454, %v1097
  %v1459 = vadd.f32 %v1455, %v1117
  %v1460 = vadd.f32 %v1456, %v1137
  %v1461 = vadd.f32 %v1457, %v1157
  %v1462 = vxor.u32 %v1458, 2147483648
  %v1463 = vxor.u32 %v1459, 2147483648
  %v1464 = vmul.f32 %v1462, 1.442695
  %v1465 = vpow.pop %v1464
  %v1466 = vmul.f32 %v1463, 1.442695
  %v1467 = vpow.pop %v1466
  %v1468 = vadd.f32 %v1465, 1.0
  %v1469 = vadd.f32 %v1467, 1.0
  %v1470 = vrcp.pop %v1468
  %v1471 = vmul.f32 %v1468, %v1470
  %v1472 = vsub.f32 1.0, %v1471
  %v1473 = vmul.f32 %v1470, %v1472
  %v1474 = vadd.f32 %v1470, %v1473
  %vm1475 = vweird.f32 %v1468
  %vm1476 = vweird.f32 %v1470
  %vm1477 = vmor %vm1475, %vm1476
  %v1478 = vsel %vm1477, %v1470, %v1474
  %v1479 = vand.u32 2147483647, %v1468
  %vm1480 = vcmp.eq.f32.partialorder %v1479, 8.507059e+37
  %v1481 = vand.u32 %v1468, 2147483648
  %v1482 = vor.u32 1.1754944e-38, %v1481
  %v1483 = vsel %vm1480, %v1482, %v1478
  %v1484 = vmul.f32 1.0, %v1483
  %v1485 = vrcp.pop %v1469
  %v1486 = vmul.f32 %v1469, %v1485
  %v1487 = vsub.f32 1.0, %v1486
  %v1488 = vmul.f32 %v1485, %v1487
  %v1489 = vadd.f32 %v1485, %v1488
  %vm1490 = vweird.f32 %v1469
  %vm1491 = vweird.f32 %v1485
  %vm1492 = vmor %vm1490, %vm1491
  %v1493 = vsel %vm1492, %v1485, %v1489
  %v1494 = vand.u32 2147483647, %v1469
  %vm1495 = vcmp.eq.f32.partialorder %v1494, 8.507059e+37
  %v1496 = vand.u32 %v1469, 2147483648
  %v1497 = vor.u32 1.1754944e-38, %v1496
  %v1498 = vsel %vm1495, %v1497, %v1493
  %v1499 = vmul.f32 1.0, %v1498
  %v1500 = vtanh.pop %v1460
  %v1501 = vxor.u32 %v1461, 2147483648
  %v1502 = vmul.f32 %v1501, 1.442695
  %v1503 = vpow.pop %v1502
  %v1504 = vadd.f32 %v1503, 1.0
  %v1505 = vrcp.pop %v1504
  %v1506 = vmul.f32 %v1504, %v1505
  %v1507 = vsub.f32 1.0, %v1506
  %v1508 = vmul.f32 %v1505, %v1507
  %v1509 = vadd.f32 %v1505, %v1508
  %vm1510 = vweird.f32 %v1504
  %vm1511 = vweird.f32 %v1505
  %vm1512 = vmor %vm1510, %vm1511
  %v1513 = vsel %vm1512, %v1505, %v1509
  %v1514 = vand.u32 2147483647, %v1504
  %vm1515 = vcmp.eq.f32.partialorder %v1514, 8.507059e+37
  %v1516 = vand.u32 %v1504, 2147483648
  %v1517 = vor.u32 1.1754944e-38, %v1516
  %v1518 = vsel %vm1515, %v1517, %v1513
  %v1519 = vmul.f32 1.0, %v1518
  %v1520 = vmul.f32 %v1499, %v948
  %v1521 = vmul.f32 %v1484, %v1500
  %v1522 = vadd.f32 %v1520, %v1521
  %v1523 = vtanh.pop %v1522
  %v1524 = vmul.f32 %v1519, %v1523
  %v1525 = vld [vmem:[%s2] sm:$0xff]
  %v1526 = vld [vmem:[%s2 + $0x8] sm:$0xff]
  %v1527 = vld [vmem:[%s2 + $0x10] sm:$0xff]
  %v1528 = vld [vmem:[%s2 + $0x18] sm:$0xff]
  %v1529 = vld [vmem:[%s2 + $0x20] sm:$0xff]
  %v1530 = vld [vmem:[%s2 + $0x28] sm:$0xff]
  %v1531 = vld [vmem:[%s2 + $0x30] sm:$0xff]
  %v1532 = vld [vmem:[%s2 + $0x38] sm:$0xff]
  %v1533 = vld [vmem:[%s2 + $0x40] sm:$0xff]
  %v1534 = vld [vmem:[%s2 + $0x48] sm:$0xff]
  %v1535 = vld [vmem:[%s2 + $0x50] sm:$0xff]
  %v1536 = vld [vmem:[%s2 + $0x58] sm:$0xff]
  %v1537 = vld [vmem:[%s2 + $0x60] sm:$0xff]
  %v1538 = vld [vmem:[%s2 + $0x68] sm:$0xff]
  %v1539 = vld [vmem:[%s2 + $0x70] sm:$0xff]
  %v1540 = vld [vmem:[%s2 + $0x78] sm:$0xff]
  %v1541 = vld [vmem:[%s2 + $0x80] sm:$0xff]
  %v1542 = vld [vmem:[%s2 + $0x88] sm:$0xff]
  %v1543 = vld [vmem:[%s2 + $0x90] sm:$0xff]
  %v1544 = vld [vmem:[%s2 + $0x98] sm:$0xff]
  %v1545 = vld [vmem:[%s2 + $0xa0] sm:$0xff]
  %v1546 = vld [vmem:[%s2 + $0xa8] sm:$0xff]
  %v1547 = vld [vmem:[%s2 + $0xb0] sm:$0xff]
  %v1548 = vld [vmem:[%s2 + $0xb8] sm:$0xff]
  %v1549 = vld [vmem:[%s2 + $0xc0] sm:$0xff]
  %v1550 = vld [vmem:[%s2 + $0xc8] sm:$0xff]
  %v1551 = vld [vmem:[%s2 + $0xd0] sm:$0xff]
  %v1552 = vld [vmem:[%s2 + $0xd8] sm:$0xff]
  %v1553 = vld [vmem:[%s2 + $0xe0] sm:$0xff]
  %v1554 = vld [vmem:[%s2 + $0xe8] sm:$0xff]
  %v1555 = vld [vmem:[%s2 + $0xf0] sm:$0xff]
  %v1556 = vld [vmem:[%s2 + $0xf8] sm:$0xff]
  %v1557 = vld [vmem:[%s2 + $0x100] sm:$0xff]
  %v1558 = vld [vmem:[%s2 + $0x108] sm:$0xff]
  %v1559 = vld [vmem:[%s2 + $0x110] sm:$0xff]
  %v1560 = vld [vmem:[%s2 + $0x118] sm:$0xff]
  %v1561 = vld [vmem:[%s2 + $0x120] sm:$0xff]
  %v1562 = vld [vmem:[%s2 + $0x128] sm:$0xff]
  %v1563 = vld [vmem:[%s2 + $0x130] sm:$0xff]
  %v1564 = vld [vmem:[%s2 + $0x138] sm:$0xff]
  %v1565 = vld [vmem:[%s2 + $0x140] sm:$0xff]
  %v1566 = vld [vmem:[%s2 + $0x148] sm:$0xff]
  %v1567 = vld [vmem:[%s2 + $0x150] sm:$0xff]
  %v1568 = vld [vmem:[%s2 + $0x158] sm:$0xff]
  %v1569 = vld [vmem:[%s2 + $0x160] sm:$0xff]
  %v1570 = vld [vmem:[%s2 + $0x168] sm:$0xff]
  %v1571 = vld [vmem:[%s2 + $0x170] sm:$0xff]
  %v1572 = vld [vmem:[%s2 + $0x178] sm:$0xff]
  %v1573 = vld [vmem:[%s2 + $0x180] sm:$0xff]
  %v1574 = vld [vmem:[%s2 + $0x188] sm:$0xff]
  %v1575 = vld [vmem:[%s2 + $0x190] sm:$0xff]
  %v1576 = vld [vmem:[%s2 + $0x198] sm:$0xff]
  %v1577 = vld [vmem:[%s2 + $0x1a0] sm:$0xff]
  %v1578 = vld [vmem:[%s2 + $0x1a8] sm:$0xff]
  %v1579 = vld [vmem:[%s2 + $0x1b0] sm:$0xff]
  %v1580 = vld [vmem:[%s2 + $0x1b8] sm:$0xff]
  %v1581 = vld [vmem:[%s2 + $0x1c0] sm:$0xff]
  %v1582 = vld [vmem:[%s2 + $0x1c8] sm:$0xff]
  %v1583 = vld [vmem:[%s2 + $0x1d0] sm:$0xff]
  %v1584 = vld [vmem:[%s2 + $0x1d8] sm:$0xff]
  %v1585 = vld [vmem:[%s2 + $0x1e0] sm:$0xff]
  %v1586 = vld [vmem:[%s2 + $0x1e8] sm:$0xff]
  %v1587 = vld [vmem:[%s2 + $0x1f0] sm:$0xff]
  %v1588 = vld [vmem:[%s2 + $0x1f8] sm:$0xff]
  %v1589 = vld [vmem:[%s2 + $0x200] sm:$0xff]
  %v1590 = vld [vmem:[%s2 + $0x208] sm:$0xff]
  %v1591 = vld [vmem:[%s2 + $0x210] sm:$0xff]
  %v1592 = vld [vmem:[%s2 + $0x218] sm:$0xff]
  %v1593 = vld [vmem:[%s2 + $0x220] sm:$0xff]
  %v1594 = vld [vmem:[%s2 + $0x228] sm:$0xff]
  %v1595 = vld [vmem:[%s2 + $0x230] sm:$0xff]
  %v1596 = vld [vmem:[%s2 + $0x238] sm:$0xff]
  %v1597 = vld [vmem:[%s2 + $0x240] sm:$0xff]
  %v1598 = vld [vmem:[%s2 + $0x248] sm:$0xff]
  %v1599 = vld [vmem:[%s2 + $0x250] sm:$0xff]
  %v1600 = vld [vmem:[%s2 + $0x258] sm:$0xff]
  %v1601 = vld [vmem:[%s2 + $0x260] sm:$0xff]
  %v1602 = vld [vmem:[%s2 + $0x268] sm:$0xff]
  %v1603 = vld [vmem:[%s2 + $0x270] sm:$0xff]
  %v1604 = vld [vmem:[%s2 + $0x278] sm:$0xff]
  %v1605 = vld [vmem:[%s2 + $0x280] sm:$0xff]
  %v1606 = vld [vmem:[%s2 + $0x288] sm:$0xff]
  %v1607 = vld [vmem:[%s2 + $0x290] sm:$0xff]
  %v1608 = vld [vmem:[%s2 + $0x298] sm:$0xff]
  %v1609 = vld [vmem:[%s2 + $0x2a0] sm:$0xff]
  %v1610 = vld [vmem:[%s2 + $0x2a8] sm:$0xff]
  %v1611 = vld [vmem:[%s2 + $0x2b0] sm:$0xff]
  %v1612 = vld [vmem:[%s2 + $0x2b8] sm:$0xff]
  %v1613 = vld [vmem:[%s2 + $0x2c0] sm:$0xff]
  %v1614 = vld [vmem:[%s2 + $0x2c8] sm:$0xff]
  %v1615 = vld [vmem:[%s2 + $0x2d0] sm:$0xff]
  %v1616 = vld [vmem:[%s2 + $0x2d8] sm:$0xff]
  %v1617 = vld [vmem:[%s2 + $0x2e0] sm:$0xff]
  %v1618 = vld [vmem:[%s2 + $0x2e8] sm:$0xff]
  %v1619 = vld [vmem:[%s2 + $0x2f0] sm:$0xff]
  %v1620 = vld [vmem:[%s2 + $0x2f8] sm:$0xff]
  %v1621 = vld [vmem:[%s2 + $0x300] sm:$0xff]
  %v1622 = vld [vmem:[%s2 + $0x308] sm:$0xff]
  %v1623 = vld [vmem:[%s2 + $0x310] sm:$0xff]
  %v1624 = vld [vmem:[%s2 + $0x318] sm:$0xff]
  %v1625 = vld [vmem:[%s2 + $0x320] sm:$0xff]
  %v1626 = vld [vmem:[%s2 + $0x328] sm:$0xff]
  %v1627 = vld [vmem:[%s2 + $0x330] sm:$0xff]
  %v1628 = vld [vmem:[%s2 + $0x338] sm:$0xff]
  %v1629 = vld [vmem:[%s2 + $0x340] sm:$0xff]
  %v1630 = vld [vmem:[%s2 + $0x348] sm:$0xff]
  %v1631 = vld [vmem:[%s2 + $0x350] sm:$0xff]
  %v1632 = vld [vmem:[%s2 + $0x358] sm:$0xff]
  %v1633 = vld [vmem:[%s2 + $0x360] sm:$0xff]
  %v1634 = vld [vmem:[%s2 + $0x368] sm:$0xff]
  %v1635 = vld [vmem:[%s2 + $0x370] sm:$0xff]
  %v1636 = vld [vmem:[%s2 + $0x378] sm:$0xff]
  %v1637 = vld [vmem:[%s2 + $0x380] sm:$0xff]
  %v1638 = vld [vmem:[%s2 + $0x388] sm:$0xff]
  %v1639 = vld [vmem:[%s2 + $0x390] sm:$0xff]
  %v1640 = vld [vmem:[%s2 + $0x398] sm:$0xff]
  %v1641 = vld [vmem:[%s2 + $0x3a0] sm:$0xff]
  %v1642 = vld [vmem:[%s2 + $0x3a8] sm:$0xff]
  %v1643 = vld [vmem:[%s2 + $0x3b0] sm:$0xff]
  %v1644 = vld [vmem:[%s2 + $0x3b8] sm:$0xff]
  %v1645 = vld [vmem:[%s2 + $0x3c0] sm:$0xff]
  %v1646 = vld [vmem:[%s2 + $0x3c8] sm:$0xff]
  %v1647 = vld [vmem:[%s2 + $0x3d0] sm:$0xff]
  %v1648 = vld [vmem:[%s2 + $0x3d8] sm:$0xff]
  %v1649 = vld [vmem:[%s2 + $0x3e0] sm:$0xff]
  %v1650 = vld [vmem:[%s2 + $0x3e8] sm:$0xff]
  %v1651 = vld [vmem:[%s2 + $0x3f0] sm:$0xff]
  %v1652 = vld [vmem:[%s2 + $0x3f8] sm:$0xff]
  %1653 = vmatpush.msra.mxu0 %v1645
  %1654 = vmatpush.msra.mxu0 %v1637
  %1655 = vmatpush.msra.mxu0 %v1629
  %1656 = vmatpush.msra.mxu0 %v1621
  %1657 = vmatpush.msra.mxu0 %v1613
  %1658 = vmatpush.msra.mxu0 %v1605
  %1659 = vmatpush.msra.mxu0 %v1597
  %1660 = vmatpush.msra.mxu0 %v1589
  %1661 = vmatpush.msra.mxu0 %v1581
  %1662 = vmatpush.msra.mxu0 %v1573
  %1663 = vmatpush.msra.mxu0 %v1565
  %1664 = vmatpush.msra.mxu0 %v1557
  %1665 = vmatpush.msra.mxu0 %v1549
  %1666 = vmatpush.msra.mxu0 %v1541
  %1667 = vmatpush.msra.mxu0 %v1533
  %1668 = vmatpush.msra.mxu0 %v1525
  %1669 = vmatmul.f32.gmra.mxu0 %v1524
  %v1670 = vpop.f32.mrf.mxu0
  %v1671 = vadd.f32 0.0, %v1670
  %1672 = vdwg.mxu0
  %1673 = vmatpush.msra.mxu0 %v1646
  %1674 = vmatpush.msra.mxu0 %v1638
  %1675 = vmatpush.msra.mxu0 %v1630
  %1676 = vmatpush.msra.mxu0 %v1622
  %1677 = vmatpush.msra.mxu0 %v1614
  %1678 = vmatpush.msra.mxu0 %v1606
  %1679 = vmatpush.msra.mxu0 %v1598
  %1680 = vmatpush.msra.mxu0 %v1590
  %1681 = vmatpush.msra.mxu0 %v1582
  %1682 = vmatpush.msra.mxu0 %v1574
  %1683 = vmatpush.msra.mxu0 %v1566
  %1684 = vmatpush.msra.mxu0 %v1558
  %1685 = vmatpush.msra.mxu0 %v1550
  %1686 = vmatpush.msra.mxu0 %v1542
  %1687 = vmatpush.msra.mxu0 %v1534
  %1688 = vmatpush.msra.mxu0 %v1526
  %1689 = vmatmul.f32.gmra.mxu0 %v1524
  %v1690 = vpop.f32.mrf.mxu0
  %v1691 = vadd.f32 0.0, %v1690
  %1692 = vdwg.mxu0
  %1693 = vmatpush.msra.mxu0 %v1647
  %1694 = vmatpush.msra.mxu0 %v1639
  %1695 = vmatpush.msra.mxu0 %v1631
  %1696 = vmatpush.msra.mxu0 %v1623
  %1697 = vmatpush.msra.mxu0 %v1615
  %1698 = vmatpush.msra.mxu0 %v1607
  %1699 = vmatpush.msra.mxu0 %v1599
  %1700 = vmatpush.msra.mxu0 %v1591
  %1701 = vmatpush.msra.mxu0 %v1583
  %1702 = vmatpush.msra.mxu0 %v1575
  %1703 = vmatpush.msra.mxu0 %v1567
  %1704 = vmatpush.msra.mxu0 %v1559
  %1705 = vmatpush.msra.mxu0 %v1551
  %1706 = vmatpush.msra.mxu0 %v1543
  %1707 = vmatpush.msra.mxu0 %v1535
  %1708 = vmatpush.msra.mxu0 %v1527
  %1709 = vmatmul.f32.gmra.mxu0 %v1524
  %v1710 = vpop.f32.mrf.mxu0
  %v1711 = vadd.f32 0.0, %v1710
  %1712 = vdwg.mxu0
  %1713 = vmatpush.msra.mxu0 %v1648
  %1714 = vmatpush.msra.mxu0 %v1640
  %1715 = vmatpush.msra.mxu0 %v1632
  %1716 = vmatpush.msra.mxu0 %v1624
  %1717 = vmatpush.msra.mxu0 %v1616
  %1718 = vmatpush.msra.mxu0 %v1608
  %1719 = vmatpush.msra.mxu0 %v1600
  %1720 = vmatpush.msra.mxu0 %v1592
  %1721 = vmatpush.msra.mxu0 %v1584
  %1722 = vmatpush.msra.mxu0 %v1576
  %1723 = vmatpush.msra.mxu0 %v1568
  %1724 = vmatpush.msra.mxu0 %v1560
  %1725 = vmatpush.msra.mxu0 %v1552
  %1726 = vmatpush.msra.mxu0 %v1544
  %1727 = vmatpush.msra.mxu0 %v1536
  %1728 = vmatpush.msra.mxu0 %v1528
  %1729 = vmatmul.f32.gmra.mxu0 %v1524
  %v1730 = vpop.f32.mrf.mxu0
  %v1731 = vadd.f32 0.0, %v1730
  %1732 = vdwg.mxu0
  %1733 = vmatpush.msra.mxu0 %v1649
  %1734 = vmatpush.msra.mxu0 %v1641
  %1735 = vmatpush.msra.mxu0 %v1633
  %1736 = vmatpush.msra.mxu0 %v1625
  %1737 = vmatpush.msra.mxu0 %v1617
  %1738 = vmatpush.msra.mxu0 %v1609
  %1739 = vmatpush.msra.mxu0 %v1601
  %1740 = vmatpush.msra.mxu0 %v1593
  %1741 = vmatpush.msra.mxu0 %v1585
  %1742 = vmatpush.msra.mxu0 %v1577
  %1743 = vmatpush.msra.mxu0 %v1569
  %1744 = vmatpush.msra.mxu0 %v1561
  %1745 = vmatpush.msra.mxu0 %v1553
  %1746 = vmatpush.msra.mxu0 %v1545
  %1747 = vmatpush.msra.mxu0 %v1537
  %1748 = vmatpush.msra.mxu0 %v1529
  %1749 = vmatmul.f32.gmra.mxu0 %v1524
  %v1750 = vpop.f32.mrf.mxu0
  %v1751 = vadd.f32 0.0, %v1750
  %1752 = vdwg.mxu0
  %1753 = vmatpush.msra.mxu0 %v1650
  %1754 = vmatpush.msra.mxu0 %v1642
  %1755 = vmatpush.msra.mxu0 %v1634
  %1756 = vmatpush.msra.mxu0 %v1626
  %1757 = vmatpush.msra.mxu0 %v1618
  %1758 = vmatpush.msra.mxu0 %v1610
  %1759 = vmatpush.msra.mxu0 %v1602
  %1760 = vmatpush.msra.mxu0 %v1594
  %1761 = vmatpush.msra.mxu0 %v1586
  %1762 = vmatpush.msra.mxu0 %v1578
  %1763 = vmatpush.msra.mxu0 %v1570
  %1764 = vmatpush.msra.mxu0 %v1562
  %1765 = vmatpush.msra.mxu0 %v1554
  %1766 = vmatpush.msra.mxu0 %v1546
  %1767 = vmatpush.msra.mxu0 %v1538
  %1768 = vmatpush.msra.mxu0 %v1530
  %1769 = vmatmul.f32.gmra.mxu0 %v1524
  %v1770 = vpop.f32.mrf.mxu0
  %v1771 = vadd.f32 0.0, %v1770
  %1772 = vdwg.mxu0
  %1773 = vmatpush.msra.mxu0 %v1651
  %1774 = vmatpush.msra.mxu0 %v1643
  %1775 = vmatpush.msra.mxu0 %v1635
  %1776 = vmatpush.msra.mxu0 %v1627
  %1777 = vmatpush.msra.mxu0 %v1619
  %1778 = vmatpush.msra.mxu0 %v1611
  %1779 = vmatpush.msra.mxu0 %v1603
  %1780 = vmatpush.msra.mxu0 %v1595
  %1781 = vmatpush.msra.mxu0 %v1587
  %1782 = vmatpush.msra.mxu0 %v1579
  %1783 = vmatpush.msra.mxu0 %v1571
  %1784 = vmatpush.msra.mxu0 %v1563
  %1785 = vmatpush.msra.mxu0 %v1555
  %1786 = vmatpush.msra.mxu0 %v1547
  %1787 = vmatpush.msra.mxu0 %v1539
  %1788 = vmatpush.msra.mxu0 %v1531
  %1789 = vmatmul.f32.gmra.mxu0 %v1524
  %v1790 = vpop.f32.mrf.mxu0
  %v1791 = vadd.f32 0.0, %v1790
  %1792 = vdwg.mxu0
  %1793 = vmatpush.msra.mxu0 %v1652
  %1794 = vmatpush.msra.mxu0 %v1644
  %1795 = vmatpush.msra.mxu0 %v1636
  %1796 = vmatpush.msra.mxu0 %v1628
  %1797 = vmatpush.msra.mxu0 %v1620
  %1798 = vmatpush.msra.mxu0 %v1612
  %1799 = vmatpush.msra.mxu0 %v1604
  %1800 = vmatpush.msra.mxu0 %v1596
  %1801 = vmatpush.msra.mxu0 %v1588
  %1802 = vmatpush.msra.mxu0 %v1580
  %1803 = vmatpush.msra.mxu0 %v1572
  %1804 = vmatpush.msra.mxu0 %v1564
  %1805 = vmatpush.msra.mxu0 %v1556
  %1806 = vmatpush.msra.mxu0 %v1548
  %1807 = vmatpush.msra.mxu0 %v1540
  %1808 = vmatpush.msra.mxu0 %v1532
  %1809 = vmatmul.f32.gmra.mxu0 %v1524
  %v1810 = vpop.f32.mrf.mxu0
  %v1811 = vadd.f32 0.0, %v1810
  %1812 = vdwg.mxu0
  %v1813 = vadd.f32 %v1389, %v1751
  %v1814 = vadd.f32 %v1409, %v1771
  %v1815 = vadd.f32 %v1429, %v1791
  %v1816 = vadd.f32 %v1449, %v1811
  %v1817 = vxor.u32 %v1813, 2147483648
  %v1818 = vxor.u32 %v1814, 2147483648
  %v1819 = vmul.f32 %v1817, 1.442695
  %v1820 = vpow.pop %v1819
  %v1821 = vmul.f32 %v1818, 1.442695
  %v1822 = vpow.pop %v1821
  %v1823 = vadd.f32 %v1820, 1.0
  %v1824 = vadd.f32 %v1822, 1.0
  %v1825 = vrcp.pop %v1823
  %v1826 = vmul.f32 %v1823, %v1825
  %v1827 = vsub.f32 1.0, %v1826
  %v1828 = vmul.f32 %v1825, %v1827
  %v1829 = vadd.f32 %v1825, %v1828
  %vm1830 = vweird.f32 %v1823
  %vm1831 = vweird.f32 %v1825
  %vm1832 = vmor %vm1830, %vm1831
  %v1833 = vsel %vm1832, %v1825, %v1829
  %v1834 = vand.u32 2147483647, %v1823
  %vm1835 = vcmp.eq.f32.partialorder %v1834, 8.507059e+37
  %v1836 = vand.u32 %v1823, 2147483648
  %v1837 = vor.u32 1.1754944e-38, %v1836
  %v1838 = vsel %vm1835, %v1837, %v1833
  %v1839 = vmul.f32 1.0, %v1838
  %v1840 = vrcp.pop %v1824
  %v1841 = vmul.f32 %v1824, %v1840
  %v1842 = vsub.f32 1.0, %v1841
  %v1843 = vmul.f32 %v1840, %v1842
  %v1844 = vadd.f32 %v1840, %v1843
  %vm1845 = vweird.f32 %v1824
  %vm1846 = vweird.f32 %v1840
  %vm1847 = vmor %vm1845, %vm1846
  %v1848 = vsel %vm1847, %v1840, %v1844
  %v1849 = vand.u32 2147483647, %v1824
  %vm1850 = vcmp.eq.f32.partialorder %v1849, 8.507059e+37
  %v1851 = vand.u32 %v1824, 2147483648
  %v1852 = vor.u32 1.1754944e-38, %v1851
  %v1853 = vsel %vm1850, %v1852, %v1848
  %v1854 = vmul.f32 1.0, %v1853
  %v1855 = vtanh.pop %v1815
  %v1856 = vxor.u32 %v1816, 2147483648
  %v1857 = vmul.f32 %v1856, 1.442695
  %v1858 = vpow.pop %v1857
  %v1859 = vadd.f32 %v1858, 1.0
  %v1860 = vrcp.pop %v1859
  %v1861 = vmul.f32 %v1859, %v1860
  %v1862 = vsub.f32 1.0, %v1861
  %v1863 = vmul.f32 %v1860, %v1862
  %v1864 = vadd.f32 %v1860, %v1863
  %vm1865 = vweird.f32 %v1859
  %vm1866 = vweird.f32 %v1860
  %vm1867 = vmor %vm1865, %vm1866
  %v1868 = vsel %vm1867, %v1860, %v1864
  %v1869 = vand.u32 2147483647, %v1859
  %vm1870 = vcmp.eq.f32.partialorder %v1869, 8.507059e+37
  %v1871 = vand.u32 %v1859, 2147483648
  %v1872 = vor.u32 1.1754944e-38, %v1871
  %v1873 = vsel %vm1870, %v1872, %v1868
  %v1874 = vmul.f32 1.0, %v1873
  %v1875 = vmul.f32 %v1854, %v1303
  %v1876 = vmul.f32 %v1839, %v1855
  %v1877 = vadd.f32 %v1875, %v1876
  %v1878 = vtanh.pop %v1877
  %v1879 = vmul.f32 %v1874, %v1878
  %s1880 = scalar_lea.vmem [#allocation3], 8
  %1881 = vst [vmem:[%s1880] sm:$0xff] %v1879
  %v1882 = vld [vmem:[%s3] sm:$0xff]
  %v1883 = vld [vmem:[%s3 + $0x8] sm:$0xff]
  %v1884 = vld [vmem:[%s3 + $0x10] sm:$0xff]
  %v1885 = vld [vmem:[%s3 + $0x18] sm:$0xff]
  %v1886 = vld [vmem:[%s3 + $0x20] sm:$0xff]
  %v1887 = vld [vmem:[%s3 + $0x28] sm:$0xff]
  %v1888 = vld [vmem:[%s3 + $0x30] sm:$0xff]
  %v1889 = vld [vmem:[%s3 + $0x38] sm:$0xff]
  %v1890 = vld [vmem:[%s3 + $0x40] sm:$0xff]
  %v1891 = vld [vmem:[%s3 + $0x48] sm:$0xff]
  %v1892 = vld [vmem:[%s3 + $0x50] sm:$0xff]
  %v1893 = vld [vmem:[%s3 + $0x58] sm:$0xff]
  %v1894 = vld [vmem:[%s3 + $0x60] sm:$0xff]
  %v1895 = vld [vmem:[%s3 + $0x68] sm:$0xff]
  %v1896 = vld [vmem:[%s3 + $0x70] sm:$0xff]
  %v1897 = vld [vmem:[%s3 + $0x78] sm:$0xff]
  %v1898 = vld [vmem:[%s3 + $0x80] sm:$0xff]
  %v1899 = vld [vmem:[%s3 + $0x88] sm:$0xff]
  %v1900 = vld [vmem:[%s3 + $0x90] sm:$0xff]
  %v1901 = vld [vmem:[%s3 + $0x98] sm:$0xff]
  %v1902 = vld [vmem:[%s3 + $0xa0] sm:$0xff]
  %v1903 = vld [vmem:[%s3 + $0xa8] sm:$0xff]
  %v1904 = vld [vmem:[%s3 + $0xb0] sm:$0xff]
  %v1905 = vld [vmem:[%s3 + $0xb8] sm:$0xff]
  %v1906 = vld [vmem:[%s3 + $0xc0] sm:$0xff]
  %v1907 = vld [vmem:[%s3 + $0xc8] sm:$0xff]
  %v1908 = vld [vmem:[%s3 + $0xd0] sm:$0xff]
  %v1909 = vld [vmem:[%s3 + $0xd8] sm:$0xff]
  %v1910 = vld [vmem:[%s3 + $0xe0] sm:$0xff]
  %v1911 = vld [vmem:[%s3 + $0xe8] sm:$0xff]
  %v1912 = vld [vmem:[%s3 + $0xf0] sm:$0xff]
  %v1913 = vld [vmem:[%s3 + $0xf8] sm:$0xff]
  %v1914 = vld [vmem:[%s3 + $0x100] sm:$0xff]
  %v1915 = vld [vmem:[%s3 + $0x108] sm:$0xff]
  %v1916 = vld [vmem:[%s3 + $0x110] sm:$0xff]
  %v1917 = vld [vmem:[%s3 + $0x118] sm:$0xff]
  %v1918 = vld [vmem:[%s3 + $0x120] sm:$0xff]
  %v1919 = vld [vmem:[%s3 + $0x128] sm:$0xff]
  %v1920 = vld [vmem:[%s3 + $0x130] sm:$0xff]
  %v1921 = vld [vmem:[%s3 + $0x138] sm:$0xff]
  %v1922 = vld [vmem:[%s3 + $0x140] sm:$0xff]
  %v1923 = vld [vmem:[%s3 + $0x148] sm:$0xff]
  %v1924 = vld [vmem:[%s3 + $0x150] sm:$0xff]
  %v1925 = vld [vmem:[%s3 + $0x158] sm:$0xff]
  %v1926 = vld [vmem:[%s3 + $0x160] sm:$0xff]
  %v1927 = vld [vmem:[%s3 + $0x168] sm:$0xff]
  %v1928 = vld [vmem:[%s3 + $0x170] sm:$0xff]
  %v1929 = vld [vmem:[%s3 + $0x178] sm:$0xff]
  %v1930 = vld [vmem:[%s3 + $0x180] sm:$0xff]
  %v1931 = vld [vmem:[%s3 + $0x188] sm:$0xff]
  %v1932 = vld [vmem:[%s3 + $0x190] sm:$0xff]
  %v1933 = vld [vmem:[%s3 + $0x198] sm:$0xff]
  %v1934 = vld [vmem:[%s3 + $0x1a0] sm:$0xff]
  %v1935 = vld [vmem:[%s3 + $0x1a8] sm:$0xff]
  %v1936 = vld [vmem:[%s3 + $0x1b0] sm:$0xff]
  %v1937 = vld [vmem:[%s3 + $0x1b8] sm:$0xff]
  %v1938 = vld [vmem:[%s3 + $0x1c0] sm:$0xff]
  %v1939 = vld [vmem:[%s3 + $0x1c8] sm:$0xff]
  %v1940 = vld [vmem:[%s3 + $0x1d0] sm:$0xff]
  %v1941 = vld [vmem:[%s3 + $0x1d8] sm:$0xff]
  %v1942 = vld [vmem:[%s3 + $0x1e0] sm:$0xff]
  %v1943 = vld [vmem:[%s3 + $0x1e8] sm:$0xff]
  %v1944 = vld [vmem:[%s3 + $0x1f0] sm:$0xff]
  %v1945 = vld [vmem:[%s3 + $0x1f8] sm:$0xff]
  %1946 = vmatpush.msra.mxu0 %v1942
  %1947 = vmatpush.msra.mxu0 %v1938
  %1948 = vmatpush.msra.mxu0 %v1934
  %1949 = vmatpush.msra.mxu0 %v1930
  %1950 = vmatpush.msra.mxu0 %v1926
  %1951 = vmatpush.msra.mxu0 %v1922
  %1952 = vmatpush.msra.mxu0 %v1918
  %1953 = vmatpush.msra.mxu0 %v1914
  %1954 = vmatpush.msra.mxu0 %v1910
  %1955 = vmatpush.msra.mxu0 %v1906
  %1956 = vmatpush.msra.mxu0 %v1902
  %1957 = vmatpush.msra.mxu0 %v1898
  %1958 = vmatpush.msra.mxu0 %v1894
  %1959 = vmatpush.msra.mxu0 %v1890
  %1960 = vmatpush.msra.mxu0 %v1886
  %1961 = vmatpush.msra.mxu0 %v1882
  %1962 = vmatmul.f32.gmra.mxu0 %v1879
  %v1963 = vpop.f32.mrf.mxu0
  %v1964 = vadd.f32 %v725, %v1963
  %1965 = vdwg.mxu0
  %1966 = vmatpush.msra.mxu0 %v1943
  %1967 = vmatpush.msra.mxu0 %v1939
  %1968 = vmatpush.msra.mxu0 %v1935
  %1969 = vmatpush.msra.mxu0 %v1931
  %1970 = vmatpush.msra.mxu0 %v1927
  %1971 = vmatpush.msra.mxu0 %v1923
  %1972 = vmatpush.msra.mxu0 %v1919
  %1973 = vmatpush.msra.mxu0 %v1915
  %1974 = vmatpush.msra.mxu0 %v1911
  %1975 = vmatpush.msra.mxu0 %v1907
  %1976 = vmatpush.msra.mxu0 %v1903
  %1977 = vmatpush.msra.mxu0 %v1899
  %1978 = vmatpush.msra.mxu0 %v1895
  %1979 = vmatpush.msra.mxu0 %v1891
  %1980 = vmatpush.msra.mxu0 %v1887
  %1981 = vmatpush.msra.mxu0 %v1883
  %1982 = vmatmul.f32.gmra.mxu0 %v1879
  %v1983 = vpop.f32.mrf.mxu0
  %v1984 = vadd.f32 %v726, %v1983
  %1985 = vdwg.mxu0
  %1986 = vmatpush.msra.mxu0 %v1944
  %1987 = vmatpush.msra.mxu0 %v1940
  %1988 = vmatpush.msra.mxu0 %v1936
  %1989 = vmatpush.msra.mxu0 %v1932
  %1990 = vmatpush.msra.mxu0 %v1928
  %1991 = vmatpush.msra.mxu0 %v1924
  %1992 = vmatpush.msra.mxu0 %v1920
  %1993 = vmatpush.msra.mxu0 %v1916
  %1994 = vmatpush.msra.mxu0 %v1912
  %1995 = vmatpush.msra.mxu0 %v1908
  %1996 = vmatpush.msra.mxu0 %v1904
  %1997 = vmatpush.msra.mxu0 %v1900
  %1998 = vmatpush.msra.mxu0 %v1896
  %1999 = vmatpush.msra.mxu0 %v1892
  %2000 = vmatpush.msra.mxu0 %v1888
  %2001 = vmatpush.msra.mxu0 %v1884
  %2002 = vmatmul.f32.gmra.mxu0 %v1879
  %v2003 = vpop.f32.mrf.mxu0
  %v2004 = vadd.f32 %v727, %v2003
  %2005 = vdwg.mxu0
  %2006 = vmatpush.msra.mxu0 %v1945
  %2007 = vmatpush.msra.mxu0 %v1941
  %2008 = vmatpush.msra.mxu0 %v1937
  %2009 = vmatpush.msra.mxu0 %v1933
  %2010 = vmatpush.msra.mxu0 %v1929
  %2011 = vmatpush.msra.mxu0 %v1925
  %2012 = vmatpush.msra.mxu0 %v1921
  %2013 = vmatpush.msra.mxu0 %v1917
  %2014 = vmatpush.msra.mxu0 %v1913
  %2015 = vmatpush.msra.mxu0 %v1909
  %2016 = vmatpush.msra.mxu0 %v1905
  %2017 = vmatpush.msra.mxu0 %v1901
  %2018 = vmatpush.msra.mxu0 %v1897
  %2019 = vmatpush.msra.mxu0 %v1893
  %2020 = vmatpush.msra.mxu0 %v1889
  %2021 = vmatpush.msra.mxu0 %v1885
  %2022 = vmatmul.f32.gmra.mxu0 %v1879
  %v2023 = vpop.f32.mrf.mxu0
  %v2024 = vadd.f32 %v728, %v2023
  %2025 = vdwg.mxu0
  %s2026 = smul.u32 2, 4
  %s2027 = smul.addr %s2026, 8
  %s2028 = scalar_lea.vmem [#allocation2], %s2027
  %v2029 = vld [vmem:[%s2028] sm:$0xff]
  %v2030 = vld [vmem:[%s2028 + $0x8] sm:$0xff]
  %v2031 = vld [vmem:[%s2028 + $0x10] sm:$0xff]
  %v2032 = vld [vmem:[%s2028 + $0x18] sm:$0xff]
  %v2033 = vadd.f32 %v2029, %v1671
  %v2034 = vadd.f32 %v2030, %v1691
  %v2035 = vadd.f32 %v2031, %v1711
  %v2036 = vadd.f32 %v2032, %v1731
  %v2037 = vxor.u32 %v2033, 2147483648
  %v2038 = vxor.u32 %v2034, 2147483648
  %v2039 = vmul.f32 %v2037, 1.442695
  %v2040 = vpow.pop %v2039
  %v2041 = vmul.f32 %v2038, 1.442695
  %v2042 = vpow.pop %v2041
  %v2043 = vadd.f32 %v2040, 1.0
  %v2044 = vadd.f32 %v2042, 1.0
  %v2045 = vrcp.pop %v2043
  %v2046 = vmul.f32 %v2043, %v2045
  %v2047 = vsub.f32 1.0, %v2046
  %v2048 = vmul.f32 %v2045, %v2047
  %v2049 = vadd.f32 %v2045, %v2048
  %vm2050 = vweird.f32 %v2043
  %vm2051 = vweird.f32 %v2045
  %vm2052 = vmor %vm2050, %vm2051
  %v2053 = vsel %vm2052, %v2045, %v2049
  %v2054 = vand.u32 2147483647, %v2043
  %vm2055 = vcmp.eq.f32.partialorder %v2054, 8.507059e+37
  %v2056 = vand.u32 %v2043, 2147483648
  %v2057 = vor.u32 1.1754944e-38, %v2056
  %v2058 = vsel %vm2055, %v2057, %v2053
  %v2059 = vmul.f32 1.0, %v2058
  %v2060 = vrcp.pop %v2044
  %v2061 = vmul.f32 %v2044, %v2060
  %v2062 = vsub.f32 1.0, %v2061
  %v2063 = vmul.f32 %v2060, %v2062
  %v2064 = vadd.f32 %v2060, %v2063
  %vm2065 = vweird.f32 %v2044
  %vm2066 = vweird.f32 %v2060
  %vm2067 = vmor %vm2065, %vm2066
  %v2068 = vsel %vm2067, %v2060, %v2064
  %v2069 = vand.u32 2147483647, %v2044
  %vm2070 = vcmp.eq.f32.partialorder %v2069, 8.507059e+37
  %v2071 = vand.u32 %v2044, 2147483648
  %v2072 = vor.u32 1.1754944e-38, %v2071
  %v2073 = vsel %vm2070, %v2072, %v2068
  %v2074 = vmul.f32 1.0, %v2073
  %v2075 = vtanh.pop %v2035
  %v2076 = vxor.u32 %v2036, 2147483648
  %v2077 = vmul.f32 %v2076, 1.442695
  %v2078 = vpow.pop %v2077
  %v2079 = vadd.f32 %v2078, 1.0
  %v2080 = vrcp.pop %v2079
  %v2081 = vmul.f32 %v2079, %v2080
  %v2082 = vsub.f32 1.0, %v2081
  %v2083 = vmul.f32 %v2080, %v2082
  %v2084 = vadd.f32 %v2080, %v2083
  %vm2085 = vweird.f32 %v2079
  %vm2086 = vweird.f32 %v2080
  %vm2087 = vmor %vm2085, %vm2086
  %v2088 = vsel %vm2087, %v2080, %v2084
  %v2089 = vand.u32 2147483647, %v2079
  %vm2090 = vcmp.eq.f32.partialorder %v2089, 8.507059e+37
  %v2091 = vand.u32 %v2079, 2147483648
  %v2092 = vor.u32 1.1754944e-38, %v2091
  %v2093 = vsel %vm2090, %v2092, %v2088
  %v2094 = vmul.f32 1.0, %v2093
  %v2095 = vmul.f32 %v2074, %v1522
  %v2096 = vmul.f32 %v2059, %v2075
  %v2097 = vadd.f32 %v2095, %v2096
  %v2098 = vtanh.pop %v2097
  %v2099 = vmul.f32 %v2094, %v2098
  %v2100 = vld [vmem:[%s2] sm:$0xff]
  %v2101 = vld [vmem:[%s2 + $0x8] sm:$0xff]
  %v2102 = vld [vmem:[%s2 + $0x10] sm:$0xff]
  %v2103 = vld [vmem:[%s2 + $0x18] sm:$0xff]
  %v2104 = vld [vmem:[%s2 + $0x20] sm:$0xff]
  %v2105 = vld [vmem:[%s2 + $0x28] sm:$0xff]
  %v2106 = vld [vmem:[%s2 + $0x30] sm:$0xff]
  %v2107 = vld [vmem:[%s2 + $0x38] sm:$0xff]
  %v2108 = vld [vmem:[%s2 + $0x40] sm:$0xff]
  %v2109 = vld [vmem:[%s2 + $0x48] sm:$0xff]
  %v2110 = vld [vmem:[%s2 + $0x50] sm:$0xff]
  %v2111 = vld [vmem:[%s2 + $0x58] sm:$0xff]
  %v2112 = vld [vmem:[%s2 + $0x60] sm:$0xff]
  %v2113 = vld [vmem:[%s2 + $0x68] sm:$0xff]
  %v2114 = vld [vmem:[%s2 + $0x70] sm:$0xff]
  %v2115 = vld [vmem:[%s2 + $0x78] sm:$0xff]
  %v2116 = vld [vmem:[%s2 + $0x80] sm:$0xff]
  %v2117 = vld [vmem:[%s2 + $0x88] sm:$0xff]
  %v2118 = vld [vmem:[%s2 + $0x90] sm:$0xff]
  %v2119 = vld [vmem:[%s2 + $0x98] sm:$0xff]
  %v2120 = vld [vmem:[%s2 + $0xa0] sm:$0xff]
  %v2121 = vld [vmem:[%s2 + $0xa8] sm:$0xff]
  %v2122 = vld [vmem:[%s2 + $0xb0] sm:$0xff]
  %v2123 = vld [vmem:[%s2 + $0xb8] sm:$0xff]
  %v2124 = vld [vmem:[%s2 + $0xc0] sm:$0xff]
  %v2125 = vld [vmem:[%s2 + $0xc8] sm:$0xff]
  %v2126 = vld [vmem:[%s2 + $0xd0] sm:$0xff]
  %v2127 = vld [vmem:[%s2 + $0xd8] sm:$0xff]
  %v2128 = vld [vmem:[%s2 + $0xe0] sm:$0xff]
  %v2129 = vld [vmem:[%s2 + $0xe8] sm:$0xff]
  %v2130 = vld [vmem:[%s2 + $0xf0] sm:$0xff]
  %v2131 = vld [vmem:[%s2 + $0xf8] sm:$0xff]
  %v2132 = vld [vmem:[%s2 + $0x100] sm:$0xff]
  %v2133 = vld [vmem:[%s2 + $0x108] sm:$0xff]
  %v2134 = vld [vmem:[%s2 + $0x110] sm:$0xff]
  %v2135 = vld [vmem:[%s2 + $0x118] sm:$0xff]
  %v2136 = vld [vmem:[%s2 + $0x120] sm:$0xff]
  %v2137 = vld [vmem:[%s2 + $0x128] sm:$0xff]
  %v2138 = vld [vmem:[%s2 + $0x130] sm:$0xff]
  %v2139 = vld [vmem:[%s2 + $0x138] sm:$0xff]
  %v2140 = vld [vmem:[%s2 + $0x140] sm:$0xff]
  %v2141 = vld [vmem:[%s2 + $0x148] sm:$0xff]
  %v2142 = vld [vmem:[%s2 + $0x150] sm:$0xff]
  %v2143 = vld [vmem:[%s2 + $0x158] sm:$0xff]
  %v2144 = vld [vmem:[%s2 + $0x160] sm:$0xff]
  %v2145 = vld [vmem:[%s2 + $0x168] sm:$0xff]
  %v2146 = vld [vmem:[%s2 + $0x170] sm:$0xff]
  %v2147 = vld [vmem:[%s2 + $0x178] sm:$0xff]
  %v2148 = vld [vmem:[%s2 + $0x180] sm:$0xff]
  %v2149 = vld [vmem:[%s2 + $0x188] sm:$0xff]
  %v2150 = vld [vmem:[%s2 + $0x190] sm:$0xff]
  %v2151 = vld [vmem:[%s2 + $0x198] sm:$0xff]
  %v2152 = vld [vmem:[%s2 + $0x1a0] sm:$0xff]
  %v2153 = vld [vmem:[%s2 + $0x1a8] sm:$0xff]
  %v2154 = vld [vmem:[%s2 + $0x1b0] sm:$0xff]
  %v2155 = vld [vmem:[%s2 + $0x1b8] sm:$0xff]
  %v2156 = vld [vmem:[%s2 + $0x1c0] sm:$0xff]
  %v2157 = vld [vmem:[%s2 + $0x1c8] sm:$0xff]
  %v2158 = vld [vmem:[%s2 + $0x1d0] sm:$0xff]
  %v2159 = vld [vmem:[%s2 + $0x1d8] sm:$0xff]
  %v2160 = vld [vmem:[%s2 + $0x1e0] sm:$0xff]
  %v2161 = vld [vmem:[%s2 + $0x1e8] sm:$0xff]
  %v2162 = vld [vmem:[%s2 + $0x1f0] sm:$0xff]
  %v2163 = vld [vmem:[%s2 + $0x1f8] sm:$0xff]
  %v2164 = vld [vmem:[%s2 + $0x200] sm:$0xff]
  %v2165 = vld [vmem:[%s2 + $0x208] sm:$0xff]
  %v2166 = vld [vmem:[%s2 + $0x210] sm:$0xff]
  %v2167 = vld [vmem:[%s2 + $0x218] sm:$0xff]
  %v2168 = vld [vmem:[%s2 + $0x220] sm:$0xff]
  %v2169 = vld [vmem:[%s2 + $0x228] sm:$0xff]
  %v2170 = vld [vmem:[%s2 + $0x230] sm:$0xff]
  %v2171 = vld [vmem:[%s2 + $0x238] sm:$0xff]
  %v2172 = vld [vmem:[%s2 + $0x240] sm:$0xff]
  %v2173 = vld [vmem:[%s2 + $0x248] sm:$0xff]
  %v2174 = vld [vmem:[%s2 + $0x250] sm:$0xff]
  %v2175 = vld [vmem:[%s2 + $0x258] sm:$0xff]
  %v2176 = vld [vmem:[%s2 + $0x260] sm:$0xff]
  %v2177 = vld [vmem:[%s2 + $0x268] sm:$0xff]
  %v2178 = vld [vmem:[%s2 + $0x270] sm:$0xff]
  %v2179 = vld [vmem:[%s2 + $0x278] sm:$0xff]
  %v2180 = vld [vmem:[%s2 + $0x280] sm:$0xff]
  %v2181 = vld [vmem:[%s2 + $0x288] sm:$0xff]
  %v2182 = vld [vmem:[%s2 + $0x290] sm:$0xff]
  %v2183 = vld [vmem:[%s2 + $0x298] sm:$0xff]
  %v2184 = vld [vmem:[%s2 + $0x2a0] sm:$0xff]
  %v2185 = vld [vmem:[%s2 + $0x2a8] sm:$0xff]
  %v2186 = vld [vmem:[%s2 + $0x2b0] sm:$0xff]
  %v2187 = vld [vmem:[%s2 + $0x2b8] sm:$0xff]
  %v2188 = vld [vmem:[%s2 + $0x2c0] sm:$0xff]
  %v2189 = vld [vmem:[%s2 + $0x2c8] sm:$0xff]
  %v2190 = vld [vmem:[%s2 + $0x2d0] sm:$0xff]
  %v2191 = vld [vmem:[%s2 + $0x2d8] sm:$0xff]
  %v2192 = vld [vmem:[%s2 + $0x2e0] sm:$0xff]
  %v2193 = vld [vmem:[%s2 + $0x2e8] sm:$0xff]
  %v2194 = vld [vmem:[%s2 + $0x2f0] sm:$0xff]
  %v2195 = vld [vmem:[%s2 + $0x2f8] sm:$0xff]
  %v2196 = vld [vmem:[%s2 + $0x300] sm:$0xff]
  %v2197 = vld [vmem:[%s2 + $0x308] sm:$0xff]
  %v2198 = vld [vmem:[%s2 + $0x310] sm:$0xff]
  %v2199 = vld [vmem:[%s2 + $0x318] sm:$0xff]
  %v2200 = vld [vmem:[%s2 + $0x320] sm:$0xff]
  %v2201 = vld [vmem:[%s2 + $0x328] sm:$0xff]
  %v2202 = vld [vmem:[%s2 + $0x330] sm:$0xff]
  %v2203 = vld [vmem:[%s2 + $0x338] sm:$0xff]
  %v2204 = vld [vmem:[%s2 + $0x340] sm:$0xff]
  %v2205 = vld [vmem:[%s2 + $0x348] sm:$0xff]
  %v2206 = vld [vmem:[%s2 + $0x350] sm:$0xff]
  %v2207 = vld [vmem:[%s2 + $0x358] sm:$0xff]
  %v2208 = vld [vmem:[%s2 + $0x360] sm:$0xff]
  %v2209 = vld [vmem:[%s2 + $0x368] sm:$0xff]
  %v2210 = vld [vmem:[%s2 + $0x370] sm:$0xff]
  %v2211 = vld [vmem:[%s2 + $0x378] sm:$0xff]
  %v2212 = vld [vmem:[%s2 + $0x380] sm:$0xff]
  %v2213 = vld [vmem:[%s2 + $0x388] sm:$0xff]
  %v2214 = vld [vmem:[%s2 + $0x390] sm:$0xff]
  %v2215 = vld [vmem:[%s2 + $0x398] sm:$0xff]
  %v2216 = vld [vmem:[%s2 + $0x3a0] sm:$0xff]
  %v2217 = vld [vmem:[%s2 + $0x3a8] sm:$0xff]
  %v2218 = vld [vmem:[%s2 + $0x3b0] sm:$0xff]
  %v2219 = vld [vmem:[%s2 + $0x3b8] sm:$0xff]
  %v2220 = vld [vmem:[%s2 + $0x3c0] sm:$0xff]
  %v2221 = vld [vmem:[%s2 + $0x3c8] sm:$0xff]
  %v2222 = vld [vmem:[%s2 + $0x3d0] sm:$0xff]
  %v2223 = vld [vmem:[%s2 + $0x3d8] sm:$0xff]
  %v2224 = vld [vmem:[%s2 + $0x3e0] sm:$0xff]
  %v2225 = vld [vmem:[%s2 + $0x3e8] sm:$0xff]
  %v2226 = vld [vmem:[%s2 + $0x3f0] sm:$0xff]
  %v2227 = vld [vmem:[%s2 + $0x3f8] sm:$0xff]
  %2228 = vmatpush.msra.mxu0 %v2220
  %2229 = vmatpush.msra.mxu0 %v2212
  %2230 = vmatpush.msra.mxu0 %v2204
  %2231 = vmatpush.msra.mxu0 %v2196
  %2232 = vmatpush.msra.mxu0 %v2188
  %2233 = vmatpush.msra.mxu0 %v2180
  %2234 = vmatpush.msra.mxu0 %v2172
  %2235 = vmatpush.msra.mxu0 %v2164
  %2236 = vmatpush.msra.mxu0 %v2156
  %2237 = vmatpush.msra.mxu0 %v2148
  %2238 = vmatpush.msra.mxu0 %v2140
  %2239 = vmatpush.msra.mxu0 %v2132
  %2240 = vmatpush.msra.mxu0 %v2124
  %2241 = vmatpush.msra.mxu0 %v2116
  %2242 = vmatpush.msra.mxu0 %v2108
  %2243 = vmatpush.msra.mxu0 %v2100
  %2244 = vmatmul.f32.gmra.mxu0 %v2099
  %v2245 = vpop.f32.mrf.mxu0
  %v2246 = vadd.f32 0.0, %v2245
  %2247 = vdwg.mxu0
  %2248 = vmatpush.msra.mxu0 %v2221
  %2249 = vmatpush.msra.mxu0 %v2213
  %2250 = vmatpush.msra.mxu0 %v2205
  %2251 = vmatpush.msra.mxu0 %v2197
  %2252 = vmatpush.msra.mxu0 %v2189
  %2253 = vmatpush.msra.mxu0 %v2181
  %2254 = vmatpush.msra.mxu0 %v2173
  %2255 = vmatpush.msra.mxu0 %v2165
  %2256 = vmatpush.msra.mxu0 %v2157
  %2257 = vmatpush.msra.mxu0 %v2149
  %2258 = vmatpush.msra.mxu0 %v2141
  %2259 = vmatpush.msra.mxu0 %v2133
  %2260 = vmatpush.msra.mxu0 %v2125
  %2261 = vmatpush.msra.mxu0 %v2117
  %2262 = vmatpush.msra.mxu0 %v2109
  %2263 = vmatpush.msra.mxu0 %v2101
  %2264 = vmatmul.f32.gmra.mxu0 %v2099
  %v2265 = vpop.f32.mrf.mxu0
  %v2266 = vadd.f32 0.0, %v2265
  %2267 = vdwg.mxu0
  %2268 = vmatpush.msra.mxu0 %v2222
  %2269 = vmatpush.msra.mxu0 %v2214
  %2270 = vmatpush.msra.mxu0 %v2206
  %2271 = vmatpush.msra.mxu0 %v2198
  %2272 = vmatpush.msra.mxu0 %v2190
  %2273 = vmatpush.msra.mxu0 %v2182
  %2274 = vmatpush.msra.mxu0 %v2174
  %2275 = vmatpush.msra.mxu0 %v2166
  %2276 = vmatpush.msra.mxu0 %v2158
  %2277 = vmatpush.msra.mxu0 %v2150
  %2278 = vmatpush.msra.mxu0 %v2142
  %2279 = vmatpush.msra.mxu0 %v2134
  %2280 = vmatpush.msra.mxu0 %v2126
  %2281 = vmatpush.msra.mxu0 %v2118
  %2282 = vmatpush.msra.mxu0 %v2110
  %2283 = vmatpush.msra.mxu0 %v2102
  %2284 = vmatmul.f32.gmra.mxu0 %v2099
  %v2285 = vpop.f32.mrf.mxu0
  %v2286 = vadd.f32 0.0, %v2285
  %2287 = vdwg.mxu0
  %2288 = vmatpush.msra.mxu0 %v2223
  %2289 = vmatpush.msra.mxu0 %v2215
  %2290 = vmatpush.msra.mxu0 %v2207
  %2291 = vmatpush.msra.mxu0 %v2199
  %2292 = vmatpush.msra.mxu0 %v2191
  %2293 = vmatpush.msra.mxu0 %v2183
  %2294 = vmatpush.msra.mxu0 %v2175
  %2295 = vmatpush.msra.mxu0 %v2167
  %2296 = vmatpush.msra.mxu0 %v2159
  %2297 = vmatpush.msra.mxu0 %v2151
  %2298 = vmatpush.msra.mxu0 %v2143
  %2299 = vmatpush.msra.mxu0 %v2135
  %2300 = vmatpush.msra.mxu0 %v2127
  %2301 = vmatpush.msra.mxu0 %v2119
  %2302 = vmatpush.msra.mxu0 %v2111
  %2303 = vmatpush.msra.mxu0 %v2103
  %2304 = vmatmul.f32.gmra.mxu0 %v2099
  %v2305 = vpop.f32.mrf.mxu0
  %v2306 = vadd.f32 0.0, %v2305
  %2307 = vdwg.mxu0
  %2308 = vmatpush.msra.mxu0 %v2224
  %2309 = vmatpush.msra.mxu0 %v2216
  %2310 = vmatpush.msra.mxu0 %v2208
  %2311 = vmatpush.msra.mxu0 %v2200
  %2312 = vmatpush.msra.mxu0 %v2192
  %2313 = vmatpush.msra.mxu0 %v2184
  %2314 = vmatpush.msra.mxu0 %v2176
  %2315 = vmatpush.msra.mxu0 %v2168
  %2316 = vmatpush.msra.mxu0 %v2160
  %2317 = vmatpush.msra.mxu0 %v2152
  %2318 = vmatpush.msra.mxu0 %v2144
  %2319 = vmatpush.msra.mxu0 %v2136
  %2320 = vmatpush.msra.mxu0 %v2128
  %2321 = vmatpush.msra.mxu0 %v2120
  %2322 = vmatpush.msra.mxu0 %v2112
  %2323 = vmatpush.msra.mxu0 %v2104
  %2324 = vmatmul.f32.gmra.mxu0 %v2099
  %v2325 = vpop.f32.mrf.mxu0
  %v2326 = vadd.f32 0.0, %v2325
  %2327 = vdwg.mxu0
  %2328 = vmatpush.msra.mxu0 %v2225
  %2329 = vmatpush.msra.mxu0 %v2217
  %2330 = vmatpush.msra.mxu0 %v2209
  %2331 = vmatpush.msra.mxu0 %v2201
  %2332 = vmatpush.msra.mxu0 %v2193
  %2333 = vmatpush.msra.mxu0 %v2185
  %2334 = vmatpush.msra.mxu0 %v2177
  %2335 = vmatpush.msra.mxu0 %v2169
  %2336 = vmatpush.msra.mxu0 %v2161
  %2337 = vmatpush.msra.mxu0 %v2153
  %2338 = vmatpush.msra.mxu0 %v2145
  %2339 = vmatpush.msra.mxu0 %v2137
  %2340 = vmatpush.msra.mxu0 %v2129
  %2341 = vmatpush.msra.mxu0 %v2121
  %2342 = vmatpush.msra.mxu0 %v2113
  %2343 = vmatpush.msra.mxu0 %v2105
  %2344 = vmatmul.f32.gmra.mxu0 %v2099
  %v2345 = vpop.f32.mrf.mxu0
  %v2346 = vadd.f32 0.0, %v2345
  %2347 = vdwg.mxu0
  %2348 = vmatpush.msra.mxu0 %v2226
  %2349 = vmatpush.msra.mxu0 %v2218
  %2350 = vmatpush.msra.mxu0 %v2210
  %2351 = vmatpush.msra.mxu0 %v2202
  %2352 = vmatpush.msra.mxu0 %v2194
  %2353 = vmatpush.msra.mxu0 %v2186
  %2354 = vmatpush.msra.mxu0 %v2178
  %2355 = vmatpush.msra.mxu0 %v2170
  %2356 = vmatpush.msra.mxu0 %v2162
  %2357 = vmatpush.msra.mxu0 %v2154
  %2358 = vmatpush.msra.mxu0 %v2146
  %2359 = vmatpush.msra.mxu0 %v2138
  %2360 = vmatpush.msra.mxu0 %v2130
  %2361 = vmatpush.msra.mxu0 %v2122
  %2362 = vmatpush.msra.mxu0 %v2114
  %2363 = vmatpush.msra.mxu0 %v2106
  %2364 = vmatmul.f32.gmra.mxu0 %v2099
  %v2365 = vpop.f32.mrf.mxu0
  %v2366 = vadd.f32 0.0, %v2365
  %2367 = vdwg.mxu0
  %2368 = vmatpush.msra.mxu0 %v2227
  %2369 = vmatpush.msra.mxu0 %v2219
  %2370 = vmatpush.msra.mxu0 %v2211
  %2371 = vmatpush.msra.mxu0 %v2203
  %2372 = vmatpush.msra.mxu0 %v2195
  %2373 = vmatpush.msra.mxu0 %v2187
  %2374 = vmatpush.msra.mxu0 %v2179
  %2375 = vmatpush.msra.mxu0 %v2171
  %2376 = vmatpush.msra.mxu0 %v2163
  %2377 = vmatpush.msra.mxu0 %v2155
  %2378 = vmatpush.msra.mxu0 %v2147
  %2379 = vmatpush.msra.mxu0 %v2139
  %2380 = vmatpush.msra.mxu0 %v2131
  %2381 = vmatpush.msra.mxu0 %v2123
  %2382 = vmatpush.msra.mxu0 %v2115
  %2383 = vmatpush.msra.mxu0 %v2107
  %2384 = vmatmul.f32.gmra.mxu0 %v2099
  %v2385 = vpop.f32.mrf.mxu0
  %v2386 = vadd.f32 0.0, %v2385
  %2387 = vdwg.mxu0
  %v2388 = vadd.f32 %v1964, %v2326
  %v2389 = vadd.f32 %v1984, %v2346
  %v2390 = vadd.f32 %v2004, %v2366
  %v2391 = vadd.f32 %v2024, %v2386
  %v2392 = vxor.u32 %v2388, 2147483648
  %v2393 = vxor.u32 %v2389, 2147483648
  %v2394 = vmul.f32 %v2392, 1.442695
  %v2395 = vpow.pop %v2394
  %v2396 = vmul.f32 %v2393, 1.442695
  %v2397 = vpow.pop %v2396
  %v2398 = vadd.f32 %v2395, 1.0
  %v2399 = vadd.f32 %v2397, 1.0
  %v2400 = vrcp.pop %v2398
  %v2401 = vmul.f32 %v2398, %v2400
  %v2402 = vsub.f32 1.0, %v2401
  %v2403 = vmul.f32 %v2400, %v2402
  %v2404 = vadd.f32 %v2400, %v2403
  %vm2405 = vweird.f32 %v2398
  %vm2406 = vweird.f32 %v2400
  %vm2407 = vmor %vm2405, %vm2406
  %v2408 = vsel %vm2407, %v2400, %v2404
  %v2409 = vand.u32 2147483647, %v2398
  %vm2410 = vcmp.eq.f32.partialorder %v2409, 8.507059e+37
  %v2411 = vand.u32 %v2398, 2147483648
  %v2412 = vor.u32 1.1754944e-38, %v2411
  %v2413 = vsel %vm2410, %v2412, %v2408
  %v2414 = vmul.f32 1.0, %v2413
  %v2415 = vrcp.pop %v2399
  %v2416 = vmul.f32 %v2399, %v2415
  %v2417 = vsub.f32 1.0, %v2416
  %v2418 = vmul.f32 %v2415, %v2417
  %v2419 = vadd.f32 %v2415, %v2418
  %vm2420 = vweird.f32 %v2399
  %vm2421 = vweird.f32 %v2415
  %vm2422 = vmor %vm2420, %vm2421
  %v2423 = vsel %vm2422, %v2415, %v2419
  %v2424 = vand.u32 2147483647, %v2399
  %vm2425 = vcmp.eq.f32.partialorder %v2424, 8.507059e+37
  %v2426 = vand.u32 %v2399, 2147483648
  %v2427 = vor.u32 1.1754944e-38, %v2426
  %v2428 = vsel %vm2425, %v2427, %v2423
  %v2429 = vmul.f32 1.0, %v2428
  %v2430 = vtanh.pop %v2390
  %v2431 = vxor.u32 %v2391, 2147483648
  %v2432 = vmul.f32 %v2431, 1.442695
  %v2433 = vpow.pop %v2432
  %v2434 = vadd.f32 %v2433, 1.0
  %v2435 = vrcp.pop %v2434
  %v2436 = vmul.f32 %v2434, %v2435
  %v2437 = vsub.f32 1.0, %v2436
  %v2438 = vmul.f32 %v2435, %v2437
  %v2439 = vadd.f32 %v2435, %v2438
  %vm2440 = vweird.f32 %v2434
  %vm2441 = vweird.f32 %v2435
  %vm2442 = vmor %vm2440, %vm2441
  %v2443 = vsel %vm2442, %v2435, %v2439
  %v2444 = vand.u32 2147483647, %v2434
  %vm2445 = vcmp.eq.f32.partialorder %v2444, 8.507059e+37
  %v2446 = vand.u32 %v2434, 2147483648
  %v2447 = vor.u32 1.1754944e-38, %v2446
  %v2448 = vsel %vm2445, %v2447, %v2443
  %v2449 = vmul.f32 1.0, %v2448
  %v2450 = vmul.f32 %v2429, %v1877
  %v2451 = vmul.f32 %v2414, %v2430
  %v2452 = vadd.f32 %v2450, %v2451
  %v2453 = vtanh.pop %v2452
  %v2454 = vmul.f32 %v2449, %v2453
  %s2455 = scalar_lea.vmem [#allocation3], 16
  %2456 = vst [vmem:[%s2455] sm:$0xff] %v2454
  %v2457 = vld [vmem:[%s3] sm:$0xff]
  %v2458 = vld [vmem:[%s3 + $0x8] sm:$0xff]
  %v2459 = vld [vmem:[%s3 + $0x10] sm:$0xff]
  %v2460 = vld [vmem:[%s3 + $0x18] sm:$0xff]
  %v2461 = vld [vmem:[%s3 + $0x20] sm:$0xff]
  %v2462 = vld [vmem:[%s3 + $0x28] sm:$0xff]
  %v2463 = vld [vmem:[%s3 + $0x30] sm:$0xff]
  %v2464 = vld [vmem:[%s3 + $0x38] sm:$0xff]
  %v2465 = vld [vmem:[%s3 + $0x40] sm:$0xff]
  %v2466 = vld [vmem:[%s3 + $0x48] sm:$0xff]
  %v2467 = vld [vmem:[%s3 + $0x50] sm:$0xff]
  %v2468 = vld [vmem:[%s3 + $0x58] sm:$0xff]
  %v2469 = vld [vmem:[%s3 + $0x60] sm:$0xff]
  %v2470 = vld [vmem:[%s3 + $0x68] sm:$0xff]
  %v2471 = vld [vmem:[%s3 + $0x70] sm:$0xff]
  %v2472 = vld [vmem:[%s3 + $0x78] sm:$0xff]
  %v2473 = vld [vmem:[%s3 + $0x80] sm:$0xff]
  %v2474 = vld [vmem:[%s3 + $0x88] sm:$0xff]
  %v2475 = vld [vmem:[%s3 + $0x90] sm:$0xff]
  %v2476 = vld [vmem:[%s3 + $0x98] sm:$0xff]
  %v2477 = vld [vmem:[%s3 + $0xa0] sm:$0xff]
  %v2478 = vld [vmem:[%s3 + $0xa8] sm:$0xff]
  %v2479 = vld [vmem:[%s3 + $0xb0] sm:$0xff]
  %v2480 = vld [vmem:[%s3 + $0xb8] sm:$0xff]
  %v2481 = vld [vmem:[%s3 + $0xc0] sm:$0xff]
  %v2482 = vld [vmem:[%s3 + $0xc8] sm:$0xff]
  %v2483 = vld [vmem:[%s3 + $0xd0] sm:$0xff]
  %v2484 = vld [vmem:[%s3 + $0xd8] sm:$0xff]
  %v2485 = vld [vmem:[%s3 + $0xe0] sm:$0xff]
  %v2486 = vld [vmem:[%s3 + $0xe8] sm:$0xff]
  %v2487 = vld [vmem:[%s3 + $0xf0] sm:$0xff]
  %v2488 = vld [vmem:[%s3 + $0xf8] sm:$0xff]
  %v2489 = vld [vmem:[%s3 + $0x100] sm:$0xff]
  %v2490 = vld [vmem:[%s3 + $0x108] sm:$0xff]
  %v2491 = vld [vmem:[%s3 + $0x110] sm:$0xff]
  %v2492 = vld [vmem:[%s3 + $0x118] sm:$0xff]
  %v2493 = vld [vmem:[%s3 + $0x120] sm:$0xff]
  %v2494 = vld [vmem:[%s3 + $0x128] sm:$0xff]
  %v2495 = vld [vmem:[%s3 + $0x130] sm:$0xff]
  %v2496 = vld [vmem:[%s3 + $0x138] sm:$0xff]
  %v2497 = vld [vmem:[%s3 + $0x140] sm:$0xff]
  %v2498 = vld [vmem:[%s3 + $0x148] sm:$0xff]
  %v2499 = vld [vmem:[%s3 + $0x150] sm:$0xff]
  %v2500 = vld [vmem:[%s3 + $0x158] sm:$0xff]
  %v2501 = vld [vmem:[%s3 + $0x160] sm:$0xff]
  %v2502 = vld [vmem:[%s3 + $0x168] sm:$0xff]
  %v2503 = vld [vmem:[%s3 + $0x170] sm:$0xff]
  %v2504 = vld [vmem:[%s3 + $0x178] sm:$0xff]
  %v2505 = vld [vmem:[%s3 + $0x180] sm:$0xff]
  %v2506 = vld [vmem:[%s3 + $0x188] sm:$0xff]
  %v2507 = vld [vmem:[%s3 + $0x190] sm:$0xff]
  %v2508 = vld [vmem:[%s3 + $0x198] sm:$0xff]
  %v2509 = vld [vmem:[%s3 + $0x1a0] sm:$0xff]
  %v2510 = vld [vmem:[%s3 + $0x1a8] sm:$0xff]
  %v2511 = vld [vmem:[%s3 + $0x1b0] sm:$0xff]
  %v2512 = vld [vmem:[%s3 + $0x1b8] sm:$0xff]
  %v2513 = vld [vmem:[%s3 + $0x1c0] sm:$0xff]
  %v2514 = vld [vmem:[%s3 + $0x1c8] sm:$0xff]
  %v2515 = vld [vmem:[%s3 + $0x1d0] sm:$0xff]
  %v2516 = vld [vmem:[%s3 + $0x1d8] sm:$0xff]
  %v2517 = vld [vmem:[%s3 + $0x1e0] sm:$0xff]
  %v2518 = vld [vmem:[%s3 + $0x1e8] sm:$0xff]
  %v2519 = vld [vmem:[%s3 + $0x1f0] sm:$0xff]
  %v2520 = vld [vmem:[%s3 + $0x1f8] sm:$0xff]
  %2521 = vmatpush.msra.mxu0 %v2517
  %2522 = vmatpush.msra.mxu0 %v2513
  %2523 = vmatpush.msra.mxu0 %v2509
  %2524 = vmatpush.msra.mxu0 %v2505
  %2525 = vmatpush.msra.mxu0 %v2501
  %2526 = vmatpush.msra.mxu0 %v2497
  %2527 = vmatpush.msra.mxu0 %v2493
  %2528 = vmatpush.msra.mxu0 %v2489
  %2529 = vmatpush.msra.mxu0 %v2485
  %2530 = vmatpush.msra.mxu0 %v2481
  %2531 = vmatpush.msra.mxu0 %v2477
  %2532 = vmatpush.msra.mxu0 %v2473
  %2533 = vmatpush.msra.mxu0 %v2469
  %2534 = vmatpush.msra.mxu0 %v2465
  %2535 = vmatpush.msra.mxu0 %v2461
  %2536 = vmatpush.msra.mxu0 %v2457
  %2537 = vmatmul.f32.gmra.mxu0 %v2454
  %v2538 = vpop.f32.mrf.mxu0
  %v2539 = vadd.f32 %v725, %v2538
  %2540 = vdwg.mxu0
  %2541 = vmatpush.msra.mxu0 %v2518
  %2542 = vmatpush.msra.mxu0 %v2514
  %2543 = vmatpush.msra.mxu0 %v2510
  %2544 = vmatpush.msra.mxu0 %v2506
  %2545 = vmatpush.msra.mxu0 %v2502
  %2546 = vmatpush.msra.mxu0 %v2498
  %2547 = vmatpush.msra.mxu0 %v2494
  %2548 = vmatpush.msra.mxu0 %v2490
  %2549 = vmatpush.msra.mxu0 %v2486
  %2550 = vmatpush.msra.mxu0 %v2482
  %2551 = vmatpush.msra.mxu0 %v2478
  %2552 = vmatpush.msra.mxu0 %v2474
  %2553 = vmatpush.msra.mxu0 %v2470
  %2554 = vmatpush.msra.mxu0 %v2466
  %2555 = vmatpush.msra.mxu0 %v2462
  %2556 = vmatpush.msra.mxu0 %v2458
  %2557 = vmatmul.f32.gmra.mxu0 %v2454
  %v2558 = vpop.f32.mrf.mxu0
  %v2559 = vadd.f32 %v726, %v2558
  %2560 = vdwg.mxu0
  %2561 = vmatpush.msra.mxu0 %v2519
  %2562 = vmatpush.msra.mxu0 %v2515
  %2563 = vmatpush.msra.mxu0 %v2511
  %2564 = vmatpush.msra.mxu0 %v2507
  %2565 = vmatpush.msra.mxu0 %v2503
  %2566 = vmatpush.msra.mxu0 %v2499
  %2567 = vmatpush.msra.mxu0 %v2495
  %2568 = vmatpush.msra.mxu0 %v2491
  %2569 = vmatpush.msra.mxu0 %v2487
  %2570 = vmatpush.msra.mxu0 %v2483
  %2571 = vmatpush.msra.mxu0 %v2479
  %2572 = vmatpush.msra.mxu0 %v2475
  %2573 = vmatpush.msra.mxu0 %v2471
  %2574 = vmatpush.msra.mxu0 %v2467
  %2575 = vmatpush.msra.mxu0 %v2463
  %2576 = vmatpush.msra.mxu0 %v2459
  %2577 = vmatmul.f32.gmra.mxu0 %v2454
  %v2578 = vpop.f32.mrf.mxu0
  %v2579 = vadd.f32 %v727, %v2578
  %2580 = vdwg.mxu0
  %2581 = vmatpush.msra.mxu0 %v2520
  %2582 = vmatpush.msra.mxu0 %v2516
  %2583 = vmatpush.msra.mxu0 %v2512
  %2584 = vmatpush.msra.mxu0 %v2508
  %2585 = vmatpush.msra.mxu0 %v2504
  %2586 = vmatpush.msra.mxu0 %v2500
  %2587 = vmatpush.msra.mxu0 %v2496
  %2588 = vmatpush.msra.mxu0 %v2492
  %2589 = vmatpush.msra.mxu0 %v2488
  %2590 = vmatpush.msra.mxu0 %v2484
  %2591 = vmatpush.msra.mxu0 %v2480
  %2592 = vmatpush.msra.mxu0 %v2476
  %2593 = vmatpush.msra.mxu0 %v2472
  %2594 = vmatpush.msra.mxu0 %v2468
  %2595 = vmatpush.msra.mxu0 %v2464
  %2596 = vmatpush.msra.mxu0 %v2460
  %2597 = vmatmul.f32.gmra.mxu0 %v2454
  %v2598 = vpop.f32.mrf.mxu0
  %v2599 = vadd.f32 %v728, %v2598
  %2600 = vdwg.mxu0
  %s2601 = smul.u32 3, 4
  %s2602 = smul.addr %s2601, 8
  %s2603 = scalar_lea.vmem [#allocation2], %s2602
  %v2604 = vld [vmem:[%s2603] sm:$0xff]
  %v2605 = vld [vmem:[%s2603 + $0x8] sm:$0xff]
  %v2606 = vld [vmem:[%s2603 + $0x10] sm:$0xff]
  %v2607 = vld [vmem:[%s2603 + $0x18] sm:$0xff]
  %v2608 = vadd.f32 %v2604, %v2246
  %v2609 = vadd.f32 %v2605, %v2266
  %v2610 = vadd.f32 %v2606, %v2286
  %v2611 = vadd.f32 %v2607, %v2306
  %v2612 = vxor.u32 %v2608, 2147483648
  %v2613 = vxor.u32 %v2609, 2147483648
  %v2614 = vmul.f32 %v2612, 1.442695
  %v2615 = vpow.pop %v2614
  %v2616 = vmul.f32 %v2613, 1.442695
  %v2617 = vpow.pop %v2616
  %v2618 = vadd.f32 %v2615, 1.0
  %v2619 = vadd.f32 %v2617, 1.0
  %v2620 = vrcp.pop %v2618
  %v2621 = vmul.f32 %v2618, %v2620
  %v2622 = vsub.f32 1.0, %v2621
  %v2623 = vmul.f32 %v2620, %v2622
  %v2624 = vadd.f32 %v2620, %v2623
  %vm2625 = vweird.f32 %v2618
  %vm2626 = vweird.f32 %v2620
  %vm2627 = vmor %vm2625, %vm2626
  %v2628 = vsel %vm2627, %v2620, %v2624
  %v2629 = vand.u32 2147483647, %v2618
  %vm2630 = vcmp.eq.f32.partialorder %v2629, 8.507059e+37
  %v2631 = vand.u32 %v2618, 2147483648
  %v2632 = vor.u32 1.1754944e-38, %v2631
  %v2633 = vsel %vm2630, %v2632, %v2628
  %v2634 = vmul.f32 1.0, %v2633
  %v2635 = vrcp.pop %v2619
  %v2636 = vmul.f32 %v2619, %v2635
  %v2637 = vsub.f32 1.0, %v2636
  %v2638 = vmul.f32 %v2635, %v2637
  %v2639 = vadd.f32 %v2635, %v2638
  %vm2640 = vweird.f32 %v2619
  %vm2641 = vweird.f32 %v2635
  %vm2642 = vmor %vm2640, %vm2641
  %v2643 = vsel %vm2642, %v2635, %v2639
  %v2644 = vand.u32 2147483647, %v2619
  %vm2645 = vcmp.eq.f32.partialorder %v2644, 8.507059e+37
  %v2646 = vand.u32 %v2619, 2147483648
  %v2647 = vor.u32 1.1754944e-38, %v2646
  %v2648 = vsel %vm2645, %v2647, %v2643
  %v2649 = vmul.f32 1.0, %v2648
  %v2650 = vtanh.pop %v2610
  %v2651 = vxor.u32 %v2611, 2147483648
  %v2652 = vmul.f32 %v2651, 1.442695
  %v2653 = vpow.pop %v2652
  %v2654 = vadd.f32 %v2653, 1.0
  %v2655 = vrcp.pop %v2654
  %v2656 = vmul.f32 %v2654, %v2655
  %v2657 = vsub.f32 1.0, %v2656
  %v2658 = vmul.f32 %v2655, %v2657
  %v2659 = vadd.f32 %v2655, %v2658
  %vm2660 = vweird.f32 %v2654
  %vm2661 = vweird.f32 %v2655
  %vm2662 = vmor %vm2660, %vm2661
  %v2663 = vsel %vm2662, %v2655, %v2659
  %v2664 = vand.u32 2147483647, %v2654
  %vm2665 = vcmp.eq.f32.partialorder %v2664, 8.507059e+37
  %v2666 = vand.u32 %v2654, 2147483648
  %v2667 = vor.u32 1.1754944e-38, %v2666
  %v2668 = vsel %vm2665, %v2667, %v2663
  %v2669 = vmul.f32 1.0, %v2668
  %v2670 = vmul.f32 %v2649, %v2097
  %v2671 = vmul.f32 %v2634, %v2650
  %v2672 = vadd.f32 %v2670, %v2671
  %v2673 = vtanh.pop %v2672
  %v2674 = vmul.f32 %v2669, %v2673
  %v2675 = vld [vmem:[%s2] sm:$0xff]
  %v2676 = vld [vmem:[%s2 + $0x8] sm:$0xff]
  %v2677 = vld [vmem:[%s2 + $0x10] sm:$0xff]
  %v2678 = vld [vmem:[%s2 + $0x18] sm:$0xff]
  %v2679 = vld [vmem:[%s2 + $0x20] sm:$0xff]
  %v2680 = vld [vmem:[%s2 + $0x28] sm:$0xff]
  %v2681 = vld [vmem:[%s2 + $0x30] sm:$0xff]
  %v2682 = vld [vmem:[%s2 + $0x38] sm:$0xff]
  %v2683 = vld [vmem:[%s2 + $0x40] sm:$0xff]
  %v2684 = vld [vmem:[%s2 + $0x48] sm:$0xff]
  %v2685 = vld [vmem:[%s2 + $0x50] sm:$0xff]
  %v2686 = vld [vmem:[%s2 + $0x58] sm:$0xff]
  %v2687 = vld [vmem:[%s2 + $0x60] sm:$0xff]
  %v2688 = vld [vmem:[%s2 + $0x68] sm:$0xff]
  %v2689 = vld [vmem:[%s2 + $0x70] sm:$0xff]
  %v2690 = vld [vmem:[%s2 + $0x78] sm:$0xff]
  %v2691 = vld [vmem:[%s2 + $0x80] sm:$0xff]
  %v2692 = vld [vmem:[%s2 + $0x88] sm:$0xff]
  %v2693 = vld [vmem:[%s2 + $0x90] sm:$0xff]
  %v2694 = vld [vmem:[%s2 + $0x98] sm:$0xff]
  %v2695 = vld [vmem:[%s2 + $0xa0] sm:$0xff]
  %v2696 = vld [vmem:[%s2 + $0xa8] sm:$0xff]
  %v2697 = vld [vmem:[%s2 + $0xb0] sm:$0xff]
  %v2698 = vld [vmem:[%s2 + $0xb8] sm:$0xff]
  %v2699 = vld [vmem:[%s2 + $0xc0] sm:$0xff]
  %v2700 = vld [vmem:[%s2 + $0xc8] sm:$0xff]
  %v2701 = vld [vmem:[%s2 + $0xd0] sm:$0xff]
  %v2702 = vld [vmem:[%s2 + $0xd8] sm:$0xff]
  %v2703 = vld [vmem:[%s2 + $0xe0] sm:$0xff]
  %v2704 = vld [vmem:[%s2 + $0xe8] sm:$0xff]
  %v2705 = vld [vmem:[%s2 + $0xf0] sm:$0xff]
  %v2706 = vld [vmem:[%s2 + $0xf8] sm:$0xff]
  %v2707 = vld [vmem:[%s2 + $0x100] sm:$0xff]
  %v2708 = vld [vmem:[%s2 + $0x108] sm:$0xff]
  %v2709 = vld [vmem:[%s2 + $0x110] sm:$0xff]
  %v2710 = vld [vmem:[%s2 + $0x118] sm:$0xff]
  %v2711 = vld [vmem:[%s2 + $0x120] sm:$0xff]
  %v2712 = vld [vmem:[%s2 + $0x128] sm:$0xff]
  %v2713 = vld [vmem:[%s2 + $0x130] sm:$0xff]
  %v2714 = vld [vmem:[%s2 + $0x138] sm:$0xff]
  %v2715 = vld [vmem:[%s2 + $0x140] sm:$0xff]
  %v2716 = vld [vmem:[%s2 + $0x148] sm:$0xff]
  %v2717 = vld [vmem:[%s2 + $0x150] sm:$0xff]
  %v2718 = vld [vmem:[%s2 + $0x158] sm:$0xff]
  %v2719 = vld [vmem:[%s2 + $0x160] sm:$0xff]
  %v2720 = vld [vmem:[%s2 + $0x168] sm:$0xff]
  %v2721 = vld [vmem:[%s2 + $0x170] sm:$0xff]
  %v2722 = vld [vmem:[%s2 + $0x178] sm:$0xff]
  %v2723 = vld [vmem:[%s2 + $0x180] sm:$0xff]
  %v2724 = vld [vmem:[%s2 + $0x188] sm:$0xff]
  %v2725 = vld [vmem:[%s2 + $0x190] sm:$0xff]
  %v2726 = vld [vmem:[%s2 + $0x198] sm:$0xff]
  %v2727 = vld [vmem:[%s2 + $0x1a0] sm:$0xff]
  %v2728 = vld [vmem:[%s2 + $0x1a8] sm:$0xff]
  %v2729 = vld [vmem:[%s2 + $0x1b0] sm:$0xff]
  %v2730 = vld [vmem:[%s2 + $0x1b8] sm:$0xff]
  %v2731 = vld [vmem:[%s2 + $0x1c0] sm:$0xff]
  %v2732 = vld [vmem:[%s2 + $0x1c8] sm:$0xff]
  %v2733 = vld [vmem:[%s2 + $0x1d0] sm:$0xff]
  %v2734 = vld [vmem:[%s2 + $0x1d8] sm:$0xff]
  %v2735 = vld [vmem:[%s2 + $0x1e0] sm:$0xff]
  %v2736 = vld [vmem:[%s2 + $0x1e8] sm:$0xff]
  %v2737 = vld [vmem:[%s2 + $0x1f0] sm:$0xff]
  %v2738 = vld [vmem:[%s2 + $0x1f8] sm:$0xff]
  %v2739 = vld [vmem:[%s2 + $0x200] sm:$0xff]
  %v2740 = vld [vmem:[%s2 + $0x208] sm:$0xff]
  %v2741 = vld [vmem:[%s2 + $0x210] sm:$0xff]
  %v2742 = vld [vmem:[%s2 + $0x218] sm:$0xff]
  %v2743 = vld [vmem:[%s2 + $0x220] sm:$0xff]
  %v2744 = vld [vmem:[%s2 + $0x228] sm:$0xff]
  %v2745 = vld [vmem:[%s2 + $0x230] sm:$0xff]
  %v2746 = vld [vmem:[%s2 + $0x238] sm:$0xff]
  %v2747 = vld [vmem:[%s2 + $0x240] sm:$0xff]
  %v2748 = vld [vmem:[%s2 + $0x248] sm:$0xff]
  %v2749 = vld [vmem:[%s2 + $0x250] sm:$0xff]
  %v2750 = vld [vmem:[%s2 + $0x258] sm:$0xff]
  %v2751 = vld [vmem:[%s2 + $0x260] sm:$0xff]
  %v2752 = vld [vmem:[%s2 + $0x268] sm:$0xff]
  %v2753 = vld [vmem:[%s2 + $0x270] sm:$0xff]
  %v2754 = vld [vmem:[%s2 + $0x278] sm:$0xff]
  %v2755 = vld [vmem:[%s2 + $0x280] sm:$0xff]
  %v2756 = vld [vmem:[%s2 + $0x288] sm:$0xff]
  %v2757 = vld [vmem:[%s2 + $0x290] sm:$0xff]
  %v2758 = vld [vmem:[%s2 + $0x298] sm:$0xff]
  %v2759 = vld [vmem:[%s2 + $0x2a0] sm:$0xff]
  %v2760 = vld [vmem:[%s2 + $0x2a8] sm:$0xff]
  %v2761 = vld [vmem:[%s2 + $0x2b0] sm:$0xff]
  %v2762 = vld [vmem:[%s2 + $0x2b8] sm:$0xff]
  %v2763 = vld [vmem:[%s2 + $0x2c0] sm:$0xff]
  %v2764 = vld [vmem:[%s2 + $0x2c8] sm:$0xff]
  %v2765 = vld [vmem:[%s2 + $0x2d0] sm:$0xff]
  %v2766 = vld [vmem:[%s2 + $0x2d8] sm:$0xff]
  %v2767 = vld [vmem:[%s2 + $0x2e0] sm:$0xff]
  %v2768 = vld [vmem:[%s2 + $0x2e8] sm:$0xff]
  %v2769 = vld [vmem:[%s2 + $0x2f0] sm:$0xff]
  %v2770 = vld [vmem:[%s2 + $0x2f8] sm:$0xff]
  %v2771 = vld [vmem:[%s2 + $0x300] sm:$0xff]
  %v2772 = vld [vmem:[%s2 + $0x308] sm:$0xff]
  %v2773 = vld [vmem:[%s2 + $0x310] sm:$0xff]
  %v2774 = vld [vmem:[%s2 + $0x318] sm:$0xff]
  %v2775 = vld [vmem:[%s2 + $0x320] sm:$0xff]
  %v2776 = vld [vmem:[%s2 + $0x328] sm:$0xff]
  %v2777 = vld [vmem:[%s2 + $0x330] sm:$0xff]
  %v2778 = vld [vmem:[%s2 + $0x338] sm:$0xff]
  %v2779 = vld [vmem:[%s2 + $0x340] sm:$0xff]
  %v2780 = vld [vmem:[%s2 + $0x348] sm:$0xff]
  %v2781 = vld [vmem:[%s2 + $0x350] sm:$0xff]
  %v2782 = vld [vmem:[%s2 + $0x358] sm:$0xff]
  %v2783 = vld [vmem:[%s2 + $0x360] sm:$0xff]
  %v2784 = vld [vmem:[%s2 + $0x368] sm:$0xff]
  %v2785 = vld [vmem:[%s2 + $0x370] sm:$0xff]
  %v2786 = vld [vmem:[%s2 + $0x378] sm:$0xff]
  %v2787 = vld [vmem:[%s2 + $0x380] sm:$0xff]
  %v2788 = vld [vmem:[%s2 + $0x388] sm:$0xff]
  %v2789 = vld [vmem:[%s2 + $0x390] sm:$0xff]
  %v2790 = vld [vmem:[%s2 + $0x398] sm:$0xff]
  %v2791 = vld [vmem:[%s2 + $0x3a0] sm:$0xff]
  %v2792 = vld [vmem:[%s2 + $0x3a8] sm:$0xff]
  %v2793 = vld [vmem:[%s2 + $0x3b0] sm:$0xff]
  %v2794 = vld [vmem:[%s2 + $0x3b8] sm:$0xff]
  %v2795 = vld [vmem:[%s2 + $0x3c0] sm:$0xff]
  %v2796 = vld [vmem:[%s2 + $0x3c8] sm:$0xff]
  %v2797 = vld [vmem:[%s2 + $0x3d0] sm:$0xff]
  %v2798 = vld [vmem:[%s2 + $0x3d8] sm:$0xff]
  %v2799 = vld [vmem:[%s2 + $0x3e0] sm:$0xff]
  %v2800 = vld [vmem:[%s2 + $0x3e8] sm:$0xff]
  %v2801 = vld [vmem:[%s2 + $0x3f0] sm:$0xff]
  %v2802 = vld [vmem:[%s2 + $0x3f8] sm:$0xff]
  %2803 = vmatpush.msra.mxu0 %v2795
  %2804 = vmatpush.msra.mxu0 %v2787
  %2805 = vmatpush.msra.mxu0 %v2779
  %2806 = vmatpush.msra.mxu0 %v2771
  %2807 = vmatpush.msra.mxu0 %v2763
  %2808 = vmatpush.msra.mxu0 %v2755
  %2809 = vmatpush.msra.mxu0 %v2747
  %2810 = vmatpush.msra.mxu0 %v2739
  %2811 = vmatpush.msra.mxu0 %v2731
  %2812 = vmatpush.msra.mxu0 %v2723
  %2813 = vmatpush.msra.mxu0 %v2715
  %2814 = vmatpush.msra.mxu0 %v2707
  %2815 = vmatpush.msra.mxu0 %v2699
  %2816 = vmatpush.msra.mxu0 %v2691
  %2817 = vmatpush.msra.mxu0 %v2683
  %2818 = vmatpush.msra.mxu0 %v2675
  %2819 = vmatmul.f32.gmra.mxu0 %v2674
  %v2820 = vpop.f32.mrf.mxu0
  %v2821 = vadd.f32 0.0, %v2820
  %2822 = vdwg.mxu0
  %2823 = vmatpush.msra.mxu0 %v2796
  %2824 = vmatpush.msra.mxu0 %v2788
  %2825 = vmatpush.msra.mxu0 %v2780
  %2826 = vmatpush.msra.mxu0 %v2772
  %2827 = vmatpush.msra.mxu0 %v2764
  %2828 = vmatpush.msra.mxu0 %v2756
  %2829 = vmatpush.msra.mxu0 %v2748
  %2830 = vmatpush.msra.mxu0 %v2740
  %2831 = vmatpush.msra.mxu0 %v2732
  %2832 = vmatpush.msra.mxu0 %v2724
  %2833 = vmatpush.msra.mxu0 %v2716
  %2834 = vmatpush.msra.mxu0 %v2708
  %2835 = vmatpush.msra.mxu0 %v2700
  %2836 = vmatpush.msra.mxu0 %v2692
  %2837 = vmatpush.msra.mxu0 %v2684
  %2838 = vmatpush.msra.mxu0 %v2676
  %2839 = vmatmul.f32.gmra.mxu0 %v2674
  %v2840 = vpop.f32.mrf.mxu0
  %v2841 = vadd.f32 0.0, %v2840
  %2842 = vdwg.mxu0
  %2843 = vmatpush.msra.mxu0 %v2797
  %2844 = vmatpush.msra.mxu0 %v2789
  %2845 = vmatpush.msra.mxu0 %v2781
  %2846 = vmatpush.msra.mxu0 %v2773
  %2847 = vmatpush.msra.mxu0 %v2765
  %2848 = vmatpush.msra.mxu0 %v2757
  %2849 = vmatpush.msra.mxu0 %v2749
  %2850 = vmatpush.msra.mxu0 %v2741
  %2851 = vmatpush.msra.mxu0 %v2733
  %2852 = vmatpush.msra.mxu0 %v2725
  %2853 = vmatpush.msra.mxu0 %v2717
  %2854 = vmatpush.msra.mxu0 %v2709
  %2855 = vmatpush.msra.mxu0 %v2701
  %2856 = vmatpush.msra.mxu0 %v2693
  %2857 = vmatpush.msra.mxu0 %v2685
  %2858 = vmatpush.msra.mxu0 %v2677
  %2859 = vmatmul.f32.gmra.mxu0 %v2674
  %v2860 = vpop.f32.mrf.mxu0
  %v2861 = vadd.f32 0.0, %v2860
  %2862 = vdwg.mxu0
  %2863 = vmatpush.msra.mxu0 %v2798
  %2864 = vmatpush.msra.mxu0 %v2790
  %2865 = vmatpush.msra.mxu0 %v2782
  %2866 = vmatpush.msra.mxu0 %v2774
  %2867 = vmatpush.msra.mxu0 %v2766
  %2868 = vmatpush.msra.mxu0 %v2758
  %2869 = vmatpush.msra.mxu0 %v2750
  %2870 = vmatpush.msra.mxu0 %v2742
  %2871 = vmatpush.msra.mxu0 %v2734
  %2872 = vmatpush.msra.mxu0 %v2726
  %2873 = vmatpush.msra.mxu0 %v2718
  %2874 = vmatpush.msra.mxu0 %v2710
  %2875 = vmatpush.msra.mxu0 %v2702
  %2876 = vmatpush.msra.mxu0 %v2694
  %2877 = vmatpush.msra.mxu0 %v2686
  %2878 = vmatpush.msra.mxu0 %v2678
  %2879 = vmatmul.f32.gmra.mxu0 %v2674
  %v2880 = vpop.f32.mrf.mxu0
  %v2881 = vadd.f32 0.0, %v2880
  %2882 = vdwg.mxu0
  %2883 = vmatpush.msra.mxu0 %v2799
  %2884 = vmatpush.msra.mxu0 %v2791
  %2885 = vmatpush.msra.mxu0 %v2783
  %2886 = vmatpush.msra.mxu0 %v2775
  %2887 = vmatpush.msra.mxu0 %v2767
  %2888 = vmatpush.msra.mxu0 %v2759
  %2889 = vmatpush.msra.mxu0 %v2751
  %2890 = vmatpush.msra.mxu0 %v2743
  %2891 = vmatpush.msra.mxu0 %v2735
  %2892 = vmatpush.msra.mxu0 %v2727
  %2893 = vmatpush.msra.mxu0 %v2719
  %2894 = vmatpush.msra.mxu0 %v2711
  %2895 = vmatpush.msra.mxu0 %v2703
  %2896 = vmatpush.msra.mxu0 %v2695
  %2897 = vmatpush.msra.mxu0 %v2687
  %2898 = vmatpush.msra.mxu0 %v2679
  %2899 = vmatmul.f32.gmra.mxu0 %v2674
  %v2900 = vpop.f32.mrf.mxu0
  %v2901 = vadd.f32 0.0, %v2900
  %2902 = vdwg.mxu0
  %2903 = vmatpush.msra.mxu0 %v2800
  %2904 = vmatpush.msra.mxu0 %v2792
  %2905 = vmatpush.msra.mxu0 %v2784
  %2906 = vmatpush.msra.mxu0 %v2776
  %2907 = vmatpush.msra.mxu0 %v2768
  %2908 = vmatpush.msra.mxu0 %v2760
  %2909 = vmatpush.msra.mxu0 %v2752
  %2910 = vmatpush.msra.mxu0 %v2744
  %2911 = vmatpush.msra.mxu0 %v2736
  %2912 = vmatpush.msra.mxu0 %v2728
  %2913 = vmatpush.msra.mxu0 %v2720
  %2914 = vmatpush.msra.mxu0 %v2712
  %2915 = vmatpush.msra.mxu0 %v2704
  %2916 = vmatpush.msra.mxu0 %v2696
  %2917 = vmatpush.msra.mxu0 %v2688
  %2918 = vmatpush.msra.mxu0 %v2680
  %2919 = vmatmul.f32.gmra.mxu0 %v2674
  %v2920 = vpop.f32.mrf.mxu0
  %v2921 = vadd.f32 0.0, %v2920
  %2922 = vdwg.mxu0
  %2923 = vmatpush.msra.mxu0 %v2801
  %2924 = vmatpush.msra.mxu0 %v2793
  %2925 = vmatpush.msra.mxu0 %v2785
  %2926 = vmatpush.msra.mxu0 %v2777
  %2927 = vmatpush.msra.mxu0 %v2769
  %2928 = vmatpush.msra.mxu0 %v2761
  %2929 = vmatpush.msra.mxu0 %v2753
  %2930 = vmatpush.msra.mxu0 %v2745
  %2931 = vmatpush.msra.mxu0 %v2737
  %2932 = vmatpush.msra.mxu0 %v2729
  %2933 = vmatpush.msra.mxu0 %v2721
  %2934 = vmatpush.msra.mxu0 %v2713
  %2935 = vmatpush.msra.mxu0 %v2705
  %2936 = vmatpush.msra.mxu0 %v2697
  %2937 = vmatpush.msra.mxu0 %v2689
  %2938 = vmatpush.msra.mxu0 %v2681
  %2939 = vmatmul.f32.gmra.mxu0 %v2674
  %v2940 = vpop.f32.mrf.mxu0
  %v2941 = vadd.f32 0.0, %v2940
  %2942 = vdwg.mxu0
  %2943 = vmatpush.msra.mxu0 %v2802
  %2944 = vmatpush.msra.mxu0 %v2794
  %2945 = vmatpush.msra.mxu0 %v2786
  %2946 = vmatpush.msra.mxu0 %v2778
  %2947 = vmatpush.msra.mxu0 %v2770
  %2948 = vmatpush.msra.mxu0 %v2762
  %2949 = vmatpush.msra.mxu0 %v2754
  %2950 = vmatpush.msra.mxu0 %v2746
  %2951 = vmatpush.msra.mxu0 %v2738
  %2952 = vmatpush.msra.mxu0 %v2730
  %2953 = vmatpush.msra.mxu0 %v2722
  %2954 = vmatpush.msra.mxu0 %v2714
  %2955 = vmatpush.msra.mxu0 %v2706
  %2956 = vmatpush.msra.mxu0 %v2698
  %2957 = vmatpush.msra.mxu0 %v2690
  %2958 = vmatpush.msra.mxu0 %v2682
  %2959 = vmatmul.f32.gmra.mxu0 %v2674
  %v2960 = vpop.f32.mrf.mxu0
  %v2961 = vadd.f32 0.0, %v2960
  %2962 = vdwg.mxu0
  %v2963 = vadd.f32 %v2539, %v2901
  %v2964 = vadd.f32 %v2559, %v2921
  %v2965 = vadd.f32 %v2579, %v2941
  %v2966 = vadd.f32 %v2599, %v2961
  %v2967 = vxor.u32 %v2963, 2147483648
  %v2968 = vxor.u32 %v2964, 2147483648
  %v2969 = vmul.f32 %v2967, 1.442695
  %v2970 = vpow.pop %v2969
  %v2971 = vmul.f32 %v2968, 1.442695
  %v2972 = vpow.pop %v2971
  %v2973 = vadd.f32 %v2970, 1.0
  %v2974 = vadd.f32 %v2972, 1.0
  %v2975 = vrcp.pop %v2973
  %v2976 = vmul.f32 %v2973, %v2975
  %v2977 = vsub.f32 1.0, %v2976
  %v2978 = vmul.f32 %v2975, %v2977
  %v2979 = vadd.f32 %v2975, %v2978
  %vm2980 = vweird.f32 %v2973
  %vm2981 = vweird.f32 %v2975
  %vm2982 = vmor %vm2980, %vm2981
  %v2983 = vsel %vm2982, %v2975, %v2979
  %v2984 = vand.u32 2147483647, %v2973
  %vm2985 = vcmp.eq.f32.partialorder %v2984, 8.507059e+37
  %v2986 = vand.u32 %v2973, 2147483648
  %v2987 = vor.u32 1.1754944e-38, %v2986
  %v2988 = vsel %vm2985, %v2987, %v2983
  %v2989 = vmul.f32 1.0, %v2988
  %v2990 = vrcp.pop %v2974
  %v2991 = vmul.f32 %v2974, %v2990
  %v2992 = vsub.f32 1.0, %v2991
  %v2993 = vmul.f32 %v2990, %v2992
  %v2994 = vadd.f32 %v2990, %v2993
  %vm2995 = vweird.f32 %v2974
  %vm2996 = vweird.f32 %v2990
  %vm2997 = vmor %vm2995, %vm2996
  %v2998 = vsel %vm2997, %v2990, %v2994
  %v2999 = vand.u32 2147483647, %v2974
  %vm3000 = vcmp.eq.f32.partialorder %v2999, 8.507059e+37
  %v3001 = vand.u32 %v2974, 2147483648
  %v3002 = vor.u32 1.1754944e-38, %v3001
  %v3003 = vsel %vm3000, %v3002, %v2998
  %v3004 = vmul.f32 1.0, %v3003
  %v3005 = vtanh.pop %v2965
  %v3006 = vxor.u32 %v2966, 2147483648
  %v3007 = vmul.f32 %v3006, 1.442695
  %v3008 = vpow.pop %v3007
  %v3009 = vadd.f32 %v3008, 1.0
  %v3010 = vrcp.pop %v3009
  %v3011 = vmul.f32 %v3009, %v3010
  %v3012 = vsub.f32 1.0, %v3011
  %v3013 = vmul.f32 %v3010, %v3012
  %v3014 = vadd.f32 %v3010, %v3013
  %vm3015 = vweird.f32 %v3009
  %vm3016 = vweird.f32 %v3010
  %vm3017 = vmor %vm3015, %vm3016
  %v3018 = vsel %vm3017, %v3010, %v3014
  %v3019 = vand.u32 2147483647, %v3009
  %vm3020 = vcmp.eq.f32.partialorder %v3019, 8.507059e+37
  %v3021 = vand.u32 %v3009, 2147483648
  %v3022 = vor.u32 1.1754944e-38, %v3021
  %v3023 = vsel %vm3020, %v3022, %v3018
  %v3024 = vmul.f32 1.0, %v3023
  %v3025 = vmul.f32 %v3004, %v2452
  %v3026 = vmul.f32 %v2989, %v3005
  %v3027 = vadd.f32 %v3025, %v3026
  %v3028 = vtanh.pop %v3027
  %v3029 = vmul.f32 %v3024, %v3028
  %s3030 = scalar_lea.vmem [#allocation3], 24
  %3031 = vst [vmem:[%s3030] sm:$0xff] %v3029
  %v3032 = vld [vmem:[%s3] sm:$0xff]
  %v3033 = vld [vmem:[%s3 + $0x8] sm:$0xff]
  %v3034 = vld [vmem:[%s3 + $0x10] sm:$0xff]
  %v3035 = vld [vmem:[%s3 + $0x18] sm:$0xff]
  %v3036 = vld [vmem:[%s3 + $0x20] sm:$0xff]
  %v3037 = vld [vmem:[%s3 + $0x28] sm:$0xff]
  %v3038 = vld [vmem:[%s3 + $0x30] sm:$0xff]
  %v3039 = vld [vmem:[%s3 + $0x38] sm:$0xff]
  %v3040 = vld [vmem:[%s3 + $0x40] sm:$0xff]
  %v3041 = vld [vmem:[%s3 + $0x48] sm:$0xff]
  %v3042 = vld [vmem:[%s3 + $0x50] sm:$0xff]
  %v3043 = vld [vmem:[%s3 + $0x58] sm:$0xff]
  %v3044 = vld [vmem:[%s3 + $0x60] sm:$0xff]
  %v3045 = vld [vmem:[%s3 + $0x68] sm:$0xff]
  %v3046 = vld [vmem:[%s3 + $0x70] sm:$0xff]
  %v3047 = vld [vmem:[%s3 + $0x78] sm:$0xff]
  %v3048 = vld [vmem:[%s3 + $0x80] sm:$0xff]
  %v3049 = vld [vmem:[%s3 + $0x88] sm:$0xff]
  %v3050 = vld [vmem:[%s3 + $0x90] sm:$0xff]
  %v3051 = vld [vmem:[%s3 + $0x98] sm:$0xff]
  %v3052 = vld [vmem:[%s3 + $0xa0] sm:$0xff]
  %v3053 = vld [vmem:[%s3 + $0xa8] sm:$0xff]
  %v3054 = vld [vmem:[%s3 + $0xb0] sm:$0xff]
  %v3055 = vld [vmem:[%s3 + $0xb8] sm:$0xff]
  %v3056 = vld [vmem:[%s3 + $0xc0] sm:$0xff]
  %v3057 = vld [vmem:[%s3 + $0xc8] sm:$0xff]
  %v3058 = vld [vmem:[%s3 + $0xd0] sm:$0xff]
  %v3059 = vld [vmem:[%s3 + $0xd8] sm:$0xff]
  %v3060 = vld [vmem:[%s3 + $0xe0] sm:$0xff]
  %v3061 = vld [vmem:[%s3 + $0xe8] sm:$0xff]
  %v3062 = vld [vmem:[%s3 + $0xf0] sm:$0xff]
  %v3063 = vld [vmem:[%s3 + $0xf8] sm:$0xff]
  %v3064 = vld [vmem:[%s3 + $0x100] sm:$0xff]
  %v3065 = vld [vmem:[%s3 + $0x108] sm:$0xff]
  %v3066 = vld [vmem:[%s3 + $0x110] sm:$0xff]
  %v3067 = vld [vmem:[%s3 + $0x118] sm:$0xff]
  %v3068 = vld [vmem:[%s3 + $0x120] sm:$0xff]
  %v3069 = vld [vmem:[%s3 + $0x128] sm:$0xff]
  %v3070 = vld [vmem:[%s3 + $0x130] sm:$0xff]
  %v3071 = vld [vmem:[%s3 + $0x138] sm:$0xff]
  %v3072 = vld [vmem:[%s3 + $0x140] sm:$0xff]
  %v3073 = vld [vmem:[%s3 + $0x148] sm:$0xff]
  %v3074 = vld [vmem:[%s3 + $0x150] sm:$0xff]
  %v3075 = vld [vmem:[%s3 + $0x158] sm:$0xff]
  %v3076 = vld [vmem:[%s3 + $0x160] sm:$0xff]
  %v3077 = vld [vmem:[%s3 + $0x168] sm:$0xff]
  %v3078 = vld [vmem:[%s3 + $0x170] sm:$0xff]
  %v3079 = vld [vmem:[%s3 + $0x178] sm:$0xff]
  %v3080 = vld [vmem:[%s3 + $0x180] sm:$0xff]
  %v3081 = vld [vmem:[%s3 + $0x188] sm:$0xff]
  %v3082 = vld [vmem:[%s3 + $0x190] sm:$0xff]
  %v3083 = vld [vmem:[%s3 + $0x198] sm:$0xff]
  %v3084 = vld [vmem:[%s3 + $0x1a0] sm:$0xff]
  %v3085 = vld [vmem:[%s3 + $0x1a8] sm:$0xff]
  %v3086 = vld [vmem:[%s3 + $0x1b0] sm:$0xff]
  %v3087 = vld [vmem:[%s3 + $0x1b8] sm:$0xff]
  %v3088 = vld [vmem:[%s3 + $0x1c0] sm:$0xff]
  %v3089 = vld [vmem:[%s3 + $0x1c8] sm:$0xff]
  %v3090 = vld [vmem:[%s3 + $0x1d0] sm:$0xff]
  %v3091 = vld [vmem:[%s3 + $0x1d8] sm:$0xff]
  %v3092 = vld [vmem:[%s3 + $0x1e0] sm:$0xff]
  %v3093 = vld [vmem:[%s3 + $0x1e8] sm:$0xff]
  %v3094 = vld [vmem:[%s3 + $0x1f0] sm:$0xff]
  %v3095 = vld [vmem:[%s3 + $0x1f8] sm:$0xff]
  %3096 = vmatpush.msra.mxu0 %v3092
  %3097 = vmatpush.msra.mxu0 %v3088
  %3098 = vmatpush.msra.mxu0 %v3084
  %3099 = vmatpush.msra.mxu0 %v3080
  %3100 = vmatpush.msra.mxu0 %v3076
  %3101 = vmatpush.msra.mxu0 %v3072
  %3102 = vmatpush.msra.mxu0 %v3068
  %3103 = vmatpush.msra.mxu0 %v3064
  %3104 = vmatpush.msra.mxu0 %v3060
  %3105 = vmatpush.msra.mxu0 %v3056
  %3106 = vmatpush.msra.mxu0 %v3052
  %3107 = vmatpush.msra.mxu0 %v3048
  %3108 = vmatpush.msra.mxu0 %v3044
  %3109 = vmatpush.msra.mxu0 %v3040
  %3110 = vmatpush.msra.mxu0 %v3036
  %3111 = vmatpush.msra.mxu0 %v3032
  %3112 = vmatmul.f32.gmra.mxu0 %v3029
  %v3113 = vpop.f32.mrf.mxu0
  %v3114 = vadd.f32 %v725, %v3113
  %3115 = vdwg.mxu0
  %3116 = vmatpush.msra.mxu0 %v3093
  %3117 = vmatpush.msra.mxu0 %v3089
  %3118 = vmatpush.msra.mxu0 %v3085
  %3119 = vmatpush.msra.mxu0 %v3081
  %3120 = vmatpush.msra.mxu0 %v3077
  %3121 = vmatpush.msra.mxu0 %v3073
  %3122 = vmatpush.msra.mxu0 %v3069
  %3123 = vmatpush.msra.mxu0 %v3065
  %3124 = vmatpush.msra.mxu0 %v3061
  %3125 = vmatpush.msra.mxu0 %v3057
  %3126 = vmatpush.msra.mxu0 %v3053
  %3127 = vmatpush.msra.mxu0 %v3049
  %3128 = vmatpush.msra.mxu0 %v3045
  %3129 = vmatpush.msra.mxu0 %v3041
  %3130 = vmatpush.msra.mxu0 %v3037
  %3131 = vmatpush.msra.mxu0 %v3033
  %3132 = vmatmul.f32.gmra.mxu0 %v3029
  %v3133 = vpop.f32.mrf.mxu0
  %v3134 = vadd.f32 %v726, %v3133
  %3135 = vdwg.mxu0
  %3136 = vmatpush.msra.mxu0 %v3094
  %3137 = vmatpush.msra.mxu0 %v3090
  %3138 = vmatpush.msra.mxu0 %v3086
  %3139 = vmatpush.msra.mxu0 %v3082
  %3140 = vmatpush.msra.mxu0 %v3078
  %3141 = vmatpush.msra.mxu0 %v3074
  %3142 = vmatpush.msra.mxu0 %v3070
  %3143 = vmatpush.msra.mxu0 %v3066
  %3144 = vmatpush.msra.mxu0 %v3062
  %3145 = vmatpush.msra.mxu0 %v3058
  %3146 = vmatpush.msra.mxu0 %v3054
  %3147 = vmatpush.msra.mxu0 %v3050
  %3148 = vmatpush.msra.mxu0 %v3046
  %3149 = vmatpush.msra.mxu0 %v3042
  %3150 = vmatpush.msra.mxu0 %v3038
  %3151 = vmatpush.msra.mxu0 %v3034
  %3152 = vmatmul.f32.gmra.mxu0 %v3029
  %v3153 = vpop.f32.mrf.mxu0
  %v3154 = vadd.f32 %v727, %v3153
  %3155 = vdwg.mxu0
  %3156 = vmatpush.msra.mxu0 %v3095
  %3157 = vmatpush.msra.mxu0 %v3091
  %3158 = vmatpush.msra.mxu0 %v3087
  %3159 = vmatpush.msra.mxu0 %v3083
  %3160 = vmatpush.msra.mxu0 %v3079
  %3161 = vmatpush.msra.mxu0 %v3075
  %3162 = vmatpush.msra.mxu0 %v3071
  %3163 = vmatpush.msra.mxu0 %v3067
  %3164 = vmatpush.msra.mxu0 %v3063
  %3165 = vmatpush.msra.mxu0 %v3059
  %3166 = vmatpush.msra.mxu0 %v3055
  %3167 = vmatpush.msra.mxu0 %v3051
  %3168 = vmatpush.msra.mxu0 %v3047
  %3169 = vmatpush.msra.mxu0 %v3043
  %3170 = vmatpush.msra.mxu0 %v3039
  %3171 = vmatpush.msra.mxu0 %v3035
  %3172 = vmatmul.f32.gmra.mxu0 %v3029
  %v3173 = vpop.f32.mrf.mxu0
  %v3174 = vadd.f32 %v728, %v3173
  %3175 = vdwg.mxu0
  %s3176 = smul.u32 4, 4
  %s3177 = smul.addr %s3176, 8
  %s3178 = scalar_lea.vmem [#allocation2], %s3177
  %v3179 = vld [vmem:[%s3178] sm:$0xff]
  %v3180 = vld [vmem:[%s3178 + $0x8] sm:$0xff]
  %v3181 = vld [vmem:[%s3178 + $0x10] sm:$0xff]
  %v3182 = vld [vmem:[%s3178 + $0x18] sm:$0xff]
  %v3183 = vadd.f32 %v3179, %v2821
  %v3184 = vadd.f32 %v3180, %v2841
  %v3185 = vadd.f32 %v3181, %v2861
  %v3186 = vadd.f32 %v3182, %v2881
  %v3187 = vxor.u32 %v3183, 2147483648
  %v3188 = vxor.u32 %v3184, 2147483648
  %v3189 = vmul.f32 %v3187, 1.442695
  %v3190 = vpow.pop %v3189
  %v3191 = vmul.f32 %v3188, 1.442695
  %v3192 = vpow.pop %v3191
  %v3193 = vadd.f32 %v3190, 1.0
  %v3194 = vadd.f32 %v3192, 1.0
  %v3195 = vrcp.pop %v3193
  %v3196 = vmul.f32 %v3193, %v3195
  %v3197 = vsub.f32 1.0, %v3196
  %v3198 = vmul.f32 %v3195, %v3197
  %v3199 = vadd.f32 %v3195, %v3198
  %vm3200 = vweird.f32 %v3193
  %vm3201 = vweird.f32 %v3195
  %vm3202 = vmor %vm3200, %vm3201
  %v3203 = vsel %vm3202, %v3195, %v3199
  %v3204 = vand.u32 2147483647, %v3193
  %vm3205 = vcmp.eq.f32.partialorder %v3204, 8.507059e+37
  %v3206 = vand.u32 %v3193, 2147483648
  %v3207 = vor.u32 1.1754944e-38, %v3206
  %v3208 = vsel %vm3205, %v3207, %v3203
  %v3209 = vmul.f32 1.0, %v3208
  %v3210 = vrcp.pop %v3194
  %v3211 = vmul.f32 %v3194, %v3210
  %v3212 = vsub.f32 1.0, %v3211
  %v3213 = vmul.f32 %v3210, %v3212
  %v3214 = vadd.f32 %v3210, %v3213
  %vm3215 = vweird.f32 %v3194
  %vm3216 = vweird.f32 %v3210
  %vm3217 = vmor %vm3215, %vm3216
  %v3218 = vsel %vm3217, %v3210, %v3214
  %v3219 = vand.u32 2147483647, %v3194
  %vm3220 = vcmp.eq.f32.partialorder %v3219, 8.507059e+37
  %v3221 = vand.u32 %v3194, 2147483648
  %v3222 = vor.u32 1.1754944e-38, %v3221
  %v3223 = vsel %vm3220, %v3222, %v3218
  %v3224 = vmul.f32 1.0, %v3223
  %v3225 = vtanh.pop %v3185
  %v3226 = vxor.u32 %v3186, 2147483648
  %v3227 = vmul.f32 %v3226, 1.442695
  %v3228 = vpow.pop %v3227
  %v3229 = vadd.f32 %v3228, 1.0
  %v3230 = vrcp.pop %v3229
  %v3231 = vmul.f32 %v3229, %v3230
  %v3232 = vsub.f32 1.0, %v3231
  %v3233 = vmul.f32 %v3230, %v3232
  %v3234 = vadd.f32 %v3230, %v3233
  %vm3235 = vweird.f32 %v3229
  %vm3236 = vweird.f32 %v3230
  %vm3237 = vmor %vm3235, %vm3236
  %v3238 = vsel %vm3237, %v3230, %v3234
  %v3239 = vand.u32 2147483647, %v3229
  %vm3240 = vcmp.eq.f32.partialorder %v3239, 8.507059e+37
  %v3241 = vand.u32 %v3229, 2147483648
  %v3242 = vor.u32 1.1754944e-38, %v3241
  %v3243 = vsel %vm3240, %v3242, %v3238
  %v3244 = vmul.f32 1.0, %v3243
  %v3245 = vmul.f32 %v3224, %v2672
  %v3246 = vmul.f32 %v3209, %v3225
  %v3247 = vadd.f32 %v3245, %v3246
  %v3248 = vtanh.pop %v3247
  %v3249 = vmul.f32 %v3244, %v3248
  %v3250 = vld [vmem:[%s2] sm:$0xff]
  %v3251 = vld [vmem:[%s2 + $0x8] sm:$0xff]
  %v3252 = vld [vmem:[%s2 + $0x10] sm:$0xff]
  %v3253 = vld [vmem:[%s2 + $0x18] sm:$0xff]
  %v3254 = vld [vmem:[%s2 + $0x20] sm:$0xff]
  %v3255 = vld [vmem:[%s2 + $0x28] sm:$0xff]
  %v3256 = vld [vmem:[%s2 + $0x30] sm:$0xff]
  %v3257 = vld [vmem:[%s2 + $0x38] sm:$0xff]
  %v3258 = vld [vmem:[%s2 + $0x40] sm:$0xff]
  %v3259 = vld [vmem:[%s2 + $0x48] sm:$0xff]
  %v3260 = vld [vmem:[%s2 + $0x50] sm:$0xff]
  %v3261 = vld [vmem:[%s2 + $0x58] sm:$0xff]
  %v3262 = vld [vmem:[%s2 + $0x60] sm:$0xff]
  %v3263 = vld [vmem:[%s2 + $0x68] sm:$0xff]
  %v3264 = vld [vmem:[%s2 + $0x70] sm:$0xff]
  %v3265 = vld [vmem:[%s2 + $0x78] sm:$0xff]
  %v3266 = vld [vmem:[%s2 + $0x80] sm:$0xff]
  %v3267 = vld [vmem:[%s2 + $0x88] sm:$0xff]
  %v3268 = vld [vmem:[%s2 + $0x90] sm:$0xff]
  %v3269 = vld [vmem:[%s2 + $0x98] sm:$0xff]
  %v3270 = vld [vmem:[%s2 + $0xa0] sm:$0xff]
  %v3271 = vld [vmem:[%s2 + $0xa8] sm:$0xff]
  %v3272 = vld [vmem:[%s2 + $0xb0] sm:$0xff]
  %v3273 = vld [vmem:[%s2 + $0xb8] sm:$0xff]
  %v3274 = vld [vmem:[%s2 + $0xc0] sm:$0xff]
  %v3275 = vld [vmem:[%s2 + $0xc8] sm:$0xff]
  %v3276 = vld [vmem:[%s2 + $0xd0] sm:$0xff]
  %v3277 = vld [vmem:[%s2 + $0xd8] sm:$0xff]
  %v3278 = vld [vmem:[%s2 + $0xe0] sm:$0xff]
  %v3279 = vld [vmem:[%s2 + $0xe8] sm:$0xff]
  %v3280 = vld [vmem:[%s2 + $0xf0] sm:$0xff]
  %v3281 = vld [vmem:[%s2 + $0xf8] sm:$0xff]
  %v3282 = vld [vmem:[%s2 + $0x100] sm:$0xff]
  %v3283 = vld [vmem:[%s2 + $0x108] sm:$0xff]
  %v3284 = vld [vmem:[%s2 + $0x110] sm:$0xff]
  %v3285 = vld [vmem:[%s2 + $0x118] sm:$0xff]
  %v3286 = vld [vmem:[%s2 + $0x120] sm:$0xff]
  %v3287 = vld [vmem:[%s2 + $0x128] sm:$0xff]
  %v3288 = vld [vmem:[%s2 + $0x130] sm:$0xff]
  %v3289 = vld [vmem:[%s2 + $0x138] sm:$0xff]
  %v3290 = vld [vmem:[%s2 + $0x140] sm:$0xff]
  %v3291 = vld [vmem:[%s2 + $0x148] sm:$0xff]
  %v3292 = vld [vmem:[%s2 + $0x150] sm:$0xff]
  %v3293 = vld [vmem:[%s2 + $0x158] sm:$0xff]
  %v3294 = vld [vmem:[%s2 + $0x160] sm:$0xff]
  %v3295 = vld [vmem:[%s2 + $0x168] sm:$0xff]
  %v3296 = vld [vmem:[%s2 + $0x170] sm:$0xff]
  %v3297 = vld [vmem:[%s2 + $0x178] sm:$0xff]
  %v3298 = vld [vmem:[%s2 + $0x180] sm:$0xff]
  %v3299 = vld [vmem:[%s2 + $0x188] sm:$0xff]
  %v3300 = vld [vmem:[%s2 + $0x190] sm:$0xff]
  %v3301 = vld [vmem:[%s2 + $0x198] sm:$0xff]
  %v3302 = vld [vmem:[%s2 + $0x1a0] sm:$0xff]
  %v3303 = vld [vmem:[%s2 + $0x1a8] sm:$0xff]
  %v3304 = vld [vmem:[%s2 + $0x1b0] sm:$0xff]
  %v3305 = vld [vmem:[%s2 + $0x1b8] sm:$0xff]
  %v3306 = vld [vmem:[%s2 + $0x1c0] sm:$0xff]
  %v3307 = vld [vmem:[%s2 + $0x1c8] sm:$0xff]
  %v3308 = vld [vmem:[%s2 + $0x1d0] sm:$0xff]
  %v3309 = vld [vmem:[%s2 + $0x1d8] sm:$0xff]
  %v3310 = vld [vmem:[%s2 + $0x1e0] sm:$0xff]
  %v3311 = vld [vmem:[%s2 + $0x1e8] sm:$0xff]
  %v3312 = vld [vmem:[%s2 + $0x1f0] sm:$0xff]
  %v3313 = vld [vmem:[%s2 + $0x1f8] sm:$0xff]
  %v3314 = vld [vmem:[%s2 + $0x200] sm:$0xff]
  %v3315 = vld [vmem:[%s2 + $0x208] sm:$0xff]
  %v3316 = vld [vmem:[%s2 + $0x210] sm:$0xff]
  %v3317 = vld [vmem:[%s2 + $0x218] sm:$0xff]
  %v3318 = vld [vmem:[%s2 + $0x220] sm:$0xff]
  %v3319 = vld [vmem:[%s2 + $0x228] sm:$0xff]
  %v3320 = vld [vmem:[%s2 + $0x230] sm:$0xff]
  %v3321 = vld [vmem:[%s2 + $0x238] sm:$0xff]
  %v3322 = vld [vmem:[%s2 + $0x240] sm:$0xff]
  %v3323 = vld [vmem:[%s2 + $0x248] sm:$0xff]
  %v3324 = vld [vmem:[%s2 + $0x250] sm:$0xff]
  %v3325 = vld [vmem:[%s2 + $0x258] sm:$0xff]
  %v3326 = vld [vmem:[%s2 + $0x260] sm:$0xff]
  %v3327 = vld [vmem:[%s2 + $0x268] sm:$0xff]
  %v3328 = vld [vmem:[%s2 + $0x270] sm:$0xff]
  %v3329 = vld [vmem:[%s2 + $0x278] sm:$0xff]
  %v3330 = vld [vmem:[%s2 + $0x280] sm:$0xff]
  %v3331 = vld [vmem:[%s2 + $0x288] sm:$0xff]
  %v3332 = vld [vmem:[%s2 + $0x290] sm:$0xff]
  %v3333 = vld [vmem:[%s2 + $0x298] sm:$0xff]
  %v3334 = vld [vmem:[%s2 + $0x2a0] sm:$0xff]
  %v3335 = vld [vmem:[%s2 + $0x2a8] sm:$0xff]
  %v3336 = vld [vmem:[%s2 + $0x2b0] sm:$0xff]
  %v3337 = vld [vmem:[%s2 + $0x2b8] sm:$0xff]
  %v3338 = vld [vmem:[%s2 + $0x2c0] sm:$0xff]
  %v3339 = vld [vmem:[%s2 + $0x2c8] sm:$0xff]
  %v3340 = vld [vmem:[%s2 + $0x2d0] sm:$0xff]
  %v3341 = vld [vmem:[%s2 + $0x2d8] sm:$0xff]
  %v3342 = vld [vmem:[%s2 + $0x2e0] sm:$0xff]
  %v3343 = vld [vmem:[%s2 + $0x2e8] sm:$0xff]
  %v3344 = vld [vmem:[%s2 + $0x2f0] sm:$0xff]
  %v3345 = vld [vmem:[%s2 + $0x2f8] sm:$0xff]
  %v3346 = vld [vmem:[%s2 + $0x300] sm:$0xff]
  %v3347 = vld [vmem:[%s2 + $0x308] sm:$0xff]
  %v3348 = vld [vmem:[%s2 + $0x310] sm:$0xff]
  %v3349 = vld [vmem:[%s2 + $0x318] sm:$0xff]
  %v3350 = vld [vmem:[%s2 + $0x320] sm:$0xff]
  %v3351 = vld [vmem:[%s2 + $0x328] sm:$0xff]
  %v3352 = vld [vmem:[%s2 + $0x330] sm:$0xff]
  %v3353 = vld [vmem:[%s2 + $0x338] sm:$0xff]
  %v3354 = vld [vmem:[%s2 + $0x340] sm:$0xff]
  %v3355 = vld [vmem:[%s2 + $0x348] sm:$0xff]
  %v3356 = vld [vmem:[%s2 + $0x350] sm:$0xff]
  %v3357 = vld [vmem:[%s2 + $0x358] sm:$0xff]
  %v3358 = vld [vmem:[%s2 + $0x360] sm:$0xff]
  %v3359 = vld [vmem:[%s2 + $0x368] sm:$0xff]
  %v3360 = vld [vmem:[%s2 + $0x370] sm:$0xff]
  %v3361 = vld [vmem:[%s2 + $0x378] sm:$0xff]
  %v3362 = vld [vmem:[%s2 + $0x380] sm:$0xff]
  %v3363 = vld [vmem:[%s2 + $0x388] sm:$0xff]
  %v3364 = vld [vmem:[%s2 + $0x390] sm:$0xff]
  %v3365 = vld [vmem:[%s2 + $0x398] sm:$0xff]
  %v3366 = vld [vmem:[%s2 + $0x3a0] sm:$0xff]
  %v3367 = vld [vmem:[%s2 + $0x3a8] sm:$0xff]
  %v3368 = vld [vmem:[%s2 + $0x3b0] sm:$0xff]
  %v3369 = vld [vmem:[%s2 + $0x3b8] sm:$0xff]
  %v3370 = vld [vmem:[%s2 + $0x3c0] sm:$0xff]
  %v3371 = vld [vmem:[%s2 + $0x3c8] sm:$0xff]
  %v3372 = vld [vmem:[%s2 + $0x3d0] sm:$0xff]
  %v3373 = vld [vmem:[%s2 + $0x3d8] sm:$0xff]
  %v3374 = vld [vmem:[%s2 + $0x3e0] sm:$0xff]
  %v3375 = vld [vmem:[%s2 + $0x3e8] sm:$0xff]
  %v3376 = vld [vmem:[%s2 + $0x3f0] sm:$0xff]
  %v3377 = vld [vmem:[%s2 + $0x3f8] sm:$0xff]
  %3378 = vmatpush.msra.mxu0 %v3370
  %3379 = vmatpush.msra.mxu0 %v3362
  %3380 = vmatpush.msra.mxu0 %v3354
  %3381 = vmatpush.msra.mxu0 %v3346
  %3382 = vmatpush.msra.mxu0 %v3338
  %3383 = vmatpush.msra.mxu0 %v3330
  %3384 = vmatpush.msra.mxu0 %v3322
  %3385 = vmatpush.msra.mxu0 %v3314
  %3386 = vmatpush.msra.mxu0 %v3306
  %3387 = vmatpush.msra.mxu0 %v3298
  %3388 = vmatpush.msra.mxu0 %v3290
  %3389 = vmatpush.msra.mxu0 %v3282
  %3390 = vmatpush.msra.mxu0 %v3274
  %3391 = vmatpush.msra.mxu0 %v3266
  %3392 = vmatpush.msra.mxu0 %v3258
  %3393 = vmatpush.msra.mxu0 %v3250
  %3394 = vmatmul.f32.gmra.mxu0 %v3249
  %v3395 = vpop.f32.mrf.mxu0
  %v3396 = vadd.f32 0.0, %v3395
  %3397 = vdwg.mxu0
  %3398 = vmatpush.msra.mxu0 %v3371
  %3399 = vmatpush.msra.mxu0 %v3363
  %3400 = vmatpush.msra.mxu0 %v3355
  %3401 = vmatpush.msra.mxu0 %v3347
  %3402 = vmatpush.msra.mxu0 %v3339
  %3403 = vmatpush.msra.mxu0 %v3331
  %3404 = vmatpush.msra.mxu0 %v3323
  %3405 = vmatpush.msra.mxu0 %v3315
  %3406 = vmatpush.msra.mxu0 %v3307
  %3407 = vmatpush.msra.mxu0 %v3299
  %3408 = vmatpush.msra.mxu0 %v3291
  %3409 = vmatpush.msra.mxu0 %v3283
  %3410 = vmatpush.msra.mxu0 %v3275
  %3411 = vmatpush.msra.mxu0 %v3267
  %3412 = vmatpush.msra.mxu0 %v3259
  %3413 = vmatpush.msra.mxu0 %v3251
  %3414 = vmatmul.f32.gmra.mxu0 %v3249
  %v3415 = vpop.f32.mrf.mxu0
  %v3416 = vadd.f32 0.0, %v3415
  %3417 = vdwg.mxu0
  %3418 = vmatpush.msra.mxu0 %v3372
  %3419 = vmatpush.msra.mxu0 %v3364
  %3420 = vmatpush.msra.mxu0 %v3356
  %3421 = vmatpush.msra.mxu0 %v3348
  %3422 = vmatpush.msra.mxu0 %v3340
  %3423 = vmatpush.msra.mxu0 %v3332
  %3424 = vmatpush.msra.mxu0 %v3324
  %3425 = vmatpush.msra.mxu0 %v3316
  %3426 = vmatpush.msra.mxu0 %v3308
  %3427 = vmatpush.msra.mxu0 %v3300
  %3428 = vmatpush.msra.mxu0 %v3292
  %3429 = vmatpush.msra.mxu0 %v3284
  %3430 = vmatpush.msra.mxu0 %v3276
  %3431 = vmatpush.msra.mxu0 %v3268
  %3432 = vmatpush.msra.mxu0 %v3260
  %3433 = vmatpush.msra.mxu0 %v3252
  %3434 = vmatmul.f32.gmra.mxu0 %v3249
  %v3435 = vpop.f32.mrf.mxu0
  %v3436 = vadd.f32 0.0, %v3435
  %3437 = vdwg.mxu0
  %3438 = vmatpush.msra.mxu0 %v3373
  %3439 = vmatpush.msra.mxu0 %v3365
  %3440 = vmatpush.msra.mxu0 %v3357
  %3441 = vmatpush.msra.mxu0 %v3349
  %3442 = vmatpush.msra.mxu0 %v3341
  %3443 = vmatpush.msra.mxu0 %v3333
  %3444 = vmatpush.msra.mxu0 %v3325
  %3445 = vmatpush.msra.mxu0 %v3317
  %3446 = vmatpush.msra.mxu0 %v3309
  %3447 = vmatpush.msra.mxu0 %v3301
  %3448 = vmatpush.msra.mxu0 %v3293
  %3449 = vmatpush.msra.mxu0 %v3285
  %3450 = vmatpush.msra.mxu0 %v3277
  %3451 = vmatpush.msra.mxu0 %v3269
  %3452 = vmatpush.msra.mxu0 %v3261
  %3453 = vmatpush.msra.mxu0 %v3253
  %3454 = vmatmul.f32.gmra.mxu0 %v3249
  %v3455 = vpop.f32.mrf.mxu0
  %v3456 = vadd.f32 0.0, %v3455
  %3457 = vdwg.mxu0
  %3458 = vmatpush.msra.mxu0 %v3374
  %3459 = vmatpush.msra.mxu0 %v3366
  %3460 = vmatpush.msra.mxu0 %v3358
  %3461 = vmatpush.msra.mxu0 %v3350
  %3462 = vmatpush.msra.mxu0 %v3342
  %3463 = vmatpush.msra.mxu0 %v3334
  %3464 = vmatpush.msra.mxu0 %v3326
  %3465 = vmatpush.msra.mxu0 %v3318
  %3466 = vmatpush.msra.mxu0 %v3310
  %3467 = vmatpush.msra.mxu0 %v3302
  %3468 = vmatpush.msra.mxu0 %v3294
  %3469 = vmatpush.msra.mxu0 %v3286
  %3470 = vmatpush.msra.mxu0 %v3278
  %3471 = vmatpush.msra.mxu0 %v3270
  %3472 = vmatpush.msra.mxu0 %v3262
  %3473 = vmatpush.msra.mxu0 %v3254
  %3474 = vmatmul.f32.gmra.mxu0 %v3249
  %v3475 = vpop.f32.mrf.mxu0
  %v3476 = vadd.f32 0.0, %v3475
  %3477 = vdwg.mxu0
  %3478 = vmatpush.msra.mxu0 %v3375
  %3479 = vmatpush.msra.mxu0 %v3367
  %3480 = vmatpush.msra.mxu0 %v3359
  %3481 = vmatpush.msra.mxu0 %v3351
  %3482 = vmatpush.msra.mxu0 %v3343
  %3483 = vmatpush.msra.mxu0 %v3335
  %3484 = vmatpush.msra.mxu0 %v3327
  %3485 = vmatpush.msra.mxu0 %v3319
  %3486 = vmatpush.msra.mxu0 %v3311
  %3487 = vmatpush.msra.mxu0 %v3303
  %3488 = vmatpush.msra.mxu0 %v3295
  %3489 = vmatpush.msra.mxu0 %v3287
  %3490 = vmatpush.msra.mxu0 %v3279
  %3491 = vmatpush.msra.mxu0 %v3271
  %3492 = vmatpush.msra.mxu0 %v3263
  %3493 = vmatpush.msra.mxu0 %v3255
  %3494 = vmatmul.f32.gmra.mxu0 %v3249
  %v3495 = vpop.f32.mrf.mxu0
  %v3496 = vadd.f32 0.0, %v3495
  %3497 = vdwg.mxu0
  %3498 = vmatpush.msra.mxu0 %v3376
  %3499 = vmatpush.msra.mxu0 %v3368
  %3500 = vmatpush.msra.mxu0 %v3360
  %3501 = vmatpush.msra.mxu0 %v3352
  %3502 = vmatpush.msra.mxu0 %v3344
  %3503 = vmatpush.msra.mxu0 %v3336
  %3504 = vmatpush.msra.mxu0 %v3328
  %3505 = vmatpush.msra.mxu0 %v3320
  %3506 = vmatpush.msra.mxu0 %v3312
  %3507 = vmatpush.msra.mxu0 %v3304
  %3508 = vmatpush.msra.mxu0 %v3296
  %3509 = vmatpush.msra.mxu0 %v3288
  %3510 = vmatpush.msra.mxu0 %v3280
  %3511 = vmatpush.msra.mxu0 %v3272
  %3512 = vmatpush.msra.mxu0 %v3264
  %3513 = vmatpush.msra.mxu0 %v3256
  %3514 = vmatmul.f32.gmra.mxu0 %v3249
  %v3515 = vpop.f32.mrf.mxu0
  %v3516 = vadd.f32 0.0, %v3515
  %3517 = vdwg.mxu0
  %3518 = vmatpush.msra.mxu0 %v3377
  %3519 = vmatpush.msra.mxu0 %v3369
  %3520 = vmatpush.msra.mxu0 %v3361
  %3521 = vmatpush.msra.mxu0 %v3353
  %3522 = vmatpush.msra.mxu0 %v3345
  %3523 = vmatpush.msra.mxu0 %v3337
  %3524 = vmatpush.msra.mxu0 %v3329
  %3525 = vmatpush.msra.mxu0 %v3321
  %3526 = vmatpush.msra.mxu0 %v3313
  %3527 = vmatpush.msra.mxu0 %v3305
  %3528 = vmatpush.msra.mxu0 %v3297
  %3529 = vmatpush.msra.mxu0 %v3289
  %3530 = vmatpush.msra.mxu0 %v3281
  %3531 = vmatpush.msra.mxu0 %v3273
  %3532 = vmatpush.msra.mxu0 %v3265
  %3533 = vmatpush.msra.mxu0 %v3257
  %3534 = vmatmul.f32.gmra.mxu0 %v3249
  %v3535 = vpop.f32.mrf.mxu0
  %v3536 = vadd.f32 0.0, %v3535
  %3537 = vdwg.mxu0
  %v3538 = vadd.f32 %v3114, %v3476
  %v3539 = vadd.f32 %v3134, %v3496
  %v3540 = vadd.f32 %v3154, %v3516
  %v3541 = vadd.f32 %v3174, %v3536
  %v3542 = vxor.u32 %v3538, 2147483648
  %v3543 = vxor.u32 %v3539, 2147483648
  %v3544 = vmul.f32 %v3542, 1.442695
  %v3545 = vpow.pop %v3544
  %v3546 = vmul.f32 %v3543, 1.442695
  %v3547 = vpow.pop %v3546
  %v3548 = vadd.f32 %v3545, 1.0
  %v3549 = vadd.f32 %v3547, 1.0
  %v3550 = vrcp.pop %v3548
  %v3551 = vmul.f32 %v3548, %v3550
  %v3552 = vsub.f32 1.0, %v3551
  %v3553 = vmul.f32 %v3550, %v3552
  %v3554 = vadd.f32 %v3550, %v3553
  %vm3555 = vweird.f32 %v3548
  %vm3556 = vweird.f32 %v3550
  %vm3557 = vmor %vm3555, %vm3556
  %v3558 = vsel %vm3557, %v3550, %v3554
  %v3559 = vand.u32 2147483647, %v3548
  %vm3560 = vcmp.eq.f32.partialorder %v3559, 8.507059e+37
  %v3561 = vand.u32 %v3548, 2147483648
  %v3562 = vor.u32 1.1754944e-38, %v3561
  %v3563 = vsel %vm3560, %v3562, %v3558
  %v3564 = vmul.f32 1.0, %v3563
  %v3565 = vrcp.pop %v3549
  %v3566 = vmul.f32 %v3549, %v3565
  %v3567 = vsub.f32 1.0, %v3566
  %v3568 = vmul.f32 %v3565, %v3567
  %v3569 = vadd.f32 %v3565, %v3568
  %vm3570 = vweird.f32 %v3549
  %vm3571 = vweird.f32 %v3565
  %vm3572 = vmor %vm3570, %vm3571
  %v3573 = vsel %vm3572, %v3565, %v3569
  %v3574 = vand.u32 2147483647, %v3549
  %vm3575 = vcmp.eq.f32.partialorder %v3574, 8.507059e+37
  %v3576 = vand.u32 %v3549, 2147483648
  %v3577 = vor.u32 1.1754944e-38, %v3576
  %v3578 = vsel %vm3575, %v3577, %v3573
  %v3579 = vmul.f32 1.0, %v3578
  %v3580 = vtanh.pop %v3540
  %v3581 = vxor.u32 %v3541, 2147483648
  %v3582 = vmul.f32 %v3581, 1.442695
  %v3583 = vpow.pop %v3582
  %v3584 = vadd.f32 %v3583, 1.0
  %v3585 = vrcp.pop %v3584
  %v3586 = vmul.f32 %v3584, %v3585
  %v3587 = vsub.f32 1.0, %v3586
  %v3588 = vmul.f32 %v3585, %v3587
  %v3589 = vadd.f32 %v3585, %v3588
  %vm3590 = vweird.f32 %v3584
  %vm3591 = vweird.f32 %v3585
  %vm3592 = vmor %vm3590, %vm3591
  %v3593 = vsel %vm3592, %v3585, %v3589
  %v3594 = vand.u32 2147483647, %v3584
  %vm3595 = vcmp.eq.f32.partialorder %v3594, 8.507059e+37
  %v3596 = vand.u32 %v3584, 2147483648
  %v3597 = vor.u32 1.1754944e-38, %v3596
  %v3598 = vsel %vm3595, %v3597, %v3593
  %v3599 = vmul.f32 1.0, %v3598
  %v3600 = vmul.f32 %v3579, %v3027
  %v3601 = vmul.f32 %v3564, %v3580
  %v3602 = vadd.f32 %v3600, %v3601
  %v3603 = vtanh.pop %v3602
  %v3604 = vmul.f32 %v3599, %v3603
  %s3605 = scalar_lea.vmem [#allocation3], 32
  %3606 = vst [vmem:[%s3605] sm:$0xff] %v3604
  %v3607 = vld [vmem:[%s3] sm:$0xff]
  %v3608 = vld [vmem:[%s3 + $0x8] sm:$0xff]
  %v3609 = vld [vmem:[%s3 + $0x10] sm:$0xff]
  %v3610 = vld [vmem:[%s3 + $0x18] sm:$0xff]
  %v3611 = vld [vmem:[%s3 + $0x20] sm:$0xff]
  %v3612 = vld [vmem:[%s3 + $0x28] sm:$0xff]
  %v3613 = vld [vmem:[%s3 + $0x30] sm:$0xff]
  %v3614 = vld [vmem:[%s3 + $0x38] sm:$0xff]
  %v3615 = vld [vmem:[%s3 + $0x40] sm:$0xff]
  %v3616 = vld [vmem:[%s3 + $0x48] sm:$0xff]
  %v3617 = vld [vmem:[%s3 + $0x50] sm:$0xff]
  %v3618 = vld [vmem:[%s3 + $0x58] sm:$0xff]
  %v3619 = vld [vmem:[%s3 + $0x60] sm:$0xff]
  %v3620 = vld [vmem:[%s3 + $0x68] sm:$0xff]
  %v3621 = vld [vmem:[%s3 + $0x70] sm:$0xff]
  %v3622 = vld [vmem:[%s3 + $0x78] sm:$0xff]
  %v3623 = vld [vmem:[%s3 + $0x80] sm:$0xff]
  %v3624 = vld [vmem:[%s3 + $0x88] sm:$0xff]
  %v3625 = vld [vmem:[%s3 + $0x90] sm:$0xff]
  %v3626 = vld [vmem:[%s3 + $0x98] sm:$0xff]
  %v3627 = vld [vmem:[%s3 + $0xa0] sm:$0xff]
  %v3628 = vld [vmem:[%s3 + $0xa8] sm:$0xff]
  %v3629 = vld [vmem:[%s3 + $0xb0] sm:$0xff]
  %v3630 = vld [vmem:[%s3 + $0xb8] sm:$0xff]
  %v3631 = vld [vmem:[%s3 + $0xc0] sm:$0xff]
  %v3632 = vld [vmem:[%s3 + $0xc8] sm:$0xff]
  %v3633 = vld [vmem:[%s3 + $0xd0] sm:$0xff]
  %v3634 = vld [vmem:[%s3 + $0xd8] sm:$0xff]
  %v3635 = vld [vmem:[%s3 + $0xe0] sm:$0xff]
  %v3636 = vld [vmem:[%s3 + $0xe8] sm:$0xff]
  %v3637 = vld [vmem:[%s3 + $0xf0] sm:$0xff]
  %v3638 = vld [vmem:[%s3 + $0xf8] sm:$0xff]
  %v3639 = vld [vmem:[%s3 + $0x100] sm:$0xff]
  %v3640 = vld [vmem:[%s3 + $0x108] sm:$0xff]
  %v3641 = vld [vmem:[%s3 + $0x110] sm:$0xff]
  %v3642 = vld [vmem:[%s3 + $0x118] sm:$0xff]
  %v3643 = vld [vmem:[%s3 + $0x120] sm:$0xff]
  %v3644 = vld [vmem:[%s3 + $0x128] sm:$0xff]
  %v3645 = vld [vmem:[%s3 + $0x130] sm:$0xff]
  %v3646 = vld [vmem:[%s3 + $0x138] sm:$0xff]
  %v3647 = vld [vmem:[%s3 + $0x140] sm:$0xff]
  %v3648 = vld [vmem:[%s3 + $0x148] sm:$0xff]
  %v3649 = vld [vmem:[%s3 + $0x150] sm:$0xff]
  %v3650 = vld [vmem:[%s3 + $0x158] sm:$0xff]
  %v3651 = vld [vmem:[%s3 + $0x160] sm:$0xff]
  %v3652 = vld [vmem:[%s3 + $0x168] sm:$0xff]
  %v3653 = vld [vmem:[%s3 + $0x170] sm:$0xff]
  %v3654 = vld [vmem:[%s3 + $0x178] sm:$0xff]
  %v3655 = vld [vmem:[%s3 + $0x180] sm:$0xff]
  %v3656 = vld [vmem:[%s3 + $0x188] sm:$0xff]
  %v3657 = vld [vmem:[%s3 + $0x190] sm:$0xff]
  %v3658 = vld [vmem:[%s3 + $0x198] sm:$0xff]
  %v3659 = vld [vmem:[%s3 + $0x1a0] sm:$0xff]
  %v3660 = vld [vmem:[%s3 + $0x1a8] sm:$0xff]
  %v3661 = vld [vmem:[%s3 + $0x1b0] sm:$0xff]
  %v3662 = vld [vmem:[%s3 + $0x1b8] sm:$0xff]
  %v3663 = vld [vmem:[%s3 + $0x1c0] sm:$0xff]
  %v3664 = vld [vmem:[%s3 + $0x1c8] sm:$0xff]
  %v3665 = vld [vmem:[%s3 + $0x1d0] sm:$0xff]
  %v3666 = vld [vmem:[%s3 + $0x1d8] sm:$0xff]
  %v3667 = vld [vmem:[%s3 + $0x1e0] sm:$0xff]
  %v3668 = vld [vmem:[%s3 + $0x1e8] sm:$0xff]
  %v3669 = vld [vmem:[%s3 + $0x1f0] sm:$0xff]
  %v3670 = vld [vmem:[%s3 + $0x1f8] sm:$0xff]
  %3671 = vmatpush.msra.mxu0 %v3667
  %3672 = vmatpush.msra.mxu0 %v3663
  %3673 = vmatpush.msra.mxu0 %v3659
  %3674 = vmatpush.msra.mxu0 %v3655
  %3675 = vmatpush.msra.mxu0 %v3651
  %3676 = vmatpush.msra.mxu0 %v3647
  %3677 = vmatpush.msra.mxu0 %v3643
  %3678 = vmatpush.msra.mxu0 %v3639
  %3679 = vmatpush.msra.mxu0 %v3635
  %3680 = vmatpush.msra.mxu0 %v3631
  %3681 = vmatpush.msra.mxu0 %v3627
  %3682 = vmatpush.msra.mxu0 %v3623
  %3683 = vmatpush.msra.mxu0 %v3619
  %3684 = vmatpush.msra.mxu0 %v3615
  %3685 = vmatpush.msra.mxu0 %v3611
  %3686 = vmatpush.msra.mxu0 %v3607
  %3687 = vmatmul.f32.gmra.mxu0 %v3604
  %v3688 = vpop.f32.mrf.mxu0
  %v3689 = vadd.f32 %v725, %v3688
  %3690 = vdwg.mxu0
  %3691 = vmatpush.msra.mxu0 %v3668
  %3692 = vmatpush.msra.mxu0 %v3664
  %3693 = vmatpush.msra.mxu0 %v3660
  %3694 = vmatpush.msra.mxu0 %v3656
  %3695 = vmatpush.msra.mxu0 %v3652
  %3696 = vmatpush.msra.mxu0 %v3648
  %3697 = vmatpush.msra.mxu0 %v3644
  %3698 = vmatpush.msra.mxu0 %v3640
  %3699 = vmatpush.msra.mxu0 %v3636
  %3700 = vmatpush.msra.mxu0 %v3632
  %3701 = vmatpush.msra.mxu0 %v3628
  %3702 = vmatpush.msra.mxu0 %v3624
  %3703 = vmatpush.msra.mxu0 %v3620
  %3704 = vmatpush.msra.mxu0 %v3616
  %3705 = vmatpush.msra.mxu0 %v3612
  %3706 = vmatpush.msra.mxu0 %v3608
  %3707 = vmatmul.f32.gmra.mxu0 %v3604
  %v3708 = vpop.f32.mrf.mxu0
  %v3709 = vadd.f32 %v726, %v3708
  %3710 = vdwg.mxu0
  %3711 = vmatpush.msra.mxu0 %v3669
  %3712 = vmatpush.msra.mxu0 %v3665
  %3713 = vmatpush.msra.mxu0 %v3661
  %3714 = vmatpush.msra.mxu0 %v3657
  %3715 = vmatpush.msra.mxu0 %v3653
  %3716 = vmatpush.msra.mxu0 %v3649
  %3717 = vmatpush.msra.mxu0 %v3645
  %3718 = vmatpush.msra.mxu0 %v3641
  %3719 = vmatpush.msra.mxu0 %v3637
  %3720 = vmatpush.msra.mxu0 %v3633
  %3721 = vmatpush.msra.mxu0 %v3629
  %3722 = vmatpush.msra.mxu0 %v3625
  %3723 = vmatpush.msra.mxu0 %v3621
  %3724 = vmatpush.msra.mxu0 %v3617
  %3725 = vmatpush.msra.mxu0 %v3613
  %3726 = vmatpush.msra.mxu0 %v3609
  %3727 = vmatmul.f32.gmra.mxu0 %v3604
  %v3728 = vpop.f32.mrf.mxu0
  %v3729 = vadd.f32 %v727, %v3728
  %3730 = vdwg.mxu0
  %3731 = vmatpush.msra.mxu0 %v3670
  %3732 = vmatpush.msra.mxu0 %v3666
  %3733 = vmatpush.msra.mxu0 %v3662
  %3734 = vmatpush.msra.mxu0 %v3658
  %3735 = vmatpush.msra.mxu0 %v3654
  %3736 = vmatpush.msra.mxu0 %v3650
  %3737 = vmatpush.msra.mxu0 %v3646
  %3738 = vmatpush.msra.mxu0 %v3642
  %3739 = vmatpush.msra.mxu0 %v3638
  %3740 = vmatpush.msra.mxu0 %v3634
  %3741 = vmatpush.msra.mxu0 %v3630
  %3742 = vmatpush.msra.mxu0 %v3626
  %3743 = vmatpush.msra.mxu0 %v3622
  %3744 = vmatpush.msra.mxu0 %v3618
  %3745 = vmatpush.msra.mxu0 %v3614
  %3746 = vmatpush.msra.mxu0 %v3610
  %3747 = vmatmul.f32.gmra.mxu0 %v3604
  %v3748 = vpop.f32.mrf.mxu0
  %v3749 = vadd.f32 %v728, %v3748
  %3750 = vdwg.mxu0
  %s3751 = smul.u32 5, 4
  %s3752 = smul.addr %s3751, 8
  %s3753 = scalar_lea.vmem [#allocation2], %s3752
  %v3754 = vld [vmem:[%s3753] sm:$0xff]
  %v3755 = vld [vmem:[%s3753 + $0x8] sm:$0xff]
  %v3756 = vld [vmem:[%s3753 + $0x10] sm:$0xff]
  %v3757 = vld [vmem:[%s3753 + $0x18] sm:$0xff]
  %v3758 = vadd.f32 %v3754, %v3396
  %v3759 = vadd.f32 %v3755, %v3416
  %v3760 = vadd.f32 %v3756, %v3436
  %v3761 = vadd.f32 %v3757, %v3456
  %v3762 = vxor.u32 %v3758, 2147483648
  %v3763 = vxor.u32 %v3759, 2147483648
  %v3764 = vmul.f32 %v3762, 1.442695
  %v3765 = vpow.pop %v3764
  %v3766 = vmul.f32 %v3763, 1.442695
  %v3767 = vpow.pop %v3766
  %v3768 = vadd.f32 %v3765, 1.0
  %v3769 = vadd.f32 %v3767, 1.0
  %v3770 = vrcp.pop %v3768
  %v3771 = vmul.f32 %v3768, %v3770
  %v3772 = vsub.f32 1.0, %v3771
  %v3773 = vmul.f32 %v3770, %v3772
  %v3774 = vadd.f32 %v3770, %v3773
  %vm3775 = vweird.f32 %v3768
  %vm3776 = vweird.f32 %v3770
  %vm3777 = vmor %vm3775, %vm3776
  %v3778 = vsel %vm3777, %v3770, %v3774
  %v3779 = vand.u32 2147483647, %v3768
  %vm3780 = vcmp.eq.f32.partialorder %v3779, 8.507059e+37
  %v3781 = vand.u32 %v3768, 2147483648
  %v3782 = vor.u32 1.1754944e-38, %v3781
  %v3783 = vsel %vm3780, %v3782, %v3778
  %v3784 = vmul.f32 1.0, %v3783
  %v3785 = vrcp.pop %v3769
  %v3786 = vmul.f32 %v3769, %v3785
  %v3787 = vsub.f32 1.0, %v3786
  %v3788 = vmul.f32 %v3785, %v3787
  %v3789 = vadd.f32 %v3785, %v3788
  %vm3790 = vweird.f32 %v3769
  %vm3791 = vweird.f32 %v3785
  %vm3792 = vmor %vm3790, %vm3791
  %v3793 = vsel %vm3792, %v3785, %v3789
  %v3794 = vand.u32 2147483647, %v3769
  %vm3795 = vcmp.eq.f32.partialorder %v3794, 8.507059e+37
  %v3796 = vand.u32 %v3769, 2147483648
  %v3797 = vor.u32 1.1754944e-38, %v3796
  %v3798 = vsel %vm3795, %v3797, %v3793
  %v3799 = vmul.f32 1.0, %v3798
  %v3800 = vtanh.pop %v3760
  %v3801 = vxor.u32 %v3761, 2147483648
  %v3802 = vmul.f32 %v3801, 1.442695
  %v3803 = vpow.pop %v3802
  %v3804 = vadd.f32 %v3803, 1.0
  %v3805 = vrcp.pop %v3804
  %v3806 = vmul.f32 %v3804, %v3805
  %v3807 = vsub.f32 1.0, %v3806
  %v3808 = vmul.f32 %v3805, %v3807
  %v3809 = vadd.f32 %v3805, %v3808
  %vm3810 = vweird.f32 %v3804
  %vm3811 = vweird.f32 %v3805
  %vm3812 = vmor %vm3810, %vm3811
  %v3813 = vsel %vm3812, %v3805, %v3809
  %v3814 = vand.u32 2147483647, %v3804
  %vm3815 = vcmp.eq.f32.partialorder %v3814, 8.507059e+37
  %v3816 = vand.u32 %v3804, 2147483648
  %v3817 = vor.u32 1.1754944e-38, %v3816
  %v3818 = vsel %vm3815, %v3817, %v3813
  %v3819 = vmul.f32 1.0, %v3818
  %v3820 = vmul.f32 %v3799, %v3247
  %v3821 = vmul.f32 %v3784, %v3800
  %v3822 = vadd.f32 %v3820, %v3821
  %v3823 = vtanh.pop %v3822
  %v3824 = vmul.f32 %v3819, %v3823
  %v3825 = vld [vmem:[%s2] sm:$0xff]
  %v3826 = vld [vmem:[%s2 + $0x8] sm:$0xff]
  %v3827 = vld [vmem:[%s2 + $0x10] sm:$0xff]
  %v3828 = vld [vmem:[%s2 + $0x18] sm:$0xff]
  %v3829 = vld [vmem:[%s2 + $0x20] sm:$0xff]
  %v3830 = vld [vmem:[%s2 + $0x28] sm:$0xff]
  %v3831 = vld [vmem:[%s2 + $0x30] sm:$0xff]
  %v3832 = vld [vmem:[%s2 + $0x38] sm:$0xff]
  %v3833 = vld [vmem:[%s2 + $0x40] sm:$0xff]
  %v3834 = vld [vmem:[%s2 + $0x48] sm:$0xff]
  %v3835 = vld [vmem:[%s2 + $0x50] sm:$0xff]
  %v3836 = vld [vmem:[%s2 + $0x58] sm:$0xff]
  %v3837 = vld [vmem:[%s2 + $0x60] sm:$0xff]
  %v3838 = vld [vmem:[%s2 + $0x68] sm:$0xff]
  %v3839 = vld [vmem:[%s2 + $0x70] sm:$0xff]
  %v3840 = vld [vmem:[%s2 + $0x78] sm:$0xff]
  %v3841 = vld [vmem:[%s2 + $0x80] sm:$0xff]
  %v3842 = vld [vmem:[%s2 + $0x88] sm:$0xff]
  %v3843 = vld [vmem:[%s2 + $0x90] sm:$0xff]
  %v3844 = vld [vmem:[%s2 + $0x98] sm:$0xff]
  %v3845 = vld [vmem:[%s2 + $0xa0] sm:$0xff]
  %v3846 = vld [vmem:[%s2 + $0xa8] sm:$0xff]
  %v3847 = vld [vmem:[%s2 + $0xb0] sm:$0xff]
  %v3848 = vld [vmem:[%s2 + $0xb8] sm:$0xff]
  %v3849 = vld [vmem:[%s2 + $0xc0] sm:$0xff]
  %v3850 = vld [vmem:[%s2 + $0xc8] sm:$0xff]
  %v3851 = vld [vmem:[%s2 + $0xd0] sm:$0xff]
  %v3852 = vld [vmem:[%s2 + $0xd8] sm:$0xff]
  %v3853 = vld [vmem:[%s2 + $0xe0] sm:$0xff]
  %v3854 = vld [vmem:[%s2 + $0xe8] sm:$0xff]
  %v3855 = vld [vmem:[%s2 + $0xf0] sm:$0xff]
  %v3856 = vld [vmem:[%s2 + $0xf8] sm:$0xff]
  %v3857 = vld [vmem:[%s2 + $0x100] sm:$0xff]
  %v3858 = vld [vmem:[%s2 + $0x108] sm:$0xff]
  %v3859 = vld [vmem:[%s2 + $0x110] sm:$0xff]
  %v3860 = vld [vmem:[%s2 + $0x118] sm:$0xff]
  %v3861 = vld [vmem:[%s2 + $0x120] sm:$0xff]
  %v3862 = vld [vmem:[%s2 + $0x128] sm:$0xff]
  %v3863 = vld [vmem:[%s2 + $0x130] sm:$0xff]
  %v3864 = vld [vmem:[%s2 + $0x138] sm:$0xff]
  %v3865 = vld [vmem:[%s2 + $0x140] sm:$0xff]
  %v3866 = vld [vmem:[%s2 + $0x148] sm:$0xff]
  %v3867 = vld [vmem:[%s2 + $0x150] sm:$0xff]
  %v3868 = vld [vmem:[%s2 + $0x158] sm:$0xff]
  %v3869 = vld [vmem:[%s2 + $0x160] sm:$0xff]
  %v3870 = vld [vmem:[%s2 + $0x168] sm:$0xff]
  %v3871 = vld [vmem:[%s2 + $0x170] sm:$0xff]
  %v3872 = vld [vmem:[%s2 + $0x178] sm:$0xff]
  %v3873 = vld [vmem:[%s2 + $0x180] sm:$0xff]
  %v3874 = vld [vmem:[%s2 + $0x188] sm:$0xff]
  %v3875 = vld [vmem:[%s2 + $0x190] sm:$0xff]
  %v3876 = vld [vmem:[%s2 + $0x198] sm:$0xff]
  %v3877 = vld [vmem:[%s2 + $0x1a0] sm:$0xff]
  %v3878 = vld [vmem:[%s2 + $0x1a8] sm:$0xff]
  %v3879 = vld [vmem:[%s2 + $0x1b0] sm:$0xff]
  %v3880 = vld [vmem:[%s2 + $0x1b8] sm:$0xff]
  %v3881 = vld [vmem:[%s2 + $0x1c0] sm:$0xff]
  %v3882 = vld [vmem:[%s2 + $0x1c8] sm:$0xff]
  %v3883 = vld [vmem:[%s2 + $0x1d0] sm:$0xff]
  %v3884 = vld [vmem:[%s2 + $0x1d8] sm:$0xff]
  %v3885 = vld [vmem:[%s2 + $0x1e0] sm:$0xff]
  %v3886 = vld [vmem:[%s2 + $0x1e8] sm:$0xff]
  %v3887 = vld [vmem:[%s2 + $0x1f0] sm:$0xff]
  %v3888 = vld [vmem:[%s2 + $0x1f8] sm:$0xff]
  %v3889 = vld [vmem:[%s2 + $0x200] sm:$0xff]
  %v3890 = vld [vmem:[%s2 + $0x208] sm:$0xff]
  %v3891 = vld [vmem:[%s2 + $0x210] sm:$0xff]
  %v3892 = vld [vmem:[%s2 + $0x218] sm:$0xff]
  %v3893 = vld [vmem:[%s2 + $0x220] sm:$0xff]
  %v3894 = vld [vmem:[%s2 + $0x228] sm:$0xff]
  %v3895 = vld [vmem:[%s2 + $0x230] sm:$0xff]
  %v3896 = vld [vmem:[%s2 + $0x238] sm:$0xff]
  %v3897 = vld [vmem:[%s2 + $0x240] sm:$0xff]
  %v3898 = vld [vmem:[%s2 + $0x248] sm:$0xff]
  %v3899 = vld [vmem:[%s2 + $0x250] sm:$0xff]
  %v3900 = vld [vmem:[%s2 + $0x258] sm:$0xff]
  %v3901 = vld [vmem:[%s2 + $0x260] sm:$0xff]
  %v3902 = vld [vmem:[%s2 + $0x268] sm:$0xff]
  %v3903 = vld [vmem:[%s2 + $0x270] sm:$0xff]
  %v3904 = vld [vmem:[%s2 + $0x278] sm:$0xff]
  %v3905 = vld [vmem:[%s2 + $0x280] sm:$0xff]
  %v3906 = vld [vmem:[%s2 + $0x288] sm:$0xff]
  %v3907 = vld [vmem:[%s2 + $0x290] sm:$0xff]
  %v3908 = vld [vmem:[%s2 + $0x298] sm:$0xff]
  %v3909 = vld [vmem:[%s2 + $0x2a0] sm:$0xff]
  %v3910 = vld [vmem:[%s2 + $0x2a8] sm:$0xff]
  %v3911 = vld [vmem:[%s2 + $0x2b0] sm:$0xff]
  %v3912 = vld [vmem:[%s2 + $0x2b8] sm:$0xff]
  %v3913 = vld [vmem:[%s2 + $0x2c0] sm:$0xff]
  %v3914 = vld [vmem:[%s2 + $0x2c8] sm:$0xff]
  %v3915 = vld [vmem:[%s2 + $0x2d0] sm:$0xff]
  %v3916 = vld [vmem:[%s2 + $0x2d8] sm:$0xff]
  %v3917 = vld [vmem:[%s2 + $0x2e0] sm:$0xff]
  %v3918 = vld [vmem:[%s2 + $0x2e8] sm:$0xff]
  %v3919 = vld [vmem:[%s2 + $0x2f0] sm:$0xff]
  %v3920 = vld [vmem:[%s2 + $0x2f8] sm:$0xff]
  %v3921 = vld [vmem:[%s2 + $0x300] sm:$0xff]
  %v3922 = vld [vmem:[%s2 + $0x308] sm:$0xff]
  %v3923 = vld [vmem:[%s2 + $0x310] sm:$0xff]
  %v3924 = vld [vmem:[%s2 + $0x318] sm:$0xff]
  %v3925 = vld [vmem:[%s2 + $0x320] sm:$0xff]
  %v3926 = vld [vmem:[%s2 + $0x328] sm:$0xff]
  %v3927 = vld [vmem:[%s2 + $0x330] sm:$0xff]
  %v3928 = vld [vmem:[%s2 + $0x338] sm:$0xff]
  %v3929 = vld [vmem:[%s2 + $0x340] sm:$0xff]
  %v3930 = vld [vmem:[%s2 + $0x348] sm:$0xff]
  %v3931 = vld [vmem:[%s2 + $0x350] sm:$0xff]
  %v3932 = vld [vmem:[%s2 + $0x358] sm:$0xff]
  %v3933 = vld [vmem:[%s2 + $0x360] sm:$0xff]
  %v3934 = vld [vmem:[%s2 + $0x368] sm:$0xff]
  %v3935 = vld [vmem:[%s2 + $0x370] sm:$0xff]
  %v3936 = vld [vmem:[%s2 + $0x378] sm:$0xff]
  %v3937 = vld [vmem:[%s2 + $0x380] sm:$0xff]
  %v3938 = vld [vmem:[%s2 + $0x388] sm:$0xff]
  %v3939 = vld [vmem:[%s2 + $0x390] sm:$0xff]
  %v3940 = vld [vmem:[%s2 + $0x398] sm:$0xff]
  %v3941 = vld [vmem:[%s2 + $0x3a0] sm:$0xff]
  %v3942 = vld [vmem:[%s2 + $0x3a8] sm:$0xff]
  %v3943 = vld [vmem:[%s2 + $0x3b0] sm:$0xff]
  %v3944 = vld [vmem:[%s2 + $0x3b8] sm:$0xff]
  %v3945 = vld [vmem:[%s2 + $0x3c0] sm:$0xff]
  %v3946 = vld [vmem:[%s2 + $0x3c8] sm:$0xff]
  %v3947 = vld [vmem:[%s2 + $0x3d0] sm:$0xff]
  %v3948 = vld [vmem:[%s2 + $0x3d8] sm:$0xff]
  %v3949 = vld [vmem:[%s2 + $0x3e0] sm:$0xff]
  %v3950 = vld [vmem:[%s2 + $0x3e8] sm:$0xff]
  %v3951 = vld [vmem:[%s2 + $0x3f0] sm:$0xff]
  %v3952 = vld [vmem:[%s2 + $0x3f8] sm:$0xff]
  %3953 = vmatpush.msra.mxu0 %v3945
  %3954 = vmatpush.msra.mxu0 %v3937
  %3955 = vmatpush.msra.mxu0 %v3929
  %3956 = vmatpush.msra.mxu0 %v3921
  %3957 = vmatpush.msra.mxu0 %v3913
  %3958 = vmatpush.msra.mxu0 %v3905
  %3959 = vmatpush.msra.mxu0 %v3897
  %3960 = vmatpush.msra.mxu0 %v3889
  %3961 = vmatpush.msra.mxu0 %v3881
  %3962 = vmatpush.msra.mxu0 %v3873
  %3963 = vmatpush.msra.mxu0 %v3865
  %3964 = vmatpush.msra.mxu0 %v3857
  %3965 = vmatpush.msra.mxu0 %v3849
  %3966 = vmatpush.msra.mxu0 %v3841
  %3967 = vmatpush.msra.mxu0 %v3833
  %3968 = vmatpush.msra.mxu0 %v3825
  %3969 = vmatmul.f32.gmra.mxu0 %v3824
  %v3970 = vpop.f32.mrf.mxu0
  %v3971 = vadd.f32 0.0, %v3970
  %3972 = vdwg.mxu0
  %3973 = vmatpush.msra.mxu0 %v3946
  %3974 = vmatpush.msra.mxu0 %v3938
  %3975 = vmatpush.msra.mxu0 %v3930
  %3976 = vmatpush.msra.mxu0 %v3922
  %3977 = vmatpush.msra.mxu0 %v3914
  %3978 = vmatpush.msra.mxu0 %v3906
  %3979 = vmatpush.msra.mxu0 %v3898
  %3980 = vmatpush.msra.mxu0 %v3890
  %3981 = vmatpush.msra.mxu0 %v3882
  %3982 = vmatpush.msra.mxu0 %v3874
  %3983 = vmatpush.msra.mxu0 %v3866
  %3984 = vmatpush.msra.mxu0 %v3858
  %3985 = vmatpush.msra.mxu0 %v3850
  %3986 = vmatpush.msra.mxu0 %v3842
  %3987 = vmatpush.msra.mxu0 %v3834
  %3988 = vmatpush.msra.mxu0 %v3826
  %3989 = vmatmul.f32.gmra.mxu0 %v3824
  %v3990 = vpop.f32.mrf.mxu0
  %v3991 = vadd.f32 0.0, %v3990
  %3992 = vdwg.mxu0
  %3993 = vmatpush.msra.mxu0 %v3947
  %3994 = vmatpush.msra.mxu0 %v3939
  %3995 = vmatpush.msra.mxu0 %v3931
  %3996 = vmatpush.msra.mxu0 %v3923
  %3997 = vmatpush.msra.mxu0 %v3915
  %3998 = vmatpush.msra.mxu0 %v3907
  %3999 = vmatpush.msra.mxu0 %v3899
  %4000 = vmatpush.msra.mxu0 %v3891
  %4001 = vmatpush.msra.mxu0 %v3883
  %4002 = vmatpush.msra.mxu0 %v3875
  %4003 = vmatpush.msra.mxu0 %v3867
  %4004 = vmatpush.msra.mxu0 %v3859
  %4005 = vmatpush.msra.mxu0 %v3851
  %4006 = vmatpush.msra.mxu0 %v3843
  %4007 = vmatpush.msra.mxu0 %v3835
  %4008 = vmatpush.msra.mxu0 %v3827
  %4009 = vmatmul.f32.gmra.mxu0 %v3824
  %v4010 = vpop.f32.mrf.mxu0
  %v4011 = vadd.f32 0.0, %v4010
  %4012 = vdwg.mxu0
  %4013 = vmatpush.msra.mxu0 %v3948
  %4014 = vmatpush.msra.mxu0 %v3940
  %4015 = vmatpush.msra.mxu0 %v3932
  %4016 = vmatpush.msra.mxu0 %v3924
  %4017 = vmatpush.msra.mxu0 %v3916
  %4018 = vmatpush.msra.mxu0 %v3908
  %4019 = vmatpush.msra.mxu0 %v3900
  %4020 = vmatpush.msra.mxu0 %v3892
  %4021 = vmatpush.msra.mxu0 %v3884
  %4022 = vmatpush.msra.mxu0 %v3876
  %4023 = vmatpush.msra.mxu0 %v3868
  %4024 = vmatpush.msra.mxu0 %v3860
  %4025 = vmatpush.msra.mxu0 %v3852
  %4026 = vmatpush.msra.mxu0 %v3844
  %4027 = vmatpush.msra.mxu0 %v3836
  %4028 = vmatpush.msra.mxu0 %v3828
  %4029 = vmatmul.f32.gmra.mxu0 %v3824
  %v4030 = vpop.f32.mrf.mxu0
  %v4031 = vadd.f32 0.0, %v4030
  %4032 = vdwg.mxu0
  %4033 = vmatpush.msra.mxu0 %v3949
  %4034 = vmatpush.msra.mxu0 %v3941
  %4035 = vmatpush.msra.mxu0 %v3933
  %4036 = vmatpush.msra.mxu0 %v3925
  %4037 = vmatpush.msra.mxu0 %v3917
  %4038 = vmatpush.msra.mxu0 %v3909
  %4039 = vmatpush.msra.mxu0 %v3901
  %4040 = vmatpush.msra.mxu0 %v3893
  %4041 = vmatpush.msra.mxu0 %v3885
  %4042 = vmatpush.msra.mxu0 %v3877
  %4043 = vmatpush.msra.mxu0 %v3869
  %4044 = vmatpush.msra.mxu0 %v3861
  %4045 = vmatpush.msra.mxu0 %v3853
  %4046 = vmatpush.msra.mxu0 %v3845
  %4047 = vmatpush.msra.mxu0 %v3837
  %4048 = vmatpush.msra.mxu0 %v3829
  %4049 = vmatmul.f32.gmra.mxu0 %v3824
  %v4050 = vpop.f32.mrf.mxu0
  %v4051 = vadd.f32 0.0, %v4050
  %4052 = vdwg.mxu0
  %4053 = vmatpush.msra.mxu0 %v3950
  %4054 = vmatpush.msra.mxu0 %v3942
  %4055 = vmatpush.msra.mxu0 %v3934
  %4056 = vmatpush.msra.mxu0 %v3926
  %4057 = vmatpush.msra.mxu0 %v3918
  %4058 = vmatpush.msra.mxu0 %v3910
  %4059 = vmatpush.msra.mxu0 %v3902
  %4060 = vmatpush.msra.mxu0 %v3894
  %4061 = vmatpush.msra.mxu0 %v3886
  %4062 = vmatpush.msra.mxu0 %v3878
  %4063 = vmatpush.msra.mxu0 %v3870
  %4064 = vmatpush.msra.mxu0 %v3862
  %4065 = vmatpush.msra.mxu0 %v3854
  %4066 = vmatpush.msra.mxu0 %v3846
  %4067 = vmatpush.msra.mxu0 %v3838
  %4068 = vmatpush.msra.mxu0 %v3830
  %4069 = vmatmul.f32.gmra.mxu0 %v3824
  %v4070 = vpop.f32.mrf.mxu0
  %v4071 = vadd.f32 0.0, %v4070
  %4072 = vdwg.mxu0
  %4073 = vmatpush.msra.mxu0 %v3951
  %4074 = vmatpush.msra.mxu0 %v3943
  %4075 = vmatpush.msra.mxu0 %v3935
  %4076 = vmatpush.msra.mxu0 %v3927
  %4077 = vmatpush.msra.mxu0 %v3919
  %4078 = vmatpush.msra.mxu0 %v3911
  %4079 = vmatpush.msra.mxu0 %v3903
  %4080 = vmatpush.msra.mxu0 %v3895
  %4081 = vmatpush.msra.mxu0 %v3887
  %4082 = vmatpush.msra.mxu0 %v3879
  %4083 = vmatpush.msra.mxu0 %v3871
  %4084 = vmatpush.msra.mxu0 %v3863
  %4085 = vmatpush.msra.mxu0 %v3855
  %4086 = vmatpush.msra.mxu0 %v3847
  %4087 = vmatpush.msra.mxu0 %v3839
  %4088 = vmatpush.msra.mxu0 %v3831
  %4089 = vmatmul.f32.gmra.mxu0 %v3824
  %v4090 = vpop.f32.mrf.mxu0
  %v4091 = vadd.f32 0.0, %v4090
  %4092 = vdwg.mxu0
  %4093 = vmatpush.msra.mxu0 %v3952
  %4094 = vmatpush.msra.mxu0 %v3944
  %4095 = vmatpush.msra.mxu0 %v3936
  %4096 = vmatpush.msra.mxu0 %v3928
  %4097 = vmatpush.msra.mxu0 %v3920
  %4098 = vmatpush.msra.mxu0 %v3912
  %4099 = vmatpush.msra.mxu0 %v3904
  %4100 = vmatpush.msra.mxu0 %v3896
  %4101 = vmatpush.msra.mxu0 %v3888
  %4102 = vmatpush.msra.mxu0 %v3880
  %4103 = vmatpush.msra.mxu0 %v3872
  %4104 = vmatpush.msra.mxu0 %v3864
  %4105 = vmatpush.msra.mxu0 %v3856
  %4106 = vmatpush.msra.mxu0 %v3848
  %4107 = vmatpush.msra.mxu0 %v3840
  %4108 = vmatpush.msra.mxu0 %v3832
  %4109 = vmatmul.f32.gmra.mxu0 %v3824
  %v4110 = vpop.f32.mrf.mxu0
  %v4111 = vadd.f32 0.0, %v4110
  %4112 = vdwg.mxu0
  %v4113 = vadd.f32 %v3689, %v4051
  %v4114 = vadd.f32 %v3709, %v4071
  %v4115 = vadd.f32 %v3729, %v4091
  %v4116 = vadd.f32 %v3749, %v4111
  %v4117 = vxor.u32 %v4113, 2147483648
  %v4118 = vxor.u32 %v4114, 2147483648
  %v4119 = vmul.f32 %v4117, 1.442695
  %v4120 = vpow.pop %v4119
  %v4121 = vmul.f32 %v4118, 1.442695
  %v4122 = vpow.pop %v4121
  %v4123 = vadd.f32 %v4120, 1.0
  %v4124 = vadd.f32 %v4122, 1.0
  %v4125 = vrcp.pop %v4123
  %v4126 = vmul.f32 %v4123, %v4125
  %v4127 = vsub.f32 1.0, %v4126
  %v4128 = vmul.f32 %v4125, %v4127
  %v4129 = vadd.f32 %v4125, %v4128
  %vm4130 = vweird.f32 %v4123
  %vm4131 = vweird.f32 %v4125
  %vm4132 = vmor %vm4130, %vm4131
  %v4133 = vsel %vm4132, %v4125, %v4129
  %v4134 = vand.u32 2147483647, %v4123
  %vm4135 = vcmp.eq.f32.partialorder %v4134, 8.507059e+37
  %v4136 = vand.u32 %v4123, 2147483648
  %v4137 = vor.u32 1.1754944e-38, %v4136
  %v4138 = vsel %vm4135, %v4137, %v4133
  %v4139 = vmul.f32 1.0, %v4138
  %v4140 = vrcp.pop %v4124
  %v4141 = vmul.f32 %v4124, %v4140
  %v4142 = vsub.f32 1.0, %v4141
  %v4143 = vmul.f32 %v4140, %v4142
  %v4144 = vadd.f32 %v4140, %v4143
  %vm4145 = vweird.f32 %v4124
  %vm4146 = vweird.f32 %v4140
  %vm4147 = vmor %vm4145, %vm4146
  %v4148 = vsel %vm4147, %v4140, %v4144
  %v4149 = vand.u32 2147483647, %v4124
  %vm4150 = vcmp.eq.f32.partialorder %v4149, 8.507059e+37
  %v4151 = vand.u32 %v4124, 2147483648
  %v4152 = vor.u32 1.1754944e-38, %v4151
  %v4153 = vsel %vm4150, %v4152, %v4148
  %v4154 = vmul.f32 1.0, %v4153
  %v4155 = vtanh.pop %v4115
  %v4156 = vxor.u32 %v4116, 2147483648
  %v4157 = vmul.f32 %v4156, 1.442695
  %v4158 = vpow.pop %v4157
  %v4159 = vadd.f32 %v4158, 1.0
  %v4160 = vrcp.pop %v4159
  %v4161 = vmul.f32 %v4159, %v4160
  %v4162 = vsub.f32 1.0, %v4161
  %v4163 = vmul.f32 %v4160, %v4162
  %v4164 = vadd.f32 %v4160, %v4163
  %vm4165 = vweird.f32 %v4159
  %vm4166 = vweird.f32 %v4160
  %vm4167 = vmor %vm4165, %vm4166
  %v4168 = vsel %vm4167, %v4160, %v4164
  %v4169 = vand.u32 2147483647, %v4159
  %vm4170 = vcmp.eq.f32.partialorder %v4169, 8.507059e+37
  %v4171 = vand.u32 %v4159, 2147483648
  %v4172 = vor.u32 1.1754944e-38, %v4171
  %v4173 = vsel %vm4170, %v4172, %v4168
  %v4174 = vmul.f32 1.0, %v4173
  %v4175 = vmul.f32 %v4154, %v3602
  %v4176 = vmul.f32 %v4139, %v4155
  %v4177 = vadd.f32 %v4175, %v4176
  %v4178 = vtanh.pop %v4177
  %v4179 = vmul.f32 %v4174, %v4178
  %s4180 = scalar_lea.vmem [#allocation3], 40
  %4181 = vst [vmem:[%s4180] sm:$0xff] %v4179
  %v4182 = vld [vmem:[%s3] sm:$0xff]
  %v4183 = vld [vmem:[%s3 + $0x8] sm:$0xff]
  %v4184 = vld [vmem:[%s3 + $0x10] sm:$0xff]
  %v4185 = vld [vmem:[%s3 + $0x18] sm:$0xff]
  %v4186 = vld [vmem:[%s3 + $0x20] sm:$0xff]
  %v4187 = vld [vmem:[%s3 + $0x28] sm:$0xff]
  %v4188 = vld [vmem:[%s3 + $0x30] sm:$0xff]
  %v4189 = vld [vmem:[%s3 + $0x38] sm:$0xff]
  %v4190 = vld [vmem:[%s3 + $0x40] sm:$0xff]
  %v4191 = vld [vmem:[%s3 + $0x48] sm:$0xff]
  %v4192 = vld [vmem:[%s3 + $0x50] sm:$0xff]
  %v4193 = vld [vmem:[%s3 + $0x58] sm:$0xff]
  %v4194 = vld [vmem:[%s3 + $0x60] sm:$0xff]
  %v4195 = vld [vmem:[%s3 + $0x68] sm:$0xff]
  %v4196 = vld [vmem:[%s3 + $0x70] sm:$0xff]
  %v4197 = vld [vmem:[%s3 + $0x78] sm:$0xff]
  %v4198 = vld [vmem:[%s3 + $0x80] sm:$0xff]
  %v4199 = vld [vmem:[%s3 + $0x88] sm:$0xff]
  %v4200 = vld [vmem:[%s3 + $0x90] sm:$0xff]
  %v4201 = vld [vmem:[%s3 + $0x98] sm:$0xff]
  %v4202 = vld [vmem:[%s3 + $0xa0] sm:$0xff]
  %v4203 = vld [vmem:[%s3 + $0xa8] sm:$0xff]
  %v4204 = vld [vmem:[%s3 + $0xb0] sm:$0xff]
  %v4205 = vld [vmem:[%s3 + $0xb8] sm:$0xff]
  %v4206 = vld [vmem:[%s3 + $0xc0] sm:$0xff]
  %v4207 = vld [vmem:[%s3 + $0xc8] sm:$0xff]
  %v4208 = vld [vmem:[%s3 + $0xd0] sm:$0xff]
  %v4209 = vld [vmem:[%s3 + $0xd8] sm:$0xff]
  %v4210 = vld [vmem:[%s3 + $0xe0] sm:$0xff]
  %v4211 = vld [vmem:[%s3 + $0xe8] sm:$0xff]
  %v4212 = vld [vmem:[%s3 + $0xf0] sm:$0xff]
  %v4213 = vld [vmem:[%s3 + $0xf8] sm:$0xff]
  %v4214 = vld [vmem:[%s3 + $0x100] sm:$0xff]
  %v4215 = vld [vmem:[%s3 + $0x108] sm:$0xff]
  %v4216 = vld [vmem:[%s3 + $0x110] sm:$0xff]
  %v4217 = vld [vmem:[%s3 + $0x118] sm:$0xff]
  %v4218 = vld [vmem:[%s3 + $0x120] sm:$0xff]
  %v4219 = vld [vmem:[%s3 + $0x128] sm:$0xff]
  %v4220 = vld [vmem:[%s3 + $0x130] sm:$0xff]
  %v4221 = vld [vmem:[%s3 + $0x138] sm:$0xff]
  %v4222 = vld [vmem:[%s3 + $0x140] sm:$0xff]
  %v4223 = vld [vmem:[%s3 + $0x148] sm:$0xff]
  %v4224 = vld [vmem:[%s3 + $0x150] sm:$0xff]
  %v4225 = vld [vmem:[%s3 + $0x158] sm:$0xff]
  %v4226 = vld [vmem:[%s3 + $0x160] sm:$0xff]
  %v4227 = vld [vmem:[%s3 + $0x168] sm:$0xff]
  %v4228 = vld [vmem:[%s3 + $0x170] sm:$0xff]
  %v4229 = vld [vmem:[%s3 + $0x178] sm:$0xff]
  %v4230 = vld [vmem:[%s3 + $0x180] sm:$0xff]
  %v4231 = vld [vmem:[%s3 + $0x188] sm:$0xff]
  %v4232 = vld [vmem:[%s3 + $0x190] sm:$0xff]
  %v4233 = vld [vmem:[%s3 + $0x198] sm:$0xff]
  %v4234 = vld [vmem:[%s3 + $0x1a0] sm:$0xff]
  %v4235 = vld [vmem:[%s3 + $0x1a8] sm:$0xff]
  %v4236 = vld [vmem:[%s3 + $0x1b0] sm:$0xff]
  %v4237 = vld [vmem:[%s3 + $0x1b8] sm:$0xff]
  %v4238 = vld [vmem:[%s3 + $0x1c0] sm:$0xff]
  %v4239 = vld [vmem:[%s3 + $0x1c8] sm:$0xff]
  %v4240 = vld [vmem:[%s3 + $0x1d0] sm:$0xff]
  %v4241 = vld [vmem:[%s3 + $0x1d8] sm:$0xff]
  %v4242 = vld [vmem:[%s3 + $0x1e0] sm:$0xff]
  %v4243 = vld [vmem:[%s3 + $0x1e8] sm:$0xff]
  %v4244 = vld [vmem:[%s3 + $0x1f0] sm:$0xff]
  %v4245 = vld [vmem:[%s3 + $0x1f8] sm:$0xff]
  %4246 = vmatpush.msra.mxu0 %v4242
  %4247 = vmatpush.msra.mxu0 %v4238
  %4248 = vmatpush.msra.mxu0 %v4234
  %4249 = vmatpush.msra.mxu0 %v4230
  %4250 = vmatpush.msra.mxu0 %v4226
  %4251 = vmatpush.msra.mxu0 %v4222
  %4252 = vmatpush.msra.mxu0 %v4218
  %4253 = vmatpush.msra.mxu0 %v4214
  %4254 = vmatpush.msra.mxu0 %v4210
  %4255 = vmatpush.msra.mxu0 %v4206
  %4256 = vmatpush.msra.mxu0 %v4202
  %4257 = vmatpush.msra.mxu0 %v4198
  %4258 = vmatpush.msra.mxu0 %v4194
  %4259 = vmatpush.msra.mxu0 %v4190
  %4260 = vmatpush.msra.mxu0 %v4186
  %4261 = vmatpush.msra.mxu0 %v4182
  %4262 = vmatmul.f32.gmra.mxu0 %v4179
  %v4263 = vpop.f32.mrf.mxu0
  %v4264 = vadd.f32 %v725, %v4263
  %4265 = vdwg.mxu0
  %4266 = vmatpush.msra.mxu0 %v4243
  %4267 = vmatpush.msra.mxu0 %v4239
  %4268 = vmatpush.msra.mxu0 %v4235
  %4269 = vmatpush.msra.mxu0 %v4231
  %4270 = vmatpush.msra.mxu0 %v4227
  %4271 = vmatpush.msra.mxu0 %v4223
  %4272 = vmatpush.msra.mxu0 %v4219
  %4273 = vmatpush.msra.mxu0 %v4215
  %4274 = vmatpush.msra.mxu0 %v4211
  %4275 = vmatpush.msra.mxu0 %v4207
  %4276 = vmatpush.msra.mxu0 %v4203
  %4277 = vmatpush.msra.mxu0 %v4199
  %4278 = vmatpush.msra.mxu0 %v4195
  %4279 = vmatpush.msra.mxu0 %v4191
  %4280 = vmatpush.msra.mxu0 %v4187
  %4281 = vmatpush.msra.mxu0 %v4183
  %4282 = vmatmul.f32.gmra.mxu0 %v4179
  %v4283 = vpop.f32.mrf.mxu0
  %v4284 = vadd.f32 %v726, %v4283
  %4285 = vdwg.mxu0
  %4286 = vmatpush.msra.mxu0 %v4244
  %4287 = vmatpush.msra.mxu0 %v4240
  %4288 = vmatpush.msra.mxu0 %v4236
  %4289 = vmatpush.msra.mxu0 %v4232
  %4290 = vmatpush.msra.mxu0 %v4228
  %4291 = vmatpush.msra.mxu0 %v4224
  %4292 = vmatpush.msra.mxu0 %v4220
  %4293 = vmatpush.msra.mxu0 %v4216
  %4294 = vmatpush.msra.mxu0 %v4212
  %4295 = vmatpush.msra.mxu0 %v4208
  %4296 = vmatpush.msra.mxu0 %v4204
  %4297 = vmatpush.msra.mxu0 %v4200
  %4298 = vmatpush.msra.mxu0 %v4196
  %4299 = vmatpush.msra.mxu0 %v4192
  %4300 = vmatpush.msra.mxu0 %v4188
  %4301 = vmatpush.msra.mxu0 %v4184
  %4302 = vmatmul.f32.gmra.mxu0 %v4179
  %v4303 = vpop.f32.mrf.mxu0
  %v4304 = vadd.f32 %v727, %v4303
  %4305 = vdwg.mxu0
  %4306 = vmatpush.msra.mxu0 %v4245
  %4307 = vmatpush.msra.mxu0 %v4241
  %4308 = vmatpush.msra.mxu0 %v4237
  %4309 = vmatpush.msra.mxu0 %v4233
  %4310 = vmatpush.msra.mxu0 %v4229
  %4311 = vmatpush.msra.mxu0 %v4225
  %4312 = vmatpush.msra.mxu0 %v4221
  %4313 = vmatpush.msra.mxu0 %v4217
  %4314 = vmatpush.msra.mxu0 %v4213
  %4315 = vmatpush.msra.mxu0 %v4209
  %4316 = vmatpush.msra.mxu0 %v4205
  %4317 = vmatpush.msra.mxu0 %v4201
  %4318 = vmatpush.msra.mxu0 %v4197
  %4319 = vmatpush.msra.mxu0 %v4193
  %4320 = vmatpush.msra.mxu0 %v4189
  %4321 = vmatpush.msra.mxu0 %v4185
  %4322 = vmatmul.f32.gmra.mxu0 %v4179
  %v4323 = vpop.f32.mrf.mxu0
  %v4324 = vadd.f32 %v728, %v4323
  %4325 = vdwg.mxu0
  %s4326 = smul.u32 6, 4
  %s4327 = smul.addr %s4326, 8
  %s4328 = scalar_lea.vmem [#allocation2], %s4327
  %v4329 = vld [vmem:[%s4328] sm:$0xff]
  %v4330 = vld [vmem:[%s4328 + $0x8] sm:$0xff]
  %v4331 = vld [vmem:[%s4328 + $0x10] sm:$0xff]
  %v4332 = vld [vmem:[%s4328 + $0x18] sm:$0xff]
  %v4333 = vadd.f32 %v4329, %v3971
  %v4334 = vadd.f32 %v4330, %v3991
  %v4335 = vadd.f32 %v4331, %v4011
  %v4336 = vadd.f32 %v4332, %v4031
  %v4337 = vxor.u32 %v4333, 2147483648
  %v4338 = vxor.u32 %v4334, 2147483648
  %v4339 = vmul.f32 %v4337, 1.442695
  %v4340 = vpow.pop %v4339
  %v4341 = vmul.f32 %v4338, 1.442695
  %v4342 = vpow.pop %v4341
  %v4343 = vadd.f32 %v4340, 1.0
  %v4344 = vadd.f32 %v4342, 1.0
  %v4345 = vrcp.pop %v4343
  %v4346 = vmul.f32 %v4343, %v4345
  %v4347 = vsub.f32 1.0, %v4346
  %v4348 = vmul.f32 %v4345, %v4347
  %v4349 = vadd.f32 %v4345, %v4348
  %vm4350 = vweird.f32 %v4343
  %vm4351 = vweird.f32 %v4345
  %vm4352 = vmor %vm4350, %vm4351
  %v4353 = vsel %vm4352, %v4345, %v4349
  %v4354 = vand.u32 2147483647, %v4343
  %vm4355 = vcmp.eq.f32.partialorder %v4354, 8.507059e+37
  %v4356 = vand.u32 %v4343, 2147483648
  %v4357 = vor.u32 1.1754944e-38, %v4356
  %v4358 = vsel %vm4355, %v4357, %v4353
  %v4359 = vmul.f32 1.0, %v4358
  %v4360 = vrcp.pop %v4344
  %v4361 = vmul.f32 %v4344, %v4360
  %v4362 = vsub.f32 1.0, %v4361
  %v4363 = vmul.f32 %v4360, %v4362
  %v4364 = vadd.f32 %v4360, %v4363
  %vm4365 = vweird.f32 %v4344
  %vm4366 = vweird.f32 %v4360
  %vm4367 = vmor %vm4365, %vm4366
  %v4368 = vsel %vm4367, %v4360, %v4364
  %v4369 = vand.u32 2147483647, %v4344
  %vm4370 = vcmp.eq.f32.partialorder %v4369, 8.507059e+37
  %v4371 = vand.u32 %v4344, 2147483648
  %v4372 = vor.u32 1.1754944e-38, %v4371
  %v4373 = vsel %vm4370, %v4372, %v4368
  %v4374 = vmul.f32 1.0, %v4373
  %v4375 = vtanh.pop %v4335
  %v4376 = vxor.u32 %v4336, 2147483648
  %v4377 = vmul.f32 %v4376, 1.442695
  %v4378 = vpow.pop %v4377
  %v4379 = vadd.f32 %v4378, 1.0
  %v4380 = vrcp.pop %v4379
  %v4381 = vmul.f32 %v4379, %v4380
  %v4382 = vsub.f32 1.0, %v4381
  %v4383 = vmul.f32 %v4380, %v4382
  %v4384 = vadd.f32 %v4380, %v4383
  %vm4385 = vweird.f32 %v4379
  %vm4386 = vweird.f32 %v4380
  %vm4387 = vmor %vm4385, %vm4386
  %v4388 = vsel %vm4387, %v4380, %v4384
  %v4389 = vand.u32 2147483647, %v4379
  %vm4390 = vcmp.eq.f32.partialorder %v4389, 8.507059e+37
  %v4391 = vand.u32 %v4379, 2147483648
  %v4392 = vor.u32 1.1754944e-38, %v4391
  %v4393 = vsel %vm4390, %v4392, %v4388
  %v4394 = vmul.f32 1.0, %v4393
  %v4395 = vmul.f32 %v4374, %v3822
  %v4396 = vmul.f32 %v4359, %v4375
  %v4397 = vadd.f32 %v4395, %v4396
  %v4398 = vtanh.pop %v4397
  %v4399 = vmul.f32 %v4394, %v4398
  %v4400 = vld [vmem:[%s2] sm:$0xff]
  %v4401 = vld [vmem:[%s2 + $0x8] sm:$0xff]
  %v4402 = vld [vmem:[%s2 + $0x10] sm:$0xff]
  %v4403 = vld [vmem:[%s2 + $0x18] sm:$0xff]
  %v4404 = vld [vmem:[%s2 + $0x20] sm:$0xff]
  %v4405 = vld [vmem:[%s2 + $0x28] sm:$0xff]
  %v4406 = vld [vmem:[%s2 + $0x30] sm:$0xff]
  %v4407 = vld [vmem:[%s2 + $0x38] sm:$0xff]
  %v4408 = vld [vmem:[%s2 + $0x40] sm:$0xff]
  %v4409 = vld [vmem:[%s2 + $0x48] sm:$0xff]
  %v4410 = vld [vmem:[%s2 + $0x50] sm:$0xff]
  %v4411 = vld [vmem:[%s2 + $0x58] sm:$0xff]
  %v4412 = vld [vmem:[%s2 + $0x60] sm:$0xff]
  %v4413 = vld [vmem:[%s2 + $0x68] sm:$0xff]
  %v4414 = vld [vmem:[%s2 + $0x70] sm:$0xff]
  %v4415 = vld [vmem:[%s2 + $0x78] sm:$0xff]
  %v4416 = vld [vmem:[%s2 + $0x80] sm:$0xff]
  %v4417 = vld [vmem:[%s2 + $0x88] sm:$0xff]
  %v4418 = vld [vmem:[%s2 + $0x90] sm:$0xff]
  %v4419 = vld [vmem:[%s2 + $0x98] sm:$0xff]
  %v4420 = vld [vmem:[%s2 + $0xa0] sm:$0xff]
  %v4421 = vld [vmem:[%s2 + $0xa8] sm:$0xff]
  %v4422 = vld [vmem:[%s2 + $0xb0] sm:$0xff]
  %v4423 = vld [vmem:[%s2 + $0xb8] sm:$0xff]
  %v4424 = vld [vmem:[%s2 + $0xc0] sm:$0xff]
  %v4425 = vld [vmem:[%s2 + $0xc8] sm:$0xff]
  %v4426 = vld [vmem:[%s2 + $0xd0] sm:$0xff]
  %v4427 = vld [vmem:[%s2 + $0xd8] sm:$0xff]
  %v4428 = vld [vmem:[%s2 + $0xe0] sm:$0xff]
  %v4429 = vld [vmem:[%s2 + $0xe8] sm:$0xff]
  %v4430 = vld [vmem:[%s2 + $0xf0] sm:$0xff]
  %v4431 = vld [vmem:[%s2 + $0xf8] sm:$0xff]
  %v4432 = vld [vmem:[%s2 + $0x100] sm:$0xff]
  %v4433 = vld [vmem:[%s2 + $0x108] sm:$0xff]
  %v4434 = vld [vmem:[%s2 + $0x110] sm:$0xff]
  %v4435 = vld [vmem:[%s2 + $0x118] sm:$0xff]
  %v4436 = vld [vmem:[%s2 + $0x120] sm:$0xff]
  %v4437 = vld [vmem:[%s2 + $0x128] sm:$0xff]
  %v4438 = vld [vmem:[%s2 + $0x130] sm:$0xff]
  %v4439 = vld [vmem:[%s2 + $0x138] sm:$0xff]
  %v4440 = vld [vmem:[%s2 + $0x140] sm:$0xff]
  %v4441 = vld [vmem:[%s2 + $0x148] sm:$0xff]
  %v4442 = vld [vmem:[%s2 + $0x150] sm:$0xff]
  %v4443 = vld [vmem:[%s2 + $0x158] sm:$0xff]
  %v4444 = vld [vmem:[%s2 + $0x160] sm:$0xff]
  %v4445 = vld [vmem:[%s2 + $0x168] sm:$0xff]
  %v4446 = vld [vmem:[%s2 + $0x170] sm:$0xff]
  %v4447 = vld [vmem:[%s2 + $0x178] sm:$0xff]
  %v4448 = vld [vmem:[%s2 + $0x180] sm:$0xff]
  %v4449 = vld [vmem:[%s2 + $0x188] sm:$0xff]
  %v4450 = vld [vmem:[%s2 + $0x190] sm:$0xff]
  %v4451 = vld [vmem:[%s2 + $0x198] sm:$0xff]
  %v4452 = vld [vmem:[%s2 + $0x1a0] sm:$0xff]
  %v4453 = vld [vmem:[%s2 + $0x1a8] sm:$0xff]
  %v4454 = vld [vmem:[%s2 + $0x1b0] sm:$0xff]
  %v4455 = vld [vmem:[%s2 + $0x1b8] sm:$0xff]
  %v4456 = vld [vmem:[%s2 + $0x1c0] sm:$0xff]
  %v4457 = vld [vmem:[%s2 + $0x1c8] sm:$0xff]
  %v4458 = vld [vmem:[%s2 + $0x1d0] sm:$0xff]
  %v4459 = vld [vmem:[%s2 + $0x1d8] sm:$0xff]
  %v4460 = vld [vmem:[%s2 + $0x1e0] sm:$0xff]
  %v4461 = vld [vmem:[%s2 + $0x1e8] sm:$0xff]
  %v4462 = vld [vmem:[%s2 + $0x1f0] sm:$0xff]
  %v4463 = vld [vmem:[%s2 + $0x1f8] sm:$0xff]
  %v4464 = vld [vmem:[%s2 + $0x200] sm:$0xff]
  %v4465 = vld [vmem:[%s2 + $0x208] sm:$0xff]
  %v4466 = vld [vmem:[%s2 + $0x210] sm:$0xff]
  %v4467 = vld [vmem:[%s2 + $0x218] sm:$0xff]
  %v4468 = vld [vmem:[%s2 + $0x220] sm:$0xff]
  %v4469 = vld [vmem:[%s2 + $0x228] sm:$0xff]
  %v4470 = vld [vmem:[%s2 + $0x230] sm:$0xff]
  %v4471 = vld [vmem:[%s2 + $0x238] sm:$0xff]
  %v4472 = vld [vmem:[%s2 + $0x240] sm:$0xff]
  %v4473 = vld [vmem:[%s2 + $0x248] sm:$0xff]
  %v4474 = vld [vmem:[%s2 + $0x250] sm:$0xff]
  %v4475 = vld [vmem:[%s2 + $0x258] sm:$0xff]
  %v4476 = vld [vmem:[%s2 + $0x260] sm:$0xff]
  %v4477 = vld [vmem:[%s2 + $0x268] sm:$0xff]
  %v4478 = vld [vmem:[%s2 + $0x270] sm:$0xff]
  %v4479 = vld [vmem:[%s2 + $0x278] sm:$0xff]
  %v4480 = vld [vmem:[%s2 + $0x280] sm:$0xff]
  %v4481 = vld [vmem:[%s2 + $0x288] sm:$0xff]
  %v4482 = vld [vmem:[%s2 + $0x290] sm:$0xff]
  %v4483 = vld [vmem:[%s2 + $0x298] sm:$0xff]
  %v4484 = vld [vmem:[%s2 + $0x2a0] sm:$0xff]
  %v4485 = vld [vmem:[%s2 + $0x2a8] sm:$0xff]
  %v4486 = vld [vmem:[%s2 + $0x2b0] sm:$0xff]
  %v4487 = vld [vmem:[%s2 + $0x2b8] sm:$0xff]
  %v4488 = vld [vmem:[%s2 + $0x2c0] sm:$0xff]
  %v4489 = vld [vmem:[%s2 + $0x2c8] sm:$0xff]
  %v4490 = vld [vmem:[%s2 + $0x2d0] sm:$0xff]
  %v4491 = vld [vmem:[%s2 + $0x2d8] sm:$0xff]
  %v4492 = vld [vmem:[%s2 + $0x2e0] sm:$0xff]
  %v4493 = vld [vmem:[%s2 + $0x2e8] sm:$0xff]
  %v4494 = vld [vmem:[%s2 + $0x2f0] sm:$0xff]
  %v4495 = vld [vmem:[%s2 + $0x2f8] sm:$0xff]
  %v4496 = vld [vmem:[%s2 + $0x300] sm:$0xff]
  %v4497 = vld [vmem:[%s2 + $0x308] sm:$0xff]
  %v4498 = vld [vmem:[%s2 + $0x310] sm:$0xff]
  %v4499 = vld [vmem:[%s2 + $0x318] sm:$0xff]
  %v4500 = vld [vmem:[%s2 + $0x320] sm:$0xff]
  %v4501 = vld [vmem:[%s2 + $0x328] sm:$0xff]
  %v4502 = vld [vmem:[%s2 + $0x330] sm:$0xff]
  %v4503 = vld [vmem:[%s2 + $0x338] sm:$0xff]
  %v4504 = vld [vmem:[%s2 + $0x340] sm:$0xff]
  %v4505 = vld [vmem:[%s2 + $0x348] sm:$0xff]
  %v4506 = vld [vmem:[%s2 + $0x350] sm:$0xff]
  %v4507 = vld [vmem:[%s2 + $0x358] sm:$0xff]
  %v4508 = vld [vmem:[%s2 + $0x360] sm:$0xff]
  %v4509 = vld [vmem:[%s2 + $0x368] sm:$0xff]
  %v4510 = vld [vmem:[%s2 + $0x370] sm:$0xff]
  %v4511 = vld [vmem:[%s2 + $0x378] sm:$0xff]
  %v4512 = vld [vmem:[%s2 + $0x380] sm:$0xff]
  %v4513 = vld [vmem:[%s2 + $0x388] sm:$0xff]
  %v4514 = vld [vmem:[%s2 + $0x390] sm:$0xff]
  %v4515 = vld [vmem:[%s2 + $0x398] sm:$0xff]
  %v4516 = vld [vmem:[%s2 + $0x3a0] sm:$0xff]
  %v4517 = vld [vmem:[%s2 + $0x3a8] sm:$0xff]
  %v4518 = vld [vmem:[%s2 + $0x3b0] sm:$0xff]
  %v4519 = vld [vmem:[%s2 + $0x3b8] sm:$0xff]
  %v4520 = vld [vmem:[%s2 + $0x3c0] sm:$0xff]
  %v4521 = vld [vmem:[%s2 + $0x3c8] sm:$0xff]
  %v4522 = vld [vmem:[%s2 + $0x3d0] sm:$0xff]
  %v4523 = vld [vmem:[%s2 + $0x3d8] sm:$0xff]
  %v4524 = vld [vmem:[%s2 + $0x3e0] sm:$0xff]
  %v4525 = vld [vmem:[%s2 + $0x3e8] sm:$0xff]
  %v4526 = vld [vmem:[%s2 + $0x3f0] sm:$0xff]
  %v4527 = vld [vmem:[%s2 + $0x3f8] sm:$0xff]
  %4528 = vmatpush.msra.mxu0 %v4520
  %4529 = vmatpush.msra.mxu0 %v4512
  %4530 = vmatpush.msra.mxu0 %v4504
  %4531 = vmatpush.msra.mxu0 %v4496
  %4532 = vmatpush.msra.mxu0 %v4488
  %4533 = vmatpush.msra.mxu0 %v4480
  %4534 = vmatpush.msra.mxu0 %v4472
  %4535 = vmatpush.msra.mxu0 %v4464
  %4536 = vmatpush.msra.mxu0 %v4456
  %4537 = vmatpush.msra.mxu0 %v4448
  %4538 = vmatpush.msra.mxu0 %v4440
  %4539 = vmatpush.msra.mxu0 %v4432
  %4540 = vmatpush.msra.mxu0 %v4424
  %4541 = vmatpush.msra.mxu0 %v4416
  %4542 = vmatpush.msra.mxu0 %v4408
  %4543 = vmatpush.msra.mxu0 %v4400
  %4544 = vmatmul.f32.gmra.mxu0 %v4399
  %v4545 = vpop.f32.mrf.mxu0
  %v4546 = vadd.f32 0.0, %v4545
  %4547 = vdwg.mxu0
  %4548 = vmatpush.msra.mxu0 %v4521
  %4549 = vmatpush.msra.mxu0 %v4513
  %4550 = vmatpush.msra.mxu0 %v4505
  %4551 = vmatpush.msra.mxu0 %v4497
  %4552 = vmatpush.msra.mxu0 %v4489
  %4553 = vmatpush.msra.mxu0 %v4481
  %4554 = vmatpush.msra.mxu0 %v4473
  %4555 = vmatpush.msra.mxu0 %v4465
  %4556 = vmatpush.msra.mxu0 %v4457
  %4557 = vmatpush.msra.mxu0 %v4449
  %4558 = vmatpush.msra.mxu0 %v4441
  %4559 = vmatpush.msra.mxu0 %v4433
  %4560 = vmatpush.msra.mxu0 %v4425
  %4561 = vmatpush.msra.mxu0 %v4417
  %4562 = vmatpush.msra.mxu0 %v4409
  %4563 = vmatpush.msra.mxu0 %v4401
  %4564 = vmatmul.f32.gmra.mxu0 %v4399
  %v4565 = vpop.f32.mrf.mxu0
  %v4566 = vadd.f32 0.0, %v4565
  %4567 = vdwg.mxu0
  %4568 = vmatpush.msra.mxu0 %v4522
  %4569 = vmatpush.msra.mxu0 %v4514
  %4570 = vmatpush.msra.mxu0 %v4506
  %4571 = vmatpush.msra.mxu0 %v4498
  %4572 = vmatpush.msra.mxu0 %v4490
  %4573 = vmatpush.msra.mxu0 %v4482
  %4574 = vmatpush.msra.mxu0 %v4474
  %4575 = vmatpush.msra.mxu0 %v4466
  %4576 = vmatpush.msra.mxu0 %v4458
  %4577 = vmatpush.msra.mxu0 %v4450
  %4578 = vmatpush.msra.mxu0 %v4442
  %4579 = vmatpush.msra.mxu0 %v4434
  %4580 = vmatpush.msra.mxu0 %v4426
  %4581 = vmatpush.msra.mxu0 %v4418
  %4582 = vmatpush.msra.mxu0 %v4410
  %4583 = vmatpush.msra.mxu0 %v4402
  %4584 = vmatmul.f32.gmra.mxu0 %v4399
  %v4585 = vpop.f32.mrf.mxu0
  %v4586 = vadd.f32 0.0, %v4585
  %4587 = vdwg.mxu0
  %4588 = vmatpush.msra.mxu0 %v4523
  %4589 = vmatpush.msra.mxu0 %v4515
  %4590 = vmatpush.msra.mxu0 %v4507
  %4591 = vmatpush.msra.mxu0 %v4499
  %4592 = vmatpush.msra.mxu0 %v4491
  %4593 = vmatpush.msra.mxu0 %v4483
  %4594 = vmatpush.msra.mxu0 %v4475
  %4595 = vmatpush.msra.mxu0 %v4467
  %4596 = vmatpush.msra.mxu0 %v4459
  %4597 = vmatpush.msra.mxu0 %v4451
  %4598 = vmatpush.msra.mxu0 %v4443
  %4599 = vmatpush.msra.mxu0 %v4435
  %4600 = vmatpush.msra.mxu0 %v4427
  %4601 = vmatpush.msra.mxu0 %v4419
  %4602 = vmatpush.msra.mxu0 %v4411
  %4603 = vmatpush.msra.mxu0 %v4403
  %4604 = vmatmul.f32.gmra.mxu0 %v4399
  %v4605 = vpop.f32.mrf.mxu0
  %v4606 = vadd.f32 0.0, %v4605
  %4607 = vdwg.mxu0
  %4608 = vmatpush.msra.mxu0 %v4524
  %4609 = vmatpush.msra.mxu0 %v4516
  %4610 = vmatpush.msra.mxu0 %v4508
  %4611 = vmatpush.msra.mxu0 %v4500
  %4612 = vmatpush.msra.mxu0 %v4492
  %4613 = vmatpush.msra.mxu0 %v4484
  %4614 = vmatpush.msra.mxu0 %v4476
  %4615 = vmatpush.msra.mxu0 %v4468
  %4616 = vmatpush.msra.mxu0 %v4460
  %4617 = vmatpush.msra.mxu0 %v4452
  %4618 = vmatpush.msra.mxu0 %v4444
  %4619 = vmatpush.msra.mxu0 %v4436
  %4620 = vmatpush.msra.mxu0 %v4428
  %4621 = vmatpush.msra.mxu0 %v4420
  %4622 = vmatpush.msra.mxu0 %v4412
  %4623 = vmatpush.msra.mxu0 %v4404
  %4624 = vmatmul.f32.gmra.mxu0 %v4399
  %v4625 = vpop.f32.mrf.mxu0
  %v4626 = vadd.f32 0.0, %v4625
  %4627 = vdwg.mxu0
  %4628 = vmatpush.msra.mxu0 %v4525
  %4629 = vmatpush.msra.mxu0 %v4517
  %4630 = vmatpush.msra.mxu0 %v4509
  %4631 = vmatpush.msra.mxu0 %v4501
  %4632 = vmatpush.msra.mxu0 %v4493
  %4633 = vmatpush.msra.mxu0 %v4485
  %4634 = vmatpush.msra.mxu0 %v4477
  %4635 = vmatpush.msra.mxu0 %v4469
  %4636 = vmatpush.msra.mxu0 %v4461
  %4637 = vmatpush.msra.mxu0 %v4453
  %4638 = vmatpush.msra.mxu0 %v4445
  %4639 = vmatpush.msra.mxu0 %v4437
  %4640 = vmatpush.msra.mxu0 %v4429
  %4641 = vmatpush.msra.mxu0 %v4421
  %4642 = vmatpush.msra.mxu0 %v4413
  %4643 = vmatpush.msra.mxu0 %v4405
  %4644 = vmatmul.f32.gmra.mxu0 %v4399
  %v4645 = vpop.f32.mrf.mxu0
  %v4646 = vadd.f32 0.0, %v4645
  %4647 = vdwg.mxu0
  %4648 = vmatpush.msra.mxu0 %v4526
  %4649 = vmatpush.msra.mxu0 %v4518
  %4650 = vmatpush.msra.mxu0 %v4510
  %4651 = vmatpush.msra.mxu0 %v4502
  %4652 = vmatpush.msra.mxu0 %v4494
  %4653 = vmatpush.msra.mxu0 %v4486
  %4654 = vmatpush.msra.mxu0 %v4478
  %4655 = vmatpush.msra.mxu0 %v4470
  %4656 = vmatpush.msra.mxu0 %v4462
  %4657 = vmatpush.msra.mxu0 %v4454
  %4658 = vmatpush.msra.mxu0 %v4446
  %4659 = vmatpush.msra.mxu0 %v4438
  %4660 = vmatpush.msra.mxu0 %v4430
  %4661 = vmatpush.msra.mxu0 %v4422
  %4662 = vmatpush.msra.mxu0 %v4414
  %4663 = vmatpush.msra.mxu0 %v4406
  %4664 = vmatmul.f32.gmra.mxu0 %v4399
  %v4665 = vpop.f32.mrf.mxu0
  %v4666 = vadd.f32 0.0, %v4665
  %4667 = vdwg.mxu0
  %4668 = vmatpush.msra.mxu0 %v4527
  %4669 = vmatpush.msra.mxu0 %v4519
  %4670 = vmatpush.msra.mxu0 %v4511
  %4671 = vmatpush.msra.mxu0 %v4503
  %4672 = vmatpush.msra.mxu0 %v4495
  %4673 = vmatpush.msra.mxu0 %v4487
  %4674 = vmatpush.msra.mxu0 %v4479
  %4675 = vmatpush.msra.mxu0 %v4471
  %4676 = vmatpush.msra.mxu0 %v4463
  %4677 = vmatpush.msra.mxu0 %v4455
  %4678 = vmatpush.msra.mxu0 %v4447
  %4679 = vmatpush.msra.mxu0 %v4439
  %4680 = vmatpush.msra.mxu0 %v4431
  %4681 = vmatpush.msra.mxu0 %v4423
  %4682 = vmatpush.msra.mxu0 %v4415
  %4683 = vmatpush.msra.mxu0 %v4407
  %4684 = vmatmul.f32.gmra.mxu0 %v4399
  %v4685 = vpop.f32.mrf.mxu0
  %v4686 = vadd.f32 0.0, %v4685
  %4687 = vdwg.mxu0
  %v4688 = vadd.f32 %v4264, %v4626
  %v4689 = vadd.f32 %v4284, %v4646
  %v4690 = vadd.f32 %v4304, %v4666
  %v4691 = vadd.f32 %v4324, %v4686
  %v4692 = vxor.u32 %v4688, 2147483648
  %v4693 = vxor.u32 %v4689, 2147483648
  %v4694 = vmul.f32 %v4692, 1.442695
  %v4695 = vpow.pop %v4694
  %v4696 = vmul.f32 %v4693, 1.442695
  %v4697 = vpow.pop %v4696
  %v4698 = vadd.f32 %v4695, 1.0
  %v4699 = vadd.f32 %v4697, 1.0
  %v4700 = vrcp.pop %v4698
  %v4701 = vmul.f32 %v4698, %v4700
  %v4702 = vsub.f32 1.0, %v4701
  %v4703 = vmul.f32 %v4700, %v4702
  %v4704 = vadd.f32 %v4700, %v4703
  %vm4705 = vweird.f32 %v4698
  %vm4706 = vweird.f32 %v4700
  %vm4707 = vmor %vm4705, %vm4706
  %v4708 = vsel %vm4707, %v4700, %v4704
  %v4709 = vand.u32 2147483647, %v4698
  %vm4710 = vcmp.eq.f32.partialorder %v4709, 8.507059e+37
  %v4711 = vand.u32 %v4698, 2147483648
  %v4712 = vor.u32 1.1754944e-38, %v4711
  %v4713 = vsel %vm4710, %v4712, %v4708
  %v4714 = vmul.f32 1.0, %v4713
  %v4715 = vrcp.pop %v4699
  %v4716 = vmul.f32 %v4699, %v4715
  %v4717 = vsub.f32 1.0, %v4716
  %v4718 = vmul.f32 %v4715, %v4717
  %v4719 = vadd.f32 %v4715, %v4718
  %vm4720 = vweird.f32 %v4699
  %vm4721 = vweird.f32 %v4715
  %vm4722 = vmor %vm4720, %vm4721
  %v4723 = vsel %vm4722, %v4715, %v4719
  %v4724 = vand.u32 2147483647, %v4699
  %vm4725 = vcmp.eq.f32.partialorder %v4724, 8.507059e+37
  %v4726 = vand.u32 %v4699, 2147483648
  %v4727 = vor.u32 1.1754944e-38, %v4726
  %v4728 = vsel %vm4725, %v4727, %v4723
  %v4729 = vmul.f32 1.0, %v4728
  %v4730 = vtanh.pop %v4690
  %v4731 = vxor.u32 %v4691, 2147483648
  %v4732 = vmul.f32 %v4731, 1.442695
  %v4733 = vpow.pop %v4732
  %v4734 = vadd.f32 %v4733, 1.0
  %v4735 = vrcp.pop %v4734
  %v4736 = vmul.f32 %v4734, %v4735
  %v4737 = vsub.f32 1.0, %v4736
  %v4738 = vmul.f32 %v4735, %v4737
  %v4739 = vadd.f32 %v4735, %v4738
  %vm4740 = vweird.f32 %v4734
  %vm4741 = vweird.f32 %v4735
  %vm4742 = vmor %vm4740, %vm4741
  %v4743 = vsel %vm4742, %v4735, %v4739
  %v4744 = vand.u32 2147483647, %v4734
  %vm4745 = vcmp.eq.f32.partialorder %v4744, 8.507059e+37
  %v4746 = vand.u32 %v4734, 2147483648
  %v4747 = vor.u32 1.1754944e-38, %v4746
  %v4748 = vsel %vm4745, %v4747, %v4743
  %v4749 = vmul.f32 1.0, %v4748
  %v4750 = vmul.f32 %v4729, %v4177
  %v4751 = vmul.f32 %v4714, %v4730
  %v4752 = vadd.f32 %v4750, %v4751
  %v4753 = vtanh.pop %v4752
  %v4754 = vmul.f32 %v4749, %v4753
  %s4755 = scalar_lea.vmem [#allocation3], 48
  %4756 = vst [vmem:[%s4755] sm:$0xff] %v4754
  %v4757 = vld [vmem:[%s3] sm:$0xff]
  %v4758 = vld [vmem:[%s3 + $0x8] sm:$0xff]
  %v4759 = vld [vmem:[%s3 + $0x10] sm:$0xff]
  %v4760 = vld [vmem:[%s3 + $0x18] sm:$0xff]
  %v4761 = vld [vmem:[%s3 + $0x20] sm:$0xff]
  %v4762 = vld [vmem:[%s3 + $0x28] sm:$0xff]
  %v4763 = vld [vmem:[%s3 + $0x30] sm:$0xff]
  %v4764 = vld [vmem:[%s3 + $0x38] sm:$0xff]
  %v4765 = vld [vmem:[%s3 + $0x40] sm:$0xff]
  %v4766 = vld [vmem:[%s3 + $0x48] sm:$0xff]
  %v4767 = vld [vmem:[%s3 + $0x50] sm:$0xff]
  %v4768 = vld [vmem:[%s3 + $0x58] sm:$0xff]
  %v4769 = vld [vmem:[%s3 + $0x60] sm:$0xff]
  %v4770 = vld [vmem:[%s3 + $0x68] sm:$0xff]
  %v4771 = vld [vmem:[%s3 + $0x70] sm:$0xff]
  %v4772 = vld [vmem:[%s3 + $0x78] sm:$0xff]
  %v4773 = vld [vmem:[%s3 + $0x80] sm:$0xff]
  %v4774 = vld [vmem:[%s3 + $0x88] sm:$0xff]
  %v4775 = vld [vmem:[%s3 + $0x90] sm:$0xff]
  %v4776 = vld [vmem:[%s3 + $0x98] sm:$0xff]
  %v4777 = vld [vmem:[%s3 + $0xa0] sm:$0xff]
  %v4778 = vld [vmem:[%s3 + $0xa8] sm:$0xff]
  %v4779 = vld [vmem:[%s3 + $0xb0] sm:$0xff]
  %v4780 = vld [vmem:[%s3 + $0xb8] sm:$0xff]
  %v4781 = vld [vmem:[%s3 + $0xc0] sm:$0xff]
  %v4782 = vld [vmem:[%s3 + $0xc8] sm:$0xff]
  %v4783 = vld [vmem:[%s3 + $0xd0] sm:$0xff]
  %v4784 = vld [vmem:[%s3 + $0xd8] sm:$0xff]
  %v4785 = vld [vmem:[%s3 + $0xe0] sm:$0xff]
  %v4786 = vld [vmem:[%s3 + $0xe8] sm:$0xff]
  %v4787 = vld [vmem:[%s3 + $0xf0] sm:$0xff]
  %v4788 = vld [vmem:[%s3 + $0xf8] sm:$0xff]
  %v4789 = vld [vmem:[%s3 + $0x100] sm:$0xff]
  %v4790 = vld [vmem:[%s3 + $0x108] sm:$0xff]
  %v4791 = vld [vmem:[%s3 + $0x110] sm:$0xff]
  %v4792 = vld [vmem:[%s3 + $0x118] sm:$0xff]
  %v4793 = vld [vmem:[%s3 + $0x120] sm:$0xff]
  %v4794 = vld [vmem:[%s3 + $0x128] sm:$0xff]
  %v4795 = vld [vmem:[%s3 + $0x130] sm:$0xff]
  %v4796 = vld [vmem:[%s3 + $0x138] sm:$0xff]
  %v4797 = vld [vmem:[%s3 + $0x140] sm:$0xff]
  %v4798 = vld [vmem:[%s3 + $0x148] sm:$0xff]
  %v4799 = vld [vmem:[%s3 + $0x150] sm:$0xff]
  %v4800 = vld [vmem:[%s3 + $0x158] sm:$0xff]
  %v4801 = vld [vmem:[%s3 + $0x160] sm:$0xff]
  %v4802 = vld [vmem:[%s3 + $0x168] sm:$0xff]
  %v4803 = vld [vmem:[%s3 + $0x170] sm:$0xff]
  %v4804 = vld [vmem:[%s3 + $0x178] sm:$0xff]
  %v4805 = vld [vmem:[%s3 + $0x180] sm:$0xff]
  %v4806 = vld [vmem:[%s3 + $0x188] sm:$0xff]
  %v4807 = vld [vmem:[%s3 + $0x190] sm:$0xff]
  %v4808 = vld [vmem:[%s3 + $0x198] sm:$0xff]
  %v4809 = vld [vmem:[%s3 + $0x1a0] sm:$0xff]
  %v4810 = vld [vmem:[%s3 + $0x1a8] sm:$0xff]
  %v4811 = vld [vmem:[%s3 + $0x1b0] sm:$0xff]
  %v4812 = vld [vmem:[%s3 + $0x1b8] sm:$0xff]
  %v4813 = vld [vmem:[%s3 + $0x1c0] sm:$0xff]
  %v4814 = vld [vmem:[%s3 + $0x1c8] sm:$0xff]
  %v4815 = vld [vmem:[%s3 + $0x1d0] sm:$0xff]
  %v4816 = vld [vmem:[%s3 + $0x1d8] sm:$0xff]
  %v4817 = vld [vmem:[%s3 + $0x1e0] sm:$0xff]
  %v4818 = vld [vmem:[%s3 + $0x1e8] sm:$0xff]
  %v4819 = vld [vmem:[%s3 + $0x1f0] sm:$0xff]
  %v4820 = vld [vmem:[%s3 + $0x1f8] sm:$0xff]
  %4821 = vmatpush.msra.mxu0 %v4817
  %4822 = vmatpush.msra.mxu0 %v4813
  %4823 = vmatpush.msra.mxu0 %v4809
  %4824 = vmatpush.msra.mxu0 %v4805
  %4825 = vmatpush.msra.mxu0 %v4801
  %4826 = vmatpush.msra.mxu0 %v4797
  %4827 = vmatpush.msra.mxu0 %v4793
  %4828 = vmatpush.msra.mxu0 %v4789
  %4829 = vmatpush.msra.mxu0 %v4785
  %4830 = vmatpush.msra.mxu0 %v4781
  %4831 = vmatpush.msra.mxu0 %v4777
  %4832 = vmatpush.msra.mxu0 %v4773
  %4833 = vmatpush.msra.mxu0 %v4769
  %4834 = vmatpush.msra.mxu0 %v4765
  %4835 = vmatpush.msra.mxu0 %v4761
  %4836 = vmatpush.msra.mxu0 %v4757
  %4837 = vmatmul.f32.gmra.mxu0 %v4754
  %v4838 = vpop.f32.mrf.mxu0
  %v4839 = vadd.f32 %v725, %v4838
  %4840 = vdwg.mxu0
  %4841 = vmatpush.msra.mxu0 %v4818
  %4842 = vmatpush.msra.mxu0 %v4814
  %4843 = vmatpush.msra.mxu0 %v4810
  %4844 = vmatpush.msra.mxu0 %v4806
  %4845 = vmatpush.msra.mxu0 %v4802
  %4846 = vmatpush.msra.mxu0 %v4798
  %4847 = vmatpush.msra.mxu0 %v4794
  %4848 = vmatpush.msra.mxu0 %v4790
  %4849 = vmatpush.msra.mxu0 %v4786
  %4850 = vmatpush.msra.mxu0 %v4782
  %4851 = vmatpush.msra.mxu0 %v4778
  %4852 = vmatpush.msra.mxu0 %v4774
  %4853 = vmatpush.msra.mxu0 %v4770
  %4854 = vmatpush.msra.mxu0 %v4766
  %4855 = vmatpush.msra.mxu0 %v4762
  %4856 = vmatpush.msra.mxu0 %v4758
  %4857 = vmatmul.f32.gmra.mxu0 %v4754
  %v4858 = vpop.f32.mrf.mxu0
  %v4859 = vadd.f32 %v726, %v4858
  %4860 = vdwg.mxu0
  %4861 = vmatpush.msra.mxu0 %v4819
  %4862 = vmatpush.msra.mxu0 %v4815
  %4863 = vmatpush.msra.mxu0 %v4811
  %4864 = vmatpush.msra.mxu0 %v4807
  %4865 = vmatpush.msra.mxu0 %v4803
  %4866 = vmatpush.msra.mxu0 %v4799
  %4867 = vmatpush.msra.mxu0 %v4795
  %4868 = vmatpush.msra.mxu0 %v4791
  %4869 = vmatpush.msra.mxu0 %v4787
  %4870 = vmatpush.msra.mxu0 %v4783
  %4871 = vmatpush.msra.mxu0 %v4779
  %4872 = vmatpush.msra.mxu0 %v4775
  %4873 = vmatpush.msra.mxu0 %v4771
  %4874 = vmatpush.msra.mxu0 %v4767
  %4875 = vmatpush.msra.mxu0 %v4763
  %4876 = vmatpush.msra.mxu0 %v4759
  %4877 = vmatmul.f32.gmra.mxu0 %v4754
  %v4878 = vpop.f32.mrf.mxu0
  %v4879 = vadd.f32 %v727, %v4878
  %4880 = vdwg.mxu0
  %4881 = vmatpush.msra.mxu0 %v4820
  %4882 = vmatpush.msra.mxu0 %v4816
  %4883 = vmatpush.msra.mxu0 %v4812
  %4884 = vmatpush.msra.mxu0 %v4808
  %4885 = vmatpush.msra.mxu0 %v4804
  %4886 = vmatpush.msra.mxu0 %v4800
  %4887 = vmatpush.msra.mxu0 %v4796
  %4888 = vmatpush.msra.mxu0 %v4792
  %4889 = vmatpush.msra.mxu0 %v4788
  %4890 = vmatpush.msra.mxu0 %v4784
  %4891 = vmatpush.msra.mxu0 %v4780
  %4892 = vmatpush.msra.mxu0 %v4776
  %4893 = vmatpush.msra.mxu0 %v4772
  %4894 = vmatpush.msra.mxu0 %v4768
  %4895 = vmatpush.msra.mxu0 %v4764
  %4896 = vmatpush.msra.mxu0 %v4760
  %4897 = vmatmul.f32.gmra.mxu0 %v4754
  %v4898 = vpop.f32.mrf.mxu0
  %v4899 = vadd.f32 %v728, %v4898
  %4900 = vdwg.mxu0
  %s4901 = smul.u32 7, 4
  %s4902 = smul.addr %s4901, 8
  %s4903 = scalar_lea.vmem [#allocation2], %s4902
  %v4904 = vld [vmem:[%s4903] sm:$0xff]
  %v4905 = vld [vmem:[%s4903 + $0x8] sm:$0xff]
  %v4906 = vld [vmem:[%s4903 + $0x10] sm:$0xff]
  %v4907 = vld [vmem:[%s4903 + $0x18] sm:$0xff]
  %v4908 = vadd.f32 %v4904, %v4546
  %v4909 = vadd.f32 %v4905, %v4566
  %v4910 = vadd.f32 %v4906, %v4586
  %v4911 = vadd.f32 %v4907, %v4606
  %v4912 = vxor.u32 %v4908, 2147483648
  %v4913 = vxor.u32 %v4909, 2147483648
  %v4914 = vmul.f32 %v4912, 1.442695
  %v4915 = vpow.pop %v4914
  %v4916 = vmul.f32 %v4913, 1.442695
  %v4917 = vpow.pop %v4916
  %v4918 = vadd.f32 %v4915, 1.0
  %v4919 = vadd.f32 %v4917, 1.0
  %v4920 = vrcp.pop %v4918
  %v4921 = vmul.f32 %v4918, %v4920
  %v4922 = vsub.f32 1.0, %v4921
  %v4923 = vmul.f32 %v4920, %v4922
  %v4924 = vadd.f32 %v4920, %v4923
  %vm4925 = vweird.f32 %v4918
  %vm4926 = vweird.f32 %v4920
  %vm4927 = vmor %vm4925, %vm4926
  %v4928 = vsel %vm4927, %v4920, %v4924
  %v4929 = vand.u32 2147483647, %v4918
  %vm4930 = vcmp.eq.f32.partialorder %v4929, 8.507059e+37
  %v4931 = vand.u32 %v4918, 2147483648
  %v4932 = vor.u32 1.1754944e-38, %v4931
  %v4933 = vsel %vm4930, %v4932, %v4928
  %v4934 = vmul.f32 1.0, %v4933
  %v4935 = vrcp.pop %v4919
  %v4936 = vmul.f32 %v4919, %v4935
  %v4937 = vsub.f32 1.0, %v4936
  %v4938 = vmul.f32 %v4935, %v4937
  %v4939 = vadd.f32 %v4935, %v4938
  %vm4940 = vweird.f32 %v4919
  %vm4941 = vweird.f32 %v4935
  %vm4942 = vmor %vm4940, %vm4941
  %v4943 = vsel %vm4942, %v4935, %v4939
  %v4944 = vand.u32 2147483647, %v4919
  %vm4945 = vcmp.eq.f32.partialorder %v4944, 8.507059e+37
  %v4946 = vand.u32 %v4919, 2147483648
  %v4947 = vor.u32 1.1754944e-38, %v4946
  %v4948 = vsel %vm4945, %v4947, %v4943
  %v4949 = vmul.f32 1.0, %v4948
  %v4950 = vtanh.pop %v4910
  %v4951 = vxor.u32 %v4911, 2147483648
  %v4952 = vmul.f32 %v4951, 1.442695
  %v4953 = vpow.pop %v4952
  %v4954 = vadd.f32 %v4953, 1.0
  %v4955 = vrcp.pop %v4954
  %v4956 = vmul.f32 %v4954, %v4955
  %v4957 = vsub.f32 1.0, %v4956
  %v4958 = vmul.f32 %v4955, %v4957
  %v4959 = vadd.f32 %v4955, %v4958
  %vm4960 = vweird.f32 %v4954
  %vm4961 = vweird.f32 %v4955
  %vm4962 = vmor %vm4960, %vm4961
  %v4963 = vsel %vm4962, %v4955, %v4959
  %v4964 = vand.u32 2147483647, %v4954
  %vm4965 = vcmp.eq.f32.partialorder %v4964, 8.507059e+37
  %v4966 = vand.u32 %v4954, 2147483648
  %v4967 = vor.u32 1.1754944e-38, %v4966
  %v4968 = vsel %vm4965, %v4967, %v4963
  %v4969 = vmul.f32 1.0, %v4968
  %v4970 = vmul.f32 %v4949, %v4397
  %v4971 = vmul.f32 %v4934, %v4950
  %v4972 = vadd.f32 %v4970, %v4971
  %v4973 = vtanh.pop %v4972
  %v4974 = vmul.f32 %v4969, %v4973
  %v4975 = vld [vmem:[%s2] sm:$0xff]
  %v4976 = vld [vmem:[%s2 + $0x8] sm:$0xff]
  %v4977 = vld [vmem:[%s2 + $0x10] sm:$0xff]
  %v4978 = vld [vmem:[%s2 + $0x18] sm:$0xff]
  %v4979 = vld [vmem:[%s2 + $0x20] sm:$0xff]
  %v4980 = vld [vmem:[%s2 + $0x28] sm:$0xff]
  %v4981 = vld [vmem:[%s2 + $0x30] sm:$0xff]
  %v4982 = vld [vmem:[%s2 + $0x38] sm:$0xff]
  %v4983 = vld [vmem:[%s2 + $0x40] sm:$0xff]
  %v4984 = vld [vmem:[%s2 + $0x48] sm:$0xff]
  %v4985 = vld [vmem:[%s2 + $0x50] sm:$0xff]
  %v4986 = vld [vmem:[%s2 + $0x58] sm:$0xff]
  %v4987 = vld [vmem:[%s2 + $0x60] sm:$0xff]
  %v4988 = vld [vmem:[%s2 + $0x68] sm:$0xff]
  %v4989 = vld [vmem:[%s2 + $0x70] sm:$0xff]
  %v4990 = vld [vmem:[%s2 + $0x78] sm:$0xff]
  %v4991 = vld [vmem:[%s2 + $0x80] sm:$0xff]
  %v4992 = vld [vmem:[%s2 + $0x88] sm:$0xff]
  %v4993 = vld [vmem:[%s2 + $0x90] sm:$0xff]
  %v4994 = vld [vmem:[%s2 + $0x98] sm:$0xff]
  %v4995 = vld [vmem:[%s2 + $0xa0] sm:$0xff]
  %v4996 = vld [vmem:[%s2 + $0xa8] sm:$0xff]
  %v4997 = vld [vmem:[%s2 + $0xb0] sm:$0xff]
  %v4998 = vld [vmem:[%s2 + $0xb8] sm:$0xff]
  %v4999 = vld [vmem:[%s2 + $0xc0] sm:$0xff]
  %v5000 = vld [vmem:[%s2 + $0xc8] sm:$0xff]
  %v5001 = vld [vmem:[%s2 + $0xd0] sm:$0xff]
  %v5002 = vld [vmem:[%s2 + $0xd8] sm:$0xff]
  %v5003 = vld [vmem:[%s2 + $0xe0] sm:$0xff]
  %v5004 = vld [vmem:[%s2 + $0xe8] sm:$0xff]
  %v5005 = vld [vmem:[%s2 + $0xf0] sm:$0xff]
  %v5006 = vld [vmem:[%s2 + $0xf8] sm:$0xff]
  %v5007 = vld [vmem:[%s2 + $0x100] sm:$0xff]
  %v5008 = vld [vmem:[%s2 + $0x108] sm:$0xff]
  %v5009 = vld [vmem:[%s2 + $0x110] sm:$0xff]
  %v5010 = vld [vmem:[%s2 + $0x118] sm:$0xff]
  %v5011 = vld [vmem:[%s2 + $0x120] sm:$0xff]
  %v5012 = vld [vmem:[%s2 + $0x128] sm:$0xff]
  %v5013 = vld [vmem:[%s2 + $0x130] sm:$0xff]
  %v5014 = vld [vmem:[%s2 + $0x138] sm:$0xff]
  %v5015 = vld [vmem:[%s2 + $0x140] sm:$0xff]
  %v5016 = vld [vmem:[%s2 + $0x148] sm:$0xff]
  %v5017 = vld [vmem:[%s2 + $0x150] sm:$0xff]
  %v5018 = vld [vmem:[%s2 + $0x158] sm:$0xff]
  %v5019 = vld [vmem:[%s2 + $0x160] sm:$0xff]
  %v5020 = vld [vmem:[%s2 + $0x168] sm:$0xff]
  %v5021 = vld [vmem:[%s2 + $0x170] sm:$0xff]
  %v5022 = vld [vmem:[%s2 + $0x178] sm:$0xff]
  %v5023 = vld [vmem:[%s2 + $0x180] sm:$0xff]
  %v5024 = vld [vmem:[%s2 + $0x188] sm:$0xff]
  %v5025 = vld [vmem:[%s2 + $0x190] sm:$0xff]
  %v5026 = vld [vmem:[%s2 + $0x198] sm:$0xff]
  %v5027 = vld [vmem:[%s2 + $0x1a0] sm:$0xff]
  %v5028 = vld [vmem:[%s2 + $0x1a8] sm:$0xff]
  %v5029 = vld [vmem:[%s2 + $0x1b0] sm:$0xff]
  %v5030 = vld [vmem:[%s2 + $0x1b8] sm:$0xff]
  %v5031 = vld [vmem:[%s2 + $0x1c0] sm:$0xff]
  %v5032 = vld [vmem:[%s2 + $0x1c8] sm:$0xff]
  %v5033 = vld [vmem:[%s2 + $0x1d0] sm:$0xff]
  %v5034 = vld [vmem:[%s2 + $0x1d8] sm:$0xff]
  %v5035 = vld [vmem:[%s2 + $0x1e0] sm:$0xff]
  %v5036 = vld [vmem:[%s2 + $0x1e8] sm:$0xff]
  %v5037 = vld [vmem:[%s2 + $0x1f0] sm:$0xff]
  %v5038 = vld [vmem:[%s2 + $0x1f8] sm:$0xff]
  %v5039 = vld [vmem:[%s2 + $0x200] sm:$0xff]
  %v5040 = vld [vmem:[%s2 + $0x208] sm:$0xff]
  %v5041 = vld [vmem:[%s2 + $0x210] sm:$0xff]
  %v5042 = vld [vmem:[%s2 + $0x218] sm:$0xff]
  %v5043 = vld [vmem:[%s2 + $0x220] sm:$0xff]
  %v5044 = vld [vmem:[%s2 + $0x228] sm:$0xff]
  %v5045 = vld [vmem:[%s2 + $0x230] sm:$0xff]
  %v5046 = vld [vmem:[%s2 + $0x238] sm:$0xff]
  %v5047 = vld [vmem:[%s2 + $0x240] sm:$0xff]
  %v5048 = vld [vmem:[%s2 + $0x248] sm:$0xff]
  %v5049 = vld [vmem:[%s2 + $0x250] sm:$0xff]
  %v5050 = vld [vmem:[%s2 + $0x258] sm:$0xff]
  %v5051 = vld [vmem:[%s2 + $0x260] sm:$0xff]
  %v5052 = vld [vmem:[%s2 + $0x268] sm:$0xff]
  %v5053 = vld [vmem:[%s2 + $0x270] sm:$0xff]
  %v5054 = vld [vmem:[%s2 + $0x278] sm:$0xff]
  %v5055 = vld [vmem:[%s2 + $0x280] sm:$0xff]
  %v5056 = vld [vmem:[%s2 + $0x288] sm:$0xff]
  %v5057 = vld [vmem:[%s2 + $0x290] sm:$0xff]
  %v5058 = vld [vmem:[%s2 + $0x298] sm:$0xff]
  %v5059 = vld [vmem:[%s2 + $0x2a0] sm:$0xff]
  %v5060 = vld [vmem:[%s2 + $0x2a8] sm:$0xff]
  %v5061 = vld [vmem:[%s2 + $0x2b0] sm:$0xff]
  %v5062 = vld [vmem:[%s2 + $0x2b8] sm:$0xff]
  %v5063 = vld [vmem:[%s2 + $0x2c0] sm:$0xff]
  %v5064 = vld [vmem:[%s2 + $0x2c8] sm:$0xff]
  %v5065 = vld [vmem:[%s2 + $0x2d0] sm:$0xff]
  %v5066 = vld [vmem:[%s2 + $0x2d8] sm:$0xff]
  %v5067 = vld [vmem:[%s2 + $0x2e0] sm:$0xff]
  %v5068 = vld [vmem:[%s2 + $0x2e8] sm:$0xff]
  %v5069 = vld [vmem:[%s2 + $0x2f0] sm:$0xff]
  %v5070 = vld [vmem:[%s2 + $0x2f8] sm:$0xff]
  %v5071 = vld [vmem:[%s2 + $0x300] sm:$0xff]
  %v5072 = vld [vmem:[%s2 + $0x308] sm:$0xff]
  %v5073 = vld [vmem:[%s2 + $0x310] sm:$0xff]
  %v5074 = vld [vmem:[%s2 + $0x318] sm:$0xff]
  %v5075 = vld [vmem:[%s2 + $0x320] sm:$0xff]
  %v5076 = vld [vmem:[%s2 + $0x328] sm:$0xff]
  %v5077 = vld [vmem:[%s2 + $0x330] sm:$0xff]
  %v5078 = vld [vmem:[%s2 + $0x338] sm:$0xff]
  %v5079 = vld [vmem:[%s2 + $0x340] sm:$0xff]
  %v5080 = vld [vmem:[%s2 + $0x348] sm:$0xff]
  %v5081 = vld [vmem:[%s2 + $0x350] sm:$0xff]
  %v5082 = vld [vmem:[%s2 + $0x358] sm:$0xff]
  %v5083 = vld [vmem:[%s2 + $0x360] sm:$0xff]
  %v5084 = vld [vmem:[%s2 + $0x368] sm:$0xff]
  %v5085 = vld [vmem:[%s2 + $0x370] sm:$0xff]
  %v5086 = vld [vmem:[%s2 + $0x378] sm:$0xff]
  %v5087 = vld [vmem:[%s2 + $0x380] sm:$0xff]
  %v5088 = vld [vmem:[%s2 + $0x388] sm:$0xff]
  %v5089 = vld [vmem:[%s2 + $0x390] sm:$0xff]
  %v5090 = vld [vmem:[%s2 + $0x398] sm:$0xff]
  %v5091 = vld [vmem:[%s2 + $0x3a0] sm:$0xff]
  %v5092 = vld [vmem:[%s2 + $0x3a8] sm:$0xff]
  %v5093 = vld [vmem:[%s2 + $0x3b0] sm:$0xff]
  %v5094 = vld [vmem:[%s2 + $0x3b8] sm:$0xff]
  %v5095 = vld [vmem:[%s2 + $0x3c0] sm:$0xff]
  %v5096 = vld [vmem:[%s2 + $0x3c8] sm:$0xff]
  %v5097 = vld [vmem:[%s2 + $0x3d0] sm:$0xff]
  %v5098 = vld [vmem:[%s2 + $0x3d8] sm:$0xff]
  %v5099 = vld [vmem:[%s2 + $0x3e0] sm:$0xff]
  %v5100 = vld [vmem:[%s2 + $0x3e8] sm:$0xff]
  %v5101 = vld [vmem:[%s2 + $0x3f0] sm:$0xff]
  %v5102 = vld [vmem:[%s2 + $0x3f8] sm:$0xff]
  %5103 = vmatpush.msra.mxu0 %v5095
  %5104 = vmatpush.msra.mxu0 %v5087
  %5105 = vmatpush.msra.mxu0 %v5079
  %5106 = vmatpush.msra.mxu0 %v5071
  %5107 = vmatpush.msra.mxu0 %v5063
  %5108 = vmatpush.msra.mxu0 %v5055
  %5109 = vmatpush.msra.mxu0 %v5047
  %5110 = vmatpush.msra.mxu0 %v5039
  %5111 = vmatpush.msra.mxu0 %v5031
  %5112 = vmatpush.msra.mxu0 %v5023
  %5113 = vmatpush.msra.mxu0 %v5015
  %5114 = vmatpush.msra.mxu0 %v5007
  %5115 = vmatpush.msra.mxu0 %v4999
  %5116 = vmatpush.msra.mxu0 %v4991
  %5117 = vmatpush.msra.mxu0 %v4983
  %5118 = vmatpush.msra.mxu0 %v4975
  %5119 = vmatmul.f32.gmra.mxu0 %v4974
  %v5120 = vpop.f32.mrf.mxu0
  %v5121 = vadd.f32 0.0, %v5120
  %5122 = vdwg.mxu0
  %5123 = vmatpush.msra.mxu0 %v5096
  %5124 = vmatpush.msra.mxu0 %v5088
  %5125 = vmatpush.msra.mxu0 %v5080
  %5126 = vmatpush.msra.mxu0 %v5072
  %5127 = vmatpush.msra.mxu0 %v5064
  %5128 = vmatpush.msra.mxu0 %v5056
  %5129 = vmatpush.msra.mxu0 %v5048
  %5130 = vmatpush.msra.mxu0 %v5040
  %5131 = vmatpush.msra.mxu0 %v5032
  %5132 = vmatpush.msra.mxu0 %v5024
  %5133 = vmatpush.msra.mxu0 %v5016
  %5134 = vmatpush.msra.mxu0 %v5008
  %5135 = vmatpush.msra.mxu0 %v5000
  %5136 = vmatpush.msra.mxu0 %v4992
  %5137 = vmatpush.msra.mxu0 %v4984
  %5138 = vmatpush.msra.mxu0 %v4976
  %5139 = vmatmul.f32.gmra.mxu0 %v4974
  %v5140 = vpop.f32.mrf.mxu0
  %v5141 = vadd.f32 0.0, %v5140
  %5142 = vdwg.mxu0
  %5143 = vmatpush.msra.mxu0 %v5097
  %5144 = vmatpush.msra.mxu0 %v5089
  %5145 = vmatpush.msra.mxu0 %v5081
  %5146 = vmatpush.msra.mxu0 %v5073
  %5147 = vmatpush.msra.mxu0 %v5065
  %5148 = vmatpush.msra.mxu0 %v5057
  %5149 = vmatpush.msra.mxu0 %v5049
  %5150 = vmatpush.msra.mxu0 %v5041
  %5151 = vmatpush.msra.mxu0 %v5033
  %5152 = vmatpush.msra.mxu0 %v5025
  %5153 = vmatpush.msra.mxu0 %v5017
  %5154 = vmatpush.msra.mxu0 %v5009
  %5155 = vmatpush.msra.mxu0 %v5001
  %5156 = vmatpush.msra.mxu0 %v4993
  %5157 = vmatpush.msra.mxu0 %v4985
  %5158 = vmatpush.msra.mxu0 %v4977
  %5159 = vmatmul.f32.gmra.mxu0 %v4974
  %v5160 = vpop.f32.mrf.mxu0
  %v5161 = vadd.f32 0.0, %v5160
  %5162 = vdwg.mxu0
  %5163 = vmatpush.msra.mxu0 %v5098
  %5164 = vmatpush.msra.mxu0 %v5090
  %5165 = vmatpush.msra.mxu0 %v5082
  %5166 = vmatpush.msra.mxu0 %v5074
  %5167 = vmatpush.msra.mxu0 %v5066
  %5168 = vmatpush.msra.mxu0 %v5058
  %5169 = vmatpush.msra.mxu0 %v5050
  %5170 = vmatpush.msra.mxu0 %v5042
  %5171 = vmatpush.msra.mxu0 %v5034
  %5172 = vmatpush.msra.mxu0 %v5026
  %5173 = vmatpush.msra.mxu0 %v5018
  %5174 = vmatpush.msra.mxu0 %v5010
  %5175 = vmatpush.msra.mxu0 %v5002
  %5176 = vmatpush.msra.mxu0 %v4994
  %5177 = vmatpush.msra.mxu0 %v4986
  %5178 = vmatpush.msra.mxu0 %v4978
  %5179 = vmatmul.f32.gmra.mxu0 %v4974
  %v5180 = vpop.f32.mrf.mxu0
  %v5181 = vadd.f32 0.0, %v5180
  %5182 = vdwg.mxu0
  %5183 = vmatpush.msra.mxu0 %v5099
  %5184 = vmatpush.msra.mxu0 %v5091
  %5185 = vmatpush.msra.mxu0 %v5083
  %5186 = vmatpush.msra.mxu0 %v5075
  %5187 = vmatpush.msra.mxu0 %v5067
  %5188 = vmatpush.msra.mxu0 %v5059
  %5189 = vmatpush.msra.mxu0 %v5051
  %5190 = vmatpush.msra.mxu0 %v5043
  %5191 = vmatpush.msra.mxu0 %v5035
  %5192 = vmatpush.msra.mxu0 %v5027
  %5193 = vmatpush.msra.mxu0 %v5019
  %5194 = vmatpush.msra.mxu0 %v5011
  %5195 = vmatpush.msra.mxu0 %v5003
  %5196 = vmatpush.msra.mxu0 %v4995
  %5197 = vmatpush.msra.mxu0 %v4987
  %5198 = vmatpush.msra.mxu0 %v4979
  %5199 = vmatmul.f32.gmra.mxu0 %v4974
  %v5200 = vpop.f32.mrf.mxu0
  %v5201 = vadd.f32 0.0, %v5200
  %5202 = vdwg.mxu0
  %5203 = vmatpush.msra.mxu0 %v5100
  %5204 = vmatpush.msra.mxu0 %v5092
  %5205 = vmatpush.msra.mxu0 %v5084
  %5206 = vmatpush.msra.mxu0 %v5076
  %5207 = vmatpush.msra.mxu0 %v5068
  %5208 = vmatpush.msra.mxu0 %v5060
  %5209 = vmatpush.msra.mxu0 %v5052
  %5210 = vmatpush.msra.mxu0 %v5044
  %5211 = vmatpush.msra.mxu0 %v5036
  %5212 = vmatpush.msra.mxu0 %v5028
  %5213 = vmatpush.msra.mxu0 %v5020
  %5214 = vmatpush.msra.mxu0 %v5012
  %5215 = vmatpush.msra.mxu0 %v5004
  %5216 = vmatpush.msra.mxu0 %v4996
  %5217 = vmatpush.msra.mxu0 %v4988
  %5218 = vmatpush.msra.mxu0 %v4980
  %5219 = vmatmul.f32.gmra.mxu0 %v4974
  %v5220 = vpop.f32.mrf.mxu0
  %v5221 = vadd.f32 0.0, %v5220
  %5222 = vdwg.mxu0
  %5223 = vmatpush.msra.mxu0 %v5101
  %5224 = vmatpush.msra.mxu0 %v5093
  %5225 = vmatpush.msra.mxu0 %v5085
  %5226 = vmatpush.msra.mxu0 %v5077
  %5227 = vmatpush.msra.mxu0 %v5069
  %5228 = vmatpush.msra.mxu0 %v5061
  %5229 = vmatpush.msra.mxu0 %v5053
  %5230 = vmatpush.msra.mxu0 %v5045
  %5231 = vmatpush.msra.mxu0 %v5037
  %5232 = vmatpush.msra.mxu0 %v5029
  %5233 = vmatpush.msra.mxu0 %v5021
  %5234 = vmatpush.msra.mxu0 %v5013
  %5235 = vmatpush.msra.mxu0 %v5005
  %5236 = vmatpush.msra.mxu0 %v4997
  %5237 = vmatpush.msra.mxu0 %v4989
  %5238 = vmatpush.msra.mxu0 %v4981
  %5239 = vmatmul.f32.gmra.mxu0 %v4974
  %v5240 = vpop.f32.mrf.mxu0
  %v5241 = vadd.f32 0.0, %v5240
  %5242 = vdwg.mxu0
  %5243 = vmatpush.msra.mxu0 %v5102
  %5244 = vmatpush.msra.mxu0 %v5094
  %5245 = vmatpush.msra.mxu0 %v5086
  %5246 = vmatpush.msra.mxu0 %v5078
  %5247 = vmatpush.msra.mxu0 %v5070
  %5248 = vmatpush.msra.mxu0 %v5062
  %5249 = vmatpush.msra.mxu0 %v5054
  %5250 = vmatpush.msra.mxu0 %v5046
  %5251 = vmatpush.msra.mxu0 %v5038
  %5252 = vmatpush.msra.mxu0 %v5030
  %5253 = vmatpush.msra.mxu0 %v5022
  %5254 = vmatpush.msra.mxu0 %v5014
  %5255 = vmatpush.msra.mxu0 %v5006
  %5256 = vmatpush.msra.mxu0 %v4998
  %5257 = vmatpush.msra.mxu0 %v4990
  %5258 = vmatpush.msra.mxu0 %v4982
  %5259 = vmatmul.f32.gmra.mxu0 %v4974
  %v5260 = vpop.f32.mrf.mxu0
  %v5261 = vadd.f32 0.0, %v5260
  %5262 = vdwg.mxu0
  %v5263 = vadd.f32 %v4839, %v5201
  %v5264 = vadd.f32 %v4859, %v5221
  %v5265 = vadd.f32 %v4879, %v5241
  %v5266 = vadd.f32 %v4899, %v5261
  %v5267 = vxor.u32 %v5263, 2147483648
  %v5268 = vxor.u32 %v5264, 2147483648
  %v5269 = vmul.f32 %v5267, 1.442695
  %v5270 = vpow.pop %v5269
  %v5271 = vmul.f32 %v5268, 1.442695
  %v5272 = vpow.pop %v5271
  %v5273 = vadd.f32 %v5270, 1.0
  %v5274 = vadd.f32 %v5272, 1.0
  %v5275 = vrcp.pop %v5273
  %v5276 = vmul.f32 %v5273, %v5275
  %v5277 = vsub.f32 1.0, %v5276
  %v5278 = vmul.f32 %v5275, %v5277
  %v5279 = vadd.f32 %v5275, %v5278
  %vm5280 = vweird.f32 %v5273
  %vm5281 = vweird.f32 %v5275
  %vm5282 = vmor %vm5280, %vm5281
  %v5283 = vsel %vm5282, %v5275, %v5279
  %v5284 = vand.u32 2147483647, %v5273
  %vm5285 = vcmp.eq.f32.partialorder %v5284, 8.507059e+37
  %v5286 = vand.u32 %v5273, 2147483648
  %v5287 = vor.u32 1.1754944e-38, %v5286
  %v5288 = vsel %vm5285, %v5287, %v5283
  %v5289 = vmul.f32 1.0, %v5288
  %v5290 = vrcp.pop %v5274
  %v5291 = vmul.f32 %v5274, %v5290
  %v5292 = vsub.f32 1.0, %v5291
  %v5293 = vmul.f32 %v5290, %v5292
  %v5294 = vadd.f32 %v5290, %v5293
  %vm5295 = vweird.f32 %v5274
  %vm5296 = vweird.f32 %v5290
  %vm5297 = vmor %vm5295, %vm5296
  %v5298 = vsel %vm5297, %v5290, %v5294
  %v5299 = vand.u32 2147483647, %v5274
  %vm5300 = vcmp.eq.f32.partialorder %v5299, 8.507059e+37
  %v5301 = vand.u32 %v5274, 2147483648
  %v5302 = vor.u32 1.1754944e-38, %v5301
  %v5303 = vsel %vm5300, %v5302, %v5298
  %v5304 = vmul.f32 1.0, %v5303
  %v5305 = vtanh.pop %v5265
  %v5306 = vxor.u32 %v5266, 2147483648
  %v5307 = vmul.f32 %v5306, 1.442695
  %v5308 = vpow.pop %v5307
  %v5309 = vadd.f32 %v5308, 1.0
  %v5310 = vrcp.pop %v5309
  %v5311 = vmul.f32 %v5309, %v5310
  %v5312 = vsub.f32 1.0, %v5311
  %v5313 = vmul.f32 %v5310, %v5312
  %v5314 = vadd.f32 %v5310, %v5313
  %vm5315 = vweird.f32 %v5309
  %vm5316 = vweird.f32 %v5310
  %vm5317 = vmor %vm5315, %vm5316
  %v5318 = vsel %vm5317, %v5310, %v5314
  %v5319 = vand.u32 2147483647, %v5309
  %vm5320 = vcmp.eq.f32.partialorder %v5319, 8.507059e+37
  %v5321 = vand.u32 %v5309, 2147483648
  %v5322 = vor.u32 1.1754944e-38, %v5321
  %v5323 = vsel %vm5320, %v5322, %v5318
  %v5324 = vmul.f32 1.0, %v5323
  %v5325 = vmul.f32 %v5304, %v4752
  %v5326 = vmul.f32 %v5289, %v5305
  %v5327 = vadd.f32 %v5325, %v5326
  %v5328 = vtanh.pop %v5327
  %v5329 = vmul.f32 %v5324, %v5328
  %s5330 = scalar_lea.vmem [#allocation3], 56
  %5331 = vst [vmem:[%s5330] sm:$0xff] %v5329
  %v5332 = vld [vmem:[%s3] sm:$0xff]
  %v5333 = vld [vmem:[%s3 + $0x8] sm:$0xff]
  %v5334 = vld [vmem:[%s3 + $0x10] sm:$0xff]
  %v5335 = vld [vmem:[%s3 + $0x18] sm:$0xff]
  %v5336 = vld [vmem:[%s3 + $0x20] sm:$0xff]
  %v5337 = vld [vmem:[%s3 + $0x28] sm:$0xff]
  %v5338 = vld [vmem:[%s3 + $0x30] sm:$0xff]
  %v5339 = vld [vmem:[%s3 + $0x38] sm:$0xff]
  %v5340 = vld [vmem:[%s3 + $0x40] sm:$0xff]
  %v5341 = vld [vmem:[%s3 + $0x48] sm:$0xff]
  %v5342 = vld [vmem:[%s3 + $0x50] sm:$0xff]
  %v5343 = vld [vmem:[%s3 + $0x58] sm:$0xff]
  %v5344 = vld [vmem:[%s3 + $0x60] sm:$0xff]
  %v5345 = vld [vmem:[%s3 + $0x68] sm:$0xff]
  %v5346 = vld [vmem:[%s3 + $0x70] sm:$0xff]
  %v5347 = vld [vmem:[%s3 + $0x78] sm:$0xff]
  %v5348 = vld [vmem:[%s3 + $0x80] sm:$0xff]
  %v5349 = vld [vmem:[%s3 + $0x88] sm:$0xff]
  %v5350 = vld [vmem:[%s3 + $0x90] sm:$0xff]
  %v5351 = vld [vmem:[%s3 + $0x98] sm:$0xff]
  %v5352 = vld [vmem:[%s3 + $0xa0] sm:$0xff]
  %v5353 = vld [vmem:[%s3 + $0xa8] sm:$0xff]
  %v5354 = vld [vmem:[%s3 + $0xb0] sm:$0xff]
  %v5355 = vld [vmem:[%s3 + $0xb8] sm:$0xff]
  %v5356 = vld [vmem:[%s3 + $0xc0] sm:$0xff]
  %v5357 = vld [vmem:[%s3 + $0xc8] sm:$0xff]
  %v5358 = vld [vmem:[%s3 + $0xd0] sm:$0xff]
  %v5359 = vld [vmem:[%s3 + $0xd8] sm:$0xff]
  %v5360 = vld [vmem:[%s3 + $0xe0] sm:$0xff]
  %v5361 = vld [vmem:[%s3 + $0xe8] sm:$0xff]
  %v5362 = vld [vmem:[%s3 + $0xf0] sm:$0xff]
  %v5363 = vld [vmem:[%s3 + $0xf8] sm:$0xff]
  %v5364 = vld [vmem:[%s3 + $0x100] sm:$0xff]
  %v5365 = vld [vmem:[%s3 + $0x108] sm:$0xff]
  %v5366 = vld [vmem:[%s3 + $0x110] sm:$0xff]
  %v5367 = vld [vmem:[%s3 + $0x118] sm:$0xff]
  %v5368 = vld [vmem:[%s3 + $0x120] sm:$0xff]
  %v5369 = vld [vmem:[%s3 + $0x128] sm:$0xff]
  %v5370 = vld [vmem:[%s3 + $0x130] sm:$0xff]
  %v5371 = vld [vmem:[%s3 + $0x138] sm:$0xff]
  %v5372 = vld [vmem:[%s3 + $0x140] sm:$0xff]
  %v5373 = vld [vmem:[%s3 + $0x148] sm:$0xff]
  %v5374 = vld [vmem:[%s3 + $0x150] sm:$0xff]
  %v5375 = vld [vmem:[%s3 + $0x158] sm:$0xff]
  %v5376 = vld [vmem:[%s3 + $0x160] sm:$0xff]
  %v5377 = vld [vmem:[%s3 + $0x168] sm:$0xff]
  %v5378 = vld [vmem:[%s3 + $0x170] sm:$0xff]
  %v5379 = vld [vmem:[%s3 + $0x178] sm:$0xff]
  %v5380 = vld [vmem:[%s3 + $0x180] sm:$0xff]
  %v5381 = vld [vmem:[%s3 + $0x188] sm:$0xff]
  %v5382 = vld [vmem:[%s3 + $0x190] sm:$0xff]
  %v5383 = vld [vmem:[%s3 + $0x198] sm:$0xff]
  %v5384 = vld [vmem:[%s3 + $0x1a0] sm:$0xff]
  %v5385 = vld [vmem:[%s3 + $0x1a8] sm:$0xff]
  %v5386 = vld [vmem:[%s3 + $0x1b0] sm:$0xff]
  %v5387 = vld [vmem:[%s3 + $0x1b8] sm:$0xff]
  %v5388 = vld [vmem:[%s3 + $0x1c0] sm:$0xff]
  %v5389 = vld [vmem:[%s3 + $0x1c8] sm:$0xff]
  %v5390 = vld [vmem:[%s3 + $0x1d0] sm:$0xff]
  %v5391 = vld [vmem:[%s3 + $0x1d8] sm:$0xff]
  %v5392 = vld [vmem:[%s3 + $0x1e0] sm:$0xff]
  %v5393 = vld [vmem:[%s3 + $0x1e8] sm:$0xff]
  %v5394 = vld [vmem:[%s3 + $0x1f0] sm:$0xff]
  %v5395 = vld [vmem:[%s3 + $0x1f8] sm:$0xff]
  %5396 = vmatpush.msra.mxu0 %v5392
  %5397 = vmatpush.msra.mxu0 %v5388
  %5398 = vmatpush.msra.mxu0 %v5384
  %5399 = vmatpush.msra.mxu0 %v5380
  %5400 = vmatpush.msra.mxu0 %v5376
  %5401 = vmatpush.msra.mxu0 %v5372
  %5402 = vmatpush.msra.mxu0 %v5368
  %5403 = vmatpush.msra.mxu0 %v5364
  %5404 = vmatpush.msra.mxu0 %v5360
  %5405 = vmatpush.msra.mxu0 %v5356
  %5406 = vmatpush.msra.mxu0 %v5352
  %5407 = vmatpush.msra.mxu0 %v5348
  %5408 = vmatpush.msra.mxu0 %v5344
  %5409 = vmatpush.msra.mxu0 %v5340
  %5410 = vmatpush.msra.mxu0 %v5336
  %5411 = vmatpush.msra.mxu0 %v5332
  %5412 = vmatmul.f32.gmra.mxu0 %v5329
  %v5413 = vpop.f32.mrf.mxu0
  %v5414 = vadd.f32 %v725, %v5413
  %5415 = vdwg.mxu0
  %5416 = vmatpush.msra.mxu0 %v5393
  %5417 = vmatpush.msra.mxu0 %v5389
  %5418 = vmatpush.msra.mxu0 %v5385
  %5419 = vmatpush.msra.mxu0 %v5381
  %5420 = vmatpush.msra.mxu0 %v5377
  %5421 = vmatpush.msra.mxu0 %v5373
  %5422 = vmatpush.msra.mxu0 %v5369
  %5423 = vmatpush.msra.mxu0 %v5365
  %5424 = vmatpush.msra.mxu0 %v5361
  %5425 = vmatpush.msra.mxu0 %v5357
  %5426 = vmatpush.msra.mxu0 %v5353
  %5427 = vmatpush.msra.mxu0 %v5349
  %5428 = vmatpush.msra.mxu0 %v5345
  %5429 = vmatpush.msra.mxu0 %v5341
  %5430 = vmatpush.msra.mxu0 %v5337
  %5431 = vmatpush.msra.mxu0 %v5333
  %5432 = vmatmul.f32.gmra.mxu0 %v5329
  %v5433 = vpop.f32.mrf.mxu0
  %v5434 = vadd.f32 %v726, %v5433
  %5435 = vdwg.mxu0
  %5436 = vmatpush.msra.mxu0 %v5394
  %5437 = vmatpush.msra.mxu0 %v5390
  %5438 = vmatpush.msra.mxu0 %v5386
  %5439 = vmatpush.msra.mxu0 %v5382
  %5440 = vmatpush.msra.mxu0 %v5378
  %5441 = vmatpush.msra.mxu0 %v5374
  %5442 = vmatpush.msra.mxu0 %v5370
  %5443 = vmatpush.msra.mxu0 %v5366
  %5444 = vmatpush.msra.mxu0 %v5362
  %5445 = vmatpush.msra.mxu0 %v5358
  %5446 = vmatpush.msra.mxu0 %v5354
  %5447 = vmatpush.msra.mxu0 %v5350
  %5448 = vmatpush.msra.mxu0 %v5346
  %5449 = vmatpush.msra.mxu0 %v5342
  %5450 = vmatpush.msra.mxu0 %v5338
  %5451 = vmatpush.msra.mxu0 %v5334
  %5452 = vmatmul.f32.gmra.mxu0 %v5329
  %v5453 = vpop.f32.mrf.mxu0
  %v5454 = vadd.f32 %v727, %v5453
  %5455 = vdwg.mxu0
  %5456 = vmatpush.msra.mxu0 %v5395
  %5457 = vmatpush.msra.mxu0 %v5391
  %5458 = vmatpush.msra.mxu0 %v5387
  %5459 = vmatpush.msra.mxu0 %v5383
  %5460 = vmatpush.msra.mxu0 %v5379
  %5461 = vmatpush.msra.mxu0 %v5375
  %5462 = vmatpush.msra.mxu0 %v5371
  %5463 = vmatpush.msra.mxu0 %v5367
  %5464 = vmatpush.msra.mxu0 %v5363
  %5465 = vmatpush.msra.mxu0 %v5359
  %5466 = vmatpush.msra.mxu0 %v5355
  %5467 = vmatpush.msra.mxu0 %v5351
  %5468 = vmatpush.msra.mxu0 %v5347
  %5469 = vmatpush.msra.mxu0 %v5343
  %5470 = vmatpush.msra.mxu0 %v5339
  %5471 = vmatpush.msra.mxu0 %v5335
  %5472 = vmatmul.f32.gmra.mxu0 %v5329
  %v5473 = vpop.f32.mrf.mxu0
  %v5474 = vadd.f32 %v728, %v5473
  %5475 = vdwg.mxu0
  %s5476 = smul.u32 8, 4
  %s5477 = smul.addr %s5476, 8
  %s5478 = scalar_lea.vmem [#allocation2], %s5477
  %v5479 = vld [vmem:[%s5478] sm:$0xff]
  %v5480 = vld [vmem:[%s5478 + $0x8] sm:$0xff]
  %v5481 = vld [vmem:[%s5478 + $0x10] sm:$0xff]
  %v5482 = vld [vmem:[%s5478 + $0x18] sm:$0xff]
  %v5483 = vadd.f32 %v5479, %v5121
  %v5484 = vadd.f32 %v5480, %v5141
  %v5485 = vadd.f32 %v5481, %v5161
  %v5486 = vadd.f32 %v5482, %v5181
  %v5487 = vxor.u32 %v5483, 2147483648
  %v5488 = vxor.u32 %v5484, 2147483648
  %v5489 = vmul.f32 %v5487, 1.442695
  %v5490 = vpow.pop %v5489
  %v5491 = vmul.f32 %v5488, 1.442695
  %v5492 = vpow.pop %v5491
  %v5493 = vadd.f32 %v5490, 1.0
  %v5494 = vadd.f32 %v5492, 1.0
  %v5495 = vrcp.pop %v5493
  %v5496 = vmul.f32 %v5493, %v5495
  %v5497 = vsub.f32 1.0, %v5496
  %v5498 = vmul.f32 %v5495, %v5497
  %v5499 = vadd.f32 %v5495, %v5498
  %vm5500 = vweird.f32 %v5493
  %vm5501 = vweird.f32 %v5495
  %vm5502 = vmor %vm5500, %vm5501
  %v5503 = vsel %vm5502, %v5495, %v5499
  %v5504 = vand.u32 2147483647, %v5493
  %vm5505 = vcmp.eq.f32.partialorder %v5504, 8.507059e+37
  %v5506 = vand.u32 %v5493, 2147483648
  %v5507 = vor.u32 1.1754944e-38, %v5506
  %v5508 = vsel %vm5505, %v5507, %v5503
  %v5509 = vmul.f32 1.0, %v5508
  %v5510 = vrcp.pop %v5494
  %v5511 = vmul.f32 %v5494, %v5510
  %v5512 = vsub.f32 1.0, %v5511
  %v5513 = vmul.f32 %v5510, %v5512
  %v5514 = vadd.f32 %v5510, %v5513
  %vm5515 = vweird.f32 %v5494
  %vm5516 = vweird.f32 %v5510
  %vm5517 = vmor %vm5515, %vm5516
  %v5518 = vsel %vm5517, %v5510, %v5514
  %v5519 = vand.u32 2147483647, %v5494
  %vm5520 = vcmp.eq.f32.partialorder %v5519, 8.507059e+37
  %v5521 = vand.u32 %v5494, 2147483648
  %v5522 = vor.u32 1.1754944e-38, %v5521
  %v5523 = vsel %vm5520, %v5522, %v5518
  %v5524 = vmul.f32 1.0, %v5523
  %v5525 = vtanh.pop %v5485
  %v5526 = vxor.u32 %v5486, 2147483648
  %v5527 = vmul.f32 %v5526, 1.442695
  %v5528 = vpow.pop %v5527
  %v5529 = vadd.f32 %v5528, 1.0
  %v5530 = vrcp.pop %v5529
  %v5531 = vmul.f32 %v5529, %v5530
  %v5532 = vsub.f32 1.0, %v5531
  %v5533 = vmul.f32 %v5530, %v5532
  %v5534 = vadd.f32 %v5530, %v5533
  %vm5535 = vweird.f32 %v5529
  %vm5536 = vweird.f32 %v5530
  %vm5537 = vmor %vm5535, %vm5536
  %v5538 = vsel %vm5537, %v5530, %v5534
  %v5539 = vand.u32 2147483647, %v5529
  %vm5540 = vcmp.eq.f32.partialorder %v5539, 8.507059e+37
  %v5541 = vand.u32 %v5529, 2147483648
  %v5542 = vor.u32 1.1754944e-38, %v5541
  %v5543 = vsel %vm5540, %v5542, %v5538
  %v5544 = vmul.f32 1.0, %v5543
  %v5545 = vmul.f32 %v5524, %v4972
  %v5546 = vmul.f32 %v5509, %v5525
  %v5547 = vadd.f32 %v5545, %v5546
  %v5548 = vtanh.pop %v5547
  %v5549 = vmul.f32 %v5544, %v5548
  %v5550 = vld [vmem:[%s2] sm:$0xff]
  %v5551 = vld [vmem:[%s2 + $0x8] sm:$0xff]
  %v5552 = vld [vmem:[%s2 + $0x10] sm:$0xff]
  %v5553 = vld [vmem:[%s2 + $0x18] sm:$0xff]
  %v5554 = vld [vmem:[%s2 + $0x20] sm:$0xff]
  %v5555 = vld [vmem:[%s2 + $0x28] sm:$0xff]
  %v5556 = vld [vmem:[%s2 + $0x30] sm:$0xff]
  %v5557 = vld [vmem:[%s2 + $0x38] sm:$0xff]
  %v5558 = vld [vmem:[%s2 + $0x40] sm:$0xff]
  %v5559 = vld [vmem:[%s2 + $0x48] sm:$0xff]
  %v5560 = vld [vmem:[%s2 + $0x50] sm:$0xff]
  %v5561 = vld [vmem:[%s2 + $0x58] sm:$0xff]
  %v5562 = vld [vmem:[%s2 + $0x60] sm:$0xff]
  %v5563 = vld [vmem:[%s2 + $0x68] sm:$0xff]
  %v5564 = vld [vmem:[%s2 + $0x70] sm:$0xff]
  %v5565 = vld [vmem:[%s2 + $0x78] sm:$0xff]
  %v5566 = vld [vmem:[%s2 + $0x80] sm:$0xff]
  %v5567 = vld [vmem:[%s2 + $0x88] sm:$0xff]
  %v5568 = vld [vmem:[%s2 + $0x90] sm:$0xff]
  %v5569 = vld [vmem:[%s2 + $0x98] sm:$0xff]
  %v5570 = vld [vmem:[%s2 + $0xa0] sm:$0xff]
  %v5571 = vld [vmem:[%s2 + $0xa8] sm:$0xff]
  %v5572 = vld [vmem:[%s2 + $0xb0] sm:$0xff]
  %v5573 = vld [vmem:[%s2 + $0xb8] sm:$0xff]
  %v5574 = vld [vmem:[%s2 + $0xc0] sm:$0xff]
  %v5575 = vld [vmem:[%s2 + $0xc8] sm:$0xff]
  %v5576 = vld [vmem:[%s2 + $0xd0] sm:$0xff]
  %v5577 = vld [vmem:[%s2 + $0xd8] sm:$0xff]
  %v5578 = vld [vmem:[%s2 + $0xe0] sm:$0xff]
  %v5579 = vld [vmem:[%s2 + $0xe8] sm:$0xff]
  %v5580 = vld [vmem:[%s2 + $0xf0] sm:$0xff]
  %v5581 = vld [vmem:[%s2 + $0xf8] sm:$0xff]
  %v5582 = vld [vmem:[%s2 + $0x100] sm:$0xff]
  %v5583 = vld [vmem:[%s2 + $0x108] sm:$0xff]
  %v5584 = vld [vmem:[%s2 + $0x110] sm:$0xff]
  %v5585 = vld [vmem:[%s2 + $0x118] sm:$0xff]
  %v5586 = vld [vmem:[%s2 + $0x120] sm:$0xff]
  %v5587 = vld [vmem:[%s2 + $0x128] sm:$0xff]
  %v5588 = vld [vmem:[%s2 + $0x130] sm:$0xff]
  %v5589 = vld [vmem:[%s2 + $0x138] sm:$0xff]
  %v5590 = vld [vmem:[%s2 + $0x140] sm:$0xff]
  %v5591 = vld [vmem:[%s2 + $0x148] sm:$0xff]
  %v5592 = vld [vmem:[%s2 + $0x150] sm:$0xff]
  %v5593 = vld [vmem:[%s2 + $0x158] sm:$0xff]
  %v5594 = vld [vmem:[%s2 + $0x160] sm:$0xff]
  %v5595 = vld [vmem:[%s2 + $0x168] sm:$0xff]
  %v5596 = vld [vmem:[%s2 + $0x170] sm:$0xff]
  %v5597 = vld [vmem:[%s2 + $0x178] sm:$0xff]
  %v5598 = vld [vmem:[%s2 + $0x180] sm:$0xff]
  %v5599 = vld [vmem:[%s2 + $0x188] sm:$0xff]
  %v5600 = vld [vmem:[%s2 + $0x190] sm:$0xff]
  %v5601 = vld [vmem:[%s2 + $0x198] sm:$0xff]
  %v5602 = vld [vmem:[%s2 + $0x1a0] sm:$0xff]
  %v5603 = vld [vmem:[%s2 + $0x1a8] sm:$0xff]
  %v5604 = vld [vmem:[%s2 + $0x1b0] sm:$0xff]
  %v5605 = vld [vmem:[%s2 + $0x1b8] sm:$0xff]
  %v5606 = vld [vmem:[%s2 + $0x1c0] sm:$0xff]
  %v5607 = vld [vmem:[%s2 + $0x1c8] sm:$0xff]
  %v5608 = vld [vmem:[%s2 + $0x1d0] sm:$0xff]
  %v5609 = vld [vmem:[%s2 + $0x1d8] sm:$0xff]
  %v5610 = vld [vmem:[%s2 + $0x1e0] sm:$0xff]
  %v5611 = vld [vmem:[%s2 + $0x1e8] sm:$0xff]
  %v5612 = vld [vmem:[%s2 + $0x1f0] sm:$0xff]
  %v5613 = vld [vmem:[%s2 + $0x1f8] sm:$0xff]
  %v5614 = vld [vmem:[%s2 + $0x200] sm:$0xff]
  %v5615 = vld [vmem:[%s2 + $0x208] sm:$0xff]
  %v5616 = vld [vmem:[%s2 + $0x210] sm:$0xff]
  %v5617 = vld [vmem:[%s2 + $0x218] sm:$0xff]
  %v5618 = vld [vmem:[%s2 + $0x220] sm:$0xff]
  %v5619 = vld [vmem:[%s2 + $0x228] sm:$0xff]
  %v5620 = vld [vmem:[%s2 + $0x230] sm:$0xff]
  %v5621 = vld [vmem:[%s2 + $0x238] sm:$0xff]
  %v5622 = vld [vmem:[%s2 + $0x240] sm:$0xff]
  %v5623 = vld [vmem:[%s2 + $0x248] sm:$0xff]
  %v5624 = vld [vmem:[%s2 + $0x250] sm:$0xff]
  %v5625 = vld [vmem:[%s2 + $0x258] sm:$0xff]
  %v5626 = vld [vmem:[%s2 + $0x260] sm:$0xff]
  %v5627 = vld [vmem:[%s2 + $0x268] sm:$0xff]
  %v5628 = vld [vmem:[%s2 + $0x270] sm:$0xff]
  %v5629 = vld [vmem:[%s2 + $0x278] sm:$0xff]
  %v5630 = vld [vmem:[%s2 + $0x280] sm:$0xff]
  %v5631 = vld [vmem:[%s2 + $0x288] sm:$0xff]
  %v5632 = vld [vmem:[%s2 + $0x290] sm:$0xff]
  %v5633 = vld [vmem:[%s2 + $0x298] sm:$0xff]
  %v5634 = vld [vmem:[%s2 + $0x2a0] sm:$0xff]
  %v5635 = vld [vmem:[%s2 + $0x2a8] sm:$0xff]
  %v5636 = vld [vmem:[%s2 + $0x2b0] sm:$0xff]
  %v5637 = vld [vmem:[%s2 + $0x2b8] sm:$0xff]
  %v5638 = vld [vmem:[%s2 + $0x2c0] sm:$0xff]
  %v5639 = vld [vmem:[%s2 + $0x2c8] sm:$0xff]
  %v5640 = vld [vmem:[%s2 + $0x2d0] sm:$0xff]
  %v5641 = vld [vmem:[%s2 + $0x2d8] sm:$0xff]
  %v5642 = vld [vmem:[%s2 + $0x2e0] sm:$0xff]
  %v5643 = vld [vmem:[%s2 + $0x2e8] sm:$0xff]
  %v5644 = vld [vmem:[%s2 + $0x2f0] sm:$0xff]
  %v5645 = vld [vmem:[%s2 + $0x2f8] sm:$0xff]
  %v5646 = vld [vmem:[%s2 + $0x300] sm:$0xff]
  %v5647 = vld [vmem:[%s2 + $0x308] sm:$0xff]
  %v5648 = vld [vmem:[%s2 + $0x310] sm:$0xff]
  %v5649 = vld [vmem:[%s2 + $0x318] sm:$0xff]
  %v5650 = vld [vmem:[%s2 + $0x320] sm:$0xff]
  %v5651 = vld [vmem:[%s2 + $0x328] sm:$0xff]
  %v5652 = vld [vmem:[%s2 + $0x330] sm:$0xff]
  %v5653 = vld [vmem:[%s2 + $0x338] sm:$0xff]
  %v5654 = vld [vmem:[%s2 + $0x340] sm:$0xff]
  %v5655 = vld [vmem:[%s2 + $0x348] sm:$0xff]
  %v5656 = vld [vmem:[%s2 + $0x350] sm:$0xff]
  %v5657 = vld [vmem:[%s2 + $0x358] sm:$0xff]
  %v5658 = vld [vmem:[%s2 + $0x360] sm:$0xff]
  %v5659 = vld [vmem:[%s2 + $0x368] sm:$0xff]
  %v5660 = vld [vmem:[%s2 + $0x370] sm:$0xff]
  %v5661 = vld [vmem:[%s2 + $0x378] sm:$0xff]
  %v5662 = vld [vmem:[%s2 + $0x380] sm:$0xff]
  %v5663 = vld [vmem:[%s2 + $0x388] sm:$0xff]
  %v5664 = vld [vmem:[%s2 + $0x390] sm:$0xff]
  %v5665 = vld [vmem:[%s2 + $0x398] sm:$0xff]
  %v5666 = vld [vmem:[%s2 + $0x3a0] sm:$0xff]
  %v5667 = vld [vmem:[%s2 + $0x3a8] sm:$0xff]
  %v5668 = vld [vmem:[%s2 + $0x3b0] sm:$0xff]
  %v5669 = vld [vmem:[%s2 + $0x3b8] sm:$0xff]
  %v5670 = vld [vmem:[%s2 + $0x3c0] sm:$0xff]
  %v5671 = vld [vmem:[%s2 + $0x3c8] sm:$0xff]
  %v5672 = vld [vmem:[%s2 + $0x3d0] sm:$0xff]
  %v5673 = vld [vmem:[%s2 + $0x3d8] sm:$0xff]
  %v5674 = vld [vmem:[%s2 + $0x3e0] sm:$0xff]
  %v5675 = vld [vmem:[%s2 + $0x3e8] sm:$0xff]
  %v5676 = vld [vmem:[%s2 + $0x3f0] sm:$0xff]
  %v5677 = vld [vmem:[%s2 + $0x3f8] sm:$0xff]
  %5678 = vmatpush.msra.mxu0 %v5670
  %5679 = vmatpush.msra.mxu0 %v5662
  %5680 = vmatpush.msra.mxu0 %v5654
  %5681 = vmatpush.msra.mxu0 %v5646
  %5682 = vmatpush.msra.mxu0 %v5638
  %5683 = vmatpush.msra.mxu0 %v5630
  %5684 = vmatpush.msra.mxu0 %v5622
  %5685 = vmatpush.msra.mxu0 %v5614
  %5686 = vmatpush.msra.mxu0 %v5606
  %5687 = vmatpush.msra.mxu0 %v5598
  %5688 = vmatpush.msra.mxu0 %v5590
  %5689 = vmatpush.msra.mxu0 %v5582
  %5690 = vmatpush.msra.mxu0 %v5574
  %5691 = vmatpush.msra.mxu0 %v5566
  %5692 = vmatpush.msra.mxu0 %v5558
  %5693 = vmatpush.msra.mxu0 %v5550
  %5694 = vmatmul.f32.gmra.mxu0 %v5549
  %v5695 = vpop.f32.mrf.mxu0
  %v5696 = vadd.f32 0.0, %v5695
  %5697 = vdwg.mxu0
  %5698 = vmatpush.msra.mxu0 %v5671
  %5699 = vmatpush.msra.mxu0 %v5663
  %5700 = vmatpush.msra.mxu0 %v5655
  %5701 = vmatpush.msra.mxu0 %v5647
  %5702 = vmatpush.msra.mxu0 %v5639
  %5703 = vmatpush.msra.mxu0 %v5631
  %5704 = vmatpush.msra.mxu0 %v5623
  %5705 = vmatpush.msra.mxu0 %v5615
  %5706 = vmatpush.msra.mxu0 %v5607
  %5707 = vmatpush.msra.mxu0 %v5599
  %5708 = vmatpush.msra.mxu0 %v5591
  %5709 = vmatpush.msra.mxu0 %v5583
  %5710 = vmatpush.msra.mxu0 %v5575
  %5711 = vmatpush.msra.mxu0 %v5567
  %5712 = vmatpush.msra.mxu0 %v5559
  %5713 = vmatpush.msra.mxu0 %v5551
  %5714 = vmatmul.f32.gmra.mxu0 %v5549
  %v5715 = vpop.f32.mrf.mxu0
  %v5716 = vadd.f32 0.0, %v5715
  %5717 = vdwg.mxu0
  %5718 = vmatpush.msra.mxu0 %v5672
  %5719 = vmatpush.msra.mxu0 %v5664
  %5720 = vmatpush.msra.mxu0 %v5656
  %5721 = vmatpush.msra.mxu0 %v5648
  %5722 = vmatpush.msra.mxu0 %v5640
  %5723 = vmatpush.msra.mxu0 %v5632
  %5724 = vmatpush.msra.mxu0 %v5624
  %5725 = vmatpush.msra.mxu0 %v5616
  %5726 = vmatpush.msra.mxu0 %v5608
  %5727 = vmatpush.msra.mxu0 %v5600
  %5728 = vmatpush.msra.mxu0 %v5592
  %5729 = vmatpush.msra.mxu0 %v5584
  %5730 = vmatpush.msra.mxu0 %v5576
  %5731 = vmatpush.msra.mxu0 %v5568
  %5732 = vmatpush.msra.mxu0 %v5560
  %5733 = vmatpush.msra.mxu0 %v5552
  %5734 = vmatmul.f32.gmra.mxu0 %v5549
  %v5735 = vpop.f32.mrf.mxu0
  %v5736 = vadd.f32 0.0, %v5735
  %5737 = vdwg.mxu0
  %5738 = vmatpush.msra.mxu0 %v5673
  %5739 = vmatpush.msra.mxu0 %v5665
  %5740 = vmatpush.msra.mxu0 %v5657
  %5741 = vmatpush.msra.mxu0 %v5649
  %5742 = vmatpush.msra.mxu0 %v5641
  %5743 = vmatpush.msra.mxu0 %v5633
  %5744 = vmatpush.msra.mxu0 %v5625
  %5745 = vmatpush.msra.mxu0 %v5617
  %5746 = vmatpush.msra.mxu0 %v5609
  %5747 = vmatpush.msra.mxu0 %v5601
  %5748 = vmatpush.msra.mxu0 %v5593
  %5749 = vmatpush.msra.mxu0 %v5585
  %5750 = vmatpush.msra.mxu0 %v5577
  %5751 = vmatpush.msra.mxu0 %v5569
  %5752 = vmatpush.msra.mxu0 %v5561
  %5753 = vmatpush.msra.mxu0 %v5553
  %5754 = vmatmul.f32.gmra.mxu0 %v5549
  %v5755 = vpop.f32.mrf.mxu0
  %v5756 = vadd.f32 0.0, %v5755
  %5757 = vdwg.mxu0
  %5758 = vmatpush.msra.mxu0 %v5674
  %5759 = vmatpush.msra.mxu0 %v5666
  %5760 = vmatpush.msra.mxu0 %v5658
  %5761 = vmatpush.msra.mxu0 %v5650
  %5762 = vmatpush.msra.mxu0 %v5642
  %5763 = vmatpush.msra.mxu0 %v5634
  %5764 = vmatpush.msra.mxu0 %v5626
  %5765 = vmatpush.msra.mxu0 %v5618
  %5766 = vmatpush.msra.mxu0 %v5610
  %5767 = vmatpush.msra.mxu0 %v5602
  %5768 = vmatpush.msra.mxu0 %v5594
  %5769 = vmatpush.msra.mxu0 %v5586
  %5770 = vmatpush.msra.mxu0 %v5578
  %5771 = vmatpush.msra.mxu0 %v5570
  %5772 = vmatpush.msra.mxu0 %v5562
  %5773 = vmatpush.msra.mxu0 %v5554
  %5774 = vmatmul.f32.gmra.mxu0 %v5549
  %v5775 = vpop.f32.mrf.mxu0
  %v5776 = vadd.f32 0.0, %v5775
  %5777 = vdwg.mxu0
  %5778 = vmatpush.msra.mxu0 %v5675
  %5779 = vmatpush.msra.mxu0 %v5667
  %5780 = vmatpush.msra.mxu0 %v5659
  %5781 = vmatpush.msra.mxu0 %v5651
  %5782 = vmatpush.msra.mxu0 %v5643
  %5783 = vmatpush.msra.mxu0 %v5635
  %5784 = vmatpush.msra.mxu0 %v5627
  %5785 = vmatpush.msra.mxu0 %v5619
  %5786 = vmatpush.msra.mxu0 %v5611
  %5787 = vmatpush.msra.mxu0 %v5603
  %5788 = vmatpush.msra.mxu0 %v5595
  %5789 = vmatpush.msra.mxu0 %v5587
  %5790 = vmatpush.msra.mxu0 %v5579
  %5791 = vmatpush.msra.mxu0 %v5571
  %5792 = vmatpush.msra.mxu0 %v5563
  %5793 = vmatpush.msra.mxu0 %v5555
  %5794 = vmatmul.f32.gmra.mxu0 %v5549
  %v5795 = vpop.f32.mrf.mxu0
  %v5796 = vadd.f32 0.0, %v5795
  %5797 = vdwg.mxu0
  %5798 = vmatpush.msra.mxu0 %v5676
  %5799 = vmatpush.msra.mxu0 %v5668
  %5800 = vmatpush.msra.mxu0 %v5660
  %5801 = vmatpush.msra.mxu0 %v5652
  %5802 = vmatpush.msra.mxu0 %v5644
  %5803 = vmatpush.msra.mxu0 %v5636
  %5804 = vmatpush.msra.mxu0 %v5628
  %5805 = vmatpush.msra.mxu0 %v5620
  %5806 = vmatpush.msra.mxu0 %v5612
  %5807 = vmatpush.msra.mxu0 %v5604
  %5808 = vmatpush.msra.mxu0 %v5596
  %5809 = vmatpush.msra.mxu0 %v5588
  %5810 = vmatpush.msra.mxu0 %v5580
  %5811 = vmatpush.msra.mxu0 %v5572
  %5812 = vmatpush.msra.mxu0 %v5564
  %5813 = vmatpush.msra.mxu0 %v5556
  %5814 = vmatmul.f32.gmra.mxu0 %v5549
  %v5815 = vpop.f32.mrf.mxu0
  %v5816 = vadd.f32 0.0, %v5815
  %5817 = vdwg.mxu0
  %5818 = vmatpush.msra.mxu0 %v5677
  %5819 = vmatpush.msra.mxu0 %v5669
  %5820 = vmatpush.msra.mxu0 %v5661
  %5821 = vmatpush.msra.mxu0 %v5653
  %5822 = vmatpush.msra.mxu0 %v5645
  %5823 = vmatpush.msra.mxu0 %v5637
  %5824 = vmatpush.msra.mxu0 %v5629
  %5825 = vmatpush.msra.mxu0 %v5621
  %5826 = vmatpush.msra.mxu0 %v5613
  %5827 = vmatpush.msra.mxu0 %v5605
  %5828 = vmatpush.msra.mxu0 %v5597
  %5829 = vmatpush.msra.mxu0 %v5589
  %5830 = vmatpush.msra.mxu0 %v5581
  %5831 = vmatpush.msra.mxu0 %v5573
  %5832 = vmatpush.msra.mxu0 %v5565
  %5833 = vmatpush.msra.mxu0 %v5557
  %5834 = vmatmul.f32.gmra.mxu0 %v5549
  %v5835 = vpop.f32.mrf.mxu0
  %v5836 = vadd.f32 0.0, %v5835
  %5837 = vdwg.mxu0
  %v5838 = vadd.f32 %v5414, %v5776
  %v5839 = vadd.f32 %v5434, %v5796
  %v5840 = vadd.f32 %v5454, %v5816
  %v5841 = vadd.f32 %v5474, %v5836
  %v5842 = vxor.u32 %v5838, 2147483648
  %v5843 = vxor.u32 %v5839, 2147483648
  %v5844 = vmul.f32 %v5842, 1.442695
  %v5845 = vpow.pop %v5844
  %v5846 = vmul.f32 %v5843, 1.442695
  %v5847 = vpow.pop %v5846
  %v5848 = vadd.f32 %v5845, 1.0
  %v5849 = vadd.f32 %v5847, 1.0
  %v5850 = vrcp.pop %v5848
  %v5851 = vmul.f32 %v5848, %v5850
  %v5852 = vsub.f32 1.0, %v5851
  %v5853 = vmul.f32 %v5850, %v5852
  %v5854 = vadd.f32 %v5850, %v5853
  %vm5855 = vweird.f32 %v5848
  %vm5856 = vweird.f32 %v5850
  %vm5857 = vmor %vm5855, %vm5856
  %v5858 = vsel %vm5857, %v5850, %v5854
  %v5859 = vand.u32 2147483647, %v5848
  %vm5860 = vcmp.eq.f32.partialorder %v5859, 8.507059e+37
  %v5861 = vand.u32 %v5848, 2147483648
  %v5862 = vor.u32 1.1754944e-38, %v5861
  %v5863 = vsel %vm5860, %v5862, %v5858
  %v5864 = vmul.f32 1.0, %v5863
  %v5865 = vrcp.pop %v5849
  %v5866 = vmul.f32 %v5849, %v5865
  %v5867 = vsub.f32 1.0, %v5866
  %v5868 = vmul.f32 %v5865, %v5867
  %v5869 = vadd.f32 %v5865, %v5868
  %vm5870 = vweird.f32 %v5849
  %vm5871 = vweird.f32 %v5865
  %vm5872 = vmor %vm5870, %vm5871
  %v5873 = vsel %vm5872, %v5865, %v5869
  %v5874 = vand.u32 2147483647, %v5849
  %vm5875 = vcmp.eq.f32.partialorder %v5874, 8.507059e+37
  %v5876 = vand.u32 %v5849, 2147483648
  %v5877 = vor.u32 1.1754944e-38, %v5876
  %v5878 = vsel %vm5875, %v5877, %v5873
  %v5879 = vmul.f32 1.0, %v5878
  %v5880 = vtanh.pop %v5840
  %v5881 = vxor.u32 %v5841, 2147483648
  %v5882 = vmul.f32 %v5881, 1.442695
  %v5883 = vpow.pop %v5882
  %v5884 = vadd.f32 %v5883, 1.0
  %v5885 = vrcp.pop %v5884
  %v5886 = vmul.f32 %v5884, %v5885
  %v5887 = vsub.f32 1.0, %v5886
  %v5888 = vmul.f32 %v5885, %v5887
  %v5889 = vadd.f32 %v5885, %v5888
  %vm5890 = vweird.f32 %v5884
  %vm5891 = vweird.f32 %v5885
  %vm5892 = vmor %vm5890, %vm5891
  %v5893 = vsel %vm5892, %v5885, %v5889
  %v5894 = vand.u32 2147483647, %v5884
  %vm5895 = vcmp.eq.f32.partialorder %v5894, 8.507059e+37
  %v5896 = vand.u32 %v5884, 2147483648
  %v5897 = vor.u32 1.1754944e-38, %v5896
  %v5898 = vsel %vm5895, %v5897, %v5893
  %v5899 = vmul.f32 1.0, %v5898
  %v5900 = vmul.f32 %v5879, %v5327
  %v5901 = vmul.f32 %v5864, %v5880
  %v5902 = vadd.f32 %v5900, %v5901
  %v5903 = vtanh.pop %v5902
  %v5904 = vmul.f32 %v5899, %v5903
  %s5905 = scalar_lea.vmem [#allocation3], 64
  %5906 = vst [vmem:[%s5905] sm:$0xff] %v5904
  %v5907 = vld [vmem:[%s3] sm:$0xff]
  %v5908 = vld [vmem:[%s3 + $0x8] sm:$0xff]
  %v5909 = vld [vmem:[%s3 + $0x10] sm:$0xff]
  %v5910 = vld [vmem:[%s3 + $0x18] sm:$0xff]
  %v5911 = vld [vmem:[%s3 + $0x20] sm:$0xff]
  %v5912 = vld [vmem:[%s3 + $0x28] sm:$0xff]
  %v5913 = vld [vmem:[%s3 + $0x30] sm:$0xff]
  %v5914 = vld [vmem:[%s3 + $0x38] sm:$0xff]
  %v5915 = vld [vmem:[%s3 + $0x40] sm:$0xff]
  %v5916 = vld [vmem:[%s3 + $0x48] sm:$0xff]
  %v5917 = vld [vmem:[%s3 + $0x50] sm:$0xff]
  %v5918 = vld [vmem:[%s3 + $0x58] sm:$0xff]
  %v5919 = vld [vmem:[%s3 + $0x60] sm:$0xff]
  %v5920 = vld [vmem:[%s3 + $0x68] sm:$0xff]
  %v5921 = vld [vmem:[%s3 + $0x70] sm:$0xff]
  %v5922 = vld [vmem:[%s3 + $0x78] sm:$0xff]
  %v5923 = vld [vmem:[%s3 + $0x80] sm:$0xff]
  %v5924 = vld [vmem:[%s3 + $0x88] sm:$0xff]
  %v5925 = vld [vmem:[%s3 + $0x90] sm:$0xff]
  %v5926 = vld [vmem:[%s3 + $0x98] sm:$0xff]
  %v5927 = vld [vmem:[%s3 + $0xa0] sm:$0xff]
  %v5928 = vld [vmem:[%s3 + $0xa8] sm:$0xff]
  %v5929 = vld [vmem:[%s3 + $0xb0] sm:$0xff]
  %v5930 = vld [vmem:[%s3 + $0xb8] sm:$0xff]
  %v5931 = vld [vmem:[%s3 + $0xc0] sm:$0xff]
  %v5932 = vld [vmem:[%s3 + $0xc8] sm:$0xff]
  %v5933 = vld [vmem:[%s3 + $0xd0] sm:$0xff]
  %v5934 = vld [vmem:[%s3 + $0xd8] sm:$0xff]
  %v5935 = vld [vmem:[%s3 + $0xe0] sm:$0xff]
  %v5936 = vld [vmem:[%s3 + $0xe8] sm:$0xff]
  %v5937 = vld [vmem:[%s3 + $0xf0] sm:$0xff]
  %v5938 = vld [vmem:[%s3 + $0xf8] sm:$0xff]
  %v5939 = vld [vmem:[%s3 + $0x100] sm:$0xff]
  %v5940 = vld [vmem:[%s3 + $0x108] sm:$0xff]
  %v5941 = vld [vmem:[%s3 + $0x110] sm:$0xff]
  %v5942 = vld [vmem:[%s3 + $0x118] sm:$0xff]
  %v5943 = vld [vmem:[%s3 + $0x120] sm:$0xff]
  %v5944 = vld [vmem:[%s3 + $0x128] sm:$0xff]
  %v5945 = vld [vmem:[%s3 + $0x130] sm:$0xff]
  %v5946 = vld [vmem:[%s3 + $0x138] sm:$0xff]
  %v5947 = vld [vmem:[%s3 + $0x140] sm:$0xff]
  %v5948 = vld [vmem:[%s3 + $0x148] sm:$0xff]
  %v5949 = vld [vmem:[%s3 + $0x150] sm:$0xff]
  %v5950 = vld [vmem:[%s3 + $0x158] sm:$0xff]
  %v5951 = vld [vmem:[%s3 + $0x160] sm:$0xff]
  %v5952 = vld [vmem:[%s3 + $0x168] sm:$0xff]
  %v5953 = vld [vmem:[%s3 + $0x170] sm:$0xff]
  %v5954 = vld [vmem:[%s3 + $0x178] sm:$0xff]
  %v5955 = vld [vmem:[%s3 + $0x180] sm:$0xff]
  %v5956 = vld [vmem:[%s3 + $0x188] sm:$0xff]
  %v5957 = vld [vmem:[%s3 + $0x190] sm:$0xff]
  %v5958 = vld [vmem:[%s3 + $0x198] sm:$0xff]
  %v5959 = vld [vmem:[%s3 + $0x1a0] sm:$0xff]
  %v5960 = vld [vmem:[%s3 + $0x1a8] sm:$0xff]
  %v5961 = vld [vmem:[%s3 + $0x1b0] sm:$0xff]
  %v5962 = vld [vmem:[%s3 + $0x1b8] sm:$0xff]
  %v5963 = vld [vmem:[%s3 + $0x1c0] sm:$0xff]
  %v5964 = vld [vmem:[%s3 + $0x1c8] sm:$0xff]
  %v5965 = vld [vmem:[%s3 + $0x1d0] sm:$0xff]
  %v5966 = vld [vmem:[%s3 + $0x1d8] sm:$0xff]
  %v5967 = vld [vmem:[%s3 + $0x1e0] sm:$0xff]
  %v5968 = vld [vmem:[%s3 + $0x1e8] sm:$0xff]
  %v5969 = vld [vmem:[%s3 + $0x1f0] sm:$0xff]
  %v5970 = vld [vmem:[%s3 + $0x1f8] sm:$0xff]
  %5971 = vmatpush.msra.mxu0 %v5967
  %5972 = vmatpush.msra.mxu0 %v5963
  %5973 = vmatpush.msra.mxu0 %v5959
  %5974 = vmatpush.msra.mxu0 %v5955
  %5975 = vmatpush.msra.mxu0 %v5951
  %5976 = vmatpush.msra.mxu0 %v5947
  %5977 = vmatpush.msra.mxu0 %v5943
  %5978 = vmatpush.msra.mxu0 %v5939
  %5979 = vmatpush.msra.mxu0 %v5935
  %5980 = vmatpush.msra.mxu0 %v5931
  %5981 = vmatpush.msra.mxu0 %v5927
  %5982 = vmatpush.msra.mxu0 %v5923
  %5983 = vmatpush.msra.mxu0 %v5919
  %5984 = vmatpush.msra.mxu0 %v5915
  %5985 = vmatpush.msra.mxu0 %v5911
  %5986 = vmatpush.msra.mxu0 %v5907
  %5987 = vmatmul.f32.gmra.mxu0 %v5904
  %v5988 = vpop.f32.mrf.mxu0
  %v5989 = vadd.f32 %v725, %v5988
  %5990 = vdwg.mxu0
  %5991 = vmatpush.msra.mxu0 %v5968
  %5992 = vmatpush.msra.mxu0 %v5964
  %5993 = vmatpush.msra.mxu0 %v5960
  %5994 = vmatpush.msra.mxu0 %v5956
  %5995 = vmatpush.msra.mxu0 %v5952
  %5996 = vmatpush.msra.mxu0 %v5948
  %5997 = vmatpush.msra.mxu0 %v5944
  %5998 = vmatpush.msra.mxu0 %v5940
  %5999 = vmatpush.msra.mxu0 %v5936
  %6000 = vmatpush.msra.mxu0 %v5932
  %6001 = vmatpush.msra.mxu0 %v5928
  %6002 = vmatpush.msra.mxu0 %v5924
  %6003 = vmatpush.msra.mxu0 %v5920
  %6004 = vmatpush.msra.mxu0 %v5916
  %6005 = vmatpush.msra.mxu0 %v5912
  %6006 = vmatpush.msra.mxu0 %v5908
  %6007 = vmatmul.f32.gmra.mxu0 %v5904
  %v6008 = vpop.f32.mrf.mxu0
  %v6009 = vadd.f32 %v726, %v6008
  %6010 = vdwg.mxu0
  %6011 = vmatpush.msra.mxu0 %v5969
  %6012 = vmatpush.msra.mxu0 %v5965
  %6013 = vmatpush.msra.mxu0 %v5961
  %6014 = vmatpush.msra.mxu0 %v5957
  %6015 = vmatpush.msra.mxu0 %v5953
  %6016 = vmatpush.msra.mxu0 %v5949
  %6017 = vmatpush.msra.mxu0 %v5945
  %6018 = vmatpush.msra.mxu0 %v5941
  %6019 = vmatpush.msra.mxu0 %v5937
  %6020 = vmatpush.msra.mxu0 %v5933
  %6021 = vmatpush.msra.mxu0 %v5929
  %6022 = vmatpush.msra.mxu0 %v5925
  %6023 = vmatpush.msra.mxu0 %v5921
  %6024 = vmatpush.msra.mxu0 %v5917
  %6025 = vmatpush.msra.mxu0 %v5913
  %6026 = vmatpush.msra.mxu0 %v5909
  %6027 = vmatmul.f32.gmra.mxu0 %v5904
  %v6028 = vpop.f32.mrf.mxu0
  %v6029 = vadd.f32 %v727, %v6028
  %6030 = vdwg.mxu0
  %6031 = vmatpush.msra.mxu0 %v5970
  %6032 = vmatpush.msra.mxu0 %v5966
  %6033 = vmatpush.msra.mxu0 %v5962
  %6034 = vmatpush.msra.mxu0 %v5958
  %6035 = vmatpush.msra.mxu0 %v5954
  %6036 = vmatpush.msra.mxu0 %v5950
  %6037 = vmatpush.msra.mxu0 %v5946
  %6038 = vmatpush.msra.mxu0 %v5942
  %6039 = vmatpush.msra.mxu0 %v5938
  %6040 = vmatpush.msra.mxu0 %v5934
  %6041 = vmatpush.msra.mxu0 %v5930
  %6042 = vmatpush.msra.mxu0 %v5926
  %6043 = vmatpush.msra.mxu0 %v5922
  %6044 = vmatpush.msra.mxu0 %v5918
  %6045 = vmatpush.msra.mxu0 %v5914
  %6046 = vmatpush.msra.mxu0 %v5910
  %6047 = vmatmul.f32.gmra.mxu0 %v5904
  %v6048 = vpop.f32.mrf.mxu0
  %v6049 = vadd.f32 %v728, %v6048
  %6050 = vdwg.mxu0
  %s6051 = smul.u32 9, 4
  %s6052 = smul.addr %s6051, 8
  %s6053 = scalar_lea.vmem [#allocation2], %s6052
  %v6054 = vld [vmem:[%s6053] sm:$0xff]
  %v6055 = vld [vmem:[%s6053 + $0x8] sm:$0xff]
  %v6056 = vld [vmem:[%s6053 + $0x10] sm:$0xff]
  %v6057 = vld [vmem:[%s6053 + $0x18] sm:$0xff]
  %v6058 = vadd.f32 %v6054, %v5696
  %v6059 = vadd.f32 %v6055, %v5716
  %v6060 = vadd.f32 %v6056, %v5736
  %v6061 = vadd.f32 %v6057, %v5756
  %v6062 = vxor.u32 %v6058, 2147483648
  %v6063 = vxor.u32 %v6059, 2147483648
  %v6064 = vmul.f32 %v6062, 1.442695
  %v6065 = vpow.pop %v6064
  %v6066 = vmul.f32 %v6063, 1.442695
  %v6067 = vpow.pop %v6066
  %v6068 = vadd.f32 %v6065, 1.0
  %v6069 = vadd.f32 %v6067, 1.0
  %v6070 = vrcp.pop %v6068
  %v6071 = vmul.f32 %v6068, %v6070
  %v6072 = vsub.f32 1.0, %v6071
  %v6073 = vmul.f32 %v6070, %v6072
  %v6074 = vadd.f32 %v6070, %v6073
  %vm6075 = vweird.f32 %v6068
  %vm6076 = vweird.f32 %v6070
  %vm6077 = vmor %vm6075, %vm6076
  %v6078 = vsel %vm6077, %v6070, %v6074
  %v6079 = vand.u32 2147483647, %v6068
  %vm6080 = vcmp.eq.f32.partialorder %v6079, 8.507059e+37
  %v6081 = vand.u32 %v6068, 2147483648
  %v6082 = vor.u32 1.1754944e-38, %v6081
  %v6083 = vsel %vm6080, %v6082, %v6078
  %v6084 = vmul.f32 1.0, %v6083
  %v6085 = vrcp.pop %v6069
  %v6086 = vmul.f32 %v6069, %v6085
  %v6087 = vsub.f32 1.0, %v6086
  %v6088 = vmul.f32 %v6085, %v6087
  %v6089 = vadd.f32 %v6085, %v6088
  %vm6090 = vweird.f32 %v6069
  %vm6091 = vweird.f32 %v6085
  %vm6092 = vmor %vm6090, %vm6091
  %v6093 = vsel %vm6092, %v6085, %v6089
  %v6094 = vand.u32 2147483647, %v6069
  %vm6095 = vcmp.eq.f32.partialorder %v6094, 8.507059e+37
  %v6096 = vand.u32 %v6069, 2147483648
  %v6097 = vor.u32 1.1754944e-38, %v6096
  %v6098 = vsel %vm6095, %v6097, %v6093
  %v6099 = vmul.f32 1.0, %v6098
  %v6100 = vtanh.pop %v6060
  %v6101 = vxor.u32 %v6061, 2147483648
  %v6102 = vmul.f32 %v6101, 1.442695
  %v6103 = vpow.pop %v6102
  %v6104 = vadd.f32 %v6103, 1.0
  %v6105 = vrcp.pop %v6104
  %v6106 = vmul.f32 %v6104, %v6105
  %v6107 = vsub.f32 1.0, %v6106
  %v6108 = vmul.f32 %v6105, %v6107
  %v6109 = vadd.f32 %v6105, %v6108
  %vm6110 = vweird.f32 %v6104
  %vm6111 = vweird.f32 %v6105
  %vm6112 = vmor %vm6110, %vm6111
  %v6113 = vsel %vm6112, %v6105, %v6109
  %v6114 = vand.u32 2147483647, %v6104
  %vm6115 = vcmp.eq.f32.partialorder %v6114, 8.507059e+37
  %v6116 = vand.u32 %v6104, 2147483648
  %v6117 = vor.u32 1.1754944e-38, %v6116
  %v6118 = vsel %vm6115, %v6117, %v6113
  %v6119 = vmul.f32 1.0, %v6118
  %v6120 = vmul.f32 %v6099, %v5547
  %v6121 = vmul.f32 %v6084, %v6100
  %v6122 = vadd.f32 %v6120, %v6121
  %v6123 = vtanh.pop %v6122
  %v6124 = vmul.f32 %v6119, %v6123
  %v6125 = vld [vmem:[%s2] sm:$0xff]
  %v6126 = vld [vmem:[%s2 + $0x8] sm:$0xff]
  %v6127 = vld [vmem:[%s2 + $0x10] sm:$0xff]
  %v6128 = vld [vmem:[%s2 + $0x18] sm:$0xff]
  %v6129 = vld [vmem:[%s2 + $0x20] sm:$0xff]
  %v6130 = vld [vmem:[%s2 + $0x28] sm:$0xff]
  %v6131 = vld [vmem:[%s2 + $0x30] sm:$0xff]
  %v6132 = vld [vmem:[%s2 + $0x38] sm:$0xff]
  %v6133 = vld [vmem:[%s2 + $0x40] sm:$0xff]
  %v6134 = vld [vmem:[%s2 + $0x48] sm:$0xff]
  %v6135 = vld [vmem:[%s2 + $0x50] sm:$0xff]
  %v6136 = vld [vmem:[%s2 + $0x58] sm:$0xff]
  %v6137 = vld [vmem:[%s2 + $0x60] sm:$0xff]
  %v6138 = vld [vmem:[%s2 + $0x68] sm:$0xff]
  %v6139 = vld [vmem:[%s2 + $0x70] sm:$0xff]
  %v6140 = vld [vmem:[%s2 + $0x78] sm:$0xff]
  %v6141 = vld [vmem:[%s2 + $0x80] sm:$0xff]
  %v6142 = vld [vmem:[%s2 + $0x88] sm:$0xff]
  %v6143 = vld [vmem:[%s2 + $0x90] sm:$0xff]
  %v6144 = vld [vmem:[%s2 + $0x98] sm:$0xff]
  %v6145 = vld [vmem:[%s2 + $0xa0] sm:$0xff]
  %v6146 = vld [vmem:[%s2 + $0xa8] sm:$0xff]
  %v6147 = vld [vmem:[%s2 + $0xb0] sm:$0xff]
  %v6148 = vld [vmem:[%s2 + $0xb8] sm:$0xff]
  %v6149 = vld [vmem:[%s2 + $0xc0] sm:$0xff]
  %v6150 = vld [vmem:[%s2 + $0xc8] sm:$0xff]
  %v6151 = vld [vmem:[%s2 + $0xd0] sm:$0xff]
  %v6152 = vld [vmem:[%s2 + $0xd8] sm:$0xff]
  %v6153 = vld [vmem:[%s2 + $0xe0] sm:$0xff]
  %v6154 = vld [vmem:[%s2 + $0xe8] sm:$0xff]
  %v6155 = vld [vmem:[%s2 + $0xf0] sm:$0xff]
  %v6156 = vld [vmem:[%s2 + $0xf8] sm:$0xff]
  %v6157 = vld [vmem:[%s2 + $0x100] sm:$0xff]
  %v6158 = vld [vmem:[%s2 + $0x108] sm:$0xff]
  %v6159 = vld [vmem:[%s2 + $0x110] sm:$0xff]
  %v6160 = vld [vmem:[%s2 + $0x118] sm:$0xff]
  %v6161 = vld [vmem:[%s2 + $0x120] sm:$0xff]
  %v6162 = vld [vmem:[%s2 + $0x128] sm:$0xff]
  %v6163 = vld [vmem:[%s2 + $0x130] sm:$0xff]
  %v6164 = vld [vmem:[%s2 + $0x138] sm:$0xff]
  %v6165 = vld [vmem:[%s2 + $0x140] sm:$0xff]
  %v6166 = vld [vmem:[%s2 + $0x148] sm:$0xff]
  %v6167 = vld [vmem:[%s2 + $0x150] sm:$0xff]
  %v6168 = vld [vmem:[%s2 + $0x158] sm:$0xff]
  %v6169 = vld [vmem:[%s2 + $0x160] sm:$0xff]
  %v6170 = vld [vmem:[%s2 + $0x168] sm:$0xff]
  %v6171 = vld [vmem:[%s2 + $0x170] sm:$0xff]
  %v6172 = vld [vmem:[%s2 + $0x178] sm:$0xff]
  %v6173 = vld [vmem:[%s2 + $0x180] sm:$0xff]
  %v6174 = vld [vmem:[%s2 + $0x188] sm:$0xff]
  %v6175 = vld [vmem:[%s2 + $0x190] sm:$0xff]
  %v6176 = vld [vmem:[%s2 + $0x198] sm:$0xff]
  %v6177 = vld [vmem:[%s2 + $0x1a0] sm:$0xff]
  %v6178 = vld [vmem:[%s2 + $0x1a8] sm:$0xff]
  %v6179 = vld [vmem:[%s2 + $0x1b0] sm:$0xff]
  %v6180 = vld [vmem:[%s2 + $0x1b8] sm:$0xff]
  %v6181 = vld [vmem:[%s2 + $0x1c0] sm:$0xff]
  %v6182 = vld [vmem:[%s2 + $0x1c8] sm:$0xff]
  %v6183 = vld [vmem:[%s2 + $0x1d0] sm:$0xff]
  %v6184 = vld [vmem:[%s2 + $0x1d8] sm:$0xff]
  %v6185 = vld [vmem:[%s2 + $0x1e0] sm:$0xff]
  %v6186 = vld [vmem:[%s2 + $0x1e8] sm:$0xff]
  %v6187 = vld [vmem:[%s2 + $0x1f0] sm:$0xff]
  %v6188 = vld [vmem:[%s2 + $0x1f8] sm:$0xff]
  %v6189 = vld [vmem:[%s2 + $0x200] sm:$0xff]
  %v6190 = vld [vmem:[%s2 + $0x208] sm:$0xff]
  %v6191 = vld [vmem:[%s2 + $0x210] sm:$0xff]
  %v6192 = vld [vmem:[%s2 + $0x218] sm:$0xff]
  %v6193 = vld [vmem:[%s2 + $0x220] sm:$0xff]
  %v6194 = vld [vmem:[%s2 + $0x228] sm:$0xff]
  %v6195 = vld [vmem:[%s2 + $0x230] sm:$0xff]
  %v6196 = vld [vmem:[%s2 + $0x238] sm:$0xff]
  %v6197 = vld [vmem:[%s2 + $0x240] sm:$0xff]
  %v6198 = vld [vmem:[%s2 + $0x248] sm:$0xff]
  %v6199 = vld [vmem:[%s2 + $0x250] sm:$0xff]
  %v6200 = vld [vmem:[%s2 + $0x258] sm:$0xff]
  %v6201 = vld [vmem:[%s2 + $0x260] sm:$0xff]
  %v6202 = vld [vmem:[%s2 + $0x268] sm:$0xff]
  %v6203 = vld [vmem:[%s2 + $0x270] sm:$0xff]
  %v6204 = vld [vmem:[%s2 + $0x278] sm:$0xff]
  %v6205 = vld [vmem:[%s2 + $0x280] sm:$0xff]
  %v6206 = vld [vmem:[%s2 + $0x288] sm:$0xff]
  %v6207 = vld [vmem:[%s2 + $0x290] sm:$0xff]
  %v6208 = vld [vmem:[%s2 + $0x298] sm:$0xff]
  %v6209 = vld [vmem:[%s2 + $0x2a0] sm:$0xff]
  %v6210 = vld [vmem:[%s2 + $0x2a8] sm:$0xff]
  %v6211 = vld [vmem:[%s2 + $0x2b0] sm:$0xff]
  %v6212 = vld [vmem:[%s2 + $0x2b8] sm:$0xff]
  %v6213 = vld [vmem:[%s2 + $0x2c0] sm:$0xff]
  %v6214 = vld [vmem:[%s2 + $0x2c8] sm:$0xff]
  %v6215 = vld [vmem:[%s2 + $0x2d0] sm:$0xff]
  %v6216 = vld [vmem:[%s2 + $0x2d8] sm:$0xff]
  %v6217 = vld [vmem:[%s2 + $0x2e0] sm:$0xff]
  %v6218 = vld [vmem:[%s2 + $0x2e8] sm:$0xff]
  %v6219 = vld [vmem:[%s2 + $0x2f0] sm:$0xff]
  %v6220 = vld [vmem:[%s2 + $0x2f8] sm:$0xff]
  %v6221 = vld [vmem:[%s2 + $0x300] sm:$0xff]
  %v6222 = vld [vmem:[%s2 + $0x308] sm:$0xff]
  %v6223 = vld [vmem:[%s2 + $0x310] sm:$0xff]
  %v6224 = vld [vmem:[%s2 + $0x318] sm:$0xff]
  %v6225 = vld [vmem:[%s2 + $0x320] sm:$0xff]
  %v6226 = vld [vmem:[%s2 + $0x328] sm:$0xff]
  %v6227 = vld [vmem:[%s2 + $0x330] sm:$0xff]
  %v6228 = vld [vmem:[%s2 + $0x338] sm:$0xff]
  %v6229 = vld [vmem:[%s2 + $0x340] sm:$0xff]
  %v6230 = vld [vmem:[%s2 + $0x348] sm:$0xff]
  %v6231 = vld [vmem:[%s2 + $0x350] sm:$0xff]
  %v6232 = vld [vmem:[%s2 + $0x358] sm:$0xff]
  %v6233 = vld [vmem:[%s2 + $0x360] sm:$0xff]
  %v6234 = vld [vmem:[%s2 + $0x368] sm:$0xff]
  %v6235 = vld [vmem:[%s2 + $0x370] sm:$0xff]
  %v6236 = vld [vmem:[%s2 + $0x378] sm:$0xff]
  %v6237 = vld [vmem:[%s2 + $0x380] sm:$0xff]
  %v6238 = vld [vmem:[%s2 + $0x388] sm:$0xff]
  %v6239 = vld [vmem:[%s2 + $0x390] sm:$0xff]
  %v6240 = vld [vmem:[%s2 + $0x398] sm:$0xff]
  %v6241 = vld [vmem:[%s2 + $0x3a0] sm:$0xff]
  %v6242 = vld [vmem:[%s2 + $0x3a8] sm:$0xff]
  %v6243 = vld [vmem:[%s2 + $0x3b0] sm:$0xff]
  %v6244 = vld [vmem:[%s2 + $0x3b8] sm:$0xff]
  %v6245 = vld [vmem:[%s2 + $0x3c0] sm:$0xff]
  %v6246 = vld [vmem:[%s2 + $0x3c8] sm:$0xff]
  %v6247 = vld [vmem:[%s2 + $0x3d0] sm:$0xff]
  %v6248 = vld [vmem:[%s2 + $0x3d8] sm:$0xff]
  %v6249 = vld [vmem:[%s2 + $0x3e0] sm:$0xff]
  %v6250 = vld [vmem:[%s2 + $0x3e8] sm:$0xff]
  %v6251 = vld [vmem:[%s2 + $0x3f0] sm:$0xff]
  %v6252 = vld [vmem:[%s2 + $0x3f8] sm:$0xff]
  %6253 = vmatpush.msra.mxu0 %v6245
  %6254 = vmatpush.msra.mxu0 %v6237
  %6255 = vmatpush.msra.mxu0 %v6229
  %6256 = vmatpush.msra.mxu0 %v6221
  %6257 = vmatpush.msra.mxu0 %v6213
  %6258 = vmatpush.msra.mxu0 %v6205
  %6259 = vmatpush.msra.mxu0 %v6197
  %6260 = vmatpush.msra.mxu0 %v6189
  %6261 = vmatpush.msra.mxu0 %v6181
  %6262 = vmatpush.msra.mxu0 %v6173
  %6263 = vmatpush.msra.mxu0 %v6165
  %6264 = vmatpush.msra.mxu0 %v6157
  %6265 = vmatpush.msra.mxu0 %v6149
  %6266 = vmatpush.msra.mxu0 %v6141
  %6267 = vmatpush.msra.mxu0 %v6133
  %6268 = vmatpush.msra.mxu0 %v6125
  %6269 = vmatmul.f32.gmra.mxu0 %v6124
  %v6270 = vpop.f32.mrf.mxu0
  %v6271 = vadd.f32 0.0, %v6270
  %6272 = vdwg.mxu0
  %6273 = vmatpush.msra.mxu0 %v6246
  %6274 = vmatpush.msra.mxu0 %v6238
  %6275 = vmatpush.msra.mxu0 %v6230
  %6276 = vmatpush.msra.mxu0 %v6222
  %6277 = vmatpush.msra.mxu0 %v6214
  %6278 = vmatpush.msra.mxu0 %v6206
  %6279 = vmatpush.msra.mxu0 %v6198
  %6280 = vmatpush.msra.mxu0 %v6190
  %6281 = vmatpush.msra.mxu0 %v6182
  %6282 = vmatpush.msra.mxu0 %v6174
  %6283 = vmatpush.msra.mxu0 %v6166
  %6284 = vmatpush.msra.mxu0 %v6158
  %6285 = vmatpush.msra.mxu0 %v6150
  %6286 = vmatpush.msra.mxu0 %v6142
  %6287 = vmatpush.msra.mxu0 %v6134
  %6288 = vmatpush.msra.mxu0 %v6126
  %6289 = vmatmul.f32.gmra.mxu0 %v6124
  %v6290 = vpop.f32.mrf.mxu0
  %v6291 = vadd.f32 0.0, %v6290
  %6292 = vdwg.mxu0
  %6293 = vmatpush.msra.mxu0 %v6247
  %6294 = vmatpush.msra.mxu0 %v6239
  %6295 = vmatpush.msra.mxu0 %v6231
  %6296 = vmatpush.msra.mxu0 %v6223
  %6297 = vmatpush.msra.mxu0 %v6215
  %6298 = vmatpush.msra.mxu0 %v6207
  %6299 = vmatpush.msra.mxu0 %v6199
  %6300 = vmatpush.msra.mxu0 %v6191
  %6301 = vmatpush.msra.mxu0 %v6183
  %6302 = vmatpush.msra.mxu0 %v6175
  %6303 = vmatpush.msra.mxu0 %v6167
  %6304 = vmatpush.msra.mxu0 %v6159
  %6305 = vmatpush.msra.mxu0 %v6151
  %6306 = vmatpush.msra.mxu0 %v6143
  %6307 = vmatpush.msra.mxu0 %v6135
  %6308 = vmatpush.msra.mxu0 %v6127
  %6309 = vmatmul.f32.gmra.mxu0 %v6124
  %v6310 = vpop.f32.mrf.mxu0
  %v6311 = vadd.f32 0.0, %v6310
  %6312 = vdwg.mxu0
  %6313 = vmatpush.msra.mxu0 %v6248
  %6314 = vmatpush.msra.mxu0 %v6240
  %6315 = vmatpush.msra.mxu0 %v6232
  %6316 = vmatpush.msra.mxu0 %v6224
  %6317 = vmatpush.msra.mxu0 %v6216
  %6318 = vmatpush.msra.mxu0 %v6208
  %6319 = vmatpush.msra.mxu0 %v6200
  %6320 = vmatpush.msra.mxu0 %v6192
  %6321 = vmatpush.msra.mxu0 %v6184
  %6322 = vmatpush.msra.mxu0 %v6176
  %6323 = vmatpush.msra.mxu0 %v6168
  %6324 = vmatpush.msra.mxu0 %v6160
  %6325 = vmatpush.msra.mxu0 %v6152
  %6326 = vmatpush.msra.mxu0 %v6144
  %6327 = vmatpush.msra.mxu0 %v6136
  %6328 = vmatpush.msra.mxu0 %v6128
  %6329 = vmatmul.f32.gmra.mxu0 %v6124
  %v6330 = vpop.f32.mrf.mxu0
  %v6331 = vadd.f32 0.0, %v6330
  %6332 = vdwg.mxu0
  %6333 = vmatpush.msra.mxu0 %v6249
  %6334 = vmatpush.msra.mxu0 %v6241
  %6335 = vmatpush.msra.mxu0 %v6233
  %6336 = vmatpush.msra.mxu0 %v6225
  %6337 = vmatpush.msra.mxu0 %v6217
  %6338 = vmatpush.msra.mxu0 %v6209
  %6339 = vmatpush.msra.mxu0 %v6201
  %6340 = vmatpush.msra.mxu0 %v6193
  %6341 = vmatpush.msra.mxu0 %v6185
  %6342 = vmatpush.msra.mxu0 %v6177
  %6343 = vmatpush.msra.mxu0 %v6169
  %6344 = vmatpush.msra.mxu0 %v6161
  %6345 = vmatpush.msra.mxu0 %v6153
  %6346 = vmatpush.msra.mxu0 %v6145
  %6347 = vmatpush.msra.mxu0 %v6137
  %6348 = vmatpush.msra.mxu0 %v6129
  %6349 = vmatmul.f32.gmra.mxu0 %v6124
  %v6350 = vpop.f32.mrf.mxu0
  %v6351 = vadd.f32 0.0, %v6350
  %6352 = vdwg.mxu0
  %6353 = vmatpush.msra.mxu0 %v6250
  %6354 = vmatpush.msra.mxu0 %v6242
  %6355 = vmatpush.msra.mxu0 %v6234
  %6356 = vmatpush.msra.mxu0 %v6226
  %6357 = vmatpush.msra.mxu0 %v6218
  %6358 = vmatpush.msra.mxu0 %v6210
  %6359 = vmatpush.msra.mxu0 %v6202
  %6360 = vmatpush.msra.mxu0 %v6194
  %6361 = vmatpush.msra.mxu0 %v6186
  %6362 = vmatpush.msra.mxu0 %v6178
  %6363 = vmatpush.msra.mxu0 %v6170
  %6364 = vmatpush.msra.mxu0 %v6162
  %6365 = vmatpush.msra.mxu0 %v6154
  %6366 = vmatpush.msra.mxu0 %v6146
  %6367 = vmatpush.msra.mxu0 %v6138
  %6368 = vmatpush.msra.mxu0 %v6130
  %6369 = vmatmul.f32.gmra.mxu0 %v6124
  %v6370 = vpop.f32.mrf.mxu0
  %v6371 = vadd.f32 0.0, %v6370
  %6372 = vdwg.mxu0
  %6373 = vmatpush.msra.mxu0 %v6251
  %6374 = vmatpush.msra.mxu0 %v6243
  %6375 = vmatpush.msra.mxu0 %v6235
  %6376 = vmatpush.msra.mxu0 %v6227
  %6377 = vmatpush.msra.mxu0 %v6219
  %6378 = vmatpush.msra.mxu0 %v6211
  %6379 = vmatpush.msra.mxu0 %v6203
  %6380 = vmatpush.msra.mxu0 %v6195
  %6381 = vmatpush.msra.mxu0 %v6187
  %6382 = vmatpush.msra.mxu0 %v6179
  %6383 = vmatpush.msra.mxu0 %v6171
  %6384 = vmatpush.msra.mxu0 %v6163
  %6385 = vmatpush.msra.mxu0 %v6155
  %6386 = vmatpush.msra.mxu0 %v6147
  %6387 = vmatpush.msra.mxu0 %v6139
  %6388 = vmatpush.msra.mxu0 %v6131
  %6389 = vmatmul.f32.gmra.mxu0 %v6124
  %v6390 = vpop.f32.mrf.mxu0
  %v6391 = vadd.f32 0.0, %v6390
  %6392 = vdwg.mxu0
  %6393 = vmatpush.msra.mxu0 %v6252
  %6394 = vmatpush.msra.mxu0 %v6244
  %6395 = vmatpush.msra.mxu0 %v6236
  %6396 = vmatpush.msra.mxu0 %v6228
  %6397 = vmatpush.msra.mxu0 %v6220
  %6398 = vmatpush.msra.mxu0 %v6212
  %6399 = vmatpush.msra.mxu0 %v6204
  %6400 = vmatpush.msra.mxu0 %v6196
  %6401 = vmatpush.msra.mxu0 %v6188
  %6402 = vmatpush.msra.mxu0 %v6180
  %6403 = vmatpush.msra.mxu0 %v6172
  %6404 = vmatpush.msra.mxu0 %v6164
  %6405 = vmatpush.msra.mxu0 %v6156
  %6406 = vmatpush.msra.mxu0 %v6148
  %6407 = vmatpush.msra.mxu0 %v6140
  %6408 = vmatpush.msra.mxu0 %v6132
  %6409 = vmatmul.f32.gmra.mxu0 %v6124
  %v6410 = vpop.f32.mrf.mxu0
  %v6411 = vadd.f32 0.0, %v6410
  %6412 = vdwg.mxu0
  %v6413 = vadd.f32 %v5989, %v6351
  %v6414 = vadd.f32 %v6009, %v6371
  %v6415 = vadd.f32 %v6029, %v6391
  %v6416 = vadd.f32 %v6049, %v6411
  %v6417 = vxor.u32 %v6413, 2147483648
  %v6418 = vxor.u32 %v6414, 2147483648
  %v6419 = vmul.f32 %v6417, 1.442695
  %v6420 = vpow.pop %v6419
  %v6421 = vmul.f32 %v6418, 1.442695
  %v6422 = vpow.pop %v6421
  %v6423 = vadd.f32 %v6420, 1.0
  %v6424 = vadd.f32 %v6422, 1.0
  %v6425 = vrcp.pop %v6423
  %v6426 = vmul.f32 %v6423, %v6425
  %v6427 = vsub.f32 1.0, %v6426
  %v6428 = vmul.f32 %v6425, %v6427
  %v6429 = vadd.f32 %v6425, %v6428
  %vm6430 = vweird.f32 %v6423
  %vm6431 = vweird.f32 %v6425
  %vm6432 = vmor %vm6430, %vm6431
  %v6433 = vsel %vm6432, %v6425, %v6429
  %v6434 = vand.u32 2147483647, %v6423
  %vm6435 = vcmp.eq.f32.partialorder %v6434, 8.507059e+37
  %v6436 = vand.u32 %v6423, 2147483648
  %v6437 = vor.u32 1.1754944e-38, %v6436
  %v6438 = vsel %vm6435, %v6437, %v6433
  %v6439 = vmul.f32 1.0, %v6438
  %v6440 = vrcp.pop %v6424
  %v6441 = vmul.f32 %v6424, %v6440
  %v6442 = vsub.f32 1.0, %v6441
  %v6443 = vmul.f32 %v6440, %v6442
  %v6444 = vadd.f32 %v6440, %v6443
  %vm6445 = vweird.f32 %v6424
  %vm6446 = vweird.f32 %v6440
  %vm6447 = vmor %vm6445, %vm6446
  %v6448 = vsel %vm6447, %v6440, %v6444
  %v6449 = vand.u32 2147483647, %v6424
  %vm6450 = vcmp.eq.f32.partialorder %v6449, 8.507059e+37
  %v6451 = vand.u32 %v6424, 2147483648
  %v6452 = vor.u32 1.1754944e-38, %v6451
  %v6453 = vsel %vm6450, %v6452, %v6448
  %v6454 = vmul.f32 1.0, %v6453
  %v6455 = vtanh.pop %v6415
  %v6456 = vxor.u32 %v6416, 2147483648
  %v6457 = vmul.f32 %v6456, 1.442695
  %v6458 = vpow.pop %v6457
  %v6459 = vadd.f32 %v6458, 1.0
  %v6460 = vrcp.pop %v6459
  %v6461 = vmul.f32 %v6459, %v6460
  %v6462 = vsub.f32 1.0, %v6461
  %v6463 = vmul.f32 %v6460, %v6462
  %v6464 = vadd.f32 %v6460, %v6463
  %vm6465 = vweird.f32 %v6459
  %vm6466 = vweird.f32 %v6460
  %vm6467 = vmor %vm6465, %vm6466
  %v6468 = vsel %vm6467, %v6460, %v6464
  %v6469 = vand.u32 2147483647, %v6459
  %vm6470 = vcmp.eq.f32.partialorder %v6469, 8.507059e+37
  %v6471 = vand.u32 %v6459, 2147483648
  %v6472 = vor.u32 1.1754944e-38, %v6471
  %v6473 = vsel %vm6470, %v6472, %v6468
  %v6474 = vmul.f32 1.0, %v6473
  %v6475 = vmul.f32 %v6454, %v5902
  %v6476 = vmul.f32 %v6439, %v6455
  %v6477 = vadd.f32 %v6475, %v6476
  %v6478 = vtanh.pop %v6477
  %v6479 = vmul.f32 %v6474, %v6478
  %s6480 = scalar_lea.vmem [#allocation3], 72
  %6481 = vst [vmem:[%s6480] sm:$0xff] %v6479
  %v6482 = vld [vmem:[%s3] sm:$0xff]
  %v6483 = vld [vmem:[%s3 + $0x8] sm:$0xff]
  %v6484 = vld [vmem:[%s3 + $0x10] sm:$0xff]
  %v6485 = vld [vmem:[%s3 + $0x18] sm:$0xff]
  %v6486 = vld [vmem:[%s3 + $0x20] sm:$0xff]
  %v6487 = vld [vmem:[%s3 + $0x28] sm:$0xff]
  %v6488 = vld [vmem:[%s3 + $0x30] sm:$0xff]
  %v6489 = vld [vmem:[%s3 + $0x38] sm:$0xff]
  %v6490 = vld [vmem:[%s3 + $0x40] sm:$0xff]
  %v6491 = vld [vmem:[%s3 + $0x48] sm:$0xff]
  %v6492 = vld [vmem:[%s3 + $0x50] sm:$0xff]
  %v6493 = vld [vmem:[%s3 + $0x58] sm:$0xff]
  %v6494 = vld [vmem:[%s3 + $0x60] sm:$0xff]
  %v6495 = vld [vmem:[%s3 + $0x68] sm:$0xff]
  %v6496 = vld [vmem:[%s3 + $0x70] sm:$0xff]
  %v6497 = vld [vmem:[%s3 + $0x78] sm:$0xff]
  %v6498 = vld [vmem:[%s3 + $0x80] sm:$0xff]
  %v6499 = vld [vmem:[%s3 + $0x88] sm:$0xff]
  %v6500 = vld [vmem:[%s3 + $0x90] sm:$0xff]
  %v6501 = vld [vmem:[%s3 + $0x98] sm:$0xff]
  %v6502 = vld [vmem:[%s3 + $0xa0] sm:$0xff]
  %v6503 = vld [vmem:[%s3 + $0xa8] sm:$0xff]
  %v6504 = vld [vmem:[%s3 + $0xb0] sm:$0xff]
  %v6505 = vld [vmem:[%s3 + $0xb8] sm:$0xff]
  %v6506 = vld [vmem:[%s3 + $0xc0] sm:$0xff]
  %v6507 = vld [vmem:[%s3 + $0xc8] sm:$0xff]
  %v6508 = vld [vmem:[%s3 + $0xd0] sm:$0xff]
  %v6509 = vld [vmem:[%s3 + $0xd8] sm:$0xff]
  %v6510 = vld [vmem:[%s3 + $0xe0] sm:$0xff]
  %v6511 = vld [vmem:[%s3 + $0xe8] sm:$0xff]
  %v6512 = vld [vmem:[%s3 + $0xf0] sm:$0xff]
  %v6513 = vld [vmem:[%s3 + $0xf8] sm:$0xff]
  %v6514 = vld [vmem:[%s3 + $0x100] sm:$0xff]
  %v6515 = vld [vmem:[%s3 + $0x108] sm:$0xff]
  %v6516 = vld [vmem:[%s3 + $0x110] sm:$0xff]
  %v6517 = vld [vmem:[%s3 + $0x118] sm:$0xff]
  %v6518 = vld [vmem:[%s3 + $0x120] sm:$0xff]
  %v6519 = vld [vmem:[%s3 + $0x128] sm:$0xff]
  %v6520 = vld [vmem:[%s3 + $0x130] sm:$0xff]
  %v6521 = vld [vmem:[%s3 + $0x138] sm:$0xff]
  %v6522 = vld [vmem:[%s3 + $0x140] sm:$0xff]
  %v6523 = vld [vmem:[%s3 + $0x148] sm:$0xff]
  %v6524 = vld [vmem:[%s3 + $0x150] sm:$0xff]
  %v6525 = vld [vmem:[%s3 + $0x158] sm:$0xff]
  %v6526 = vld [vmem:[%s3 + $0x160] sm:$0xff]
  %v6527 = vld [vmem:[%s3 + $0x168] sm:$0xff]
  %v6528 = vld [vmem:[%s3 + $0x170] sm:$0xff]
  %v6529 = vld [vmem:[%s3 + $0x178] sm:$0xff]
  %v6530 = vld [vmem:[%s3 + $0x180] sm:$0xff]
  %v6531 = vld [vmem:[%s3 + $0x188] sm:$0xff]
  %v6532 = vld [vmem:[%s3 + $0x190] sm:$0xff]
  %v6533 = vld [vmem:[%s3 + $0x198] sm:$0xff]
  %v6534 = vld [vmem:[%s3 + $0x1a0] sm:$0xff]
  %v6535 = vld [vmem:[%s3 + $0x1a8] sm:$0xff]
  %v6536 = vld [vmem:[%s3 + $0x1b0] sm:$0xff]
  %v6537 = vld [vmem:[%s3 + $0x1b8] sm:$0xff]
  %v6538 = vld [vmem:[%s3 + $0x1c0] sm:$0xff]
  %v6539 = vld [vmem:[%s3 + $0x1c8] sm:$0xff]
  %v6540 = vld [vmem:[%s3 + $0x1d0] sm:$0xff]
  %v6541 = vld [vmem:[%s3 + $0x1d8] sm:$0xff]
  %v6542 = vld [vmem:[%s3 + $0x1e0] sm:$0xff]
  %v6543 = vld [vmem:[%s3 + $0x1e8] sm:$0xff]
  %v6544 = vld [vmem:[%s3 + $0x1f0] sm:$0xff]
  %v6545 = vld [vmem:[%s3 + $0x1f8] sm:$0xff]
  %6546 = vmatpush.msra.mxu0 %v6542
  %6547 = vmatpush.msra.mxu0 %v6538
  %6548 = vmatpush.msra.mxu0 %v6534
  %6549 = vmatpush.msra.mxu0 %v6530
  %6550 = vmatpush.msra.mxu0 %v6526
  %6551 = vmatpush.msra.mxu0 %v6522
  %6552 = vmatpush.msra.mxu0 %v6518
  %6553 = vmatpush.msra.mxu0 %v6514
  %6554 = vmatpush.msra.mxu0 %v6510
  %6555 = vmatpush.msra.mxu0 %v6506
  %6556 = vmatpush.msra.mxu0 %v6502
  %6557 = vmatpush.msra.mxu0 %v6498
  %6558 = vmatpush.msra.mxu0 %v6494
  %6559 = vmatpush.msra.mxu0 %v6490
  %6560 = vmatpush.msra.mxu0 %v6486
  %6561 = vmatpush.msra.mxu0 %v6482
  %6562 = vmatmul.f32.gmra.mxu0 %v6479
  %v6563 = vpop.f32.mrf.mxu0
  %v6564 = vadd.f32 %v725, %v6563
  %6565 = vdwg.mxu0
  %6566 = vmatpush.msra.mxu0 %v6543
  %6567 = vmatpush.msra.mxu0 %v6539
  %6568 = vmatpush.msra.mxu0 %v6535
  %6569 = vmatpush.msra.mxu0 %v6531
  %6570 = vmatpush.msra.mxu0 %v6527
  %6571 = vmatpush.msra.mxu0 %v6523
  %6572 = vmatpush.msra.mxu0 %v6519
  %6573 = vmatpush.msra.mxu0 %v6515
  %6574 = vmatpush.msra.mxu0 %v6511
  %6575 = vmatpush.msra.mxu0 %v6507
  %6576 = vmatpush.msra.mxu0 %v6503
  %6577 = vmatpush.msra.mxu0 %v6499
  %6578 = vmatpush.msra.mxu0 %v6495
  %6579 = vmatpush.msra.mxu0 %v6491
  %6580 = vmatpush.msra.mxu0 %v6487
  %6581 = vmatpush.msra.mxu0 %v6483
  %6582 = vmatmul.f32.gmra.mxu0 %v6479
  %v6583 = vpop.f32.mrf.mxu0
  %v6584 = vadd.f32 %v726, %v6583
  %6585 = vdwg.mxu0
  %6586 = vmatpush.msra.mxu0 %v6544
  %6587 = vmatpush.msra.mxu0 %v6540
  %6588 = vmatpush.msra.mxu0 %v6536
  %6589 = vmatpush.msra.mxu0 %v6532
  %6590 = vmatpush.msra.mxu0 %v6528
  %6591 = vmatpush.msra.mxu0 %v6524
  %6592 = vmatpush.msra.mxu0 %v6520
  %6593 = vmatpush.msra.mxu0 %v6516
  %6594 = vmatpush.msra.mxu0 %v6512
  %6595 = vmatpush.msra.mxu0 %v6508
  %6596 = vmatpush.msra.mxu0 %v6504
  %6597 = vmatpush.msra.mxu0 %v6500
  %6598 = vmatpush.msra.mxu0 %v6496
  %6599 = vmatpush.msra.mxu0 %v6492
  %6600 = vmatpush.msra.mxu0 %v6488
  %6601 = vmatpush.msra.mxu0 %v6484
  %6602 = vmatmul.f32.gmra.mxu0 %v6479
  %v6603 = vpop.f32.mrf.mxu0
  %v6604 = vadd.f32 %v727, %v6603
  %6605 = vdwg.mxu0
  %6606 = vmatpush.msra.mxu0 %v6545
  %6607 = vmatpush.msra.mxu0 %v6541
  %6608 = vmatpush.msra.mxu0 %v6537
  %6609 = vmatpush.msra.mxu0 %v6533
  %6610 = vmatpush.msra.mxu0 %v6529
  %6611 = vmatpush.msra.mxu0 %v6525
  %6612 = vmatpush.msra.mxu0 %v6521
  %6613 = vmatpush.msra.mxu0 %v6517
  %6614 = vmatpush.msra.mxu0 %v6513
  %6615 = vmatpush.msra.mxu0 %v6509
  %6616 = vmatpush.msra.mxu0 %v6505
  %6617 = vmatpush.msra.mxu0 %v6501
  %6618 = vmatpush.msra.mxu0 %v6497
  %6619 = vmatpush.msra.mxu0 %v6493
  %6620 = vmatpush.msra.mxu0 %v6489
  %6621 = vmatpush.msra.mxu0 %v6485
  %6622 = vmatmul.f32.gmra.mxu0 %v6479
  %v6623 = vpop.f32.mrf.mxu0
  %v6624 = vadd.f32 %v728, %v6623
  %6625 = vdwg.mxu0
  %s6626 = smul.u32 10, 4
  %s6627 = smul.addr %s6626, 8
  %s6628 = scalar_lea.vmem [#allocation2], %s6627
  %v6629 = vld [vmem:[%s6628] sm:$0xff]
  %v6630 = vld [vmem:[%s6628 + $0x8] sm:$0xff]
  %v6631 = vld [vmem:[%s6628 + $0x10] sm:$0xff]
  %v6632 = vld [vmem:[%s6628 + $0x18] sm:$0xff]
  %v6633 = vadd.f32 %v6629, %v6271
  %v6634 = vadd.f32 %v6630, %v6291
  %v6635 = vadd.f32 %v6631, %v6311
  %v6636 = vadd.f32 %v6632, %v6331
  %v6637 = vxor.u32 %v6633, 2147483648
  %v6638 = vxor.u32 %v6634, 2147483648
  %v6639 = vmul.f32 %v6637, 1.442695
  %v6640 = vpow.pop %v6639
  %v6641 = vmul.f32 %v6638, 1.442695
  %v6642 = vpow.pop %v6641
  %v6643 = vadd.f32 %v6640, 1.0
  %v6644 = vadd.f32 %v6642, 1.0
  %v6645 = vrcp.pop %v6643
  %v6646 = vmul.f32 %v6643, %v6645
  %v6647 = vsub.f32 1.0, %v6646
  %v6648 = vmul.f32 %v6645, %v6647
  %v6649 = vadd.f32 %v6645, %v6648
  %vm6650 = vweird.f32 %v6643
  %vm6651 = vweird.f32 %v6645
  %vm6652 = vmor %vm6650, %vm6651
  %v6653 = vsel %vm6652, %v6645, %v6649
  %v6654 = vand.u32 2147483647, %v6643
  %vm6655 = vcmp.eq.f32.partialorder %v6654, 8.507059e+37
  %v6656 = vand.u32 %v6643, 2147483648
  %v6657 = vor.u32 1.1754944e-38, %v6656
  %v6658 = vsel %vm6655, %v6657, %v6653
  %v6659 = vmul.f32 1.0, %v6658
  %v6660 = vrcp.pop %v6644
  %v6661 = vmul.f32 %v6644, %v6660
  %v6662 = vsub.f32 1.0, %v6661
  %v6663 = vmul.f32 %v6660, %v6662
  %v6664 = vadd.f32 %v6660, %v6663
  %vm6665 = vweird.f32 %v6644
  %vm6666 = vweird.f32 %v6660
  %vm6667 = vmor %vm6665, %vm6666
  %v6668 = vsel %vm6667, %v6660, %v6664
  %v6669 = vand.u32 2147483647, %v6644
  %vm6670 = vcmp.eq.f32.partialorder %v6669, 8.507059e+37
  %v6671 = vand.u32 %v6644, 2147483648
  %v6672 = vor.u32 1.1754944e-38, %v6671
  %v6673 = vsel %vm6670, %v6672, %v6668
  %v6674 = vmul.f32 1.0, %v6673
  %v6675 = vtanh.pop %v6635
  %v6676 = vxor.u32 %v6636, 2147483648
  %v6677 = vmul.f32 %v6676, 1.442695
  %v6678 = vpow.pop %v6677
  %v6679 = vadd.f32 %v6678, 1.0
  %v6680 = vrcp.pop %v6679
  %v6681 = vmul.f32 %v6679, %v6680
  %v6682 = vsub.f32 1.0, %v6681
  %v6683 = vmul.f32 %v6680, %v6682
  %v6684 = vadd.f32 %v6680, %v6683
  %vm6685 = vweird.f32 %v6679
  %vm6686 = vweird.f32 %v6680
  %vm6687 = vmor %vm6685, %vm6686
  %v6688 = vsel %vm6687, %v6680, %v6684
  %v6689 = vand.u32 2147483647, %v6679
  %vm6690 = vcmp.eq.f32.partialorder %v6689, 8.507059e+37
  %v6691 = vand.u32 %v6679, 2147483648
  %v6692 = vor.u32 1.1754944e-38, %v6691
  %v6693 = vsel %vm6690, %v6692, %v6688
  %v6694 = vmul.f32 1.0, %v6693
  %v6695 = vmul.f32 %v6674, %v6122
  %v6696 = vmul.f32 %v6659, %v6675
  %v6697 = vadd.f32 %v6695, %v6696
  %v6698 = vtanh.pop %v6697
  %v6699 = vmul.f32 %v6694, %v6698
  %v6700 = vld [vmem:[%s2] sm:$0xff]
  %v6701 = vld [vmem:[%s2 + $0x8] sm:$0xff]
  %v6702 = vld [vmem:[%s2 + $0x10] sm:$0xff]
  %v6703 = vld [vmem:[%s2 + $0x18] sm:$0xff]
  %v6704 = vld [vmem:[%s2 + $0x20] sm:$0xff]
  %v6705 = vld [vmem:[%s2 + $0x28] sm:$0xff]
  %v6706 = vld [vmem:[%s2 + $0x30] sm:$0xff]
  %v6707 = vld [vmem:[%s2 + $0x38] sm:$0xff]
  %v6708 = vld [vmem:[%s2 + $0x40] sm:$0xff]
  %v6709 = vld [vmem:[%s2 + $0x48] sm:$0xff]
  %v6710 = vld [vmem:[%s2 + $0x50] sm:$0xff]
  %v6711 = vld [vmem:[%s2 + $0x58] sm:$0xff]
  %v6712 = vld [vmem:[%s2 + $0x60] sm:$0xff]
  %v6713 = vld [vmem:[%s2 + $0x68] sm:$0xff]
  %v6714 = vld [vmem:[%s2 + $0x70] sm:$0xff]
  %v6715 = vld [vmem:[%s2 + $0x78] sm:$0xff]
  %v6716 = vld [vmem:[%s2 + $0x80] sm:$0xff]
  %v6717 = vld [vmem:[%s2 + $0x88] sm:$0xff]
  %v6718 = vld [vmem:[%s2 + $0x90] sm:$0xff]
  %v6719 = vld [vmem:[%s2 + $0x98] sm:$0xff]
  %v6720 = vld [vmem:[%s2 + $0xa0] sm:$0xff]
  %v6721 = vld [vmem:[%s2 + $0xa8] sm:$0xff]
  %v6722 = vld [vmem:[%s2 + $0xb0] sm:$0xff]
  %v6723 = vld [vmem:[%s2 + $0xb8] sm:$0xff]
  %v6724 = vld [vmem:[%s2 + $0xc0] sm:$0xff]
  %v6725 = vld [vmem:[%s2 + $0xc8] sm:$0xff]
  %v6726 = vld [vmem:[%s2 + $0xd0] sm:$0xff]
  %v6727 = vld [vmem:[%s2 + $0xd8] sm:$0xff]
  %v6728 = vld [vmem:[%s2 + $0xe0] sm:$0xff]
  %v6729 = vld [vmem:[%s2 + $0xe8] sm:$0xff]
  %v6730 = vld [vmem:[%s2 + $0xf0] sm:$0xff]
  %v6731 = vld [vmem:[%s2 + $0xf8] sm:$0xff]
  %v6732 = vld [vmem:[%s2 + $0x100] sm:$0xff]
  %v6733 = vld [vmem:[%s2 + $0x108] sm:$0xff]
  %v6734 = vld [vmem:[%s2 + $0x110] sm:$0xff]
  %v6735 = vld [vmem:[%s2 + $0x118] sm:$0xff]
  %v6736 = vld [vmem:[%s2 + $0x120] sm:$0xff]
  %v6737 = vld [vmem:[%s2 + $0x128] sm:$0xff]
  %v6738 = vld [vmem:[%s2 + $0x130] sm:$0xff]
  %v6739 = vld [vmem:[%s2 + $0x138] sm:$0xff]
  %v6740 = vld [vmem:[%s2 + $0x140] sm:$0xff]
  %v6741 = vld [vmem:[%s2 + $0x148] sm:$0xff]
  %v6742 = vld [vmem:[%s2 + $0x150] sm:$0xff]
  %v6743 = vld [vmem:[%s2 + $0x158] sm:$0xff]
  %v6744 = vld [vmem:[%s2 + $0x160] sm:$0xff]
  %v6745 = vld [vmem:[%s2 + $0x168] sm:$0xff]
  %v6746 = vld [vmem:[%s2 + $0x170] sm:$0xff]
  %v6747 = vld [vmem:[%s2 + $0x178] sm:$0xff]
  %v6748 = vld [vmem:[%s2 + $0x180] sm:$0xff]
  %v6749 = vld [vmem:[%s2 + $0x188] sm:$0xff]
  %v6750 = vld [vmem:[%s2 + $0x190] sm:$0xff]
  %v6751 = vld [vmem:[%s2 + $0x198] sm:$0xff]
  %v6752 = vld [vmem:[%s2 + $0x1a0] sm:$0xff]
  %v6753 = vld [vmem:[%s2 + $0x1a8] sm:$0xff]
  %v6754 = vld [vmem:[%s2 + $0x1b0] sm:$0xff]
  %v6755 = vld [vmem:[%s2 + $0x1b8] sm:$0xff]
  %v6756 = vld [vmem:[%s2 + $0x1c0] sm:$0xff]
  %v6757 = vld [vmem:[%s2 + $0x1c8] sm:$0xff]
  %v6758 = vld [vmem:[%s2 + $0x1d0] sm:$0xff]
  %v6759 = vld [vmem:[%s2 + $0x1d8] sm:$0xff]
  %v6760 = vld [vmem:[%s2 + $0x1e0] sm:$0xff]
  %v6761 = vld [vmem:[%s2 + $0x1e8] sm:$0xff]
  %v6762 = vld [vmem:[%s2 + $0x1f0] sm:$0xff]
  %v6763 = vld [vmem:[%s2 + $0x1f8] sm:$0xff]
  %v6764 = vld [vmem:[%s2 + $0x200] sm:$0xff]
  %v6765 = vld [vmem:[%s2 + $0x208] sm:$0xff]
  %v6766 = vld [vmem:[%s2 + $0x210] sm:$0xff]
  %v6767 = vld [vmem:[%s2 + $0x218] sm:$0xff]
  %v6768 = vld [vmem:[%s2 + $0x220] sm:$0xff]
  %v6769 = vld [vmem:[%s2 + $0x228] sm:$0xff]
  %v6770 = vld [vmem:[%s2 + $0x230] sm:$0xff]
  %v6771 = vld [vmem:[%s2 + $0x238] sm:$0xff]
  %v6772 = vld [vmem:[%s2 + $0x240] sm:$0xff]
  %v6773 = vld [vmem:[%s2 + $0x248] sm:$0xff]
  %v6774 = vld [vmem:[%s2 + $0x250] sm:$0xff]
  %v6775 = vld [vmem:[%s2 + $0x258] sm:$0xff]
  %v6776 = vld [vmem:[%s2 + $0x260] sm:$0xff]
  %v6777 = vld [vmem:[%s2 + $0x268] sm:$0xff]
  %v6778 = vld [vmem:[%s2 + $0x270] sm:$0xff]
  %v6779 = vld [vmem:[%s2 + $0x278] sm:$0xff]
  %v6780 = vld [vmem:[%s2 + $0x280] sm:$0xff]
  %v6781 = vld [vmem:[%s2 + $0x288] sm:$0xff]
  %v6782 = vld [vmem:[%s2 + $0x290] sm:$0xff]
  %v6783 = vld [vmem:[%s2 + $0x298] sm:$0xff]
  %v6784 = vld [vmem:[%s2 + $0x2a0] sm:$0xff]
  %v6785 = vld [vmem:[%s2 + $0x2a8] sm:$0xff]
  %v6786 = vld [vmem:[%s2 + $0x2b0] sm:$0xff]
  %v6787 = vld [vmem:[%s2 + $0x2b8] sm:$0xff]
  %v6788 = vld [vmem:[%s2 + $0x2c0] sm:$0xff]
  %v6789 = vld [vmem:[%s2 + $0x2c8] sm:$0xff]
  %v6790 = vld [vmem:[%s2 + $0x2d0] sm:$0xff]
  %v6791 = vld [vmem:[%s2 + $0x2d8] sm:$0xff]
  %v6792 = vld [vmem:[%s2 + $0x2e0] sm:$0xff]
  %v6793 = vld [vmem:[%s2 + $0x2e8] sm:$0xff]
  %v6794 = vld [vmem:[%s2 + $0x2f0] sm:$0xff]
  %v6795 = vld [vmem:[%s2 + $0x2f8] sm:$0xff]
  %v6796 = vld [vmem:[%s2 + $0x300] sm:$0xff]
  %v6797 = vld [vmem:[%s2 + $0x308] sm:$0xff]
  %v6798 = vld [vmem:[%s2 + $0x310] sm:$0xff]
  %v6799 = vld [vmem:[%s2 + $0x318] sm:$0xff]
  %v6800 = vld [vmem:[%s2 + $0x320] sm:$0xff]
  %v6801 = vld [vmem:[%s2 + $0x328] sm:$0xff]
  %v6802 = vld [vmem:[%s2 + $0x330] sm:$0xff]
  %v6803 = vld [vmem:[%s2 + $0x338] sm:$0xff]
  %v6804 = vld [vmem:[%s2 + $0x340] sm:$0xff]
  %v6805 = vld [vmem:[%s2 + $0x348] sm:$0xff]
  %v6806 = vld [vmem:[%s2 + $0x350] sm:$0xff]
  %v6807 = vld [vmem:[%s2 + $0x358] sm:$0xff]
  %v6808 = vld [vmem:[%s2 + $0x360] sm:$0xff]
  %v6809 = vld [vmem:[%s2 + $0x368] sm:$0xff]
  %v6810 = vld [vmem:[%s2 + $0x370] sm:$0xff]
  %v6811 = vld [vmem:[%s2 + $0x378] sm:$0xff]
  %v6812 = vld [vmem:[%s2 + $0x380] sm:$0xff]
  %v6813 = vld [vmem:[%s2 + $0x388] sm:$0xff]
  %v6814 = vld [vmem:[%s2 + $0x390] sm:$0xff]
  %v6815 = vld [vmem:[%s2 + $0x398] sm:$0xff]
  %v6816 = vld [vmem:[%s2 + $0x3a0] sm:$0xff]
  %v6817 = vld [vmem:[%s2 + $0x3a8] sm:$0xff]
  %v6818 = vld [vmem:[%s2 + $0x3b0] sm:$0xff]
  %v6819 = vld [vmem:[%s2 + $0x3b8] sm:$0xff]
  %v6820 = vld [vmem:[%s2 + $0x3c0] sm:$0xff]
  %v6821 = vld [vmem:[%s2 + $0x3c8] sm:$0xff]
  %v6822 = vld [vmem:[%s2 + $0x3d0] sm:$0xff]
  %v6823 = vld [vmem:[%s2 + $0x3d8] sm:$0xff]
  %v6824 = vld [vmem:[%s2 + $0x3e0] sm:$0xff]
  %v6825 = vld [vmem:[%s2 + $0x3e8] sm:$0xff]
  %v6826 = vld [vmem:[%s2 + $0x3f0] sm:$0xff]
  %v6827 = vld [vmem:[%s2 + $0x3f8] sm:$0xff]
  %6828 = vmatpush.msra.mxu0 %v6820
  %6829 = vmatpush.msra.mxu0 %v6812
  %6830 = vmatpush.msra.mxu0 %v6804
  %6831 = vmatpush.msra.mxu0 %v6796
  %6832 = vmatpush.msra.mxu0 %v6788
  %6833 = vmatpush.msra.mxu0 %v6780
  %6834 = vmatpush.msra.mxu0 %v6772
  %6835 = vmatpush.msra.mxu0 %v6764
  %6836 = vmatpush.msra.mxu0 %v6756
  %6837 = vmatpush.msra.mxu0 %v6748
  %6838 = vmatpush.msra.mxu0 %v6740
  %6839 = vmatpush.msra.mxu0 %v6732
  %6840 = vmatpush.msra.mxu0 %v6724
  %6841 = vmatpush.msra.mxu0 %v6716
  %6842 = vmatpush.msra.mxu0 %v6708
  %6843 = vmatpush.msra.mxu0 %v6700
  %6844 = vmatmul.f32.gmra.mxu0 %v6699
  %v6845 = vpop.f32.mrf.mxu0
  %v6846 = vadd.f32 0.0, %v6845
  %6847 = vdwg.mxu0
  %6848 = vmatpush.msra.mxu0 %v6821
  %6849 = vmatpush.msra.mxu0 %v6813
  %6850 = vmatpush.msra.mxu0 %v6805
  %6851 = vmatpush.msra.mxu0 %v6797
  %6852 = vmatpush.msra.mxu0 %v6789
  %6853 = vmatpush.msra.mxu0 %v6781
  %6854 = vmatpush.msra.mxu0 %v6773
  %6855 = vmatpush.msra.mxu0 %v6765
  %6856 = vmatpush.msra.mxu0 %v6757
  %6857 = vmatpush.msra.mxu0 %v6749
  %6858 = vmatpush.msra.mxu0 %v6741
  %6859 = vmatpush.msra.mxu0 %v6733
  %6860 = vmatpush.msra.mxu0 %v6725
  %6861 = vmatpush.msra.mxu0 %v6717
  %6862 = vmatpush.msra.mxu0 %v6709
  %6863 = vmatpush.msra.mxu0 %v6701
  %6864 = vmatmul.f32.gmra.mxu0 %v6699
  %v6865 = vpop.f32.mrf.mxu0
  %v6866 = vadd.f32 0.0, %v6865
  %6867 = vdwg.mxu0
  %6868 = vmatpush.msra.mxu0 %v6822
  %6869 = vmatpush.msra.mxu0 %v6814
  %6870 = vmatpush.msra.mxu0 %v6806
  %6871 = vmatpush.msra.mxu0 %v6798
  %6872 = vmatpush.msra.mxu0 %v6790
  %6873 = vmatpush.msra.mxu0 %v6782
  %6874 = vmatpush.msra.mxu0 %v6774
  %6875 = vmatpush.msra.mxu0 %v6766
  %6876 = vmatpush.msra.mxu0 %v6758
  %6877 = vmatpush.msra.mxu0 %v6750
  %6878 = vmatpush.msra.mxu0 %v6742
  %6879 = vmatpush.msra.mxu0 %v6734
  %6880 = vmatpush.msra.mxu0 %v6726
  %6881 = vmatpush.msra.mxu0 %v6718
  %6882 = vmatpush.msra.mxu0 %v6710
  %6883 = vmatpush.msra.mxu0 %v6702
  %6884 = vmatmul.f32.gmra.mxu0 %v6699
  %v6885 = vpop.f32.mrf.mxu0
  %v6886 = vadd.f32 0.0, %v6885
  %6887 = vdwg.mxu0
  %6888 = vmatpush.msra.mxu0 %v6823
  %6889 = vmatpush.msra.mxu0 %v6815
  %6890 = vmatpush.msra.mxu0 %v6807
  %6891 = vmatpush.msra.mxu0 %v6799
  %6892 = vmatpush.msra.mxu0 %v6791
  %6893 = vmatpush.msra.mxu0 %v6783
  %6894 = vmatpush.msra.mxu0 %v6775
  %6895 = vmatpush.msra.mxu0 %v6767
  %6896 = vmatpush.msra.mxu0 %v6759
  %6897 = vmatpush.msra.mxu0 %v6751
  %6898 = vmatpush.msra.mxu0 %v6743
  %6899 = vmatpush.msra.mxu0 %v6735
  %6900 = vmatpush.msra.mxu0 %v6727
  %6901 = vmatpush.msra.mxu0 %v6719
  %6902 = vmatpush.msra.mxu0 %v6711
  %6903 = vmatpush.msra.mxu0 %v6703
  %6904 = vmatmul.f32.gmra.mxu0 %v6699
  %v6905 = vpop.f32.mrf.mxu0
  %v6906 = vadd.f32 0.0, %v6905
  %6907 = vdwg.mxu0
  %6908 = vmatpush.msra.mxu0 %v6824
  %6909 = vmatpush.msra.mxu0 %v6816
  %6910 = vmatpush.msra.mxu0 %v6808
  %6911 = vmatpush.msra.mxu0 %v6800
  %6912 = vmatpush.msra.mxu0 %v6792
  %6913 = vmatpush.msra.mxu0 %v6784
  %6914 = vmatpush.msra.mxu0 %v6776
  %6915 = vmatpush.msra.mxu0 %v6768
  %6916 = vmatpush.msra.mxu0 %v6760
  %6917 = vmatpush.msra.mxu0 %v6752
  %6918 = vmatpush.msra.mxu0 %v6744
  %6919 = vmatpush.msra.mxu0 %v6736
  %6920 = vmatpush.msra.mxu0 %v6728
  %6921 = vmatpush.msra.mxu0 %v6720
  %6922 = vmatpush.msra.mxu0 %v6712
  %6923 = vmatpush.msra.mxu0 %v6704
  %6924 = vmatmul.f32.gmra.mxu0 %v6699
  %v6925 = vpop.f32.mrf.mxu0
  %v6926 = vadd.f32 0.0, %v6925
  %6927 = vdwg.mxu0
  %6928 = vmatpush.msra.mxu0 %v6825
  %6929 = vmatpush.msra.mxu0 %v6817
  %6930 = vmatpush.msra.mxu0 %v6809
  %6931 = vmatpush.msra.mxu0 %v6801
  %6932 = vmatpush.msra.mxu0 %v6793
  %6933 = vmatpush.msra.mxu0 %v6785
  %6934 = vmatpush.msra.mxu0 %v6777
  %6935 = vmatpush.msra.mxu0 %v6769
  %6936 = vmatpush.msra.mxu0 %v6761
  %6937 = vmatpush.msra.mxu0 %v6753
  %6938 = vmatpush.msra.mxu0 %v6745
  %6939 = vmatpush.msra.mxu0 %v6737
  %6940 = vmatpush.msra.mxu0 %v6729
  %6941 = vmatpush.msra.mxu0 %v6721
  %6942 = vmatpush.msra.mxu0 %v6713
  %6943 = vmatpush.msra.mxu0 %v6705
  %6944 = vmatmul.f32.gmra.mxu0 %v6699
  %v6945 = vpop.f32.mrf.mxu0
  %v6946 = vadd.f32 0.0, %v6945
  %6947 = vdwg.mxu0
  %6948 = vmatpush.msra.mxu0 %v6826
  %6949 = vmatpush.msra.mxu0 %v6818
  %6950 = vmatpush.msra.mxu0 %v6810
  %6951 = vmatpush.msra.mxu0 %v6802
  %6952 = vmatpush.msra.mxu0 %v6794
  %6953 = vmatpush.msra.mxu0 %v6786
  %6954 = vmatpush.msra.mxu0 %v6778
  %6955 = vmatpush.msra.mxu0 %v6770
  %6956 = vmatpush.msra.mxu0 %v6762
  %6957 = vmatpush.msra.mxu0 %v6754
  %6958 = vmatpush.msra.mxu0 %v6746
  %6959 = vmatpush.msra.mxu0 %v6738
  %6960 = vmatpush.msra.mxu0 %v6730
  %6961 = vmatpush.msra.mxu0 %v6722
  %6962 = vmatpush.msra.mxu0 %v6714
  %6963 = vmatpush.msra.mxu0 %v6706
  %6964 = vmatmul.f32.gmra.mxu0 %v6699
  %v6965 = vpop.f32.mrf.mxu0
  %v6966 = vadd.f32 0.0, %v6965
  %6967 = vdwg.mxu0
  %6968 = vmatpush.msra.mxu0 %v6827
  %6969 = vmatpush.msra.mxu0 %v6819
  %6970 = vmatpush.msra.mxu0 %v6811
  %6971 = vmatpush.msra.mxu0 %v6803
  %6972 = vmatpush.msra.mxu0 %v6795
  %6973 = vmatpush.msra.mxu0 %v6787
  %6974 = vmatpush.msra.mxu0 %v6779
  %6975 = vmatpush.msra.mxu0 %v6771
  %6976 = vmatpush.msra.mxu0 %v6763
  %6977 = vmatpush.msra.mxu0 %v6755
  %6978 = vmatpush.msra.mxu0 %v6747
  %6979 = vmatpush.msra.mxu0 %v6739
  %6980 = vmatpush.msra.mxu0 %v6731
  %6981 = vmatpush.msra.mxu0 %v6723
  %6982 = vmatpush.msra.mxu0 %v6715
  %6983 = vmatpush.msra.mxu0 %v6707
  %6984 = vmatmul.f32.gmra.mxu0 %v6699
  %v6985 = vpop.f32.mrf.mxu0
  %v6986 = vadd.f32 0.0, %v6985
  %6987 = vdwg.mxu0
  %v6988 = vadd.f32 %v6564, %v6926
  %v6989 = vadd.f32 %v6584, %v6946
  %v6990 = vadd.f32 %v6604, %v6966
  %v6991 = vadd.f32 %v6624, %v6986
  %v6992 = vxor.u32 %v6988, 2147483648
  %v6993 = vxor.u32 %v6989, 2147483648
  %v6994 = vmul.f32 %v6992, 1.442695
  %v6995 = vpow.pop %v6994
  %v6996 = vmul.f32 %v6993, 1.442695
  %v6997 = vpow.pop %v6996
  %v6998 = vadd.f32 %v6995, 1.0
  %v6999 = vadd.f32 %v6997, 1.0
  %v7000 = vrcp.pop %v6998
  %v7001 = vmul.f32 %v6998, %v7000
  %v7002 = vsub.f32 1.0, %v7001
  %v7003 = vmul.f32 %v7000, %v7002
  %v7004 = vadd.f32 %v7000, %v7003
  %vm7005 = vweird.f32 %v6998
  %vm7006 = vweird.f32 %v7000
  %vm7007 = vmor %vm7005, %vm7006
  %v7008 = vsel %vm7007, %v7000, %v7004
  %v7009 = vand.u32 2147483647, %v6998
  %vm7010 = vcmp.eq.f32.partialorder %v7009, 8.507059e+37
  %v7011 = vand.u32 %v6998, 2147483648
  %v7012 = vor.u32 1.1754944e-38, %v7011
  %v7013 = vsel %vm7010, %v7012, %v7008
  %v7014 = vmul.f32 1.0, %v7013
  %v7015 = vrcp.pop %v6999
  %v7016 = vmul.f32 %v6999, %v7015
  %v7017 = vsub.f32 1.0, %v7016
  %v7018 = vmul.f32 %v7015, %v7017
  %v7019 = vadd.f32 %v7015, %v7018
  %vm7020 = vweird.f32 %v6999
  %vm7021 = vweird.f32 %v7015
  %vm7022 = vmor %vm7020, %vm7021
  %v7023 = vsel %vm7022, %v7015, %v7019
  %v7024 = vand.u32 2147483647, %v6999
  %vm7025 = vcmp.eq.f32.partialorder %v7024, 8.507059e+37
  %v7026 = vand.u32 %v6999, 2147483648
  %v7027 = vor.u32 1.1754944e-38, %v7026
  %v7028 = vsel %vm7025, %v7027, %v7023
  %v7029 = vmul.f32 1.0, %v7028
  %v7030 = vtanh.pop %v6990
  %v7031 = vxor.u32 %v6991, 2147483648
  %v7032 = vmul.f32 %v7031, 1.442695
  %v7033 = vpow.pop %v7032
  %v7034 = vadd.f32 %v7033, 1.0
  %v7035 = vrcp.pop %v7034
  %v7036 = vmul.f32 %v7034, %v7035
  %v7037 = vsub.f32 1.0, %v7036
  %v7038 = vmul.f32 %v7035, %v7037
  %v7039 = vadd.f32 %v7035, %v7038
  %vm7040 = vweird.f32 %v7034
  %vm7041 = vweird.f32 %v7035
  %vm7042 = vmor %vm7040, %vm7041
  %v7043 = vsel %vm7042, %v7035, %v7039
  %v7044 = vand.u32 2147483647, %v7034
  %vm7045 = vcmp.eq.f32.partialorder %v7044, 8.507059e+37
  %v7046 = vand.u32 %v7034, 2147483648
  %v7047 = vor.u32 1.1754944e-38, %v7046
  %v7048 = vsel %vm7045, %v7047, %v7043
  %v7049 = vmul.f32 1.0, %v7048
  %v7050 = vmul.f32 %v7029, %v6477
  %v7051 = vmul.f32 %v7014, %v7030
  %v7052 = vadd.f32 %v7050, %v7051
  %v7053 = vtanh.pop %v7052
  %v7054 = vmul.f32 %v7049, %v7053
  %s7055 = scalar_lea.vmem [#allocation3], 80
  %7056 = vst [vmem:[%s7055] sm:$0xff] %v7054
  %v7057 = vld [vmem:[%s3] sm:$0xff]
  %v7058 = vld [vmem:[%s3 + $0x8] sm:$0xff]
  %v7059 = vld [vmem:[%s3 + $0x10] sm:$0xff]
  %v7060 = vld [vmem:[%s3 + $0x18] sm:$0xff]
  %v7061 = vld [vmem:[%s3 + $0x20] sm:$0xff]
  %v7062 = vld [vmem:[%s3 + $0x28] sm:$0xff]
  %v7063 = vld [vmem:[%s3 + $0x30] sm:$0xff]
  %v7064 = vld [vmem:[%s3 + $0x38] sm:$0xff]
  %v7065 = vld [vmem:[%s3 + $0x40] sm:$0xff]
  %v7066 = vld [vmem:[%s3 + $0x48] sm:$0xff]
  %v7067 = vld [vmem:[%s3 + $0x50] sm:$0xff]
  %v7068 = vld [vmem:[%s3 + $0x58] sm:$0xff]
  %v7069 = vld [vmem:[%s3 + $0x60] sm:$0xff]
  %v7070 = vld [vmem:[%s3 + $0x68] sm:$0xff]
  %v7071 = vld [vmem:[%s3 + $0x70] sm:$0xff]
  %v7072 = vld [vmem:[%s3 + $0x78] sm:$0xff]
  %v7073 = vld [vmem:[%s3 + $0x80] sm:$0xff]
  %v7074 = vld [vmem:[%s3 + $0x88] sm:$0xff]
  %v7075 = vld [vmem:[%s3 + $0x90] sm:$0xff]
  %v7076 = vld [vmem:[%s3 + $0x98] sm:$0xff]
  %v7077 = vld [vmem:[%s3 + $0xa0] sm:$0xff]
  %v7078 = vld [vmem:[%s3 + $0xa8] sm:$0xff]
  %v7079 = vld [vmem:[%s3 + $0xb0] sm:$0xff]
  %v7080 = vld [vmem:[%s3 + $0xb8] sm:$0xff]
  %v7081 = vld [vmem:[%s3 + $0xc0] sm:$0xff]
  %v7082 = vld [vmem:[%s3 + $0xc8] sm:$0xff]
  %v7083 = vld [vmem:[%s3 + $0xd0] sm:$0xff]
  %v7084 = vld [vmem:[%s3 + $0xd8] sm:$0xff]
  %v7085 = vld [vmem:[%s3 + $0xe0] sm:$0xff]
  %v7086 = vld [vmem:[%s3 + $0xe8] sm:$0xff]
  %v7087 = vld [vmem:[%s3 + $0xf0] sm:$0xff]
  %v7088 = vld [vmem:[%s3 + $0xf8] sm:$0xff]
  %v7089 = vld [vmem:[%s3 + $0x100] sm:$0xff]
  %v7090 = vld [vmem:[%s3 + $0x108] sm:$0xff]
  %v7091 = vld [vmem:[%s3 + $0x110] sm:$0xff]
  %v7092 = vld [vmem:[%s3 + $0x118] sm:$0xff]
  %v7093 = vld [vmem:[%s3 + $0x120] sm:$0xff]
  %v7094 = vld [vmem:[%s3 + $0x128] sm:$0xff]
  %v7095 = vld [vmem:[%s3 + $0x130] sm:$0xff]
  %v7096 = vld [vmem:[%s3 + $0x138] sm:$0xff]
  %v7097 = vld [vmem:[%s3 + $0x140] sm:$0xff]
  %v7098 = vld [vmem:[%s3 + $0x148] sm:$0xff]
  %v7099 = vld [vmem:[%s3 + $0x150] sm:$0xff]
  %v7100 = vld [vmem:[%s3 + $0x158] sm:$0xff]
  %v7101 = vld [vmem:[%s3 + $0x160] sm:$0xff]
  %v7102 = vld [vmem:[%s3 + $0x168] sm:$0xff]
  %v7103 = vld [vmem:[%s3 + $0x170] sm:$0xff]
  %v7104 = vld [vmem:[%s3 + $0x178] sm:$0xff]
  %v7105 = vld [vmem:[%s3 + $0x180] sm:$0xff]
  %v7106 = vld [vmem:[%s3 + $0x188] sm:$0xff]
  %v7107 = vld [vmem:[%s3 + $0x190] sm:$0xff]
  %v7108 = vld [vmem:[%s3 + $0x198] sm:$0xff]
  %v7109 = vld [vmem:[%s3 + $0x1a0] sm:$0xff]
  %v7110 = vld [vmem:[%s3 + $0x1a8] sm:$0xff]
  %v7111 = vld [vmem:[%s3 + $0x1b0] sm:$0xff]
  %v7112 = vld [vmem:[%s3 + $0x1b8] sm:$0xff]
  %v7113 = vld [vmem:[%s3 + $0x1c0] sm:$0xff]
  %v7114 = vld [vmem:[%s3 + $0x1c8] sm:$0xff]
  %v7115 = vld [vmem:[%s3 + $0x1d0] sm:$0xff]
  %v7116 = vld [vmem:[%s3 + $0x1d8] sm:$0xff]
  %v7117 = vld [vmem:[%s3 + $0x1e0] sm:$0xff]
  %v7118 = vld [vmem:[%s3 + $0x1e8] sm:$0xff]
  %v7119 = vld [vmem:[%s3 + $0x1f0] sm:$0xff]
  %v7120 = vld [vmem:[%s3 + $0x1f8] sm:$0xff]
  %7121 = vmatpush.msra.mxu0 %v7117
  %7122 = vmatpush.msra.mxu0 %v7113
  %7123 = vmatpush.msra.mxu0 %v7109
  %7124 = vmatpush.msra.mxu0 %v7105
  %7125 = vmatpush.msra.mxu0 %v7101
  %7126 = vmatpush.msra.mxu0 %v7097
  %7127 = vmatpush.msra.mxu0 %v7093
  %7128 = vmatpush.msra.mxu0 %v7089
  %7129 = vmatpush.msra.mxu0 %v7085
  %7130 = vmatpush.msra.mxu0 %v7081
  %7131 = vmatpush.msra.mxu0 %v7077
  %7132 = vmatpush.msra.mxu0 %v7073
  %7133 = vmatpush.msra.mxu0 %v7069
  %7134 = vmatpush.msra.mxu0 %v7065
  %7135 = vmatpush.msra.mxu0 %v7061
  %7136 = vmatpush.msra.mxu0 %v7057
  %7137 = vmatmul.f32.gmra.mxu0 %v7054
  %v7138 = vpop.f32.mrf.mxu0
  %v7139 = vadd.f32 %v725, %v7138
  %7140 = vdwg.mxu0
  %7141 = vmatpush.msra.mxu0 %v7118
  %7142 = vmatpush.msra.mxu0 %v7114
  %7143 = vmatpush.msra.mxu0 %v7110
  %7144 = vmatpush.msra.mxu0 %v7106
  %7145 = vmatpush.msra.mxu0 %v7102
  %7146 = vmatpush.msra.mxu0 %v7098
  %7147 = vmatpush.msra.mxu0 %v7094
  %7148 = vmatpush.msra.mxu0 %v7090
  %7149 = vmatpush.msra.mxu0 %v7086
  %7150 = vmatpush.msra.mxu0 %v7082
  %7151 = vmatpush.msra.mxu0 %v7078
  %7152 = vmatpush.msra.mxu0 %v7074
  %7153 = vmatpush.msra.mxu0 %v7070
  %7154 = vmatpush.msra.mxu0 %v7066
  %7155 = vmatpush.msra.mxu0 %v7062
  %7156 = vmatpush.msra.mxu0 %v7058
  %7157 = vmatmul.f32.gmra.mxu0 %v7054
  %v7158 = vpop.f32.mrf.mxu0
  %v7159 = vadd.f32 %v726, %v7158
  %7160 = vdwg.mxu0
  %7161 = vmatpush.msra.mxu0 %v7119
  %7162 = vmatpush.msra.mxu0 %v7115
  %7163 = vmatpush.msra.mxu0 %v7111
  %7164 = vmatpush.msra.mxu0 %v7107
  %7165 = vmatpush.msra.mxu0 %v7103
  %7166 = vmatpush.msra.mxu0 %v7099
  %7167 = vmatpush.msra.mxu0 %v7095
  %7168 = vmatpush.msra.mxu0 %v7091
  %7169 = vmatpush.msra.mxu0 %v7087
  %7170 = vmatpush.msra.mxu0 %v7083
  %7171 = vmatpush.msra.mxu0 %v7079
  %7172 = vmatpush.msra.mxu0 %v7075
  %7173 = vmatpush.msra.mxu0 %v7071
  %7174 = vmatpush.msra.mxu0 %v7067
  %7175 = vmatpush.msra.mxu0 %v7063
  %7176 = vmatpush.msra.mxu0 %v7059
  %7177 = vmatmul.f32.gmra.mxu0 %v7054
  %v7178 = vpop.f32.mrf.mxu0
  %v7179 = vadd.f32 %v727, %v7178
  %7180 = vdwg.mxu0
  %7181 = vmatpush.msra.mxu0 %v7120
  %7182 = vmatpush.msra.mxu0 %v7116
  %7183 = vmatpush.msra.mxu0 %v7112
  %7184 = vmatpush.msra.mxu0 %v7108
  %7185 = vmatpush.msra.mxu0 %v7104
  %7186 = vmatpush.msra.mxu0 %v7100
  %7187 = vmatpush.msra.mxu0 %v7096
  %7188 = vmatpush.msra.mxu0 %v7092
  %7189 = vmatpush.msra.mxu0 %v7088
  %7190 = vmatpush.msra.mxu0 %v7084
  %7191 = vmatpush.msra.mxu0 %v7080
  %7192 = vmatpush.msra.mxu0 %v7076
  %7193 = vmatpush.msra.mxu0 %v7072
  %7194 = vmatpush.msra.mxu0 %v7068
  %7195 = vmatpush.msra.mxu0 %v7064
  %7196 = vmatpush.msra.mxu0 %v7060
  %7197 = vmatmul.f32.gmra.mxu0 %v7054
  %v7198 = vpop.f32.mrf.mxu0
  %v7199 = vadd.f32 %v728, %v7198
  %7200 = vdwg.mxu0
  %s7201 = smul.u32 11, 4
  %s7202 = smul.addr %s7201, 8
  %s7203 = scalar_lea.vmem [#allocation2], %s7202
  %v7204 = vld [vmem:[%s7203] sm:$0xff]
  %v7205 = vld [vmem:[%s7203 + $0x8] sm:$0xff]
  %v7206 = vld [vmem:[%s7203 + $0x10] sm:$0xff]
  %v7207 = vld [vmem:[%s7203 + $0x18] sm:$0xff]
  %v7208 = vadd.f32 %v7204, %v6846
  %v7209 = vadd.f32 %v7205, %v6866
  %v7210 = vadd.f32 %v7206, %v6886
  %v7211 = vadd.f32 %v7207, %v6906
  %v7212 = vxor.u32 %v7208, 2147483648
  %v7213 = vxor.u32 %v7209, 2147483648
  %v7214 = vmul.f32 %v7212, 1.442695
  %v7215 = vpow.pop %v7214
  %v7216 = vmul.f32 %v7213, 1.442695
  %v7217 = vpow.pop %v7216
  %v7218 = vadd.f32 %v7215, 1.0
  %v7219 = vadd.f32 %v7217, 1.0
  %v7220 = vrcp.pop %v7218
  %v7221 = vmul.f32 %v7218, %v7220
  %v7222 = vsub.f32 1.0, %v7221
  %v7223 = vmul.f32 %v7220, %v7222
  %v7224 = vadd.f32 %v7220, %v7223
  %vm7225 = vweird.f32 %v7218
  %vm7226 = vweird.f32 %v7220
  %vm7227 = vmor %vm7225, %vm7226
  %v7228 = vsel %vm7227, %v7220, %v7224
  %v7229 = vand.u32 2147483647, %v7218
  %vm7230 = vcmp.eq.f32.partialorder %v7229, 8.507059e+37
  %v7231 = vand.u32 %v7218, 2147483648
  %v7232 = vor.u32 1.1754944e-38, %v7231
  %v7233 = vsel %vm7230, %v7232, %v7228
  %v7234 = vmul.f32 1.0, %v7233
  %v7235 = vrcp.pop %v7219
  %v7236 = vmul.f32 %v7219, %v7235
  %v7237 = vsub.f32 1.0, %v7236
  %v7238 = vmul.f32 %v7235, %v7237
  %v7239 = vadd.f32 %v7235, %v7238
  %vm7240 = vweird.f32 %v7219
  %vm7241 = vweird.f32 %v7235
  %vm7242 = vmor %vm7240, %vm7241
  %v7243 = vsel %vm7242, %v7235, %v7239
  %v7244 = vand.u32 2147483647, %v7219
  %vm7245 = vcmp.eq.f32.partialorder %v7244, 8.507059e+37
  %v7246 = vand.u32 %v7219, 2147483648
  %v7247 = vor.u32 1.1754944e-38, %v7246
  %v7248 = vsel %vm7245, %v7247, %v7243
  %v7249 = vmul.f32 1.0, %v7248
  %v7250 = vtanh.pop %v7210
  %v7251 = vxor.u32 %v7211, 2147483648
  %v7252 = vmul.f32 %v7251, 1.442695
  %v7253 = vpow.pop %v7252
  %v7254 = vadd.f32 %v7253, 1.0
  %v7255 = vrcp.pop %v7254
  %v7256 = vmul.f32 %v7254, %v7255
  %v7257 = vsub.f32 1.0, %v7256
  %v7258 = vmul.f32 %v7255, %v7257
  %v7259 = vadd.f32 %v7255, %v7258
  %vm7260 = vweird.f32 %v7254
  %vm7261 = vweird.f32 %v7255
  %vm7262 = vmor %vm7260, %vm7261
  %v7263 = vsel %vm7262, %v7255, %v7259
  %v7264 = vand.u32 2147483647, %v7254
  %vm7265 = vcmp.eq.f32.partialorder %v7264, 8.507059e+37
  %v7266 = vand.u32 %v7254, 2147483648
  %v7267 = vor.u32 1.1754944e-38, %v7266
  %v7268 = vsel %vm7265, %v7267, %v7263
  %v7269 = vmul.f32 1.0, %v7268
  %v7270 = vmul.f32 %v7249, %v6697
  %v7271 = vmul.f32 %v7234, %v7250
  %v7272 = vadd.f32 %v7270, %v7271
  %v7273 = vtanh.pop %v7272
  %v7274 = vmul.f32 %v7269, %v7273
  %v7275 = vld [vmem:[%s2] sm:$0xff]
  %v7276 = vld [vmem:[%s2 + $0x8] sm:$0xff]
  %v7277 = vld [vmem:[%s2 + $0x10] sm:$0xff]
  %v7278 = vld [vmem:[%s2 + $0x18] sm:$0xff]
  %v7279 = vld [vmem:[%s2 + $0x20] sm:$0xff]
  %v7280 = vld [vmem:[%s2 + $0x28] sm:$0xff]
  %v7281 = vld [vmem:[%s2 + $0x30] sm:$0xff]
  %v7282 = vld [vmem:[%s2 + $0x38] sm:$0xff]
  %v7283 = vld [vmem:[%s2 + $0x40] sm:$0xff]
  %v7284 = vld [vmem:[%s2 + $0x48] sm:$0xff]
  %v7285 = vld [vmem:[%s2 + $0x50] sm:$0xff]
  %v7286 = vld [vmem:[%s2 + $0x58] sm:$0xff]
  %v7287 = vld [vmem:[%s2 + $0x60] sm:$0xff]
  %v7288 = vld [vmem:[%s2 + $0x68] sm:$0xff]
  %v7289 = vld [vmem:[%s2 + $0x70] sm:$0xff]
  %v7290 = vld [vmem:[%s2 + $0x78] sm:$0xff]
  %v7291 = vld [vmem:[%s2 + $0x80] sm:$0xff]
  %v7292 = vld [vmem:[%s2 + $0x88] sm:$0xff]
  %v7293 = vld [vmem:[%s2 + $0x90] sm:$0xff]
  %v7294 = vld [vmem:[%s2 + $0x98] sm:$0xff]
  %v7295 = vld [vmem:[%s2 + $0xa0] sm:$0xff]
  %v7296 = vld [vmem:[%s2 + $0xa8] sm:$0xff]
  %v7297 = vld [vmem:[%s2 + $0xb0] sm:$0xff]
  %v7298 = vld [vmem:[%s2 + $0xb8] sm:$0xff]
  %v7299 = vld [vmem:[%s2 + $0xc0] sm:$0xff]
  %v7300 = vld [vmem:[%s2 + $0xc8] sm:$0xff]
  %v7301 = vld [vmem:[%s2 + $0xd0] sm:$0xff]
  %v7302 = vld [vmem:[%s2 + $0xd8] sm:$0xff]
  %v7303 = vld [vmem:[%s2 + $0xe0] sm:$0xff]
  %v7304 = vld [vmem:[%s2 + $0xe8] sm:$0xff]
  %v7305 = vld [vmem:[%s2 + $0xf0] sm:$0xff]
  %v7306 = vld [vmem:[%s2 + $0xf8] sm:$0xff]
  %v7307 = vld [vmem:[%s2 + $0x100] sm:$0xff]
  %v7308 = vld [vmem:[%s2 + $0x108] sm:$0xff]
  %v7309 = vld [vmem:[%s2 + $0x110] sm:$0xff]
  %v7310 = vld [vmem:[%s2 + $0x118] sm:$0xff]
  %v7311 = vld [vmem:[%s2 + $0x120] sm:$0xff]
  %v7312 = vld [vmem:[%s2 + $0x128] sm:$0xff]
  %v7313 = vld [vmem:[%s2 + $0x130] sm:$0xff]
  %v7314 = vld [vmem:[%s2 + $0x138] sm:$0xff]
  %v7315 = vld [vmem:[%s2 + $0x140] sm:$0xff]
  %v7316 = vld [vmem:[%s2 + $0x148] sm:$0xff]
  %v7317 = vld [vmem:[%s2 + $0x150] sm:$0xff]
  %v7318 = vld [vmem:[%s2 + $0x158] sm:$0xff]
  %v7319 = vld [vmem:[%s2 + $0x160] sm:$0xff]
  %v7320 = vld [vmem:[%s2 + $0x168] sm:$0xff]
  %v7321 = vld [vmem:[%s2 + $0x170] sm:$0xff]
  %v7322 = vld [vmem:[%s2 + $0x178] sm:$0xff]
  %v7323 = vld [vmem:[%s2 + $0x180] sm:$0xff]
  %v7324 = vld [vmem:[%s2 + $0x188] sm:$0xff]
  %v7325 = vld [vmem:[%s2 + $0x190] sm:$0xff]
  %v7326 = vld [vmem:[%s2 + $0x198] sm:$0xff]
  %v7327 = vld [vmem:[%s2 + $0x1a0] sm:$0xff]
  %v7328 = vld [vmem:[%s2 + $0x1a8] sm:$0xff]
  %v7329 = vld [vmem:[%s2 + $0x1b0] sm:$0xff]
  %v7330 = vld [vmem:[%s2 + $0x1b8] sm:$0xff]
  %v7331 = vld [vmem:[%s2 + $0x1c0] sm:$0xff]
  %v7332 = vld [vmem:[%s2 + $0x1c8] sm:$0xff]
  %v7333 = vld [vmem:[%s2 + $0x1d0] sm:$0xff]
  %v7334 = vld [vmem:[%s2 + $0x1d8] sm:$0xff]
  %v7335 = vld [vmem:[%s2 + $0x1e0] sm:$0xff]
  %v7336 = vld [vmem:[%s2 + $0x1e8] sm:$0xff]
  %v7337 = vld [vmem:[%s2 + $0x1f0] sm:$0xff]
  %v7338 = vld [vmem:[%s2 + $0x1f8] sm:$0xff]
  %v7339 = vld [vmem:[%s2 + $0x200] sm:$0xff]
  %v7340 = vld [vmem:[%s2 + $0x208] sm:$0xff]
  %v7341 = vld [vmem:[%s2 + $0x210] sm:$0xff]
  %v7342 = vld [vmem:[%s2 + $0x218] sm:$0xff]
  %v7343 = vld [vmem:[%s2 + $0x220] sm:$0xff]
  %v7344 = vld [vmem:[%s2 + $0x228] sm:$0xff]
  %v7345 = vld [vmem:[%s2 + $0x230] sm:$0xff]
  %v7346 = vld [vmem:[%s2 + $0x238] sm:$0xff]
  %v7347 = vld [vmem:[%s2 + $0x240] sm:$0xff]
  %v7348 = vld [vmem:[%s2 + $0x248] sm:$0xff]
  %v7349 = vld [vmem:[%s2 + $0x250] sm:$0xff]
  %v7350 = vld [vmem:[%s2 + $0x258] sm:$0xff]
  %v7351 = vld [vmem:[%s2 + $0x260] sm:$0xff]
  %v7352 = vld [vmem:[%s2 + $0x268] sm:$0xff]
  %v7353 = vld [vmem:[%s2 + $0x270] sm:$0xff]
  %v7354 = vld [vmem:[%s2 + $0x278] sm:$0xff]
  %v7355 = vld [vmem:[%s2 + $0x280] sm:$0xff]
  %v7356 = vld [vmem:[%s2 + $0x288] sm:$0xff]
  %v7357 = vld [vmem:[%s2 + $0x290] sm:$0xff]
  %v7358 = vld [vmem:[%s2 + $0x298] sm:$0xff]
  %v7359 = vld [vmem:[%s2 + $0x2a0] sm:$0xff]
  %v7360 = vld [vmem:[%s2 + $0x2a8] sm:$0xff]
  %v7361 = vld [vmem:[%s2 + $0x2b0] sm:$0xff]
  %v7362 = vld [vmem:[%s2 + $0x2b8] sm:$0xff]
  %v7363 = vld [vmem:[%s2 + $0x2c0] sm:$0xff]
  %v7364 = vld [vmem:[%s2 + $0x2c8] sm:$0xff]
  %v7365 = vld [vmem:[%s2 + $0x2d0] sm:$0xff]
  %v7366 = vld [vmem:[%s2 + $0x2d8] sm:$0xff]
  %v7367 = vld [vmem:[%s2 + $0x2e0] sm:$0xff]
  %v7368 = vld [vmem:[%s2 + $0x2e8] sm:$0xff]
  %v7369 = vld [vmem:[%s2 + $0x2f0] sm:$0xff]
  %v7370 = vld [vmem:[%s2 + $0x2f8] sm:$0xff]
  %v7371 = vld [vmem:[%s2 + $0x300] sm:$0xff]
  %v7372 = vld [vmem:[%s2 + $0x308] sm:$0xff]
  %v7373 = vld [vmem:[%s2 + $0x310] sm:$0xff]
  %v7374 = vld [vmem:[%s2 + $0x318] sm:$0xff]
  %v7375 = vld [vmem:[%s2 + $0x320] sm:$0xff]
  %v7376 = vld [vmem:[%s2 + $0x328] sm:$0xff]
  %v7377 = vld [vmem:[%s2 + $0x330] sm:$0xff]
  %v7378 = vld [vmem:[%s2 + $0x338] sm:$0xff]
  %v7379 = vld [vmem:[%s2 + $0x340] sm:$0xff]
  %v7380 = vld [vmem:[%s2 + $0x348] sm:$0xff]
  %v7381 = vld [vmem:[%s2 + $0x350] sm:$0xff]
  %v7382 = vld [vmem:[%s2 + $0x358] sm:$0xff]
  %v7383 = vld [vmem:[%s2 + $0x360] sm:$0xff]
  %v7384 = vld [vmem:[%s2 + $0x368] sm:$0xff]
  %v7385 = vld [vmem:[%s2 + $0x370] sm:$0xff]
  %v7386 = vld [vmem:[%s2 + $0x378] sm:$0xff]
  %v7387 = vld [vmem:[%s2 + $0x380] sm:$0xff]
  %v7388 = vld [vmem:[%s2 + $0x388] sm:$0xff]
  %v7389 = vld [vmem:[%s2 + $0x390] sm:$0xff]
  %v7390 = vld [vmem:[%s2 + $0x398] sm:$0xff]
  %v7391 = vld [vmem:[%s2 + $0x3a0] sm:$0xff]
  %v7392 = vld [vmem:[%s2 + $0x3a8] sm:$0xff]
  %v7393 = vld [vmem:[%s2 + $0x3b0] sm:$0xff]
  %v7394 = vld [vmem:[%s2 + $0x3b8] sm:$0xff]
  %v7395 = vld [vmem:[%s2 + $0x3c0] sm:$0xff]
  %v7396 = vld [vmem:[%s2 + $0x3c8] sm:$0xff]
  %v7397 = vld [vmem:[%s2 + $0x3d0] sm:$0xff]
  %v7398 = vld [vmem:[%s2 + $0x3d8] sm:$0xff]
  %v7399 = vld [vmem:[%s2 + $0x3e0] sm:$0xff]
  %v7400 = vld [vmem:[%s2 + $0x3e8] sm:$0xff]
  %v7401 = vld [vmem:[%s2 + $0x3f0] sm:$0xff]
  %v7402 = vld [vmem:[%s2 + $0x3f8] sm:$0xff]
  %7403 = vmatpush.msra.mxu0 %v7395
  %7404 = vmatpush.msra.mxu0 %v7387
  %7405 = vmatpush.msra.mxu0 %v7379
  %7406 = vmatpush.msra.mxu0 %v7371
  %7407 = vmatpush.msra.mxu0 %v7363
  %7408 = vmatpush.msra.mxu0 %v7355
  %7409 = vmatpush.msra.mxu0 %v7347
  %7410 = vmatpush.msra.mxu0 %v7339
  %7411 = vmatpush.msra.mxu0 %v7331
  %7412 = vmatpush.msra.mxu0 %v7323
  %7413 = vmatpush.msra.mxu0 %v7315
  %7414 = vmatpush.msra.mxu0 %v7307
  %7415 = vmatpush.msra.mxu0 %v7299
  %7416 = vmatpush.msra.mxu0 %v7291
  %7417 = vmatpush.msra.mxu0 %v7283
  %7418 = vmatpush.msra.mxu0 %v7275
  %7419 = vmatmul.f32.gmra.mxu0 %v7274
  %v7420 = vpop.f32.mrf.mxu0
  %v7421 = vadd.f32 0.0, %v7420
  %7422 = vdwg.mxu0
  %7423 = vmatpush.msra.mxu0 %v7396
  %7424 = vmatpush.msra.mxu0 %v7388
  %7425 = vmatpush.msra.mxu0 %v7380
  %7426 = vmatpush.msra.mxu0 %v7372
  %7427 = vmatpush.msra.mxu0 %v7364
  %7428 = vmatpush.msra.mxu0 %v7356
  %7429 = vmatpush.msra.mxu0 %v7348
  %7430 = vmatpush.msra.mxu0 %v7340
  %7431 = vmatpush.msra.mxu0 %v7332
  %7432 = vmatpush.msra.mxu0 %v7324
  %7433 = vmatpush.msra.mxu0 %v7316
  %7434 = vmatpush.msra.mxu0 %v7308
  %7435 = vmatpush.msra.mxu0 %v7300
  %7436 = vmatpush.msra.mxu0 %v7292
  %7437 = vmatpush.msra.mxu0 %v7284
  %7438 = vmatpush.msra.mxu0 %v7276
  %7439 = vmatmul.f32.gmra.mxu0 %v7274
  %v7440 = vpop.f32.mrf.mxu0
  %v7441 = vadd.f32 0.0, %v7440
  %7442 = vdwg.mxu0
  %7443 = vmatpush.msra.mxu0 %v7397
  %7444 = vmatpush.msra.mxu0 %v7389
  %7445 = vmatpush.msra.mxu0 %v7381
  %7446 = vmatpush.msra.mxu0 %v7373
  %7447 = vmatpush.msra.mxu0 %v7365
  %7448 = vmatpush.msra.mxu0 %v7357
  %7449 = vmatpush.msra.mxu0 %v7349
  %7450 = vmatpush.msra.mxu0 %v7341
  %7451 = vmatpush.msra.mxu0 %v7333
  %7452 = vmatpush.msra.mxu0 %v7325
  %7453 = vmatpush.msra.mxu0 %v7317
  %7454 = vmatpush.msra.mxu0 %v7309
  %7455 = vmatpush.msra.mxu0 %v7301
  %7456 = vmatpush.msra.mxu0 %v7293
  %7457 = vmatpush.msra.mxu0 %v7285
  %7458 = vmatpush.msra.mxu0 %v7277
  %7459 = vmatmul.f32.gmra.mxu0 %v7274
  %v7460 = vpop.f32.mrf.mxu0
  %v7461 = vadd.f32 0.0, %v7460
  %7462 = vdwg.mxu0
  %7463 = vmatpush.msra.mxu0 %v7398
  %7464 = vmatpush.msra.mxu0 %v7390
  %7465 = vmatpush.msra.mxu0 %v7382
  %7466 = vmatpush.msra.mxu0 %v7374
  %7467 = vmatpush.msra.mxu0 %v7366
  %7468 = vmatpush.msra.mxu0 %v7358
  %7469 = vmatpush.msra.mxu0 %v7350
  %7470 = vmatpush.msra.mxu0 %v7342
  %7471 = vmatpush.msra.mxu0 %v7334
  %7472 = vmatpush.msra.mxu0 %v7326
  %7473 = vmatpush.msra.mxu0 %v7318
  %7474 = vmatpush.msra.mxu0 %v7310
  %7475 = vmatpush.msra.mxu0 %v7302
  %7476 = vmatpush.msra.mxu0 %v7294
  %7477 = vmatpush.msra.mxu0 %v7286
  %7478 = vmatpush.msra.mxu0 %v7278
  %7479 = vmatmul.f32.gmra.mxu0 %v7274
  %v7480 = vpop.f32.mrf.mxu0
  %v7481 = vadd.f32 0.0, %v7480
  %7482 = vdwg.mxu0
  %7483 = vmatpush.msra.mxu0 %v7399
  %7484 = vmatpush.msra.mxu0 %v7391
  %7485 = vmatpush.msra.mxu0 %v7383
  %7486 = vmatpush.msra.mxu0 %v7375
  %7487 = vmatpush.msra.mxu0 %v7367
  %7488 = vmatpush.msra.mxu0 %v7359
  %7489 = vmatpush.msra.mxu0 %v7351
  %7490 = vmatpush.msra.mxu0 %v7343
  %7491 = vmatpush.msra.mxu0 %v7335
  %7492 = vmatpush.msra.mxu0 %v7327
  %7493 = vmatpush.msra.mxu0 %v7319
  %7494 = vmatpush.msra.mxu0 %v7311
  %7495 = vmatpush.msra.mxu0 %v7303
  %7496 = vmatpush.msra.mxu0 %v7295
  %7497 = vmatpush.msra.mxu0 %v7287
  %7498 = vmatpush.msra.mxu0 %v7279
  %7499 = vmatmul.f32.gmra.mxu0 %v7274
  %v7500 = vpop.f32.mrf.mxu0
  %v7501 = vadd.f32 0.0, %v7500
  %7502 = vdwg.mxu0
  %7503 = vmatpush.msra.mxu0 %v7400
  %7504 = vmatpush.msra.mxu0 %v7392
  %7505 = vmatpush.msra.mxu0 %v7384
  %7506 = vmatpush.msra.mxu0 %v7376
  %7507 = vmatpush.msra.mxu0 %v7368
  %7508 = vmatpush.msra.mxu0 %v7360
  %7509 = vmatpush.msra.mxu0 %v7352
  %7510 = vmatpush.msra.mxu0 %v7344
  %7511 = vmatpush.msra.mxu0 %v7336
  %7512 = vmatpush.msra.mxu0 %v7328
  %7513 = vmatpush.msra.mxu0 %v7320
  %7514 = vmatpush.msra.mxu0 %v7312
  %7515 = vmatpush.msra.mxu0 %v7304
  %7516 = vmatpush.msra.mxu0 %v7296
  %7517 = vmatpush.msra.mxu0 %v7288
  %7518 = vmatpush.msra.mxu0 %v7280
  %7519 = vmatmul.f32.gmra.mxu0 %v7274
  %v7520 = vpop.f32.mrf.mxu0
  %v7521 = vadd.f32 0.0, %v7520
  %7522 = vdwg.mxu0
  %7523 = vmatpush.msra.mxu0 %v7401
  %7524 = vmatpush.msra.mxu0 %v7393
  %7525 = vmatpush.msra.mxu0 %v7385
  %7526 = vmatpush.msra.mxu0 %v7377
  %7527 = vmatpush.msra.mxu0 %v7369
  %7528 = vmatpush.msra.mxu0 %v7361
  %7529 = vmatpush.msra.mxu0 %v7353
  %7530 = vmatpush.msra.mxu0 %v7345
  %7531 = vmatpush.msra.mxu0 %v7337
  %7532 = vmatpush.msra.mxu0 %v7329
  %7533 = vmatpush.msra.mxu0 %v7321
  %7534 = vmatpush.msra.mxu0 %v7313
  %7535 = vmatpush.msra.mxu0 %v7305
  %7536 = vmatpush.msra.mxu0 %v7297
  %7537 = vmatpush.msra.mxu0 %v7289
  %7538 = vmatpush.msra.mxu0 %v7281
  %7539 = vmatmul.f32.gmra.mxu0 %v7274
  %v7540 = vpop.f32.mrf.mxu0
  %v7541 = vadd.f32 0.0, %v7540
  %7542 = vdwg.mxu0
  %7543 = vmatpush.msra.mxu0 %v7402
  %7544 = vmatpush.msra.mxu0 %v7394
  %7545 = vmatpush.msra.mxu0 %v7386
  %7546 = vmatpush.msra.mxu0 %v7378
  %7547 = vmatpush.msra.mxu0 %v7370
  %7548 = vmatpush.msra.mxu0 %v7362
  %7549 = vmatpush.msra.mxu0 %v7354
  %7550 = vmatpush.msra.mxu0 %v7346
  %7551 = vmatpush.msra.mxu0 %v7338
  %7552 = vmatpush.msra.mxu0 %v7330
  %7553 = vmatpush.msra.mxu0 %v7322
  %7554 = vmatpush.msra.mxu0 %v7314
  %7555 = vmatpush.msra.mxu0 %v7306
  %7556 = vmatpush.msra.mxu0 %v7298
  %7557 = vmatpush.msra.mxu0 %v7290
  %7558 = vmatpush.msra.mxu0 %v7282
  %7559 = vmatmul.f32.gmra.mxu0 %v7274
  %v7560 = vpop.f32.mrf.mxu0
  %v7561 = vadd.f32 0.0, %v7560
  %7562 = vdwg.mxu0
  %v7563 = vadd.f32 %v7139, %v7501
  %v7564 = vadd.f32 %v7159, %v7521
  %v7565 = vadd.f32 %v7179, %v7541
  %v7566 = vadd.f32 %v7199, %v7561
  %v7567 = vxor.u32 %v7563, 2147483648
  %v7568 = vxor.u32 %v7564, 2147483648
  %v7569 = vmul.f32 %v7567, 1.442695
  %v7570 = vpow.pop %v7569
  %v7571 = vmul.f32 %v7568, 1.442695
  %v7572 = vpow.pop %v7571
  %v7573 = vadd.f32 %v7570, 1.0
  %v7574 = vadd.f32 %v7572, 1.0
  %v7575 = vrcp.pop %v7573
  %v7576 = vmul.f32 %v7573, %v7575
  %v7577 = vsub.f32 1.0, %v7576
  %v7578 = vmul.f32 %v7575, %v7577
  %v7579 = vadd.f32 %v7575, %v7578
  %vm7580 = vweird.f32 %v7573
  %vm7581 = vweird.f32 %v7575
  %vm7582 = vmor %vm7580, %vm7581
  %v7583 = vsel %vm7582, %v7575, %v7579
  %v7584 = vand.u32 2147483647, %v7573
  %vm7585 = vcmp.eq.f32.partialorder %v7584, 8.507059e+37
  %v7586 = vand.u32 %v7573, 2147483648
  %v7587 = vor.u32 1.1754944e-38, %v7586
  %v7588 = vsel %vm7585, %v7587, %v7583
  %v7589 = vmul.f32 1.0, %v7588
  %v7590 = vrcp.pop %v7574
  %v7591 = vmul.f32 %v7574, %v7590
  %v7592 = vsub.f32 1.0, %v7591
  %v7593 = vmul.f32 %v7590, %v7592
  %v7594 = vadd.f32 %v7590, %v7593
  %vm7595 = vweird.f32 %v7574
  %vm7596 = vweird.f32 %v7590
  %vm7597 = vmor %vm7595, %vm7596
  %v7598 = vsel %vm7597, %v7590, %v7594
  %v7599 = vand.u32 2147483647, %v7574
  %vm7600 = vcmp.eq.f32.partialorder %v7599, 8.507059e+37
  %v7601 = vand.u32 %v7574, 2147483648
  %v7602 = vor.u32 1.1754944e-38, %v7601
  %v7603 = vsel %vm7600, %v7602, %v7598
  %v7604 = vmul.f32 1.0, %v7603
  %v7605 = vtanh.pop %v7565
  %v7606 = vxor.u32 %v7566, 2147483648
  %v7607 = vmul.f32 %v7606, 1.442695
  %v7608 = vpow.pop %v7607
  %v7609 = vadd.f32 %v7608, 1.0
  %v7610 = vrcp.pop %v7609
  %v7611 = vmul.f32 %v7609, %v7610
  %v7612 = vsub.f32 1.0, %v7611
  %v7613 = vmul.f32 %v7610, %v7612
  %v7614 = vadd.f32 %v7610, %v7613
  %vm7615 = vweird.f32 %v7609
  %vm7616 = vweird.f32 %v7610
  %vm7617 = vmor %vm7615, %vm7616
  %v7618 = vsel %vm7617, %v7610, %v7614
  %v7619 = vand.u32 2147483647, %v7609
  %vm7620 = vcmp.eq.f32.partialorder %v7619, 8.507059e+37
  %v7621 = vand.u32 %v7609, 2147483648
  %v7622 = vor.u32 1.1754944e-38, %v7621
  %v7623 = vsel %vm7620, %v7622, %v7618
  %v7624 = vmul.f32 1.0, %v7623
  %v7625 = vmul.f32 %v7604, %v7052
  %v7626 = vmul.f32 %v7589, %v7605
  %v7627 = vadd.f32 %v7625, %v7626
  %v7628 = vtanh.pop %v7627
  %v7629 = vmul.f32 %v7624, %v7628
  %s7630 = scalar_lea.vmem [#allocation3], 88
  %7631 = vst [vmem:[%s7630] sm:$0xff] %v7629
  %v7632 = vld [vmem:[%s3] sm:$0xff]
  %v7633 = vld [vmem:[%s3 + $0x8] sm:$0xff]
  %v7634 = vld [vmem:[%s3 + $0x10] sm:$0xff]
  %v7635 = vld [vmem:[%s3 + $0x18] sm:$0xff]
  %v7636 = vld [vmem:[%s3 + $0x20] sm:$0xff]
  %v7637 = vld [vmem:[%s3 + $0x28] sm:$0xff]
  %v7638 = vld [vmem:[%s3 + $0x30] sm:$0xff]
  %v7639 = vld [vmem:[%s3 + $0x38] sm:$0xff]
  %v7640 = vld [vmem:[%s3 + $0x40] sm:$0xff]
  %v7641 = vld [vmem:[%s3 + $0x48] sm:$0xff]
  %v7642 = vld [vmem:[%s3 + $0x50] sm:$0xff]
  %v7643 = vld [vmem:[%s3 + $0x58] sm:$0xff]
  %v7644 = vld [vmem:[%s3 + $0x60] sm:$0xff]
  %v7645 = vld [vmem:[%s3 + $0x68] sm:$0xff]
  %v7646 = vld [vmem:[%s3 + $0x70] sm:$0xff]
  %v7647 = vld [vmem:[%s3 + $0x78] sm:$0xff]
  %v7648 = vld [vmem:[%s3 + $0x80] sm:$0xff]
  %v7649 = vld [vmem:[%s3 + $0x88] sm:$0xff]
  %v7650 = vld [vmem:[%s3 + $0x90] sm:$0xff]
  %v7651 = vld [vmem:[%s3 + $0x98] sm:$0xff]
  %v7652 = vld [vmem:[%s3 + $0xa0] sm:$0xff]
  %v7653 = vld [vmem:[%s3 + $0xa8] sm:$0xff]
  %v7654 = vld [vmem:[%s3 + $0xb0] sm:$0xff]
  %v7655 = vld [vmem:[%s3 + $0xb8] sm:$0xff]
  %v7656 = vld [vmem:[%s3 + $0xc0] sm:$0xff]
  %v7657 = vld [vmem:[%s3 + $0xc8] sm:$0xff]
  %v7658 = vld [vmem:[%s3 + $0xd0] sm:$0xff]
  %v7659 = vld [vmem:[%s3 + $0xd8] sm:$0xff]
  %v7660 = vld [vmem:[%s3 + $0xe0] sm:$0xff]
  %v7661 = vld [vmem:[%s3 + $0xe8] sm:$0xff]
  %v7662 = vld [vmem:[%s3 + $0xf0] sm:$0xff]
  %v7663 = vld [vmem:[%s3 + $0xf8] sm:$0xff]
  %v7664 = vld [vmem:[%s3 + $0x100] sm:$0xff]
  %v7665 = vld [vmem:[%s3 + $0x108] sm:$0xff]
  %v7666 = vld [vmem:[%s3 + $0x110] sm:$0xff]
  %v7667 = vld [vmem:[%s3 + $0x118] sm:$0xff]
  %v7668 = vld [vmem:[%s3 + $0x120] sm:$0xff]
  %v7669 = vld [vmem:[%s3 + $0x128] sm:$0xff]
  %v7670 = vld [vmem:[%s3 + $0x130] sm:$0xff]
  %v7671 = vld [vmem:[%s3 + $0x138] sm:$0xff]
  %v7672 = vld [vmem:[%s3 + $0x140] sm:$0xff]
  %v7673 = vld [vmem:[%s3 + $0x148] sm:$0xff]
  %v7674 = vld [vmem:[%s3 + $0x150] sm:$0xff]
  %v7675 = vld [vmem:[%s3 + $0x158] sm:$0xff]
  %v7676 = vld [vmem:[%s3 + $0x160] sm:$0xff]
  %v7677 = vld [vmem:[%s3 + $0x168] sm:$0xff]
  %v7678 = vld [vmem:[%s3 + $0x170] sm:$0xff]
  %v7679 = vld [vmem:[%s3 + $0x178] sm:$0xff]
  %v7680 = vld [vmem:[%s3 + $0x180] sm:$0xff]
  %v7681 = vld [vmem:[%s3 + $0x188] sm:$0xff]
  %v7682 = vld [vmem:[%s3 + $0x190] sm:$0xff]
  %v7683 = vld [vmem:[%s3 + $0x198] sm:$0xff]
  %v7684 = vld [vmem:[%s3 + $0x1a0] sm:$0xff]
  %v7685 = vld [vmem:[%s3 + $0x1a8] sm:$0xff]
  %v7686 = vld [vmem:[%s3 + $0x1b0] sm:$0xff]
  %v7687 = vld [vmem:[%s3 + $0x1b8] sm:$0xff]
  %v7688 = vld [vmem:[%s3 + $0x1c0] sm:$0xff]
  %v7689 = vld [vmem:[%s3 + $0x1c8] sm:$0xff]
  %v7690 = vld [vmem:[%s3 + $0x1d0] sm:$0xff]
  %v7691 = vld [vmem:[%s3 + $0x1d8] sm:$0xff]
  %v7692 = vld [vmem:[%s3 + $0x1e0] sm:$0xff]
  %v7693 = vld [vmem:[%s3 + $0x1e8] sm:$0xff]
  %v7694 = vld [vmem:[%s3 + $0x1f0] sm:$0xff]
  %v7695 = vld [vmem:[%s3 + $0x1f8] sm:$0xff]
  %7696 = vmatpush.msra.mxu0 %v7692
  %7697 = vmatpush.msra.mxu0 %v7688
  %7698 = vmatpush.msra.mxu0 %v7684
  %7699 = vmatpush.msra.mxu0 %v7680
  %7700 = vmatpush.msra.mxu0 %v7676
  %7701 = vmatpush.msra.mxu0 %v7672
  %7702 = vmatpush.msra.mxu0 %v7668
  %7703 = vmatpush.msra.mxu0 %v7664
  %7704 = vmatpush.msra.mxu0 %v7660
  %7705 = vmatpush.msra.mxu0 %v7656
  %7706 = vmatpush.msra.mxu0 %v7652
  %7707 = vmatpush.msra.mxu0 %v7648
  %7708 = vmatpush.msra.mxu0 %v7644
  %7709 = vmatpush.msra.mxu0 %v7640
  %7710 = vmatpush.msra.mxu0 %v7636
  %7711 = vmatpush.msra.mxu0 %v7632
  %7712 = vmatmul.f32.gmra.mxu0 %v7629
  %v7713 = vpop.f32.mrf.mxu0
  %v7714 = vadd.f32 %v725, %v7713
  %7715 = vdwg.mxu0
  %7716 = vmatpush.msra.mxu0 %v7693
  %7717 = vmatpush.msra.mxu0 %v7689
  %7718 = vmatpush.msra.mxu0 %v7685
  %7719 = vmatpush.msra.mxu0 %v7681
  %7720 = vmatpush.msra.mxu0 %v7677
  %7721 = vmatpush.msra.mxu0 %v7673
  %7722 = vmatpush.msra.mxu0 %v7669
  %7723 = vmatpush.msra.mxu0 %v7665
  %7724 = vmatpush.msra.mxu0 %v7661
  %7725 = vmatpush.msra.mxu0 %v7657
  %7726 = vmatpush.msra.mxu0 %v7653
  %7727 = vmatpush.msra.mxu0 %v7649
  %7728 = vmatpush.msra.mxu0 %v7645
  %7729 = vmatpush.msra.mxu0 %v7641
  %7730 = vmatpush.msra.mxu0 %v7637
  %7731 = vmatpush.msra.mxu0 %v7633
  %7732 = vmatmul.f32.gmra.mxu0 %v7629
  %v7733 = vpop.f32.mrf.mxu0
  %v7734 = vadd.f32 %v726, %v7733
  %7735 = vdwg.mxu0
  %7736 = vmatpush.msra.mxu0 %v7694
  %7737 = vmatpush.msra.mxu0 %v7690
  %7738 = vmatpush.msra.mxu0 %v7686
  %7739 = vmatpush.msra.mxu0 %v7682
  %7740 = vmatpush.msra.mxu0 %v7678
  %7741 = vmatpush.msra.mxu0 %v7674
  %7742 = vmatpush.msra.mxu0 %v7670
  %7743 = vmatpush.msra.mxu0 %v7666
  %7744 = vmatpush.msra.mxu0 %v7662
  %7745 = vmatpush.msra.mxu0 %v7658
  %7746 = vmatpush.msra.mxu0 %v7654
  %7747 = vmatpush.msra.mxu0 %v7650
  %7748 = vmatpush.msra.mxu0 %v7646
  %7749 = vmatpush.msra.mxu0 %v7642
  %7750 = vmatpush.msra.mxu0 %v7638
  %7751 = vmatpush.msra.mxu0 %v7634
  %7752 = vmatmul.f32.gmra.mxu0 %v7629
  %v7753 = vpop.f32.mrf.mxu0
  %v7754 = vadd.f32 %v727, %v7753
  %7755 = vdwg.mxu0
  %7756 = vmatpush.msra.mxu0 %v7695
  %7757 = vmatpush.msra.mxu0 %v7691
  %7758 = vmatpush.msra.mxu0 %v7687
  %7759 = vmatpush.msra.mxu0 %v7683
  %7760 = vmatpush.msra.mxu0 %v7679
  %7761 = vmatpush.msra.mxu0 %v7675
  %7762 = vmatpush.msra.mxu0 %v7671
  %7763 = vmatpush.msra.mxu0 %v7667
  %7764 = vmatpush.msra.mxu0 %v7663
  %7765 = vmatpush.msra.mxu0 %v7659
  %7766 = vmatpush.msra.mxu0 %v7655
  %7767 = vmatpush.msra.mxu0 %v7651
  %7768 = vmatpush.msra.mxu0 %v7647
  %7769 = vmatpush.msra.mxu0 %v7643
  %7770 = vmatpush.msra.mxu0 %v7639
  %7771 = vmatpush.msra.mxu0 %v7635
  %7772 = vmatmul.f32.gmra.mxu0 %v7629
  %v7773 = vpop.f32.mrf.mxu0
  %v7774 = vadd.f32 %v728, %v7773
  %7775 = vdwg.mxu0
  %s7776 = smul.u32 12, 4
  %s7777 = smul.addr %s7776, 8
  %s7778 = scalar_lea.vmem [#allocation2], %s7777
  %v7779 = vld [vmem:[%s7778] sm:$0xff]
  %v7780 = vld [vmem:[%s7778 + $0x8] sm:$0xff]
  %v7781 = vld [vmem:[%s7778 + $0x10] sm:$0xff]
  %v7782 = vld [vmem:[%s7778 + $0x18] sm:$0xff]
  %v7783 = vadd.f32 %v7779, %v7421
  %v7784 = vadd.f32 %v7780, %v7441
  %v7785 = vadd.f32 %v7781, %v7461
  %v7786 = vadd.f32 %v7782, %v7481
  %v7787 = vxor.u32 %v7783, 2147483648
  %v7788 = vxor.u32 %v7784, 2147483648
  %v7789 = vmul.f32 %v7787, 1.442695
  %v7790 = vpow.pop %v7789
  %v7791 = vmul.f32 %v7788, 1.442695
  %v7792 = vpow.pop %v7791
  %v7793 = vadd.f32 %v7790, 1.0
  %v7794 = vadd.f32 %v7792, 1.0
  %v7795 = vrcp.pop %v7793
  %v7796 = vmul.f32 %v7793, %v7795
  %v7797 = vsub.f32 1.0, %v7796
  %v7798 = vmul.f32 %v7795, %v7797
  %v7799 = vadd.f32 %v7795, %v7798
  %vm7800 = vweird.f32 %v7793
  %vm7801 = vweird.f32 %v7795
  %vm7802 = vmor %vm7800, %vm7801
  %v7803 = vsel %vm7802, %v7795, %v7799
  %v7804 = vand.u32 2147483647, %v7793
  %vm7805 = vcmp.eq.f32.partialorder %v7804, 8.507059e+37
  %v7806 = vand.u32 %v7793, 2147483648
  %v7807 = vor.u32 1.1754944e-38, %v7806
  %v7808 = vsel %vm7805, %v7807, %v7803
  %v7809 = vmul.f32 1.0, %v7808
  %v7810 = vrcp.pop %v7794
  %v7811 = vmul.f32 %v7794, %v7810
  %v7812 = vsub.f32 1.0, %v7811
  %v7813 = vmul.f32 %v7810, %v7812
  %v7814 = vadd.f32 %v7810, %v7813
  %vm7815 = vweird.f32 %v7794
  %vm7816 = vweird.f32 %v7810
  %vm7817 = vmor %vm7815, %vm7816
  %v7818 = vsel %vm7817, %v7810, %v7814
  %v7819 = vand.u32 2147483647, %v7794
  %vm7820 = vcmp.eq.f32.partialorder %v7819, 8.507059e+37
  %v7821 = vand.u32 %v7794, 2147483648
  %v7822 = vor.u32 1.1754944e-38, %v7821
  %v7823 = vsel %vm7820, %v7822, %v7818
  %v7824 = vmul.f32 1.0, %v7823
  %v7825 = vtanh.pop %v7785
  %v7826 = vxor.u32 %v7786, 2147483648
  %v7827 = vmul.f32 %v7826, 1.442695
  %v7828 = vpow.pop %v7827
  %v7829 = vadd.f32 %v7828, 1.0
  %v7830 = vrcp.pop %v7829
  %v7831 = vmul.f32 %v7829, %v7830
  %v7832 = vsub.f32 1.0, %v7831
  %v7833 = vmul.f32 %v7830, %v7832
  %v7834 = vadd.f32 %v7830, %v7833
  %vm7835 = vweird.f32 %v7829
  %vm7836 = vweird.f32 %v7830
  %vm7837 = vmor %vm7835, %vm7836
  %v7838 = vsel %vm7837, %v7830, %v7834
  %v7839 = vand.u32 2147483647, %v7829
  %vm7840 = vcmp.eq.f32.partialorder %v7839, 8.507059e+37
  %v7841 = vand.u32 %v7829, 2147483648
  %v7842 = vor.u32 1.1754944e-38, %v7841
  %v7843 = vsel %vm7840, %v7842, %v7838
  %v7844 = vmul.f32 1.0, %v7843
  %v7845 = vmul.f32 %v7824, %v7272
  %v7846 = vmul.f32 %v7809, %v7825
  %v7847 = vadd.f32 %v7845, %v7846
  %v7848 = vtanh.pop %v7847
  %v7849 = vmul.f32 %v7844, %v7848
  %v7850 = vld [vmem:[%s2] sm:$0xff]
  %v7851 = vld [vmem:[%s2 + $0x8] sm:$0xff]
  %v7852 = vld [vmem:[%s2 + $0x10] sm:$0xff]
  %v7853 = vld [vmem:[%s2 + $0x18] sm:$0xff]
  %v7854 = vld [vmem:[%s2 + $0x20] sm:$0xff]
  %v7855 = vld [vmem:[%s2 + $0x28] sm:$0xff]
  %v7856 = vld [vmem:[%s2 + $0x30] sm:$0xff]
  %v7857 = vld [vmem:[%s2 + $0x38] sm:$0xff]
  %v7858 = vld [vmem:[%s2 + $0x40] sm:$0xff]
  %v7859 = vld [vmem:[%s2 + $0x48] sm:$0xff]
  %v7860 = vld [vmem:[%s2 + $0x50] sm:$0xff]
  %v7861 = vld [vmem:[%s2 + $0x58] sm:$0xff]
  %v7862 = vld [vmem:[%s2 + $0x60] sm:$0xff]
  %v7863 = vld [vmem:[%s2 + $0x68] sm:$0xff]
  %v7864 = vld [vmem:[%s2 + $0x70] sm:$0xff]
  %v7865 = vld [vmem:[%s2 + $0x78] sm:$0xff]
  %v7866 = vld [vmem:[%s2 + $0x80] sm:$0xff]
  %v7867 = vld [vmem:[%s2 + $0x88] sm:$0xff]
  %v7868 = vld [vmem:[%s2 + $0x90] sm:$0xff]
  %v7869 = vld [vmem:[%s2 + $0x98] sm:$0xff]
  %v7870 = vld [vmem:[%s2 + $0xa0] sm:$0xff]
  %v7871 = vld [vmem:[%s2 + $0xa8] sm:$0xff]
  %v7872 = vld [vmem:[%s2 + $0xb0] sm:$0xff]
  %v7873 = vld [vmem:[%s2 + $0xb8] sm:$0xff]
  %v7874 = vld [vmem:[%s2 + $0xc0] sm:$0xff]
  %v7875 = vld [vmem:[%s2 + $0xc8] sm:$0xff]
  %v7876 = vld [vmem:[%s2 + $0xd0] sm:$0xff]
  %v7877 = vld [vmem:[%s2 + $0xd8] sm:$0xff]
  %v7878 = vld [vmem:[%s2 + $0xe0] sm:$0xff]
  %v7879 = vld [vmem:[%s2 + $0xe8] sm:$0xff]
  %v7880 = vld [vmem:[%s2 + $0xf0] sm:$0xff]
  %v7881 = vld [vmem:[%s2 + $0xf8] sm:$0xff]
  %v7882 = vld [vmem:[%s2 + $0x100] sm:$0xff]
  %v7883 = vld [vmem:[%s2 + $0x108] sm:$0xff]
  %v7884 = vld [vmem:[%s2 + $0x110] sm:$0xff]
  %v7885 = vld [vmem:[%s2 + $0x118] sm:$0xff]
  %v7886 = vld [vmem:[%s2 + $0x120] sm:$0xff]
  %v7887 = vld [vmem:[%s2 + $0x128] sm:$0xff]
  %v7888 = vld [vmem:[%s2 + $0x130] sm:$0xff]
  %v7889 = vld [vmem:[%s2 + $0x138] sm:$0xff]
  %v7890 = vld [vmem:[%s2 + $0x140] sm:$0xff]
  %v7891 = vld [vmem:[%s2 + $0x148] sm:$0xff]
  %v7892 = vld [vmem:[%s2 + $0x150] sm:$0xff]
  %v7893 = vld [vmem:[%s2 + $0x158] sm:$0xff]
  %v7894 = vld [vmem:[%s2 + $0x160] sm:$0xff]
  %v7895 = vld [vmem:[%s2 + $0x168] sm:$0xff]
  %v7896 = vld [vmem:[%s2 + $0x170] sm:$0xff]
  %v7897 = vld [vmem:[%s2 + $0x178] sm:$0xff]
  %v7898 = vld [vmem:[%s2 + $0x180] sm:$0xff]
  %v7899 = vld [vmem:[%s2 + $0x188] sm:$0xff]
  %v7900 = vld [vmem:[%s2 + $0x190] sm:$0xff]
  %v7901 = vld [vmem:[%s2 + $0x198] sm:$0xff]
  %v7902 = vld [vmem:[%s2 + $0x1a0] sm:$0xff]
  %v7903 = vld [vmem:[%s2 + $0x1a8] sm:$0xff]
  %v7904 = vld [vmem:[%s2 + $0x1b0] sm:$0xff]
  %v7905 = vld [vmem:[%s2 + $0x1b8] sm:$0xff]
  %v7906 = vld [vmem:[%s2 + $0x1c0] sm:$0xff]
  %v7907 = vld [vmem:[%s2 + $0x1c8] sm:$0xff]
  %v7908 = vld [vmem:[%s2 + $0x1d0] sm:$0xff]
  %v7909 = vld [vmem:[%s2 + $0x1d8] sm:$0xff]
  %v7910 = vld [vmem:[%s2 + $0x1e0] sm:$0xff]
  %v7911 = vld [vmem:[%s2 + $0x1e8] sm:$0xff]
  %v7912 = vld [vmem:[%s2 + $0x1f0] sm:$0xff]
  %v7913 = vld [vmem:[%s2 + $0x1f8] sm:$0xff]
  %v7914 = vld [vmem:[%s2 + $0x200] sm:$0xff]
  %v7915 = vld [vmem:[%s2 + $0x208] sm:$0xff]
  %v7916 = vld [vmem:[%s2 + $0x210] sm:$0xff]
  %v7917 = vld [vmem:[%s2 + $0x218] sm:$0xff]
  %v7918 = vld [vmem:[%s2 + $0x220] sm:$0xff]
  %v7919 = vld [vmem:[%s2 + $0x228] sm:$0xff]
  %v7920 = vld [vmem:[%s2 + $0x230] sm:$0xff]
  %v7921 = vld [vmem:[%s2 + $0x238] sm:$0xff]
  %v7922 = vld [vmem:[%s2 + $0x240] sm:$0xff]
  %v7923 = vld [vmem:[%s2 + $0x248] sm:$0xff]
  %v7924 = vld [vmem:[%s2 + $0x250] sm:$0xff]
  %v7925 = vld [vmem:[%s2 + $0x258] sm:$0xff]
  %v7926 = vld [vmem:[%s2 + $0x260] sm:$0xff]
  %v7927 = vld [vmem:[%s2 + $0x268] sm:$0xff]
  %v7928 = vld [vmem:[%s2 + $0x270] sm:$0xff]
  %v7929 = vld [vmem:[%s2 + $0x278] sm:$0xff]
  %v7930 = vld [vmem:[%s2 + $0x280] sm:$0xff]
  %v7931 = vld [vmem:[%s2 + $0x288] sm:$0xff]
  %v7932 = vld [vmem:[%s2 + $0x290] sm:$0xff]
  %v7933 = vld [vmem:[%s2 + $0x298] sm:$0xff]
  %v7934 = vld [vmem:[%s2 + $0x2a0] sm:$0xff]
  %v7935 = vld [vmem:[%s2 + $0x2a8] sm:$0xff]
  %v7936 = vld [vmem:[%s2 + $0x2b0] sm:$0xff]
  %v7937 = vld [vmem:[%s2 + $0x2b8] sm:$0xff]
  %v7938 = vld [vmem:[%s2 + $0x2c0] sm:$0xff]
  %v7939 = vld [vmem:[%s2 + $0x2c8] sm:$0xff]
  %v7940 = vld [vmem:[%s2 + $0x2d0] sm:$0xff]
  %v7941 = vld [vmem:[%s2 + $0x2d8] sm:$0xff]
  %v7942 = vld [vmem:[%s2 + $0x2e0] sm:$0xff]
  %v7943 = vld [vmem:[%s2 + $0x2e8] sm:$0xff]
  %v7944 = vld [vmem:[%s2 + $0x2f0] sm:$0xff]
  %v7945 = vld [vmem:[%s2 + $0x2f8] sm:$0xff]
  %v7946 = vld [vmem:[%s2 + $0x300] sm:$0xff]
  %v7947 = vld [vmem:[%s2 + $0x308] sm:$0xff]
  %v7948 = vld [vmem:[%s2 + $0x310] sm:$0xff]
  %v7949 = vld [vmem:[%s2 + $0x318] sm:$0xff]
  %v7950 = vld [vmem:[%s2 + $0x320] sm:$0xff]
  %v7951 = vld [vmem:[%s2 + $0x328] sm:$0xff]
  %v7952 = vld [vmem:[%s2 + $0x330] sm:$0xff]
  %v7953 = vld [vmem:[%s2 + $0x338] sm:$0xff]
  %v7954 = vld [vmem:[%s2 + $0x340] sm:$0xff]
  %v7955 = vld [vmem:[%s2 + $0x348] sm:$0xff]
  %v7956 = vld [vmem:[%s2 + $0x350] sm:$0xff]
  %v7957 = vld [vmem:[%s2 + $0x358] sm:$0xff]
  %v7958 = vld [vmem:[%s2 + $0x360] sm:$0xff]
  %v7959 = vld [vmem:[%s2 + $0x368] sm:$0xff]
  %v7960 = vld [vmem:[%s2 + $0x370] sm:$0xff]
  %v7961 = vld [vmem:[%s2 + $0x378] sm:$0xff]
  %v7962 = vld [vmem:[%s2 + $0x380] sm:$0xff]
  %v7963 = vld [vmem:[%s2 + $0x388] sm:$0xff]
  %v7964 = vld [vmem:[%s2 + $0x390] sm:$0xff]
  %v7965 = vld [vmem:[%s2 + $0x398] sm:$0xff]
  %v7966 = vld [vmem:[%s2 + $0x3a0] sm:$0xff]
  %v7967 = vld [vmem:[%s2 + $0x3a8] sm:$0xff]
  %v7968 = vld [vmem:[%s2 + $0x3b0] sm:$0xff]
  %v7969 = vld [vmem:[%s2 + $0x3b8] sm:$0xff]
  %v7970 = vld [vmem:[%s2 + $0x3c0] sm:$0xff]
  %v7971 = vld [vmem:[%s2 + $0x3c8] sm:$0xff]
  %v7972 = vld [vmem:[%s2 + $0x3d0] sm:$0xff]
  %v7973 = vld [vmem:[%s2 + $0x3d8] sm:$0xff]
  %v7974 = vld [vmem:[%s2 + $0x3e0] sm:$0xff]
  %v7975 = vld [vmem:[%s2 + $0x3e8] sm:$0xff]
  %v7976 = vld [vmem:[%s2 + $0x3f0] sm:$0xff]
  %v7977 = vld [vmem:[%s2 + $0x3f8] sm:$0xff]
  %7978 = vmatpush.msra.mxu0 %v7970
  %7979 = vmatpush.msra.mxu0 %v7962
  %7980 = vmatpush.msra.mxu0 %v7954
  %7981 = vmatpush.msra.mxu0 %v7946
  %7982 = vmatpush.msra.mxu0 %v7938
  %7983 = vmatpush.msra.mxu0 %v7930
  %7984 = vmatpush.msra.mxu0 %v7922
  %7985 = vmatpush.msra.mxu0 %v7914
  %7986 = vmatpush.msra.mxu0 %v7906
  %7987 = vmatpush.msra.mxu0 %v7898
  %7988 = vmatpush.msra.mxu0 %v7890
  %7989 = vmatpush.msra.mxu0 %v7882
  %7990 = vmatpush.msra.mxu0 %v7874
  %7991 = vmatpush.msra.mxu0 %v7866
  %7992 = vmatpush.msra.mxu0 %v7858
  %7993 = vmatpush.msra.mxu0 %v7850
  %7994 = vmatmul.f32.gmra.mxu0 %v7849
  %v7995 = vpop.f32.mrf.mxu0
  %v7996 = vadd.f32 0.0, %v7995
  %7997 = vdwg.mxu0
  %7998 = vmatpush.msra.mxu0 %v7971
  %7999 = vmatpush.msra.mxu0 %v7963
  %8000 = vmatpush.msra.mxu0 %v7955
  %8001 = vmatpush.msra.mxu0 %v7947
  %8002 = vmatpush.msra.mxu0 %v7939
  %8003 = vmatpush.msra.mxu0 %v7931
  %8004 = vmatpush.msra.mxu0 %v7923
  %8005 = vmatpush.msra.mxu0 %v7915
  %8006 = vmatpush.msra.mxu0 %v7907
  %8007 = vmatpush.msra.mxu0 %v7899
  %8008 = vmatpush.msra.mxu0 %v7891
  %8009 = vmatpush.msra.mxu0 %v7883
  %8010 = vmatpush.msra.mxu0 %v7875
  %8011 = vmatpush.msra.mxu0 %v7867
  %8012 = vmatpush.msra.mxu0 %v7859
  %8013 = vmatpush.msra.mxu0 %v7851
  %8014 = vmatmul.f32.gmra.mxu0 %v7849
  %v8015 = vpop.f32.mrf.mxu0
  %v8016 = vadd.f32 0.0, %v8015
  %8017 = vdwg.mxu0
  %8018 = vmatpush.msra.mxu0 %v7972
  %8019 = vmatpush.msra.mxu0 %v7964
  %8020 = vmatpush.msra.mxu0 %v7956
  %8021 = vmatpush.msra.mxu0 %v7948
  %8022 = vmatpush.msra.mxu0 %v7940
  %8023 = vmatpush.msra.mxu0 %v7932
  %8024 = vmatpush.msra.mxu0 %v7924
  %8025 = vmatpush.msra.mxu0 %v7916
  %8026 = vmatpush.msra.mxu0 %v7908
  %8027 = vmatpush.msra.mxu0 %v7900
  %8028 = vmatpush.msra.mxu0 %v7892
  %8029 = vmatpush.msra.mxu0 %v7884
  %8030 = vmatpush.msra.mxu0 %v7876
  %8031 = vmatpush.msra.mxu0 %v7868
  %8032 = vmatpush.msra.mxu0 %v7860
  %8033 = vmatpush.msra.mxu0 %v7852
  %8034 = vmatmul.f32.gmra.mxu0 %v7849
  %v8035 = vpop.f32.mrf.mxu0
  %v8036 = vadd.f32 0.0, %v8035
  %8037 = vdwg.mxu0
  %8038 = vmatpush.msra.mxu0 %v7973
  %8039 = vmatpush.msra.mxu0 %v7965
  %8040 = vmatpush.msra.mxu0 %v7957
  %8041 = vmatpush.msra.mxu0 %v7949
  %8042 = vmatpush.msra.mxu0 %v7941
  %8043 = vmatpush.msra.mxu0 %v7933
  %8044 = vmatpush.msra.mxu0 %v7925
  %8045 = vmatpush.msra.mxu0 %v7917
  %8046 = vmatpush.msra.mxu0 %v7909
  %8047 = vmatpush.msra.mxu0 %v7901
  %8048 = vmatpush.msra.mxu0 %v7893
  %8049 = vmatpush.msra.mxu0 %v7885
  %8050 = vmatpush.msra.mxu0 %v7877
  %8051 = vmatpush.msra.mxu0 %v7869
  %8052 = vmatpush.msra.mxu0 %v7861
  %8053 = vmatpush.msra.mxu0 %v7853
  %8054 = vmatmul.f32.gmra.mxu0 %v7849
  %v8055 = vpop.f32.mrf.mxu0
  %v8056 = vadd.f32 0.0, %v8055
  %8057 = vdwg.mxu0
  %8058 = vmatpush.msra.mxu0 %v7974
  %8059 = vmatpush.msra.mxu0 %v7966
  %8060 = vmatpush.msra.mxu0 %v7958
  %8061 = vmatpush.msra.mxu0 %v7950
  %8062 = vmatpush.msra.mxu0 %v7942
  %8063 = vmatpush.msra.mxu0 %v7934
  %8064 = vmatpush.msra.mxu0 %v7926
  %8065 = vmatpush.msra.mxu0 %v7918
  %8066 = vmatpush.msra.mxu0 %v7910
  %8067 = vmatpush.msra.mxu0 %v7902
  %8068 = vmatpush.msra.mxu0 %v7894
  %8069 = vmatpush.msra.mxu0 %v7886
  %8070 = vmatpush.msra.mxu0 %v7878
  %8071 = vmatpush.msra.mxu0 %v7870
  %8072 = vmatpush.msra.mxu0 %v7862
  %8073 = vmatpush.msra.mxu0 %v7854
  %8074 = vmatmul.f32.gmra.mxu0 %v7849
  %v8075 = vpop.f32.mrf.mxu0
  %v8076 = vadd.f32 0.0, %v8075
  %8077 = vdwg.mxu0
  %8078 = vmatpush.msra.mxu0 %v7975
  %8079 = vmatpush.msra.mxu0 %v7967
  %8080 = vmatpush.msra.mxu0 %v7959
  %8081 = vmatpush.msra.mxu0 %v7951
  %8082 = vmatpush.msra.mxu0 %v7943
  %8083 = vmatpush.msra.mxu0 %v7935
  %8084 = vmatpush.msra.mxu0 %v7927
  %8085 = vmatpush.msra.mxu0 %v7919
  %8086 = vmatpush.msra.mxu0 %v7911
  %8087 = vmatpush.msra.mxu0 %v7903
  %8088 = vmatpush.msra.mxu0 %v7895
  %8089 = vmatpush.msra.mxu0 %v7887
  %8090 = vmatpush.msra.mxu0 %v7879
  %8091 = vmatpush.msra.mxu0 %v7871
  %8092 = vmatpush.msra.mxu0 %v7863
  %8093 = vmatpush.msra.mxu0 %v7855
  %8094 = vmatmul.f32.gmra.mxu0 %v7849
  %v8095 = vpop.f32.mrf.mxu0
  %v8096 = vadd.f32 0.0, %v8095
  %8097 = vdwg.mxu0
  %8098 = vmatpush.msra.mxu0 %v7976
  %8099 = vmatpush.msra.mxu0 %v7968
  %8100 = vmatpush.msra.mxu0 %v7960
  %8101 = vmatpush.msra.mxu0 %v7952
  %8102 = vmatpush.msra.mxu0 %v7944
  %8103 = vmatpush.msra.mxu0 %v7936
  %8104 = vmatpush.msra.mxu0 %v7928
  %8105 = vmatpush.msra.mxu0 %v7920
  %8106 = vmatpush.msra.mxu0 %v7912
  %8107 = vmatpush.msra.mxu0 %v7904
  %8108 = vmatpush.msra.mxu0 %v7896
  %8109 = vmatpush.msra.mxu0 %v7888
  %8110 = vmatpush.msra.mxu0 %v7880
  %8111 = vmatpush.msra.mxu0 %v7872
  %8112 = vmatpush.msra.mxu0 %v7864
  %8113 = vmatpush.msra.mxu0 %v7856
  %8114 = vmatmul.f32.gmra.mxu0 %v7849
  %v8115 = vpop.f32.mrf.mxu0
  %v8116 = vadd.f32 0.0, %v8115
  %8117 = vdwg.mxu0
  %8118 = vmatpush.msra.mxu0 %v7977
  %8119 = vmatpush.msra.mxu0 %v7969
  %8120 = vmatpush.msra.mxu0 %v7961
  %8121 = vmatpush.msra.mxu0 %v7953
  %8122 = vmatpush.msra.mxu0 %v7945
  %8123 = vmatpush.msra.mxu0 %v7937
  %8124 = vmatpush.msra.mxu0 %v7929
  %8125 = vmatpush.msra.mxu0 %v7921
  %8126 = vmatpush.msra.mxu0 %v7913
  %8127 = vmatpush.msra.mxu0 %v7905
  %8128 = vmatpush.msra.mxu0 %v7897
  %8129 = vmatpush.msra.mxu0 %v7889
  %8130 = vmatpush.msra.mxu0 %v7881
  %8131 = vmatpush.msra.mxu0 %v7873
  %8132 = vmatpush.msra.mxu0 %v7865
  %8133 = vmatpush.msra.mxu0 %v7857
  %8134 = vmatmul.f32.gmra.mxu0 %v7849
  %v8135 = vpop.f32.mrf.mxu0
  %v8136 = vadd.f32 0.0, %v8135
  %8137 = vdwg.mxu0
  %v8138 = vadd.f32 %v7714, %v8076
  %v8139 = vadd.f32 %v7734, %v8096
  %v8140 = vadd.f32 %v7754, %v8116
  %v8141 = vadd.f32 %v7774, %v8136
  %v8142 = vxor.u32 %v8138, 2147483648
  %v8143 = vxor.u32 %v8139, 2147483648
  %v8144 = vmul.f32 %v8142, 1.442695
  %v8145 = vpow.pop %v8144
  %v8146 = vmul.f32 %v8143, 1.442695
  %v8147 = vpow.pop %v8146
  %v8148 = vadd.f32 %v8145, 1.0
  %v8149 = vadd.f32 %v8147, 1.0
  %v8150 = vrcp.pop %v8148
  %v8151 = vmul.f32 %v8148, %v8150
  %v8152 = vsub.f32 1.0, %v8151
  %v8153 = vmul.f32 %v8150, %v8152
  %v8154 = vadd.f32 %v8150, %v8153
  %vm8155 = vweird.f32 %v8148
  %vm8156 = vweird.f32 %v8150
  %vm8157 = vmor %vm8155, %vm8156
  %v8158 = vsel %vm8157, %v8150, %v8154
  %v8159 = vand.u32 2147483647, %v8148
  %vm8160 = vcmp.eq.f32.partialorder %v8159, 8.507059e+37
  %v8161 = vand.u32 %v8148, 2147483648
  %v8162 = vor.u32 1.1754944e-38, %v8161
  %v8163 = vsel %vm8160, %v8162, %v8158
  %v8164 = vmul.f32 1.0, %v8163
  %v8165 = vrcp.pop %v8149
  %v8166 = vmul.f32 %v8149, %v8165
  %v8167 = vsub.f32 1.0, %v8166
  %v8168 = vmul.f32 %v8165, %v8167
  %v8169 = vadd.f32 %v8165, %v8168
  %vm8170 = vweird.f32 %v8149
  %vm8171 = vweird.f32 %v8165
  %vm8172 = vmor %vm8170, %vm8171
  %v8173 = vsel %vm8172, %v8165, %v8169
  %v8174 = vand.u32 2147483647, %v8149
  %vm8175 = vcmp.eq.f32.partialorder %v8174, 8.507059e+37
  %v8176 = vand.u32 %v8149, 2147483648
  %v8177 = vor.u32 1.1754944e-38, %v8176
  %v8178 = vsel %vm8175, %v8177, %v8173
  %v8179 = vmul.f32 1.0, %v8178
  %v8180 = vtanh.pop %v8140
  %v8181 = vxor.u32 %v8141, 2147483648
  %v8182 = vmul.f32 %v8181, 1.442695
  %v8183 = vpow.pop %v8182
  %v8184 = vadd.f32 %v8183, 1.0
  %v8185 = vrcp.pop %v8184
  %v8186 = vmul.f32 %v8184, %v8185
  %v8187 = vsub.f32 1.0, %v8186
  %v8188 = vmul.f32 %v8185, %v8187
  %v8189 = vadd.f32 %v8185, %v8188
  %vm8190 = vweird.f32 %v8184
  %vm8191 = vweird.f32 %v8185
  %vm8192 = vmor %vm8190, %vm8191
  %v8193 = vsel %vm8192, %v8185, %v8189
  %v8194 = vand.u32 2147483647, %v8184
  %vm8195 = vcmp.eq.f32.partialorder %v8194, 8.507059e+37
  %v8196 = vand.u32 %v8184, 2147483648
  %v8197 = vor.u32 1.1754944e-38, %v8196
  %v8198 = vsel %vm8195, %v8197, %v8193
  %v8199 = vmul.f32 1.0, %v8198
  %v8200 = vmul.f32 %v8179, %v7627
  %v8201 = vmul.f32 %v8164, %v8180
  %v8202 = vadd.f32 %v8200, %v8201
  %v8203 = vtanh.pop %v8202
  %v8204 = vmul.f32 %v8199, %v8203
  %s8205 = scalar_lea.vmem [#allocation3], 96
  %8206 = vst [vmem:[%s8205] sm:$0xff] %v8204
  %v8207 = vld [vmem:[%s3] sm:$0xff]
  %v8208 = vld [vmem:[%s3 + $0x8] sm:$0xff]
  %v8209 = vld [vmem:[%s3 + $0x10] sm:$0xff]
  %v8210 = vld [vmem:[%s3 + $0x18] sm:$0xff]
  %v8211 = vld [vmem:[%s3 + $0x20] sm:$0xff]
  %v8212 = vld [vmem:[%s3 + $0x28] sm:$0xff]
  %v8213 = vld [vmem:[%s3 + $0x30] sm:$0xff]
  %v8214 = vld [vmem:[%s3 + $0x38] sm:$0xff]
  %v8215 = vld [vmem:[%s3 + $0x40] sm:$0xff]
  %v8216 = vld [vmem:[%s3 + $0x48] sm:$0xff]
  %v8217 = vld [vmem:[%s3 + $0x50] sm:$0xff]
  %v8218 = vld [vmem:[%s3 + $0x58] sm:$0xff]
  %v8219 = vld [vmem:[%s3 + $0x60] sm:$0xff]
  %v8220 = vld [vmem:[%s3 + $0x68] sm:$0xff]
  %v8221 = vld [vmem:[%s3 + $0x70] sm:$0xff]
  %v8222 = vld [vmem:[%s3 + $0x78] sm:$0xff]
  %v8223 = vld [vmem:[%s3 + $0x80] sm:$0xff]
  %v8224 = vld [vmem:[%s3 + $0x88] sm:$0xff]
  %v8225 = vld [vmem:[%s3 + $0x90] sm:$0xff]
  %v8226 = vld [vmem:[%s3 + $0x98] sm:$0xff]
  %v8227 = vld [vmem:[%s3 + $0xa0] sm:$0xff]
  %v8228 = vld [vmem:[%s3 + $0xa8] sm:$0xff]
  %v8229 = vld [vmem:[%s3 + $0xb0] sm:$0xff]
  %v8230 = vld [vmem:[%s3 + $0xb8] sm:$0xff]
  %v8231 = vld [vmem:[%s3 + $0xc0] sm:$0xff]
  %v8232 = vld [vmem:[%s3 + $0xc8] sm:$0xff]
  %v8233 = vld [vmem:[%s3 + $0xd0] sm:$0xff]
  %v8234 = vld [vmem:[%s3 + $0xd8] sm:$0xff]
  %v8235 = vld [vmem:[%s3 + $0xe0] sm:$0xff]
  %v8236 = vld [vmem:[%s3 + $0xe8] sm:$0xff]
  %v8237 = vld [vmem:[%s3 + $0xf0] sm:$0xff]
  %v8238 = vld [vmem:[%s3 + $0xf8] sm:$0xff]
  %v8239 = vld [vmem:[%s3 + $0x100] sm:$0xff]
  %v8240 = vld [vmem:[%s3 + $0x108] sm:$0xff]
  %v8241 = vld [vmem:[%s3 + $0x110] sm:$0xff]
  %v8242 = vld [vmem:[%s3 + $0x118] sm:$0xff]
  %v8243 = vld [vmem:[%s3 + $0x120] sm:$0xff]
  %v8244 = vld [vmem:[%s3 + $0x128] sm:$0xff]
  %v8245 = vld [vmem:[%s3 + $0x130] sm:$0xff]
  %v8246 = vld [vmem:[%s3 + $0x138] sm:$0xff]
  %v8247 = vld [vmem:[%s3 + $0x140] sm:$0xff]
  %v8248 = vld [vmem:[%s3 + $0x148] sm:$0xff]
  %v8249 = vld [vmem:[%s3 + $0x150] sm:$0xff]
  %v8250 = vld [vmem:[%s3 + $0x158] sm:$0xff]
  %v8251 = vld [vmem:[%s3 + $0x160] sm:$0xff]
  %v8252 = vld [vmem:[%s3 + $0x168] sm:$0xff]
  %v8253 = vld [vmem:[%s3 + $0x170] sm:$0xff]
  %v8254 = vld [vmem:[%s3 + $0x178] sm:$0xff]
  %v8255 = vld [vmem:[%s3 + $0x180] sm:$0xff]
  %v8256 = vld [vmem:[%s3 + $0x188] sm:$0xff]
  %v8257 = vld [vmem:[%s3 + $0x190] sm:$0xff]
  %v8258 = vld [vmem:[%s3 + $0x198] sm:$0xff]
  %v8259 = vld [vmem:[%s3 + $0x1a0] sm:$0xff]
  %v8260 = vld [vmem:[%s3 + $0x1a8] sm:$0xff]
  %v8261 = vld [vmem:[%s3 + $0x1b0] sm:$0xff]
  %v8262 = vld [vmem:[%s3 + $0x1b8] sm:$0xff]
  %v8263 = vld [vmem:[%s3 + $0x1c0] sm:$0xff]
  %v8264 = vld [vmem:[%s3 + $0x1c8] sm:$0xff]
  %v8265 = vld [vmem:[%s3 + $0x1d0] sm:$0xff]
  %v8266 = vld [vmem:[%s3 + $0x1d8] sm:$0xff]
  %v8267 = vld [vmem:[%s3 + $0x1e0] sm:$0xff]
  %v8268 = vld [vmem:[%s3 + $0x1e8] sm:$0xff]
  %v8269 = vld [vmem:[%s3 + $0x1f0] sm:$0xff]
  %v8270 = vld [vmem:[%s3 + $0x1f8] sm:$0xff]
  %8271 = vmatpush.msra.mxu0 %v8267
  %8272 = vmatpush.msra.mxu0 %v8263
  %8273 = vmatpush.msra.mxu0 %v8259
  %8274 = vmatpush.msra.mxu0 %v8255
  %8275 = vmatpush.msra.mxu0 %v8251
  %8276 = vmatpush.msra.mxu0 %v8247
  %8277 = vmatpush.msra.mxu0 %v8243
  %8278 = vmatpush.msra.mxu0 %v8239
  %8279 = vmatpush.msra.mxu0 %v8235
  %8280 = vmatpush.msra.mxu0 %v8231
  %8281 = vmatpush.msra.mxu0 %v8227
  %8282 = vmatpush.msra.mxu0 %v8223
  %8283 = vmatpush.msra.mxu0 %v8219
  %8284 = vmatpush.msra.mxu0 %v8215
  %8285 = vmatpush.msra.mxu0 %v8211
  %8286 = vmatpush.msra.mxu0 %v8207
  %8287 = vmatmul.f32.gmra.mxu0 %v8204
  %v8288 = vpop.f32.mrf.mxu0
  %v8289 = vadd.f32 %v725, %v8288
  %8290 = vdwg.mxu0
  %8291 = vmatpush.msra.mxu0 %v8268
  %8292 = vmatpush.msra.mxu0 %v8264
  %8293 = vmatpush.msra.mxu0 %v8260
  %8294 = vmatpush.msra.mxu0 %v8256
  %8295 = vmatpush.msra.mxu0 %v8252
  %8296 = vmatpush.msra.mxu0 %v8248
  %8297 = vmatpush.msra.mxu0 %v8244
  %8298 = vmatpush.msra.mxu0 %v8240
  %8299 = vmatpush.msra.mxu0 %v8236
  %8300 = vmatpush.msra.mxu0 %v8232
  %8301 = vmatpush.msra.mxu0 %v8228
  %8302 = vmatpush.msra.mxu0 %v8224
  %8303 = vmatpush.msra.mxu0 %v8220
  %8304 = vmatpush.msra.mxu0 %v8216
  %8305 = vmatpush.msra.mxu0 %v8212
  %8306 = vmatpush.msra.mxu0 %v8208
  %8307 = vmatmul.f32.gmra.mxu0 %v8204
  %v8308 = vpop.f32.mrf.mxu0
  %v8309 = vadd.f32 %v726, %v8308
  %8310 = vdwg.mxu0
  %8311 = vmatpush.msra.mxu0 %v8269
  %8312 = vmatpush.msra.mxu0 %v8265
  %8313 = vmatpush.msra.mxu0 %v8261
  %8314 = vmatpush.msra.mxu0 %v8257
  %8315 = vmatpush.msra.mxu0 %v8253
  %8316 = vmatpush.msra.mxu0 %v8249
  %8317 = vmatpush.msra.mxu0 %v8245
  %8318 = vmatpush.msra.mxu0 %v8241
  %8319 = vmatpush.msra.mxu0 %v8237
  %8320 = vmatpush.msra.mxu0 %v8233
  %8321 = vmatpush.msra.mxu0 %v8229
  %8322 = vmatpush.msra.mxu0 %v8225
  %8323 = vmatpush.msra.mxu0 %v8221
  %8324 = vmatpush.msra.mxu0 %v8217
  %8325 = vmatpush.msra.mxu0 %v8213
  %8326 = vmatpush.msra.mxu0 %v8209
  %8327 = vmatmul.f32.gmra.mxu0 %v8204
  %v8328 = vpop.f32.mrf.mxu0
  %v8329 = vadd.f32 %v727, %v8328
  %8330 = vdwg.mxu0
  %8331 = vmatpush.msra.mxu0 %v8270
  %8332 = vmatpush.msra.mxu0 %v8266
  %8333 = vmatpush.msra.mxu0 %v8262
  %8334 = vmatpush.msra.mxu0 %v8258
  %8335 = vmatpush.msra.mxu0 %v8254
  %8336 = vmatpush.msra.mxu0 %v8250
  %8337 = vmatpush.msra.mxu0 %v8246
  %8338 = vmatpush.msra.mxu0 %v8242
  %8339 = vmatpush.msra.mxu0 %v8238
  %8340 = vmatpush.msra.mxu0 %v8234
  %8341 = vmatpush.msra.mxu0 %v8230
  %8342 = vmatpush.msra.mxu0 %v8226
  %8343 = vmatpush.msra.mxu0 %v8222
  %8344 = vmatpush.msra.mxu0 %v8218
  %8345 = vmatpush.msra.mxu0 %v8214
  %8346 = vmatpush.msra.mxu0 %v8210
  %8347 = vmatmul.f32.gmra.mxu0 %v8204
  %v8348 = vpop.f32.mrf.mxu0
  %v8349 = vadd.f32 %v728, %v8348
  %8350 = vdwg.mxu0
  %s8351 = smul.u32 13, 4
  %s8352 = smul.addr %s8351, 8
  %s8353 = scalar_lea.vmem [#allocation2], %s8352
  %v8354 = vld [vmem:[%s8353] sm:$0xff]
  %v8355 = vld [vmem:[%s8353 + $0x8] sm:$0xff]
  %v8356 = vld [vmem:[%s8353 + $0x10] sm:$0xff]
  %v8357 = vld [vmem:[%s8353 + $0x18] sm:$0xff]
  %v8358 = vadd.f32 %v8354, %v7996
  %v8359 = vadd.f32 %v8355, %v8016
  %v8360 = vadd.f32 %v8356, %v8036
  %v8361 = vadd.f32 %v8357, %v8056
  %v8362 = vxor.u32 %v8358, 2147483648
  %v8363 = vxor.u32 %v8359, 2147483648
  %v8364 = vmul.f32 %v8362, 1.442695
  %v8365 = vpow.pop %v8364
  %v8366 = vmul.f32 %v8363, 1.442695
  %v8367 = vpow.pop %v8366
  %v8368 = vadd.f32 %v8365, 1.0
  %v8369 = vadd.f32 %v8367, 1.0
  %v8370 = vrcp.pop %v8368
  %v8371 = vmul.f32 %v8368, %v8370
  %v8372 = vsub.f32 1.0, %v8371
  %v8373 = vmul.f32 %v8370, %v8372
  %v8374 = vadd.f32 %v8370, %v8373
  %vm8375 = vweird.f32 %v8368
  %vm8376 = vweird.f32 %v8370
  %vm8377 = vmor %vm8375, %vm8376
  %v8378 = vsel %vm8377, %v8370, %v8374
  %v8379 = vand.u32 2147483647, %v8368
  %vm8380 = vcmp.eq.f32.partialorder %v8379, 8.507059e+37
  %v8381 = vand.u32 %v8368, 2147483648
  %v8382 = vor.u32 1.1754944e-38, %v8381
  %v8383 = vsel %vm8380, %v8382, %v8378
  %v8384 = vmul.f32 1.0, %v8383
  %v8385 = vrcp.pop %v8369
  %v8386 = vmul.f32 %v8369, %v8385
  %v8387 = vsub.f32 1.0, %v8386
  %v8388 = vmul.f32 %v8385, %v8387
  %v8389 = vadd.f32 %v8385, %v8388
  %vm8390 = vweird.f32 %v8369
  %vm8391 = vweird.f32 %v8385
  %vm8392 = vmor %vm8390, %vm8391
  %v8393 = vsel %vm8392, %v8385, %v8389
  %v8394 = vand.u32 2147483647, %v8369
  %vm8395 = vcmp.eq.f32.partialorder %v8394, 8.507059e+37
  %v8396 = vand.u32 %v8369, 2147483648
  %v8397 = vor.u32 1.1754944e-38, %v8396
  %v8398 = vsel %vm8395, %v8397, %v8393
  %v8399 = vmul.f32 1.0, %v8398
  %v8400 = vtanh.pop %v8360
  %v8401 = vxor.u32 %v8361, 2147483648
  %v8402 = vmul.f32 %v8401, 1.442695
  %v8403 = vpow.pop %v8402
  %v8404 = vadd.f32 %v8403, 1.0
  %v8405 = vrcp.pop %v8404
  %v8406 = vmul.f32 %v8404, %v8405
  %v8407 = vsub.f32 1.0, %v8406
  %v8408 = vmul.f32 %v8405, %v8407
  %v8409 = vadd.f32 %v8405, %v8408
  %vm8410 = vweird.f32 %v8404
  %vm8411 = vweird.f32 %v8405
  %vm8412 = vmor %vm8410, %vm8411
  %v8413 = vsel %vm8412, %v8405, %v8409
  %v8414 = vand.u32 2147483647, %v8404
  %vm8415 = vcmp.eq.f32.partialorder %v8414, 8.507059e+37
  %v8416 = vand.u32 %v8404, 2147483648
  %v8417 = vor.u32 1.1754944e-38, %v8416
  %v8418 = vsel %vm8415, %v8417, %v8413
  %v8419 = vmul.f32 1.0, %v8418
  %v8420 = vmul.f32 %v8399, %v7847
  %v8421 = vmul.f32 %v8384, %v8400
  %v8422 = vadd.f32 %v8420, %v8421
  %v8423 = vtanh.pop %v8422
  %v8424 = vmul.f32 %v8419, %v8423
  %v8425 = vld [vmem:[%s2 + $0x20] sm:$0xff]
  %v8426 = vld [vmem:[%s2 + $0x28] sm:$0xff]
  %v8427 = vld [vmem:[%s2 + $0x30] sm:$0xff]
  %v8428 = vld [vmem:[%s2 + $0x38] sm:$0xff]
  %v8429 = vld [vmem:[%s2 + $0x60] sm:$0xff]
  %v8430 = vld [vmem:[%s2 + $0x68] sm:$0xff]
  %v8431 = vld [vmem:[%s2 + $0x70] sm:$0xff]
  %v8432 = vld [vmem:[%s2 + $0x78] sm:$0xff]
  %v8433 = vld [vmem:[%s2 + $0xa0] sm:$0xff]
  %v8434 = vld [vmem:[%s2 + $0xa8] sm:$0xff]
  %v8435 = vld [vmem:[%s2 + $0xb0] sm:$0xff]
  %v8436 = vld [vmem:[%s2 + $0xb8] sm:$0xff]
  %v8437 = vld [vmem:[%s2 + $0xe0] sm:$0xff]
  %v8438 = vld [vmem:[%s2 + $0xe8] sm:$0xff]
  %v8439 = vld [vmem:[%s2 + $0xf0] sm:$0xff]
  %v8440 = vld [vmem:[%s2 + $0xf8] sm:$0xff]
  %v8441 = vld [vmem:[%s2 + $0x120] sm:$0xff]
  %v8442 = vld [vmem:[%s2 + $0x128] sm:$0xff]
  %v8443 = vld [vmem:[%s2 + $0x130] sm:$0xff]
  %v8444 = vld [vmem:[%s2 + $0x138] sm:$0xff]
  %v8445 = vld [vmem:[%s2 + $0x160] sm:$0xff]
  %v8446 = vld [vmem:[%s2 + $0x168] sm:$0xff]
  %v8447 = vld [vmem:[%s2 + $0x170] sm:$0xff]
  %v8448 = vld [vmem:[%s2 + $0x178] sm:$0xff]
  %v8449 = vld [vmem:[%s2 + $0x1a0] sm:$0xff]
  %v8450 = vld [vmem:[%s2 + $0x1a8] sm:$0xff]
  %v8451 = vld [vmem:[%s2 + $0x1b0] sm:$0xff]
  %v8452 = vld [vmem:[%s2 + $0x1b8] sm:$0xff]
  %v8453 = vld [vmem:[%s2 + $0x1e0] sm:$0xff]
  %v8454 = vld [vmem:[%s2 + $0x1e8] sm:$0xff]
  %v8455 = vld [vmem:[%s2 + $0x1f0] sm:$0xff]
  %v8456 = vld [vmem:[%s2 + $0x1f8] sm:$0xff]
  %v8457 = vld [vmem:[%s2 + $0x220] sm:$0xff]
  %v8458 = vld [vmem:[%s2 + $0x228] sm:$0xff]
  %v8459 = vld [vmem:[%s2 + $0x230] sm:$0xff]
  %v8460 = vld [vmem:[%s2 + $0x238] sm:$0xff]
  %v8461 = vld [vmem:[%s2 + $0x260] sm:$0xff]
  %v8462 = vld [vmem:[%s2 + $0x268] sm:$0xff]
  %v8463 = vld [vmem:[%s2 + $0x270] sm:$0xff]
  %v8464 = vld [vmem:[%s2 + $0x278] sm:$0xff]
  %v8465 = vld [vmem:[%s2 + $0x2a0] sm:$0xff]
  %v8466 = vld [vmem:[%s2 + $0x2a8] sm:$0xff]
  %v8467 = vld [vmem:[%s2 + $0x2b0] sm:$0xff]
  %v8468 = vld [vmem:[%s2 + $0x2b8] sm:$0xff]
  %v8469 = vld [vmem:[%s2 + $0x2e0] sm:$0xff]
  %v8470 = vld [vmem:[%s2 + $0x2e8] sm:$0xff]
  %v8471 = vld [vmem:[%s2 + $0x2f0] sm:$0xff]
  %v8472 = vld [vmem:[%s2 + $0x2f8] sm:$0xff]
  %v8473 = vld [vmem:[%s2 + $0x320] sm:$0xff]
  %v8474 = vld [vmem:[%s2 + $0x328] sm:$0xff]
  %v8475 = vld [vmem:[%s2 + $0x330] sm:$0xff]
  %v8476 = vld [vmem:[%s2 + $0x338] sm:$0xff]
  %v8477 = vld [vmem:[%s2 + $0x360] sm:$0xff]
  %v8478 = vld [vmem:[%s2 + $0x368] sm:$0xff]
  %v8479 = vld [vmem:[%s2 + $0x370] sm:$0xff]
  %v8480 = vld [vmem:[%s2 + $0x378] sm:$0xff]
  %v8481 = vld [vmem:[%s2 + $0x3a0] sm:$0xff]
  %v8482 = vld [vmem:[%s2 + $0x3a8] sm:$0xff]
  %v8483 = vld [vmem:[%s2 + $0x3b0] sm:$0xff]
  %v8484 = vld [vmem:[%s2 + $0x3b8] sm:$0xff]
  %v8485 = vld [vmem:[%s2 + $0x3e0] sm:$0xff]
  %v8486 = vld [vmem:[%s2 + $0x3e8] sm:$0xff]
  %v8487 = vld [vmem:[%s2 + $0x3f0] sm:$0xff]
  %v8488 = vld [vmem:[%s2 + $0x3f8] sm:$0xff]
  %8489 = vmatpush.msra.mxu0 %v8485
  %8490 = vmatpush.msra.mxu0 %v8481
  %8491 = vmatpush.msra.mxu0 %v8477
  %8492 = vmatpush.msra.mxu0 %v8473
  %8493 = vmatpush.msra.mxu0 %v8469
  %8494 = vmatpush.msra.mxu0 %v8465
  %8495 = vmatpush.msra.mxu0 %v8461
  %8496 = vmatpush.msra.mxu0 %v8457
  %8497 = vmatpush.msra.mxu0 %v8453
  %8498 = vmatpush.msra.mxu0 %v8449
  %8499 = vmatpush.msra.mxu0 %v8445
  %8500 = vmatpush.msra.mxu0 %v8441
  %8501 = vmatpush.msra.mxu0 %v8437
  %8502 = vmatpush.msra.mxu0 %v8433
  %8503 = vmatpush.msra.mxu0 %v8429
  %8504 = vmatpush.msra.mxu0 %v8425
  %8505 = vmatmul.f32.gmra.mxu0 %v8424
  %v8506 = vpop.f32.mrf.mxu0
  %v8507 = vadd.f32 0.0, %v8506
  %8508 = vdwg.mxu0
  %8509 = vmatpush.msra.mxu0 %v8486
  %8510 = vmatpush.msra.mxu0 %v8482
  %8511 = vmatpush.msra.mxu0 %v8478
  %8512 = vmatpush.msra.mxu0 %v8474
  %8513 = vmatpush.msra.mxu0 %v8470
  %8514 = vmatpush.msra.mxu0 %v8466
  %8515 = vmatpush.msra.mxu0 %v8462
  %8516 = vmatpush.msra.mxu0 %v8458
  %8517 = vmatpush.msra.mxu0 %v8454
  %8518 = vmatpush.msra.mxu0 %v8450
  %8519 = vmatpush.msra.mxu0 %v8446
  %8520 = vmatpush.msra.mxu0 %v8442
  %8521 = vmatpush.msra.mxu0 %v8438
  %8522 = vmatpush.msra.mxu0 %v8434
  %8523 = vmatpush.msra.mxu0 %v8430
  %8524 = vmatpush.msra.mxu0 %v8426
  %8525 = vmatmul.f32.gmra.mxu0 %v8424
  %v8526 = vpop.f32.mrf.mxu0
  %v8527 = vadd.f32 0.0, %v8526
  %8528 = vdwg.mxu0
  %8529 = vmatpush.msra.mxu0 %v8487
  %8530 = vmatpush.msra.mxu0 %v8483
  %8531 = vmatpush.msra.mxu0 %v8479
  %8532 = vmatpush.msra.mxu0 %v8475
  %8533 = vmatpush.msra.mxu0 %v8471
  %8534 = vmatpush.msra.mxu0 %v8467
  %8535 = vmatpush.msra.mxu0 %v8463
  %8536 = vmatpush.msra.mxu0 %v8459
  %8537 = vmatpush.msra.mxu0 %v8455
  %8538 = vmatpush.msra.mxu0 %v8451
  %8539 = vmatpush.msra.mxu0 %v8447
  %8540 = vmatpush.msra.mxu0 %v8443
  %8541 = vmatpush.msra.mxu0 %v8439
  %8542 = vmatpush.msra.mxu0 %v8435
  %8543 = vmatpush.msra.mxu0 %v8431
  %8544 = vmatpush.msra.mxu0 %v8427
  %8545 = vmatmul.f32.gmra.mxu0 %v8424
  %v8546 = vpop.f32.mrf.mxu0
  %v8547 = vadd.f32 0.0, %v8546
  %8548 = vdwg.mxu0
  %8549 = vmatpush.msra.mxu0 %v8488
  %8550 = vmatpush.msra.mxu0 %v8484
  %8551 = vmatpush.msra.mxu0 %v8480
  %8552 = vmatpush.msra.mxu0 %v8476
  %8553 = vmatpush.msra.mxu0 %v8472
  %8554 = vmatpush.msra.mxu0 %v8468
  %8555 = vmatpush.msra.mxu0 %v8464
  %8556 = vmatpush.msra.mxu0 %v8460
  %8557 = vmatpush.msra.mxu0 %v8456
  %8558 = vmatpush.msra.mxu0 %v8452
  %8559 = vmatpush.msra.mxu0 %v8448
  %8560 = vmatpush.msra.mxu0 %v8444
  %8561 = vmatpush.msra.mxu0 %v8440
  %8562 = vmatpush.msra.mxu0 %v8436
  %8563 = vmatpush.msra.mxu0 %v8432
  %8564 = vmatpush.msra.mxu0 %v8428
  %8565 = vmatmul.f32.gmra.mxu0 %v8424
  %v8566 = vpop.f32.mrf.mxu0
  %v8567 = vadd.f32 0.0, %v8566
  %8568 = vdwg.mxu0
  %v8569 = vadd.f32 %v8289, %v8507
  %v8570 = vadd.f32 %v8309, %v8527
  %v8571 = vadd.f32 %v8329, %v8547
  %v8572 = vadd.f32 %v8349, %v8567
  %v8573 = vxor.u32 %v8569, 2147483648
  %v8574 = vxor.u32 %v8570, 2147483648
  %v8575 = vmul.f32 %v8573, 1.442695
  %v8576 = vpow.pop %v8575
  %v8577 = vmul.f32 %v8574, 1.442695
  %v8578 = vpow.pop %v8577
  %v8579 = vadd.f32 %v8576, 1.0
  %v8580 = vadd.f32 %v8578, 1.0
  %v8581 = vrcp.pop %v8579
  %v8582 = vmul.f32 %v8579, %v8581
  %v8583 = vsub.f32 1.0, %v8582
  %v8584 = vmul.f32 %v8581, %v8583
  %v8585 = vadd.f32 %v8581, %v8584
  %vm8586 = vweird.f32 %v8579
  %vm8587 = vweird.f32 %v8581
  %vm8588 = vmor %vm8586, %vm8587
  %v8589 = vsel %vm8588, %v8581, %v8585
  %v8590 = vand.u32 2147483647, %v8579
  %vm8591 = vcmp.eq.f32.partialorder %v8590, 8.507059e+37
  %v8592 = vand.u32 %v8579, 2147483648
  %v8593 = vor.u32 1.1754944e-38, %v8592
  %v8594 = vsel %vm8591, %v8593, %v8589
  %v8595 = vmul.f32 1.0, %v8594
  %v8596 = vrcp.pop %v8580
  %v8597 = vmul.f32 %v8580, %v8596
  %v8598 = vsub.f32 1.0, %v8597
  %v8599 = vmul.f32 %v8596, %v8598
  %v8600 = vadd.f32 %v8596, %v8599
  %vm8601 = vweird.f32 %v8580
  %vm8602 = vweird.f32 %v8596
  %vm8603 = vmor %vm8601, %vm8602
  %v8604 = vsel %vm8603, %v8596, %v8600
  %v8605 = vand.u32 2147483647, %v8580
  %vm8606 = vcmp.eq.f32.partialorder %v8605, 8.507059e+37
  %v8607 = vand.u32 %v8580, 2147483648
  %v8608 = vor.u32 1.1754944e-38, %v8607
  %v8609 = vsel %vm8606, %v8608, %v8604
  %v8610 = vmul.f32 1.0, %v8609
  %v8611 = vtanh.pop %v8571
  %v8612 = vxor.u32 %v8572, 2147483648
  %v8613 = vmul.f32 %v8612, 1.442695
  %v8614 = vpow.pop %v8613
  %v8615 = vadd.f32 %v8614, 1.0
  %v8616 = vrcp.pop %v8615
  %v8617 = vmul.f32 %v8615, %v8616
  %v8618 = vsub.f32 1.0, %v8617
  %v8619 = vmul.f32 %v8616, %v8618
  %v8620 = vadd.f32 %v8616, %v8619
  %vm8621 = vweird.f32 %v8615
  %vm8622 = vweird.f32 %v8616
  %vm8623 = vmor %vm8621, %vm8622
  %v8624 = vsel %vm8623, %v8616, %v8620
  %v8625 = vand.u32 2147483647, %v8615
  %vm8626 = vcmp.eq.f32.partialorder %v8625, 8.507059e+37
  %v8627 = vand.u32 %v8615, 2147483648
  %v8628 = vor.u32 1.1754944e-38, %v8627
  %v8629 = vsel %vm8626, %v8628, %v8624
  %v8630 = vmul.f32 1.0, %v8629
  %v8631 = vmul.f32 %v8610, %v8202
  %v8632 = vmul.f32 %v8595, %v8611
  %v8633 = vadd.f32 %v8631, %v8632
  %v8634 = vtanh.pop %v8633
  %v8635 = vmul.f32 %v8630, %v8634
  %s8636 = scalar_lea.vmem [#allocation3], 104
  %8637 = vst [vmem:[%s8636] sm:$0xff] %v8635
  %v8638 = vld [vmem:[#allocation3] sm:$0xff]
  %v8639 = vld [vmem:[#allocation3 + $0x8] sm:$0xff]
  %v8640 = vld [vmem:[#allocation3 + $0x10] sm:$0xff]
  %v8641 = vld [vmem:[#allocation3 + $0x18] sm:$0xff]
  %v8642 = vld [vmem:[#allocation3 + $0x20] sm:$0xff]
  %v8643 = vld [vmem:[#allocation3 + $0x28] sm:$0xff]
  %v8644 = vld [vmem:[#allocation3 + $0x30] sm:$0xff]
  %v8645 = vld [vmem:[#allocation3 + $0x38] sm:$0xff]
  %v8646 = vld [vmem:[#allocation3 + $0x40] sm:$0xff]
  %v8647 = vld [vmem:[#allocation3 + $0x48] sm:$0xff]
  %v8648 = vld [vmem:[#allocation3 + $0x50] sm:$0xff]
  %v8649 = vld [vmem:[#allocation3 + $0x58] sm:$0xff]
  %v8650 = vld [vmem:[#allocation3 + $0x60] sm:$0xff]
  %v8651 = vld [vmem:[#allocation3 + $0x68] sm:$0xff]
  %v8652 = vld [vmem:[%s6] sm:$0xff]
  %v8653 = vld [vmem:[%s6 + $0x8] sm:$0xff]
  %v8654 = vld [vmem:[%s6 + $0x10] sm:$0xff]
  %v8655 = vld [vmem:[%s6 + $0x18] sm:$0xff]
  %v8656 = vld [vmem:[%s6 + $0x20] sm:$0xff]
  %v8657 = vld [vmem:[%s6 + $0x28] sm:$0xff]
  %v8658 = vld [vmem:[%s6 + $0x30] sm:$0xff]
  %v8659 = vld [vmem:[%s6 + $0x38] sm:$0xff]
  %v8660 = vld [vmem:[%s6 + $0x40] sm:$0xff]
  %v8661 = vld [vmem:[%s6 + $0x48] sm:$0xff]
  %v8662 = vld [vmem:[%s6 + $0x50] sm:$0xff]
  %v8663 = vld [vmem:[%s6 + $0x58] sm:$0xff]
  %v8664 = vld [vmem:[%s6 + $0x60] sm:$0xff]
  %v8665 = vld [vmem:[%s6 + $0x68] sm:$0xff]
  %v8666 = vld [vmem:[%s6 + $0x70] sm:$0xff]
  %v8667 = vld [vmem:[%s6 + $0x78] sm:$0xff]
  %v8668 = vld [vmem:[%s6 + $0x80] sm:$0xff]
  %v8669 = vld [vmem:[%s6 + $0x88] sm:$0xff]
  %v8670 = vld [vmem:[%s6 + $0x90] sm:$0xff]
  %v8671 = vld [vmem:[%s6 + $0x98] sm:$0xff]
  %v8672 = vld [vmem:[%s6 + $0xa0] sm:$0xff]
  %v8673 = vld [vmem:[%s6 + $0xa8] sm:$0xff]
  %v8674 = vld [vmem:[%s6 + $0xb0] sm:$0xff]
  %v8675 = vld [vmem:[%s6 + $0xb8] sm:$0xff]
  %v8676 = vld [vmem:[%s6 + $0xc0] sm:$0xff]
  %v8677 = vld [vmem:[%s6 + $0xc8] sm:$0xff]
  %v8678 = vld [vmem:[%s6 + $0xd0] sm:$0xff]
  %v8679 = vld [vmem:[%s6 + $0xd8] sm:$0xff]
  %v8680 = vld [vmem:[%s6 + $0xe0] sm:$0xff]
  %v8681 = vld [vmem:[%s6 + $0xe8] sm:$0xff]
  %v8682 = vld [vmem:[%s6 + $0xf0] sm:$0xff]
  %v8683 = vld [vmem:[%s6 + $0xf8] sm:$0xff]
  %v8684 = vld [vmem:[%s6 + $0x100] sm:$0xff]
  %v8685 = vld [vmem:[%s6 + $0x108] sm:$0xff]
  %v8686 = vld [vmem:[%s6 + $0x110] sm:$0xff]
  %v8687 = vld [vmem:[%s6 + $0x118] sm:$0xff]
  %v8688 = vld [vmem:[%s6 + $0x120] sm:$0xff]
  %v8689 = vld [vmem:[%s6 + $0x128] sm:$0xff]
  %v8690 = vld [vmem:[%s6 + $0x130] sm:$0xff]
  %v8691 = vld [vmem:[%s6 + $0x138] sm:$0xff]
  %v8692 = vld [vmem:[%s6 + $0x140] sm:$0xff]
  %v8693 = vld [vmem:[%s6 + $0x148] sm:$0xff]
  %v8694 = vld [vmem:[%s6 + $0x150] sm:$0xff]
  %v8695 = vld [vmem:[%s6 + $0x158] sm:$0xff]
  %v8696 = vld [vmem:[%s6 + $0x160] sm:$0xff]
  %v8697 = vld [vmem:[%s6 + $0x168] sm:$0xff]
  %v8698 = vld [vmem:[%s6 + $0x170] sm:$0xff]
  %v8699 = vld [vmem:[%s6 + $0x178] sm:$0xff]
  %v8700 = vld [vmem:[%s7] sm:$0x7]
  %v8702 = vperm.slane %v8700, 0
  %v8703 = vperm.slane %v8700, 1
  %v8704 = vperm.slane %v8700, 2
  %8708 = vmatpush.msra.mxu0 %v8697
  %8709 = vmatpush.msra.mxu0 %v8694
  %8710 = vmatpush.msra.mxu0 %v8691
  %8711 = vmatpush.msra.mxu0 %v8688
  %8712 = vmatpush.msra.mxu0 %v8685
  %8713 = vmatpush.msra.mxu0 %v8682
  %8714 = vmatpush.msra.mxu0 %v8679
  %8715 = vmatpush.msra.mxu0 %v8676
  %8716 = vmatpush.msra.mxu0 %v8673
  %8717 = vmatpush.msra.mxu0 %v8670
  %8718 = vmatpush.msra.mxu0 %v8667
  %8719 = vmatpush.msra.mxu0 %v8664
  %8720 = vmatpush.msra.mxu0 %v8661
  %8721 = vmatpush.msra.mxu0 %v8658
  %8722 = vmatpush.msra.mxu0 %v8655
  %8723 = vmatpush.msra.mxu0 %v8652
  %8724 = vmatmul.f32.gmra.mxu0 %v8638
  %v8725 = vpop.f32.mrf.mxu0
  %v8726 = vadd.f32 %v8702, %v8725
  %8727 = vmatmul.f32.gmra.mxu0 %v8639
  %v8728 = vpop.f32.mrf.mxu0
  %v8729 = vadd.f32 %v8702, %v8728
  %8730 = vmatmul.f32.gmra.mxu0 %v8640
  %v8731 = vpop.f32.mrf.mxu0
  %v8732 = vadd.f32 %v8702, %v8731
  %8733 = vmatmul.f32.gmra.mxu0 %v8641
  %v8734 = vpop.f32.mrf.mxu0
  %v8735 = vadd.f32 %v8702, %v8734
  %8736 = vmatmul.f32.gmra.mxu0 %v8642
  %v8737 = vpop.f32.mrf.mxu0
  %v8738 = vadd.f32 %v8702, %v8737
  %8739 = vmatmul.f32.gmra.mxu0 %v8643
  %v8740 = vpop.f32.mrf.mxu0
  %v8741 = vadd.f32 %v8702, %v8740
  %8742 = vmatmul.f32.gmra.mxu0 %v8644
  %v8743 = vpop.f32.mrf.mxu0
  %v8744 = vadd.f32 %v8702, %v8743
  %8745 = vmatmul.f32.gmra.mxu0 %v8645
  %v8746 = vpop.f32.mrf.mxu0
  %v8747 = vadd.f32 %v8702, %v8746
  %8748 = vmatmul.f32.gmra.mxu0 %v8646
  %v8749 = vpop.f32.mrf.mxu0
  %v8750 = vadd.f32 %v8702, %v8749
  %8751 = vmatmul.f32.gmra.mxu0 %v8647
  %v8752 = vpop.f32.mrf.mxu0
  %v8753 = vadd.f32 %v8702, %v8752
  %8754 = vmatmul.f32.gmra.mxu0 %v8648
  %v8755 = vpop.f32.mrf.mxu0
  %v8756 = vadd.f32 %v8702, %v8755
  %8757 = vmatmul.f32.gmra.mxu0 %v8649
  %v8758 = vpop.f32.mrf.mxu0
  %v8759 = vadd.f32 %v8702, %v8758
  %8760 = vmatmul.f32.gmra.mxu0 %v8650
  %v8761 = vpop.f32.mrf.mxu0
  %v8762 = vadd.f32 %v8702, %v8761
  %8763 = vmatmul.f32.gmra.mxu0 %v8651
  %v8764 = vpop.f32.mrf.mxu0
  %v8765 = vadd.f32 %v8702, %v8764
  %8766 = vdwg.mxu0
  %8767 = vmatpush.msra.mxu0 %v8698
  %8768 = vmatpush.msra.mxu0 %v8695
  %8769 = vmatpush.msra.mxu0 %v8692
  %8770 = vmatpush.msra.mxu0 %v8689
  %8771 = vmatpush.msra.mxu0 %v8686
  %8772 = vmatpush.msra.mxu0 %v8683
  %8773 = vmatpush.msra.mxu0 %v8680
  %8774 = vmatpush.msra.mxu0 %v8677
  %8775 = vmatpush.msra.mxu0 %v8674
  %8776 = vmatpush.msra.mxu0 %v8671
  %8777 = vmatpush.msra.mxu0 %v8668
  %8778 = vmatpush.msra.mxu0 %v8665
  %8779 = vmatpush.msra.mxu0 %v8662
  %8780 = vmatpush.msra.mxu0 %v8659
  %8781 = vmatpush.msra.mxu0 %v8656
  %8782 = vmatpush.msra.mxu0 %v8653
  %8783 = vmatmul.f32.gmra.mxu0 %v8638
  %v8784 = vpop.f32.mrf.mxu0
  %v8785 = vadd.f32 %v8703, %v8784
  %8786 = vmatmul.f32.gmra.mxu0 %v8639
  %v8787 = vpop.f32.mrf.mxu0
  %v8788 = vadd.f32 %v8703, %v8787
  %8789 = vmatmul.f32.gmra.mxu0 %v8640
  %v8790 = vpop.f32.mrf.mxu0
  %v8791 = vadd.f32 %v8703, %v8790
  %8792 = vmatmul.f32.gmra.mxu0 %v8641
  %v8793 = vpop.f32.mrf.mxu0
  %v8794 = vadd.f32 %v8703, %v8793
  %8795 = vmatmul.f32.gmra.mxu0 %v8642
  %v8796 = vpop.f32.mrf.mxu0
  %v8797 = vadd.f32 %v8703, %v8796
  %8798 = vmatmul.f32.gmra.mxu0 %v8643
  %v8799 = vpop.f32.mrf.mxu0
  %v8800 = vadd.f32 %v8703, %v8799
  %8801 = vmatmul.f32.gmra.mxu0 %v8644
  %v8802 = vpop.f32.mrf.mxu0
  %v8803 = vadd.f32 %v8703, %v8802
  %8804 = vmatmul.f32.gmra.mxu0 %v8645
  %v8805 = vpop.f32.mrf.mxu0
  %v8806 = vadd.f32 %v8703, %v8805
  %8807 = vmatmul.f32.gmra.mxu0 %v8646
  %v8808 = vpop.f32.mrf.mxu0
  %v8809 = vadd.f32 %v8703, %v8808
  %8810 = vmatmul.f32.gmra.mxu0 %v8647
  %v8811 = vpop.f32.mrf.mxu0
  %v8812 = vadd.f32 %v8703, %v8811
  %8813 = vmatmul.f32.gmra.mxu0 %v8648
  %v8814 = vpop.f32.mrf.mxu0
  %v8815 = vadd.f32 %v8703, %v8814
  %8816 = vmatmul.f32.gmra.mxu0 %v8649
  %v8817 = vpop.f32.mrf.mxu0
  %v8818 = vadd.f32 %v8703, %v8817
  %8819 = vmatmul.f32.gmra.mxu0 %v8650
  %v8820 = vpop.f32.mrf.mxu0
  %v8821 = vadd.f32 %v8703, %v8820
  %8822 = vmatmul.f32.gmra.mxu0 %v8651
  %v8823 = vpop.f32.mrf.mxu0
  %v8824 = vadd.f32 %v8703, %v8823
  %8825 = vdwg.mxu0
  %8826 = vmatpush.msra.mxu0 %v8699
  %8827 = vmatpush.msra.mxu0 %v8696
  %8828 = vmatpush.msra.mxu0 %v8693
  %8829 = vmatpush.msra.mxu0 %v8690
  %8830 = vmatpush.msra.mxu0 %v8687
  %8831 = vmatpush.msra.mxu0 %v8684
  %8832 = vmatpush.msra.mxu0 %v8681
  %8833 = vmatpush.msra.mxu0 %v8678
  %8834 = vmatpush.msra.mxu0 %v8675
  %8835 = vmatpush.msra.mxu0 %v8672
  %8836 = vmatpush.msra.mxu0 %v8669
  %8837 = vmatpush.msra.mxu0 %v8666
  %8838 = vmatpush.msra.mxu0 %v8663
  %8839 = vmatpush.msra.mxu0 %v8660
  %8840 = vmatpush.msra.mxu0 %v8657
  %8841 = vmatpush.msra.mxu0 %v8654
  %8842 = vmatmul.f32.gmra.mxu0 %v8638
  %v8843 = vpop.f32.mrf.mxu0
  %v8844 = vadd.f32 %v8704, %v8843
  %8845 = vmatmul.f32.gmra.mxu0 %v8639
  %v8846 = vpop.f32.mrf.mxu0
  %v8847 = vadd.f32 %v8704, %v8846
  %8848 = vmatmul.f32.gmra.mxu0 %v8640
  %v8849 = vpop.f32.mrf.mxu0
  %v8850 = vadd.f32 %v8704, %v8849
  %8851 = vmatmul.f32.gmra.mxu0 %v8641
  %v8852 = vpop.f32.mrf.mxu0
  %v8853 = vadd.f32 %v8704, %v8852
  %8854 = vmatmul.f32.gmra.mxu0 %v8642
  %v8855 = vpop.f32.mrf.mxu0
  %v8856 = vadd.f32 %v8704, %v8855
  %8857 = vmatmul.f32.gmra.mxu0 %v8643
  %v8858 = vpop.f32.mrf.mxu0
  %v8859 = vadd.f32 %v8704, %v8858
  %8860 = vmatmul.f32.gmra.mxu0 %v8644
  %v8861 = vpop.f32.mrf.mxu0
  %v8862 = vadd.f32 %v8704, %v8861
  %8863 = vmatmul.f32.gmra.mxu0 %v8645
  %v8864 = vpop.f32.mrf.mxu0
  %v8865 = vadd.f32 %v8704, %v8864
  %8866 = vmatmul.f32.gmra.mxu0 %v8646
  %v8867 = vpop.f32.mrf.mxu0
  %v8868 = vadd.f32 %v8704, %v8867
  %8869 = vmatmul.f32.gmra.mxu0 %v8647
  %v8870 = vpop.f32.mrf.mxu0
  %v8871 = vadd.f32 %v8704, %v8870
  %8872 = vmatmul.f32.gmra.mxu0 %v8648
  %v8873 = vpop.f32.mrf.mxu0
  %v8874 = vadd.f32 %v8704, %v8873
  %8875 = vmatmul.f32.gmra.mxu0 %v8649
  %v8876 = vpop.f32.mrf.mxu0
  %v8877 = vadd.f32 %v8704, %v8876
  %8878 = vmatmul.f32.gmra.mxu0 %v8650
  %v8879 = vpop.f32.mrf.mxu0
  %v8880 = vadd.f32 %v8704, %v8879
  %8881 = vmatmul.f32.gmra.mxu0 %v8651
  %v8882 = vpop.f32.mrf.mxu0
  %v8883 = vadd.f32 %v8704, %v8882
  %8884 = vdwg.mxu0
  %8885 = vst [vmem:[%s8] sm:$0xff] %v8726
  %8886 = vst [vmem:[%s8 + $0x8] sm:$0xff] %v8785
  %8887 = vst [vmem:[%s8 + $0x10] sm:$0xff] %v8844
  %8888 = vst [vmem:[%s8 + $0x18] sm:$0xff] %v8729
  %8889 = vst [vmem:[%s8 + $0x20] sm:$0xff] %v8788
  %8890 = vst [vmem:[%s8 + $0x28] sm:$0xff] %v8847
  %8891 = vst [vmem:[%s8 + $0x30] sm:$0xff] %v8732
  %8892 = vst [vmem:[%s8 + $0x38] sm:$0xff] %v8791
  %8893 = vst [vmem:[%s8 + $0x40] sm:$0xff] %v8850
  %8894 = vst [vmem:[%s8 + $0x48] sm:$0xff] %v8735
  %8895 = vst [vmem:[%s8 + $0x50] sm:$0xff] %v8794
  %8896 = vst [vmem:[%s8 + $0x58] sm:$0xff] %v8853
  %8897 = vst [vmem:[%s8 + $0x60] sm:$0xff] %v8738
  %8898 = vst [vmem:[%s8 + $0x68] sm:$0xff] %v8797
  %8899 = vst [vmem:[%s8 + $0x70] sm:$0xff] %v8856
  %8900 = vst [vmem:[%s8 + $0x78] sm:$0xff] %v8741
  %8901 = vst [vmem:[%s8 + $0x80] sm:$0xff] %v8800
  %8902 = vst [vmem:[%s8 + $0x88] sm:$0xff] %v8859
  %8903 = vst [vmem:[%s8 + $0x90] sm:$0xff] %v8744
  %8904 = vst [vmem:[%s8 + $0x98] sm:$0xff] %v8803
  %8905 = vst [vmem:[%s8 + $0xa0] sm:$0xff] %v8862
  %8906 = vst [vmem:[%s8 + $0xa8] sm:$0xff] %v8747
  %8907 = vst [vmem:[%s8 + $0xb0] sm:$0xff] %v8806
  %8908 = vst [vmem:[%s8 + $0xb8] sm:$0xff] %v8865
  %8909 = vst [vmem:[%s8 + $0xc0] sm:$0xff] %v8750
  %8910 = vst [vmem:[%s8 + $0xc8] sm:$0xff] %v8809
  %8911 = vst [vmem:[%s8 + $0xd0] sm:$0xff] %v8868
  %8912 = vst [vmem:[%s8 + $0xd8] sm:$0xff] %v8753
  %8913 = vst [vmem:[%s8 + $0xe0] sm:$0xff] %v8812
  %8914 = vst [vmem:[%s8 + $0xe8] sm:$0xff] %v8871
  %8915 = vst [vmem:[%s8 + $0xf0] sm:$0xff] %v8756
  %8916 = vst [vmem:[%s8 + $0xf8] sm:$0xff] %v8815
  %8917 = vst [vmem:[%s8 + $0x100] sm:$0xff] %v8874
  %8918 = vst [vmem:[%s8 + $0x108] sm:$0xff] %v8759
  %8919 = vst [vmem:[%s8 + $0x110] sm:$0xff] %v8818
  %8920 = vst [vmem:[%s8 + $0x118] sm:$0xff] %v8877
  %8921 = vst [vmem:[%s8 + $0x120] sm:$0xff] %v8762
  %8922 = vst [vmem:[%s8 + $0x128] sm:$0xff] %v8821
  %8923 = vst [vmem:[%s8 + $0x130] sm:$0xff] %v8880
  %8924 = vst [vmem:[%s8 + $0x138] sm:$0xff] %v8765
  %8925 = vst [vmem:[%s8 + $0x140] sm:$0xff] %v8824
  %8926 = vst [vmem:[%s8 + $0x148] sm:$0xff] %v8883
  // Predicated region
  $region34: #{lstm_model_forward.1} parent=0 // pred_check
    _
  $region35: #{lstm_model_forward.1} parent=0 // pred_check_branch
    %8928 = sbr.rel (0) target = $region37
  $region36: #{lstm_model_forward.1} parent=0 // pred_region
    _
  $region37: #{lstm_model_forward.1} parent=0 // pred_fallthru
    _
  // Predicated region
  $region38: #{lstm_model_forward.1} parent=0 // pred_check
    _
  $region39: #{lstm_model_forward.1} parent=0 // pred_check_branch
    %8930 = sbr.rel (0) target = $region41
  $region40: #{lstm_model_forward.1} parent=0 // pred_region
    _
  $region41: #{lstm_model_forward.1} parent=0 // pred_fallthru
    _

</llo_original>
